<compile_context>
chip_gen: v7x
topology: tpu7x:2x2x1
jax: 0.10.0
libtpu: 0.0.40
codegen_flags: <defaults>
</compile_context>

<pallas_src>
import functools

import jax
import jax.numpy as jnp
from jax.experimental import pallas as pl
from jax.experimental.pallas import tpu as pltpu


# ----------------------------- conv Pallas kernel ---------------------------

def _conv_mm_kernel(a_ref, w_ref, b_ref, s_ref, sh_ref, o_ref):
    y = jnp.dot(a_ref[...], w_ref[...], preferred_element_type=jnp.float32)
    y = jnp.maximum(y + b_ref[...], 0.0)            # conv bias + ReLU
    o_ref[...] = (y * s_ref[...] + sh_ref[...]).astype(o_ref.dtype)  # folded BN


def _plan_conv_tiles(M, K, Cout, cap_rows=2048, budget_bytes=20 << 20):
    """M-tile (multiple of 8) byte-budgeted for double-buffered bf16 a/out
    tiles + weights, plus padded M covered by the grid and an optional
    vmem_limit_bytes when the working set exceeds the conservative default."""
    per_row = 2 * 2 * (K + Cout)               # bf16 a-row + out-row, x2 buffers
    fixed = 2 * 2 * K * Cout + 3 * 4 * Cout    # bf16 weights x2 + f32 bias/scale/shift
    tm = min(cap_rows, max(8, (budget_bytes - fixed) // per_row))
    tm = max(8, (tm // 8) * 8)
    if M <= tm:
        tm = ((M + 7) // 8) * 8
        return tm, tm, None
    m_pad = ((M + tm - 1) // tm) * tm
    work = fixed + per_row * tm
    vmem_limit = min(2 * work, 48 << 20) if work > (12 << 20) else None
    return tm, m_pad, vmem_limit


def conv3x3_relu_bn(x, w_hwio, bias, bn_scale, bn_shift):
    """3x3 'same' conv (padding=1) -> ReLU -> BatchNorm(eval).  x is NHWC.

    Output is stored in bf16 (all consumers immediately re-cast to bf16)."""
    B, Hh, W, Cin = x.shape
    Cout = w_hwio.shape[-1]
    xp = jnp.pad(x, ((0, 0), (1, 1), (1, 1), (0, 0)))
    patches = [xp[:, dy:dy + Hh, dx:dx + W, :]
               for dy in range(3) for dx in range(3)]
    # im2col (wrapper glue); bf16 halves the HBM traffic of this buffer.
    a = jnp.stack(patches, axis=3).reshape(B * Hh * W, 9 * Cin)
    a = a.astype(jnp.bfloat16)
    wm = w_hwio.reshape(9 * Cin, Cout).astype(jnp.bfloat16)
    M, K = a.shape
    tm, m_pad, vmem_limit = _plan_conv_tiles(M, K, Cout)
    if m_pad != M:
        a = jnp.pad(a, ((0, m_pad - M), (0, 0)))
    cp = dict(dimension_semantics=("parallel",))
    if vmem_limit is not None:
        cp["vmem_limit_bytes"] = int(vmem_limit)
    out = pl.pallas_call(
        _conv_mm_kernel,
        out_shape=jax.ShapeDtypeStruct((m_pad, Cout), jnp.bfloat16),
        grid=(m_pad // tm,),
        in_specs=[pl.BlockSpec((tm, K), lambda i: (i, 0)),
                  pl.BlockSpec((K, Cout), lambda i: (0, 0)),
                  pl.BlockSpec((1, Cout), lambda i: (0, 0)),
                  pl.BlockSpec((1, Cout), lambda i: (0, 0)),
                  pl.BlockSpec((1, Cout), lambda i: (0, 0))],
        out_specs=pl.BlockSpec((tm, Cout), lambda i: (i, 0)),
        compiler_params=pltpu.CompilerParams(**cp),
    )(a, wm, bias.reshape(1, Cout).astype(jnp.float32),
      bn_scale.reshape(1, Cout).astype(jnp.float32),
      bn_shift.reshape(1, Cout).astype(jnp.float32))
    return out[:M].reshape(B, Hh, W, Cout)


# --------------------------- BiLSTM Pallas kernel ----------------------------

def _bilstm_core(x_ref, wih_ref, b_ref, whh_ref, hbuf, *, H, L, B):
    """Fused input projection + bidirectional recurrence.

    x_ref:   (L*B, K)  time-major inputs (row = t*B + b), bf16.
    wih_ref: (K, 8H)   fused fwd/rev input weights; per-gate columns laid out
                       [fwd H | rev H] for gates i, f, g, o.
    b_ref:   (1, 8H)   fused biases (b_ih + b_hh), same column layout.
    whh_ref: (2H, 8H)  per-gate block-diagonal recurrent weights, bf16.
    hbuf:    (L, B, 2H) VMEM scratch; hbuf[s] = [h_fwd(s) | h_rev(L-1-s)].
    """
    twoH = 2 * H
    # One big input-projection matmul; gate pre-activations stay in VMEM.
    gates = jnp.dot(x_ref[...], wih_ref[...],
                    preferred_element_type=jnp.float32) + b_ref[...]
    whh = whh_ref[...]                            # RHS stationary across the loop
    lane = jax.lax.broadcasted_iota(jnp.int32, (B, 8 * H), 1)
    fwd_mask = (lane % twoH) < H                  # fwd half of each gate's 2H block
    h = jnp.zeros((B, twoH), jnp.float32)
    c = jnp.zeros((B, twoH), jnp.float32)
    for s in range(L):                            # fully unrolled (small static L)
        g_f = gates[s * B:(s + 1) * B]            # input gates @ time s (fwd dir)
        g_r = gates[(L - 1 - s) * B:(L - s) * B]  # input gates @ time L-1-s (rev dir)
        g_in = jnp.where(fwd_mask, g_f, g_r)
        pre = g_in + jnp.dot(h.astype(jnp.bfloat16), whh,
                             preferred_element_type=jnp.float32)
        i = jax.nn.sigmoid(pre[:, 0 * twoH:1 * twoH])     # PyTorch gate order
        f = jax.nn.sigmoid(pre[:, 1 * twoH:2 * twoH])
        g = jnp.tanh(pre[:, 2 * twoH:3 * twoH])
        o = jax.nn.sigmoid(pre[:, 3 * twoH:4 * twoH])
        c = f * c + i * g
        h = o * jnp.tanh(c)
        hbuf[s] = h                               # one 2H-wide store per step


def _bilstm_kernel(x_ref, wih_ref, b_ref, whh_ref, o_ref, hbuf, *, H, L, B):
    _bilstm_core(x_ref, wih_ref, b_ref, whh_ref, hbuf, H=H, L=L, B=B)
    for t in range(L):                            # time-align fwd / rev halves
        o_ref[t] = jnp.concatenate(
            [hbuf[t, :, 0:H], hbuf[L - 1 - t, :, H:2 * H]], axis=-1)


def _bilstm_ln_kernel(x_ref, wih_ref, b_ref, whh_ref, ln_g_ref, ln_b_ref,
                      o_ref, hbuf, *, H, L, B):
    _bilstm_core(x_ref, wih_ref, b_ref, whh_ref, hbuf, H=H, L=L, B=B)
    g = ln_g_ref[...]
    bta = ln_b_ref[...]
    for t in range(L):                            # interleave + fused LayerNorm
        y = jnp.concatenate(
            [hbuf[t, :, 0:H], hbuf[L - 1 - t, :, H:2 * H]], axis=-1)
        mu = jnp.mean(y, axis=-1, keepdims=True)
        yc = y - mu
        var = jnp.mean(yc * yc, axis=-1, keepdims=True)
        o_ref[t] = yc * jax.lax.rsqrt(var + 1e-5) * g + bta


def bilstm_recurrence(x2, wih, b, whh, *, H, L, B, ln=None):
    """Single-kernel fused BiLSTM (input projection + recurrence [+ LayerNorm])."""
    K = x2.shape[1]
    twoH, eightH = 2 * H, 8 * H
    in_specs = [pl.BlockSpec((L * B, K), lambda i: (0, 0)),
                pl.BlockSpec((K, eightH), lambda i: (0, 0)),
                pl.BlockSpec((1, eightH), lambda i: (0, 0)),
                pl.BlockSpec((twoH, eightH), lambda i: (0, 0))]
    args = [x2, wih, b.reshape(1, eightH), whh]
    if ln is None:
        kern = functools.partial(_bilstm_kernel, H=H, L=L, B=B)
    else:
        ln_g, ln_b = ln
        kern = functools.partial(_bilstm_ln_kernel, H=H, L=L, B=B)
        in_specs += [pl.BlockSpec((1, twoH), lambda i: (0, 0)),
                     pl.BlockSpec((1, twoH), lambda i: (0, 0))]
        args += [ln_g.reshape(1, twoH).astype(jnp.float32),
                 ln_b.reshape(1, twoH).astype(jnp.float32)]
    return pl.pallas_call(
        kern,
        out_shape=jax.ShapeDtypeStruct((L, B, twoH), jnp.float32),
        grid=(1,),
        in_specs=in_specs,
        out_specs=pl.BlockSpec((L, B, twoH), lambda i: (0, 0, 0)),
        scratch_shapes=[pltpu.VMEM((L, B, twoH), jnp.float32)],
        compiler_params=pltpu.CompilerParams(
            dimension_semantics=("arbitrary",)),
    )(*args)


# ------------------------- shared forward structure --------------------------

def _pack_bilstm_weights(lp, H):
    """Pack fwd/rev W_ih columns per gate ([fwd H | rev H] x {i,f,g,o}) and
    build a per-gate block-diagonal (2H, 8H) recurrent weight."""
    wf, wr = lp['w_ih_f_t'], lp['w_ih_r_t']               # (K, 4H)
    hf, hr = lp['w_hh_f_t'], lp['w_hh_r_t']               # (H, 4H)
    cols, bcols, blocks = [], [], []
    z = jnp.zeros((H, H), jnp.float32)
    for k in range(4):
        cols += [wf[:, k * H:(k + 1) * H], wr[:, k * H:(k + 1) * H]]
        bcols += [lp['b_f'][k * H:(k + 1) * H], lp['b_r'][k * H:(k + 1) * H]]
        bf = hf[:, k * H:(k + 1) * H]
        br = hr[:, k * H:(k + 1) * H]
        blocks.append(jnp.concatenate(
            [jnp.concatenate([bf, z], axis=1),
             jnp.concatenate([z, br], axis=1)], axis=0))   # (2H, 2H)
    w_ih = jnp.concatenate(cols, axis=1).astype(jnp.bfloat16)   # (K, 8H)
    bias = jnp.concatenate(bcols, axis=0).astype(jnp.float32)   # (8H,)
    whh = jnp.concatenate(blocks, axis=1).astype(jnp.bfloat16)  # (2H, 8H)
    return w_ih, bias, whh


def bilstm_forward(feat_tm, lp, H, ln=None):
    """feat_tm: (L, B, K) time-major -> (L, B, 2H) BiLSTM output (optionally LN)."""
    L, B, K = feat_tm.shape
    wih, bias, whh = _pack_bilstm_weights(lp, H)
    x2 = feat_tm.reshape(L * B, K).astype(jnp.bfloat16)
    return bilstm_recurrence(x2, wih, bias, whh, H=H, L=L, B=B, ln=ln)


def conv_stack_forward(x, p):
    h = conv3x3_relu_bn(x, p['conv1']['w'], p['conv1']['b'],
                        p['conv1']['bn_scale'], p['conv1']['bn_shift'])
    for blk in p['blocks']:
        h = conv3x3_relu_bn(h, blk['w'], blk['b'], blk['bn_scale'],
                            blk['bn_shift'])
    return h


def _conv_features_time_major(x, p, L):
    """NHWC conv stack -> (L, B, C*W) time-major LSTM features (bf16)."""
    B = x.shape[0]
    h = conv_stack_forward(x[:, :, :, None], p)            # (B, L, W, C)
    # torch: (B,C,L,W).permute(0,2,1,3).reshape(B,L,C*W); time-major variant.
    return jnp.transpose(h, (1, 0, 3, 2)).reshape(L, B, -1)


def is_forward(x, p, H, L):
    B = x.shape[0]
    feat = _conv_features_time_major(x, p, L)
    out = bilstm_forward(feat, p['lstm'], H)                # (L, B, 2H) f32
    # bn2 (eval-mode per-time affine) + linear2: tiny tails, left to XLA.
    out = out * p['bn2_scale'][:, None, None] + p['bn2_shift'][:, None, None]
    ori = out.reshape(L * B, 2 * H) @ p['lin2_w_t'] + p['lin2_b']
    return jnp.transpose(ori.reshape(L, B, -1), (1, 0, 2))  # (B, L, 6*sensor)


def convlstm_forward(x, p, H, L, label_len):
    feat = _conv_features_time_major(x, p, L)
    out = bilstm_forward(feat, p['lstm'], H, ln=(p['ln_g'], p['ln_b']))
    # linear3 over the time axis (L -> label_len): tiny tail, left to XLA.
    xp = jnp.transpose(out, (1, 2, 0))                      # (B, 2H, L)
    y = xp @ p['lin3_w_t'] + p['lin3_b']                    # (B, 2H, label)
    return jnp.transpose(y, (0, 2, 1))                      # (B, label, 2H)


def deepconvlstm_forward(x, params, H, L, label_len):
    ori = is_forward(x, params['is'], H, L)                 # (B, L, 6*sensor)
    cat = jnp.concatenate([x, ori], axis=2)
    out = convlstm_forward(cat, params['convlstm'], H, L, label_len)
    ja = out @ params['lin1_w_t'] + params['lin1_b']        # tiny linear1
    return ja, ori


# ----------------------------- pure-JAX reference ----------------------------
# (independent formulation — uses lax.conv / lax.scan and the raw per-direction
#  LSTM weights, so it validates both the Pallas kernels and the weight packing;
#  conv intermediates are stored in bf16 and MXU operands cast to bf16 the same
#  way for a tight tolerance)

def _ref_conv(x, w, b, s, sh):
    y = jax.lax.conv_general_dilated(
        x.astype(jnp.bfloat16), w.astype(jnp.bfloat16), (1, 1),
        ((1, 1), (1, 1)), dimension_numbers=('NHWC', 'HWIO', 'NHWC'),
        preferred_element_type=jnp.float32)
    return (jnp.maximum(y + b, 0.0) * s + sh).astype(jnp.bfloat16)


def _ref_conv_stack(x, p):
    h = _ref_conv(x, p['conv1']['w'], p['conv1']['b'],
                  p['conv1']['bn_scale'], p['conv1']['bn_shift'])
    for blk in p['blocks']:
        h = _ref_conv(h, blk['w'], blk['b'], blk['bn_scale'], blk['bn_shift'])
    return h


def _ref_bilstm(x, lp, H, apply_ln=False, ln_g=None, ln_b=None):
    B, L, K = x.shape

    def run_dir(w_ih_t, w_hh_t, bias, xs):
        g_in = (jnp.dot(xs.reshape(B * L, K).astype(jnp.bfloat16),
                        w_ih_t.astype(jnp.bfloat16),
                        preferred_element_type=jnp.float32) + bias)
        g_in = jnp.transpose(g_in.reshape(B, L, 4 * H), (1, 0, 2))
        w_hh16 = w_hh_t.astype(jnp.bfloat16)

        def step(carry, g_t):
            h, c = carry
            g = g_t + jnp.dot(h.astype(jnp.bfloat16), w_hh16,
                              preferred_element_type=jnp.float32)
            i = jax.nn.sigmoid(g[:, :H])
            f = jax.nn.sigmoid(g[:, H:2 * H])
            gg = jnp.tanh(g[:, 2 * H:3 * H])
            o = jax.nn.sigmoid(g[:, 3 * H:])
            c = f * c + i * gg
            h = o * jnp.tanh(c)
            return (h, c), h

        init = (jnp.zeros((B, H), jnp.float32), jnp.zeros((B, H), jnp.float32))
        _, hs = jax.lax.scan(step, init, g_in)
        return jnp.transpose(hs, (1, 0, 2))

    hf = run_dir(lp['w_ih_f_t'], lp['w_hh_f_t'], lp['b_f'], x)
    hr = run_dir(lp['w_ih_r_t'], lp['w_hh_r_t'], lp['b_r'], x[:, ::-1])[:, ::-1]
    out = jnp.concatenate([hf, hr], axis=-1)
    if apply_ln:
        mu = out.mean(-1, keepdims=True)
        xc = out - mu
        var = (xc * xc).mean(-1, keepdims=True)
        out = xc * jax.lax.rsqrt(var + 1e-5) * ln_g + ln_b
    return out


def deepconvlstm_reference(x, params, H, L, label_len):
    B = x.shape[0]
    pi = params['is']
    h = _ref_conv_stack(x[:, :, :, None], pi)
    feat = jnp.transpose(h, (0, 1, 3, 2)).reshape(B, L, -1)
    out = _ref_bilstm(feat, pi['lstm'], H)
    out = out * pi['bn2_scale'][None, :, None] + pi['bn2_shift'][None, :, None]
    ori = (out.reshape(B * L, 2 * H) @ pi['lin2_w_t'] + pi['lin2_b']
           ).reshape(B, L, -1)

    cat = jnp.concatenate([x, ori], axis=2)
    pc = params['convlstm']
    h2 = _ref_conv_stack(cat[:, :, :, None], pc)
    feat2 = jnp.transpose(h2, (0, 1, 3, 2)).reshape(B, L, -1)
    out2 = _ref_bilstm(feat2, pc['lstm'], H, apply_ln=True,
                       ln_g=pc['ln_g'], ln_b=pc['ln_b'])
    y = jnp.transpose(jnp.transpose(out2, (0, 2, 1)) @ pc['lin3_w_t']
                      + pc['lin3_b'], (0, 2, 1))
    ja = y @ params['lin1_w_t'] + params['lin1_b']
    return ja, ori


# ------------------------------- parameters ----------------------------------

def make_params(key, L, H, label_len, sensor_num=2, width=12, C=64):
    keys = iter(jax.random.split(key, 256))

    def nrm(shape, s=0.1):
        return (s * jax.random.normal(next(keys), shape)).astype(jnp.float32)

    def bn_fold(c):
        gamma = 1.0 + nrm((c,))
        beta = nrm((c,))
        mean = jnp.zeros((c,), jnp.float32)       # running stats of fresh BN
        var = jnp.ones((c,), jnp.float32)
        scale = gamma * jax.lax.rsqrt(var + 1e-5)
        return scale, beta - mean * scale

    def conv_block(cin):
        s, sh = bn_fold(C)
        return dict(w=nrm((3, 3, cin, C)), b=nrm((C,)), bn_scale=s, bn_shift=sh)

    def lstm_params(inp):
        d = {}
        for suf in ('f', 'r'):
            d[f'w_ih_{suf}_t'] = nrm((4 * H, inp)).T
            d[f'w_hh_{suf}_t'] = nrm((4 * H, H)).T
            d[f'b_{suf}'] = nrm((4 * H,)) + nrm((4 * H,))   # b_ih + b_hh
        return d

    # IS: conv_layer_num=4 -> conv1 + 3 ConvBlocks, lstm_input = C*width
    is_p = dict(conv1=conv_block(1), blocks=[conv_block(C) for _ in range(3)])
    is_p['lstm'] = lstm_params(C * width)
    is_p['bn2_scale'], is_p['bn2_shift'] = bn_fold(L)        # BatchNorm1d(seq)
    is_p['lin2_w_t'] = nrm((sensor_num * 6, 2 * H)).T
    is_p['lin2_b'] = nrm((sensor_num * 6,))

    # ConvLSTM: conv_layer_num=5 -> conv1 + 4 ConvBlocks,
    #           lstm_input = C*(width + sensor_num*6)
    cl_p = dict(conv1=conv_block(1), blocks=[conv_block(C) for _ in range(4)])
    cl_p['lstm'] = lstm_params(C * (width + sensor_num * 6))
    cl_p['ln_g'] = 1.0 + nrm((2 * H,))
    cl_p['ln_b'] = nrm((2 * H,))
    cl_p['lin3_w_t'] = nrm((label_len, L)).T
    cl_p['lin3_b'] = nrm((label_len,))

    return {'is': is_p, 'convlstm': cl_p,
            'lin1_w_t': nrm((int(sensor_num / 2 * 6), 2 * H)).T,
            'lin1_b': nrm((int(sensor_num / 2 * 6),))}


# ---------------------------------- main --------------------------------------

if __name__ == "__main__":
    # small shapes implied by the module: width = sensor_num*6 = 12 so that
    # IS lstm_input = 64*12 and ConvLSTM lstm_input = 64*24.
    B, L, H, label_len, sensor_num = 2, 8, 32, 4, 2
    width = sensor_num * 6                       # 12

    key = jax.random.PRNGKey(0)
    kx, kp = jax.random.split(key)
    x = jax.random.normal(kx, (B, L, width), dtype=jnp.float32)
    params = make_params(kp, L, H, label_len, sensor_num, width)

    fwd = jax.jit(functools.partial(deepconvlstm_forward, H=H, L=L,
                                    label_len=label_len))
    joint_angle, ori = fwd(x, params)
    jax.block_until_ready((joint_angle, ori))

    ref = jax.jit(functools.partial(deepconvlstm_reference, H=H, L=L,
                                    label_len=label_len))
    ja_ref, ori_ref = ref(x, params)
    jax.block_until_ready((ja_ref, ori_ref))

    assert joint_angle.shape == (B, label_len, int(sensor_num / 2 * 6))
    assert ori.shape == (B, L, sensor_num * 6)
    assert bool(jnp.all(jnp.isfinite(joint_angle)))
    assert bool(jnp.all(jnp.isfinite(ori)))
    assert jnp.allclose(ori, ori_ref, atol=2e-2, rtol=2e-2)
    assert jnp.allclose(joint_angle, ja_ref, atol=2e-2, rtol=2e-2)

    print("KERNEL_OK")
</pallas_src>

<mosaic_0001>
module attributes {stable_mosaic.version = 11 : i64} {
  func.func @_conv_mm_kernel(%arg0: i32, %arg1: memref<192x9xbf16, #tpu.memory_space<vmem>>, %arg2: memref<9x64xbf16, #tpu.memory_space<vmem>>, %arg3: memref<1x64xf32, #tpu.memory_space<vmem>>, %arg4: memref<1x64xf32, #tpu.memory_space<vmem>>, %arg5: memref<1x64xf32, #tpu.memory_space<vmem>>, %arg6: memref<192x64xbf16, #tpu.memory_space<vmem>>) attributes {dimension_semantics = [#tpu.dimension_semantics<parallel>], iteration_bounds = array<i64: 1>, scalar_prefetch = 0 : i64, scratch_operands = 0 : i64, tpu.core_type = #tpu.core_type<tc>, window_params = [{transform_indices = @transform_0, window_bounds = array<i64: 192, 9>}, {pipeline_mode = #tpu.pipeline_mode<synchronous>, transform_indices = @transform_1, window_bounds = array<i64: 9, 64>}, {pipeline_mode = #tpu.pipeline_mode<synchronous>, transform_indices = @transform_2, window_bounds = array<i64: 1, 64>}, {pipeline_mode = #tpu.pipeline_mode<synchronous>, transform_indices = @transform_3, window_bounds = array<i64: 1, 64>}, {pipeline_mode = #tpu.pipeline_mode<synchronous>, transform_indices = @transform_4, window_bounds = array<i64: 1, 64>}, {transform_indices = @transform_5, window_bounds = array<i64: 192, 64>}]} {
    %c0 = arith.constant 0 : index
    %c0_0 = arith.constant 0 : index
    %0 = vector.load %arg1[%c0, %c0_0] : memref<192x9xbf16, #tpu.memory_space<vmem>>, vector<192x9xbf16>
    %c0_1 = arith.constant 0 : index
    %c0_2 = arith.constant 0 : index
    %1 = vector.load %arg2[%c0_1, %c0_2] : memref<9x64xbf16, #tpu.memory_space<vmem>>, vector<9x64xbf16>
    %cst = arith.constant dense<0.000000e+00> : vector<192x64xf32>
    %2 = tpu.matmul %0, %1, %cst {dimension_numbers = #tpu.dot_dimension_numbers<[1], [0], [0], [1], [0, 0, 1, 1], [], []>} : vector<192x9xbf16>, vector<9x64xbf16>, vector<192x64xf32> -> vector<192x64xf32>
    %c0_3 = arith.constant 0 : index
    %c0_4 = arith.constant 0 : index
    %3 = vector.load %arg3[%c0_3, %c0_4] : memref<1x64xf32, #tpu.memory_space<vmem>>, vector<1x64xf32>
    %4 = vector.broadcast %3 : vector<1x64xf32> to vector<192x64xf32>
    %5 = arith.addf %2, %4 : vector<192x64xf32>
    %cst_5 = arith.constant 0.000000e+00 : f32
    %6 = vector.broadcast %cst_5 : f32 to vector<192x64xf32>
    %7 = arith.maximumf %5, %6 : vector<192x64xf32>
    %c0_6 = arith.constant 0 : index
    %c0_7 = arith.constant 0 : index
    %8 = vector.load %arg4[%c0_6, %c0_7] : memref<1x64xf32, #tpu.memory_space<vmem>>, vector<1x64xf32>
    %9 = vector.broadcast %8 : vector<1x64xf32> to vector<192x64xf32>
    %10 = arith.mulf %7, %9 : vector<192x64xf32>
    %c0_8 = arith.constant 0 : index
    %c0_9 = arith.constant 0 : index
    %11 = vector.load %arg5[%c0_8, %c0_9] : memref<1x64xf32, #tpu.memory_space<vmem>>, vector<1x64xf32>
    %12 = vector.broadcast %11 : vector<1x64xf32> to vector<192x64xf32>
    %13 = arith.addf %10, %12 : vector<192x64xf32>
    %14 = arith.truncf %13 : vector<192x64xf32> to vector<192x64xbf16>
    %c0_10 = arith.constant 0 : index
    %c0_11 = arith.constant 0 : index
    %15 = vector.load %arg6[%c0_10, %c0_11] : memref<192x64xbf16, #tpu.memory_space<vmem>>, vector<192x64xbf16>
    tpu.vector_store %arg6[%c0_10, %c0_11], %14 {strides = array<i32>} : memref<192x64xbf16, #tpu.memory_space<vmem>>, vector<192x64xbf16>,
    return
  }
  func.func @transform_0(%arg0: i32) -> (i32, i32) {
    %c0_i32 = arith.constant 0 : i32
    %c0_i32_0 = arith.constant 0 : i32
    return %arg0, %c0_i32 : i32, i32
  }
  func.func @transform_1(%arg0: i32) -> (i32, i32) {
    %c0_i32 = arith.constant 0 : i32
    %c0_i32_0 = arith.constant 0 : i32
    %c0_i32_1 = arith.constant 0 : i32
    return %c0_i32, %c0_i32_0 : i32, i32
  }
  func.func @transform_2(%arg0: i32) -> (i32, i32) {
    %c0_i32 = arith.constant 0 : i32
    %c0_i32_0 = arith.constant 0 : i32
    %c0_i32_1 = arith.constant 0 : i32
    return %c0_i32, %c0_i32_0 : i32, i32
  }
  func.func @transform_3(%arg0: i32) -> (i32, i32) {
    %c0_i32 = arith.constant 0 : i32
    %c0_i32_0 = arith.constant 0 : i32
    %c0_i32_1 = arith.constant 0 : i32
    return %c0_i32, %c0_i32_0 : i32, i32
  }
  func.func @transform_4(%arg0: i32) -> (i32, i32) {
    %c0_i32 = arith.constant 0 : i32
    %c0_i32_0 = arith.constant 0 : i32
    %c0_i32_1 = arith.constant 0 : i32
    return %c0_i32, %c0_i32_0 : i32, i32
  }
  func.func @transform_5(%arg0: i32) -> (i32, i32) {
    %c0_i32 = arith.constant 0 : i32
    %c0_i32_0 = arith.constant 0 : i32
    return %arg0, %c0_i32 : i32, i32
  }
}

module attributes {stable_mosaic.version = 11 : i64} {
  func.func @_conv_mm_kernel(%arg0: i32, %arg1: memref<192x576xbf16, #tpu.memory_space<vmem>>, %arg2: memref<576x64xbf16, #tpu.memory_space<vmem>>, %arg3: memref<1x64xf32, #tpu.memory_space<vmem>>, %arg4: memref<1x64xf32, #tpu.memory_space<vmem>>, %arg5: memref<1x64xf32, #tpu.memory_space<vmem>>, %arg6: memref<192x64xbf16, #tpu.memory_space<vmem>>) attributes {dimension_semantics = [#tpu.dimension_semantics<parallel>], iteration_bounds = array<i64: 1>, scalar_prefetch = 0 : i64, scratch_operands = 0 : i64, tpu.core_type = #tpu.core_type<tc>, window_params = [{transform_indices = @transform_0, window_bounds = array<i64: 192, 576>}, {pipeline_mode = #tpu.pipeline_mode<synchronous>, transform_indices = @transform_1, window_bounds = array<i64: 576, 64>}, {pipeline_mode = #tpu.pipeline_mode<synchronous>, transform_indices = @transform_2, window_bounds = array<i64: 1, 64>}, {pipeline_mode = #tpu.pipeline_mode<synchronous>, transform_indices = @transform_3, window_bounds = array<i64: 1, 64>}, {pipeline_mode = #tpu.pipeline_mode<synchronous>, transform_indices = @transform_4, window_bounds = array<i64: 1, 64>}, {transform_indices = @transform_5, window_bounds = array<i64: 192, 64>}]} {
    %c0 = arith.constant 0 : index
    %c0_0 = arith.constant 0 : index
    %0 = vector.load %arg1[%c0, %c0_0] : memref<192x576xbf16, #tpu.memory_space<vmem>>, vector<192x576xbf16>
    %c0_1 = arith.constant 0 : index
    %c0_2 = arith.constant 0 : index
    %1 = vector.load %arg2[%c0_1, %c0_2] : memref<576x64xbf16, #tpu.memory_space<vmem>>, vector<576x64xbf16>
    %cst = arith.constant dense<0.000000e+00> : vector<192x64xf32>
    %2 = tpu.matmul %0, %1, %cst {dimension_numbers = #tpu.dot_dimension_numbers<[1], [0], [0], [1], [0, 0, 1, 1], [], []>} : vector<192x576xbf16>, vector<576x64xbf16>, vector<192x64xf32> -> vector<192x64xf32>
    %c0_3 = arith.constant 0 : index
    %c0_4 = arith.constant 0 : index
    %3 = vector.load %arg3[%c0_3, %c0_4] : memref<1x64xf32, #tpu.memory_space<vmem>>, vector<1x64xf32>
    %4 = vector.broadcast %3 : vector<1x64xf32> to vector<192x64xf32>
    %5 = arith.addf %2, %4 : vector<192x64xf32>
    %cst_5 = arith.constant 0.000000e+00 : f32
    %6 = vector.broadcast %cst_5 : f32 to vector<192x64xf32>
    %7 = arith.maximumf %5, %6 : vector<192x64xf32>
    %c0_6 = arith.constant 0 : index
    %c0_7 = arith.constant 0 : index
    %8 = vector.load %arg4[%c0_6, %c0_7] : memref<1x64xf32, #tpu.memory_space<vmem>>, vector<1x64xf32>
    %9 = vector.broadcast %8 : vector<1x64xf32> to vector<192x64xf32>
    %10 = arith.mulf %7, %9 : vector<192x64xf32>
    %c0_8 = arith.constant 0 : index
    %c0_9 = arith.constant 0 : index
    %11 = vector.load %arg5[%c0_8, %c0_9] : memref<1x64xf32, #tpu.memory_space<vmem>>, vector<1x64xf32>
    %12 = vector.broadcast %11 : vector<1x64xf32> to vector<192x64xf32>
    %13 = arith.addf %10, %12 : vector<192x64xf32>
    %14 = arith.truncf %13 : vector<192x64xf32> to vector<192x64xbf16>
    %c0_10 = arith.constant 0 : index
    %c0_11 = arith.constant 0 : index
    %15 = vector.load %arg6[%c0_10, %c0_11] : memref<192x64xbf16, #tpu.memory_space<vmem>>, vector<192x64xbf16>
    tpu.vector_store %arg6[%c0_10, %c0_11], %14 {strides = array<i32>} : memref<192x64xbf16, #tpu.memory_space<vmem>>, vector<192x64xbf16>,
    return
  }
  func.func @transform_0(%arg0: i32) -> (i32, i32) {
    %c0_i32 = arith.constant 0 : i32
    %c0_i32_0 = arith.constant 0 : i32
    return %arg0, %c0_i32 : i32, i32
  }
  func.func @transform_1(%arg0: i32) -> (i32, i32) {
    %c0_i32 = arith.constant 0 : i32
    %c0_i32_0 = arith.constant 0 : i32
    %c0_i32_1 = arith.constant 0 : i32
    return %c0_i32, %c0_i32_0 : i32, i32
  }
  func.func @transform_2(%arg0: i32) -> (i32, i32) {
    %c0_i32 = arith.constant 0 : i32
    %c0_i32_0 = arith.constant 0 : i32
    %c0_i32_1 = arith.constant 0 : i32
    return %c0_i32, %c0_i32_0 : i32, i32
  }
  func.func @transform_3(%arg0: i32) -> (i32, i32) {
    %c0_i32 = arith.constant 0 : i32
    %c0_i32_0 = arith.constant 0 : i32
    %c0_i32_1 = arith.constant 0 : i32
    return %c0_i32, %c0_i32_0 : i32, i32
  }
  func.func @transform_4(%arg0: i32) -> (i32, i32) {
    %c0_i32 = arith.constant 0 : i32
    %c0_i32_0 = arith.constant 0 : i32
    %c0_i32_1 = arith.constant 0 : i32
    return %c0_i32, %c0_i32_0 : i32, i32
  }
  func.func @transform_5(%arg0: i32) -> (i32, i32) {
    %c0_i32 = arith.constant 0 : i32
    %c0_i32_0 = arith.constant 0 : i32
    return %arg0, %c0_i32 : i32, i32
  }
}

module attributes {stable_mosaic.version = 11 : i64} {
  func.func @_bilstm_kernel(%arg0: i32, %arg1: memref<16x768xbf16, #tpu.memory_space<vmem>>, %arg2: memref<768x256xbf16, #tpu.memory_space<vmem>>, %arg3: memref<1x256xf32, #tpu.memory_space<vmem>>, %arg4: memref<64x256xbf16, #tpu.memory_space<vmem>>, %arg5: memref<8x2x64xf32, #tpu.memory_space<vmem>>, %arg6: memref<8x2x64xf32, #tpu.memory_space<vmem>>) attributes {dimension_semantics = [#tpu.dimension_semantics<arbitrary>], iteration_bounds = array<i64: 1>, scalar_prefetch = 0 : i64, scratch_operands = 1 : i64, tpu.core_type = #tpu.core_type<tc>, window_params = [{pipeline_mode = #tpu.pipeline_mode<synchronous>, transform_indices = @transform_0, window_bounds = array<i64: 16, 768>}, {pipeline_mode = #tpu.pipeline_mode<synchronous>, transform_indices = @transform_1, window_bounds = array<i64: 768, 256>}, {pipeline_mode = #tpu.pipeline_mode<synchronous>, transform_indices = @transform_2, window_bounds = array<i64: 1, 256>}, {pipeline_mode = #tpu.pipeline_mode<synchronous>, transform_indices = @transform_3, window_bounds = array<i64: 64, 256>}, {pipeline_mode = #tpu.pipeline_mode<synchronous>, transform_indices = @transform_4, window_bounds = array<i64: 8, 2, 64>}]} {
    %c0 = arith.constant 0 : index
    %c0_0 = arith.constant 0 : index
    %0 = vector.load %arg1[%c0, %c0_0] : memref<16x768xbf16, #tpu.memory_space<vmem>>, vector<16x768xbf16>
    %c0_1 = arith.constant 0 : index
    %c0_2 = arith.constant 0 : index
    %1 = vector.load %arg2[%c0_1, %c0_2] : memref<768x256xbf16, #tpu.memory_space<vmem>>, vector<768x256xbf16>
    %cst = arith.constant dense<0.000000e+00> : vector<16x256xf32>
    %2 = tpu.matmul %0, %1, %cst {dimension_numbers = #tpu.dot_dimension_numbers<[1], [0], [0], [1], [0, 0, 1, 1], [], []>} : vector<16x768xbf16>, vector<768x256xbf16>, vector<16x256xf32> -> vector<16x256xf32>
    %c0_3 = arith.constant 0 : index
    %c0_4 = arith.constant 0 : index
    %3 = vector.load %arg3[%c0_3, %c0_4] : memref<1x256xf32, #tpu.memory_space<vmem>>, vector<1x256xf32>
    %4 = vector.broadcast %3 : vector<1x256xf32> to vector<16x256xf32>
    %5 = arith.addf %2, %4 : vector<16x256xf32>
    %c0_5 = arith.constant 0 : index
    %c0_6 = arith.constant 0 : index
    %6 = vector.load %arg4[%c0_5, %c0_6] : memref<64x256xbf16, #tpu.memory_space<vmem>>, vector<64x256xbf16>
    %7 = tpu.iota {dimensions = array<i32: 1>} : vector<2x256xi32>
    %c64_i32 = arith.constant 64 : i32
    %c0_i32 = arith.constant 0 : i32
    %8 = arith.cmpi eq, %c64_i32, %c0_i32 : i32
    %c1_i32 = arith.constant 1 : i32
    %9 = arith.select %8, %c1_i32, %c64_i32 : i32
    %10 = vector.broadcast %9 : i32 to vector<2x256xi32>
    %11 = arith.remsi %7, %10 : vector<2x256xi32>
    %c0_i32_7 = arith.constant 0 : i32
    %12 = vector.broadcast %c0_i32_7 : i32 to vector<2x256xi32>
    %13 = arith.cmpi ne, %11, %12 : vector<2x256xi32>
    %c0_i32_8 = arith.constant 0 : i32
    %14 = vector.broadcast %c0_i32_8 : i32 to vector<2x256xi32>
    %15 = arith.cmpi slt, %11, %14 : vector<2x256xi32>
    %c0_i32_9 = arith.constant 0 : i32
    %16 = arith.cmpi slt, %9, %c0_i32_9 : i32
    %17 = vector.broadcast %16 : i1 to vector<2x256xi1>
    %18 = vector.broadcast %17 : vector<2x256xi1> to vector<2x256xi1>
    %19 = arith.xori %15, %18 : vector<2x256xi1>
    %20 = arith.andi %19, %13 : vector<2x256xi1>
    %21 = vector.broadcast %9 : i32 to vector<2x256xi32>
    %22 = arith.addi %11, %21 : vector<2x256xi32>
    %23 = arith.select %20, %22, %11 : vector<2x256xi1>, vector<2x256xi32>
    %c32_i32 = arith.constant 32 : i32
    %24 = vector.broadcast %c32_i32 : i32 to vector<2x256xi32>
    %25 = arith.cmpi slt, %23, %24 : vector<2x256xi32>
    %cst_10 = arith.constant 0.000000e+00 : f32
    %26 = vector.broadcast %cst_10 : f32 to vector<2x64xf32>
    %cst_11 = arith.constant 0.000000e+00 : f32
    %27 = vector.broadcast %cst_11 : f32 to vector<2x64xf32>
    %28 = vector.extract_strided_slice %5 {offsets = [0, 0], sizes = [2, 256], strides = [1, 1]} : vector<16x256xf32> to vector<2x256xf32>
    %29 = vector.extract_strided_slice %5 {offsets = [14, 0], sizes = [2, 256], strides = [1, 1]} : vector<16x256xf32> to vector<2x256xf32>
    %30 = arith.select %25, %28, %29 : vector<2x256xi1>, vector<2x256xf32>
    %31 = arith.truncf %26 : vector<2x64xf32> to vector<2x64xbf16>
    %cst_12 = arith.constant dense<0.000000e+00> : vector<2x256xf32>
    %32 = tpu.matmul %31, %6, %cst_12 {dimension_numbers = #tpu.dot_dimension_numbers<[1], [0], [0], [1], [0, 0, 1, 1], [], []>} : vector<2x64xbf16>, vector<64x256xbf16>, vector<2x256xf32> -> vector<2x256xf32>
    %33 = arith.addf %30, %32 : vector<2x256xf32>
    %34 = vector.extract_strided_slice %33 {offsets = [0, 0], sizes = [2, 64], strides = [1, 1]} : vector<2x256xf32> to vector<2x64xf32>
    %35 = arith.negf %34 : vector<2x64xf32>
    %36 = math.exp %35 : vector<2x64xf32>
    %cst_13 = arith.constant 1.000000e+00 : f32
    %37 = vector.broadcast %cst_13 : f32 to vector<2x64xf32>
    %38 = arith.addf %37, %36 : vector<2x64xf32>
    %39 = arith.divf %37, %38 : vector<2x64xf32>
    %40 = vector.extract_strided_slice %33 {offsets = [0, 64], sizes = [2, 64], strides = [1, 1]} : vector<2x256xf32> to vector<2x64xf32>
    %41 = arith.negf %40 : vector<2x64xf32>
    %42 = math.exp %41 : vector<2x64xf32>
    %cst_14 = arith.constant 1.000000e+00 : f32
    %43 = vector.broadcast %cst_14 : f32 to vector<2x64xf32>
    %44 = arith.addf %43, %42 : vector<2x64xf32>
    %45 = arith.divf %43, %44 : vector<2x64xf32>
    %46 = vector.extract_strided_slice %33 {offsets = [0, 128], sizes = [2, 64], strides = [1, 1]} : vector<2x256xf32> to vector<2x64xf32>
    %47 = math.tanh %46 : vector<2x64xf32>
    %48 = vector.extract_strided_slice %33 {offsets = [0, 192], sizes = [2, 64], strides = [1, 1]} : vector<2x256xf32> to vector<2x64xf32>
    %49 = arith.negf %48 : vector<2x64xf32>
    %50 = math.exp %49 : vector<2x64xf32>
    %cst_15 = arith.constant 1.000000e+00 : f32
    %51 = vector.broadcast %cst_15 : f32 to vector<2x64xf32>
    %52 = arith.addf %51, %50 : vector<2x64xf32>
    %53 = arith.divf %51, %52 : vector<2x64xf32>
    %54 = arith.mulf %45, %27 : vector<2x64xf32>
    %55 = arith.mulf %39, %47 : vector<2x64xf32>
    %56 = arith.addf %54, %55 : vector<2x64xf32>
    %57 = math.tanh %56 : vector<2x64xf32>
    %58 = arith.mulf %53, %57 : vector<2x64xf32>
    %c0_16 = arith.constant 0 : index
    %c0_17 = arith.constant 0 : index
    %c0_18 = arith.constant 0 : index
    %59 = vector.load %arg6[%c0_16, %c0_17, %c0_18] : memref<8x2x64xf32, #tpu.memory_space<vmem>>, vector<1x2x64xf32>
    %60 = vector.shape_cast %59 : vector<1x2x64xf32> to vector<2x64xf32>
    %61 = vector.shape_cast %58 : vector<2x64xf32> to vector<1x2x64xf32>
    tpu.vector_store %arg6[%c0_16, %c0_17, %c0_18], %61 {strides = array<i32>} : memref<8x2x64xf32, #tpu.memory_space<vmem>>, vector<1x2x64xf32>,
    %62 = vector.extract_strided_slice %5 {offsets = [2, 0], sizes = [2, 256], strides = [1, 1]} : vector<16x256xf32> to vector<2x256xf32>
    %63 = vector.extract_strided_slice %5 {offsets = [12, 0], sizes = [2, 256], strides = [1, 1]} : vector<16x256xf32> to vector<2x256xf32>
    %64 = arith.select %25, %62, %63 : vector<2x256xi1>, vector<2x256xf32>
    %65 = arith.truncf %58 : vector<2x64xf32> to vector<2x64xbf16>
    %cst_19 = arith.constant dense<0.000000e+00> : vector<2x256xf32>
    %66 = tpu.matmul %65, %6, %cst_19 {dimension_numbers = #tpu.dot_dimension_numbers<[1], [0], [0], [1], [0, 0, 1, 1], [], []>} : vector<2x64xbf16>, vector<64x256xbf16>, vector<2x256xf32> -> vector<2x256xf32>
    %67 = arith.addf %64, %66 : vector<2x256xf32>
    %68 = vector.extract_strided_slice %67 {offsets = [0, 0], sizes = [2, 64], strides = [1, 1]} : vector<2x256xf32> to vector<2x64xf32>
    %69 = arith.negf %68 : vector<2x64xf32>
    %70 = math.exp %69 : vector<2x64xf32>
    %cst_20 = arith.constant 1.000000e+00 : f32
    %71 = vector.broadcast %cst_20 : f32 to vector<2x64xf32>
    %72 = arith.addf %71, %70 : vector<2x64xf32>
    %73 = arith.divf %71, %72 : vector<2x64xf32>
    %74 = vector.extract_strided_slice %67 {offsets = [0, 64], sizes = [2, 64], strides = [1, 1]} : vector<2x256xf32> to vector<2x64xf32>
    %75 = arith.negf %74 : vector<2x64xf32>
    %76 = math.exp %75 : vector<2x64xf32>
    %cst_21 = arith.constant 1.000000e+00 : f32
    %77 = vector.broadcast %cst_21 : f32 to vector<2x64xf32>
    %78 = arith.addf %77, %76 : vector<2x64xf32>
    %79 = arith.divf %77, %78 : vector<2x64xf32>
    %80 = vector.extract_strided_slice %67 {offsets = [0, 128], sizes = [2, 64], strides = [1, 1]} : vector<2x256xf32> to vector<2x64xf32>
    %81 = math.tanh %80 : vector<2x64xf32>
    %82 = vector.extract_strided_slice %67 {offsets = [0, 192], sizes = [2, 64], strides = [1, 1]} : vector<2x256xf32> to vector<2x64xf32>
    %83 = arith.negf %82 : vector<2x64xf32>
    %84 = math.exp %83 : vector<2x64xf32>
    %cst_22 = arith.constant 1.000000e+00 : f32
    %85 = vector.broadcast %cst_22 : f32 to vector<2x64xf32>
    %86 = arith.addf %85, %84 : vector<2x64xf32>
    %87 = arith.divf %85, %86 : vector<2x64xf32>
    %88 = arith.mulf %79, %56 : vector<2x64xf32>
    %89 = arith.mulf %73, %81 : vector<2x64xf32>
    %90 = arith.addf %88, %89 : vector<2x64xf32>
    %91 = math.tanh %90 : vector<2x64xf32>
    %92 = arith.mulf %87, %91 : vector<2x64xf32>
    %c1 = arith.constant 1 : index
    %c0_23 = arith.constant 0 : index
    %c0_24 = arith.constant 0 : index
    %93 = vector.load %arg6[%c1, %c0_23, %c0_24] : memref<8x2x64xf32, #tpu.memory_space<vmem>>, vector<1x2x64xf32>
    %94 = vector.shape_cast %93 : vector<1x2x64xf32> to vector<2x64xf32>
    %95 = vector.shape_cast %92 : vector<2x64xf32> to vector<1x2x64xf32>
    tpu.vector_store %arg6[%c1, %c0_23, %c0_24], %95 {strides = array<i32>} : memref<8x2x64xf32, #tpu.memory_space<vmem>>, vector<1x2x64xf32>,
    %96 = vector.extract_strided_slice %5 {offsets = [4, 0], sizes = [2, 256], strides = [1, 1]} : vector<16x256xf32> to vector<2x256xf32>
    %97 = vector.extract_strided_slice %5 {offsets = [10, 0], sizes = [2, 256], strides = [1, 1]} : vector<16x256xf32> to vector<2x256xf32>
    %98 = arith.select %25, %96, %97 : vector<2x256xi1>, vector<2x256xf32>
    %99 = arith.truncf %92 : vector<2x64xf32> to vector<2x64xbf16>
    %cst_25 = arith.constant dense<0.000000e+00> : vector<2x256xf32>
    %100 = tpu.matmul %99, %6, %cst_25 {dimension_numbers = #tpu.dot_dimension_numbers<[1], [0], [0], [1], [0, 0, 1, 1], [], []>} : vector<2x64xbf16>, vector<64x256xbf16>, vector<2x256xf32> -> vector<2x256xf32>
    %101 = arith.addf %98, %100 : vector<2x256xf32>
    %102 = vector.extract_strided_slice %101 {offsets = [0, 0], sizes = [2, 64], strides = [1, 1]} : vector<2x256xf32> to vector<2x64xf32>
    %103 = arith.negf %102 : vector<2x64xf32>
    %104 = math.exp %103 : vector<2x64xf32>
    %cst_26 = arith.constant 1.000000e+00 : f32
    %105 = vector.broadcast %cst_26 : f32 to vector<2x64xf32>
    %106 = arith.addf %105, %104 : vector<2x64xf32>
    %107 = arith.divf %105, %106 : vector<2x64xf32>
    %108 = vector.extract_strided_slice %101 {offsets = [0, 64], sizes = [2, 64], strides = [1, 1]} : vector<2x256xf32> to vector<2x64xf32>
    %109 = arith.negf %108 : vector<2x64xf32>
    %110 = math.exp %109 : vector<2x64xf32>
    %cst_27 = arith.constant 1.000000e+00 : f32
    %111 = vector.broadcast %cst_27 : f32 to vector<2x64xf32>
    %112 = arith.addf %111, %110 : vector<2x64xf32>
    %113 = arith.divf %111, %112 : vector<2x64xf32>
    %114 = vector.extract_strided_slice %101 {offsets = [0, 128], sizes = [2, 64], strides = [1, 1]} : vector<2x256xf32> to vector<2x64xf32>
    %115 = math.tanh %114 : vector<2x64xf32>
    %116 = vector.extract_strided_slice %101 {offsets = [0, 192], sizes = [2, 64], strides = [1, 1]} : vector<2x256xf32> to vector<2x64xf32>
    %117 = arith.negf %116 : vector<2x64xf32>
    %118 = math.exp %117 : vector<2x64xf32>
    %cst_28 = arith.constant 1.000000e+00 : f32
    %119 = vector.broadcast %cst_28 : f32 to vector<2x64xf32>
    %120 = arith.addf %119, %118 : vector<2x64xf32>
    %121 = arith.divf %119, %120 : vector<2x64xf32>
    %122 = arith.mulf %113, %90 : vector<2x64xf32>
    %123 = arith.mulf %107, %115 : vector<2x64xf32>
    %124 = arith.addf %122, %123 : vector<2x64xf32>
    %125 = math.tanh %124 : vector<2x64xf32>
    %126 = arith.mulf %121, %125 : vector<2x64xf32>
    %c2 = arith.constant 2 : index
    %c0_29 = arith.constant 0 : index
    %c0_30 = arith.constant 0 : index
    %127 = vector.load %arg6[%c2, %c0_29, %c0_30] : memref<8x2x64xf32, #tpu.memory_space<vmem>>, vector<1x2x64xf32>
    %128 = vector.shape_cast %127 : vector<1x2x64xf32> to vector<2x64xf32>
    %129 = vector.shape_cast %126 : vector<2x64xf32> to vector<1x2x64xf32>
    tpu.vector_store %arg6[%c2, %c0_29, %c0_30], %129 {strides = array<i32>} : memref<8x2x64xf32, #tpu.memory_space<vmem>>, vector<1x2x64xf32>,
    %130 = vector.extract_strided_slice %5 {offsets = [6, 0], sizes = [2, 256], strides = [1, 1]} : vector<16x256xf32> to vector<2x256xf32>
    %131 = vector.extract_strided_slice %5 {offsets = [8, 0], sizes = [2, 256], strides = [1, 1]} : vector<16x256xf32> to vector<2x256xf32>
    %132 = arith.select %25, %130, %131 : vector<2x256xi1>, vector<2x256xf32>
    %133 = arith.truncf %126 : vector<2x64xf32> to vector<2x64xbf16>
    %cst_31 = arith.constant dense<0.000000e+00> : vector<2x256xf32>
    %134 = tpu.matmul %133, %6, %cst_31 {dimension_numbers = #tpu.dot_dimension_numbers<[1], [0], [0], [1], [0, 0, 1, 1], [], []>} : vector<2x64xbf16>, vector<64x256xbf16>, vector<2x256xf32> -> vector<2x256xf32>
    %135 = arith.addf %132, %134 : vector<2x256xf32>
    %136 = vector.extract_strided_slice %135 {offsets = [0, 0], sizes = [2, 64], strides = [1, 1]} : vector<2x256xf32> to vector<2x64xf32>
    %137 = arith.negf %136 : vector<2x64xf32>
    %138 = math.exp %137 : vector<2x64xf32>
    %cst_32 = arith.constant 1.000000e+00 : f32
    %139 = vector.broadcast %cst_32 : f32 to vector<2x64xf32>
    %140 = arith.addf %139, %138 : vector<2x64xf32>
    %141 = arith.divf %139, %140 : vector<2x64xf32>
    %142 = vector.extract_strided_slice %135 {offsets = [0, 64], sizes = [2, 64], strides = [1, 1]} : vector<2x256xf32> to vector<2x64xf32>
    %143 = arith.negf %142 : vector<2x64xf32>
    %144 = math.exp %143 : vector<2x64xf32>
    %cst_33 = arith.constant 1.000000e+00 : f32
    %145 = vector.broadcast %cst_33 : f32 to vector<2x64xf32>
    %146 = arith.addf %145, %144 : vector<2x64xf32>
    %147 = arith.divf %145, %146 : vector<2x64xf32>
    %148 = vector.extract_strided_slice %135 {offsets = [0, 128], sizes = [2, 64], strides = [1, 1]} : vector<2x256xf32> to vector<2x64xf32>
    %149 = math.tanh %148 : vector<2x64xf32>
    %150 = vector.extract_strided_slice %135 {offsets = [0, 192], sizes = [2, 64], strides = [1, 1]} : vector<2x256xf32> to vector<2x64xf32>
    %151 = arith.negf %150 : vector<2x64xf32>
    %152 = math.exp %151 : vector<2x64xf32>
    %cst_34 = arith.constant 1.000000e+00 : f32
    %153 = vector.broadcast %cst_34 : f32 to vector<2x64xf32>
    %154 = arith.addf %153, %152 : vector<2x64xf32>
    %155 = arith.divf %153, %154 : vector<2x64xf32>
    %156 = arith.mulf %147, %124 : vector<2x64xf32>
    %157 = arith.mulf %141, %149 : vector<2x64xf32>
    %158 = arith.addf %156, %157 : vector<2x64xf32>
    %159 = math.tanh %158 : vector<2x64xf32>
    %160 = arith.mulf %155, %159 : vector<2x64xf32>
    %c3 = arith.constant 3 : index
    %c0_35 = arith.constant 0 : index
    %c0_36 = arith.constant 0 : index
    %161 = vector.load %arg6[%c3, %c0_35, %c0_36] : memref<8x2x64xf32, #tpu.memory_space<vmem>>, vector<1x2x64xf32>
    %162 = vector.shape_cast %161 : vector<1x2x64xf32> to vector<2x64xf32>
    %163 = vector.shape_cast %160 : vector<2x64xf32> to vector<1x2x64xf32>
    tpu.vector_store %arg6[%c3, %c0_35, %c0_36], %163 {strides = array<i32>} : memref<8x2x64xf32, #tpu.memory_space<vmem>>, vector<1x2x64xf32>,
    %164 = vector.extract_strided_slice %5 {offsets = [8, 0], sizes = [2, 256], strides = [1, 1]} : vector<16x256xf32> to vector<2x256xf32>
    %165 = vector.extract_strided_slice %5 {offsets = [6, 0], sizes = [2, 256], strides = [1, 1]} : vector<16x256xf32> to vector<2x256xf32>
    %166 = arith.select %25, %164, %165 : vector<2x256xi1>, vector<2x256xf32>
    %167 = arith.truncf %160 : vector<2x64xf32> to vector<2x64xbf16>
    %cst_37 = arith.constant dense<0.000000e+00> : vector<2x256xf32>
    %168 = tpu.matmul %167, %6, %cst_37 {dimension_numbers = #tpu.dot_dimension_numbers<[1], [0], [0], [1], [0, 0, 1, 1], [], []>} : vector<2x64xbf16>, vector<64x256xbf16>, vector<2x256xf32> -> vector<2x256xf32>
    %169 = arith.addf %166, %168 : vector<2x256xf32>
    %170 = vector.extract_strided_slice %169 {offsets = [0, 0], sizes = [2, 64], strides = [1, 1]} : vector<2x256xf32> to vector<2x64xf32>
    %171 = arith.negf %170 : vector<2x64xf32>
    %172 = math.exp %171 : vector<2x64xf32>
    %cst_38 = arith.constant 1.000000e+00 : f32
    %173 = vector.broadcast %cst_38 : f32 to vector<2x64xf32>
    %174 = arith.addf %173, %172 : vector<2x64xf32>
    %175 = arith.divf %173, %174 : vector<2x64xf32>
    %176 = vector.extract_strided_slice %169 {offsets = [0, 64], sizes = [2, 64], strides = [1, 1]} : vector<2x256xf32> to vector<2x64xf32>
    %177 = arith.negf %176 : vector<2x64xf32>
    %178 = math.exp %177 : vector<2x64xf32>
    %cst_39 = arith.constant 1.000000e+00 : f32
    %179 = vector.broadcast %cst_39 : f32 to vector<2x64xf32>
    %180 = arith.addf %179, %178 : vector<2x64xf32>
    %181 = arith.divf %179, %180 : vector<2x64xf32>
    %182 = vector.extract_strided_slice %169 {offsets = [0, 128], sizes = [2, 64], strides = [1, 1]} : vector<2x256xf32> to vector<2x64xf32>
    %183 = math.tanh %182 : vector<2x64xf32>
    %184 = vector.extract_strided_slice %169 {offsets = [0, 192], sizes = [2, 64], strides = [1, 1]} : vector<2x256xf32> to vector<2x64xf32>
    %185 = arith.negf %184 : vector<2x64xf32>
    %186 = math.exp %185 : vector<2x64xf32>
    %cst_40 = arith.constant 1.000000e+00 : f32
    %187 = vector.broadcast %cst_40 : f32 to vector<2x64xf32>
    %188 = arith.addf %187, %186 : vector<2x64xf32>
    %189 = arith.divf %187, %188 : vector<2x64xf32>
    %190 = arith.mulf %181, %158 : vector<2x64xf32>
    %191 = arith.mulf %175, %183 : vector<2x64xf32>
    %192 = arith.addf %190, %191 : vector<2x64xf32>
    %193 = math.tanh %192 : vector<2x64xf32>
    %194 = arith.mulf %189, %193 : vector<2x64xf32>
    %c4 = arith.constant 4 : index
    %c0_41 = arith.constant 0 : index
    %c0_42 = arith.constant 0 : index
    %195 = vector.load %arg6[%c4, %c0_41, %c0_42] : memref<8x2x64xf32, #tpu.memory_space<vmem>>, vector<1x2x64xf32>
    %196 = vector.shape_cast %195 : vector<1x2x64xf32> to vector<2x64xf32>
    %197 = vector.shape_cast %194 : vector<2x64xf32> to vector<1x2x64xf32>
    tpu.vector_store %arg6[%c4, %c0_41, %c0_42], %197 {strides = array<i32>} : memref<8x2x64xf32, #tpu.memory_space<vmem>>, vector<1x2x64xf32>,
    %198 = vector.extract_strided_slice %5 {offsets = [10, 0], sizes = [2, 256], strides = [1, 1]} : vector<16x256xf32> to vector<2x256xf32>
    %199 = vector.extract_strided_slice %5 {offsets = [4, 0], sizes = [2, 256], strides = [1, 1]} : vector<16x256xf32> to vector<2x256xf32>
    %200 = arith.select %25, %198, %199 : vector<2x256xi1>, vector<2x256xf32>
    %201 = arith.truncf %194 : vector<2x64xf32> to vector<2x64xbf16>
    %cst_43 = arith.constant dense<0.000000e+00> : vector<2x256xf32>
    %202 = tpu.matmul %201, %6, %cst_43 {dimension_numbers = #tpu.dot_dimension_numbers<[1], [0], [0], [1], [0, 0, 1, 1], [], []>} : vector<2x64xbf16>, vector<64x256xbf16>, vector<2x256xf32> -> vector<2x256xf32>
    %203 = arith.addf %200, %202 : vector<2x256xf32>
    %204 = vector.extract_strided_slice %203 {offsets = [0, 0], sizes = [2, 64], strides = [1, 1]} : vector<2x256xf32> to vector<2x64xf32>
    %205 = arith.negf %204 : vector<2x64xf32>
    %206 = math.exp %205 : vector<2x64xf32>
    %cst_44 = arith.constant 1.000000e+00 : f32
    %207 = vector.broadcast %cst_44 : f32 to vector<2x64xf32>
    %208 = arith.addf %207, %206 : vector<2x64xf32>
    %209 = arith.divf %207, %208 : vector<2x64xf32>
    %210 = vector.extract_strided_slice %203 {offsets = [0, 64], sizes = [2, 64], strides = [1, 1]} : vector<2x256xf32> to vector<2x64xf32>
    %211 = arith.negf %210 : vector<2x64xf32>
    %212 = math.exp %211 : vector<2x64xf32>
    %cst_45 = arith.constant 1.000000e+00 : f32
    %213 = vector.broadcast %cst_45 : f32 to vector<2x64xf32>
    %214 = arith.addf %213, %212 : vector<2x64xf32>
    %215 = arith.divf %213, %214 : vector<2x64xf32>
    %216 = vector.extract_strided_slice %203 {offsets = [0, 128], sizes = [2, 64], strides = [1, 1]} : vector<2x256xf32> to vector<2x64xf32>
    %217 = math.tanh %216 : vector<2x64xf32>
    %218 = vector.extract_strided_slice %203 {offsets = [0, 192], sizes = [2, 64], strides = [1, 1]} : vector<2x256xf32> to vector<2x64xf32>
    %219 = arith.negf %218 : vector<2x64xf32>
    %220 = math.exp %219 : vector<2x64xf32>
    %cst_46 = arith.constant 1.000000e+00 : f32
    %221 = vector.broadcast %cst_46 : f32 to vector<2x64xf32>
    %222 = arith.addf %221, %220 : vector<2x64xf32>
    %223 = arith.divf %221, %222 : vector<2x64xf32>
    %224 = arith.mulf %215, %192 : vector<2x64xf32>
    %225 = arith.mulf %209, %217 : vector<2x64xf32>
    %226 = arith.addf %224, %225 : vector<2x64xf32>
    %227 = math.tanh %226 : vector<2x64xf32>
    %228 = arith.mulf %223, %227 : vector<2x64xf32>
    %c5 = arith.constant 5 : index
    %c0_47 = arith.constant 0 : index
    %c0_48 = arith.constant 0 : index
    %229 = vector.load %arg6[%c5, %c0_47, %c0_48] : memref<8x2x64xf32, #tpu.memory_space<vmem>>, vector<1x2x64xf32>
    %230 = vector.shape_cast %229 : vector<1x2x64xf32> to vector<2x64xf32>
    %231 = vector.shape_cast %228 : vector<2x64xf32> to vector<1x2x64xf32>
    tpu.vector_store %arg6[%c5, %c0_47, %c0_48], %231 {strides = array<i32>} : memref<8x2x64xf32, #tpu.memory_space<vmem>>, vector<1x2x64xf32>,
    %232 = vector.extract_strided_slice %5 {offsets = [12, 0], sizes = [2, 256], strides = [1, 1]} : vector<16x256xf32> to vector<2x256xf32>
    %233 = vector.extract_strided_slice %5 {offsets = [2, 0], sizes = [2, 256], strides = [1, 1]} : vector<16x256xf32> to vector<2x256xf32>
    %234 = arith.select %25, %232, %233 : vector<2x256xi1>, vector<2x256xf32>
    %235 = arith.truncf %228 : vector<2x64xf32> to vector<2x64xbf16>
    %cst_49 = arith.constant dense<0.000000e+00> : vector<2x256xf32>
    %236 = tpu.matmul %235, %6, %cst_49 {dimension_numbers = #tpu.dot_dimension_numbers<[1], [0], [0], [1], [0, 0, 1, 1], [], []>} : vector<2x64xbf16>, vector<64x256xbf16>, vector<2x256xf32> -> vector<2x256xf32>
    %237 = arith.addf %234, %236 : vector<2x256xf32>
    %238 = vector.extract_strided_slice %237 {offsets = [0, 0], sizes = [2, 64], strides = [1, 1]} : vector<2x256xf32> to vector<2x64xf32>
    %239 = arith.negf %238 : vector<2x64xf32>
    %240 = math.exp %239 : vector<2x64xf32>
    %cst_50 = arith.constant 1.000000e+00 : f32
    %241 = vector.broadcast %cst_50 : f32 to vector<2x64xf32>
    %242 = arith.addf %241, %240 : vector<2x64xf32>
    %243 = arith.divf %241, %242 : vector<2x64xf32>
    %244 = vector.extract_strided_slice %237 {offsets = [0, 64], sizes = [2, 64], strides = [1, 1]} : vector<2x256xf32> to vector<2x64xf32>
    %245 = arith.negf %244 : vector<2x64xf32>
    %246 = math.exp %245 : vector<2x64xf32>
    %cst_51 = arith.constant 1.000000e+00 : f32
    %247 = vector.broadcast %cst_51 : f32 to vector<2x64xf32>
    %248 = arith.addf %247, %246 : vector<2x64xf32>
    %249 = arith.divf %247, %248 : vector<2x64xf32>
    %250 = vector.extract_strided_slice %237 {offsets = [0, 128], sizes = [2, 64], strides = [1, 1]} : vector<2x256xf32> to vector<2x64xf32>
    %251 = math.tanh %250 : vector<2x64xf32>
    %252 = vector.extract_strided_slice %237 {offsets = [0, 192], sizes = [2, 64], strides = [1, 1]} : vector<2x256xf32> to vector<2x64xf32>
    %253 = arith.negf %252 : vector<2x64xf32>
    %254 = math.exp %253 : vector<2x64xf32>
    %cst_52 = arith.constant 1.000000e+00 : f32
    %255 = vector.broadcast %cst_52 : f32 to vector<2x64xf32>
    %256 = arith.addf %255, %254 : vector<2x64xf32>
    %257 = arith.divf %255, %256 : vector<2x64xf32>
    %258 = arith.mulf %249, %226 : vector<2x64xf32>
    %259 = arith.mulf %243, %251 : vector<2x64xf32>
    %260 = arith.addf %258, %259 : vector<2x64xf32>
    %261 = math.tanh %260 : vector<2x64xf32>
    %262 = arith.mulf %257, %261 : vector<2x64xf32>
    %c6 = arith.constant 6 : index
    %c0_53 = arith.constant 0 : index
    %c0_54 = arith.constant 0 : index
    %263 = vector.load %arg6[%c6, %c0_53, %c0_54] : memref<8x2x64xf32, #tpu.memory_space<vmem>>, vector<1x2x64xf32>
    %264 = vector.shape_cast %263 : vector<1x2x64xf32> to vector<2x64xf32>
    %265 = vector.shape_cast %262 : vector<2x64xf32> to vector<1x2x64xf32>
    tpu.vector_store %arg6[%c6, %c0_53, %c0_54], %265 {strides = array<i32>} : memref<8x2x64xf32, #tpu.memory_space<vmem>>, vector<1x2x64xf32>,
    %266 = vector.extract_strided_slice %5 {offsets = [14, 0], sizes = [2, 256], strides = [1, 1]} : vector<16x256xf32> to vector<2x256xf32>
    %267 = vector.extract_strided_slice %5 {offsets = [0, 0], sizes = [2, 256], strides = [1, 1]} : vector<16x256xf32> to vector<2x256xf32>
    %268 = arith.select %25, %266, %267 : vector<2x256xi1>, vector<2x256xf32>
    %269 = arith.truncf %262 : vector<2x64xf32> to vector<2x64xbf16>
    %cst_55 = arith.constant dense<0.000000e+00> : vector<2x256xf32>
    %270 = tpu.matmul %269, %6, %cst_55 {dimension_numbers = #tpu.dot_dimension_numbers<[1], [0], [0], [1], [0, 0, 1, 1], [], []>} : vector<2x64xbf16>, vector<64x256xbf16>, vector<2x256xf32> -> vector<2x256xf32>
    %271 = arith.addf %268, %270 : vector<2x256xf32>
    %272 = vector.extract_strided_slice %271 {offsets = [0, 0], sizes = [2, 64], strides = [1, 1]} : vector<2x256xf32> to vector<2x64xf32>
    %273 = arith.negf %272 : vector<2x64xf32>
    %274 = math.exp %273 : vector<2x64xf32>
    %cst_56 = arith.constant 1.000000e+00 : f32
    %275 = vector.broadcast %cst_56 : f32 to vector<2x64xf32>
    %276 = arith.addf %275, %274 : vector<2x64xf32>
    %277 = arith.divf %275, %276 : vector<2x64xf32>
    %278 = vector.extract_strided_slice %271 {offsets = [0, 64], sizes = [2, 64], strides = [1, 1]} : vector<2x256xf32> to vector<2x64xf32>
    %279 = arith.negf %278 : vector<2x64xf32>
    %280 = math.exp %279 : vector<2x64xf32>
    %cst_57 = arith.constant 1.000000e+00 : f32
    %281 = vector.broadcast %cst_57 : f32 to vector<2x64xf32>
    %282 = arith.addf %281, %280 : vector<2x64xf32>
    %283 = arith.divf %281, %282 : vector<2x64xf32>
    %284 = vector.extract_strided_slice %271 {offsets = [0, 128], sizes = [2, 64], strides = [1, 1]} : vector<2x256xf32> to vector<2x64xf32>
    %285 = math.tanh %284 : vector<2x64xf32>
    %286 = vector.extract_strided_slice %271 {offsets = [0, 192], sizes = [2, 64], strides = [1, 1]} : vector<2x256xf32> to vector<2x64xf32>
    %287 = arith.negf %286 : vector<2x64xf32>
    %288 = math.exp %287 : vector<2x64xf32>
    %cst_58 = arith.constant 1.000000e+00 : f32
    %289 = vector.broadcast %cst_58 : f32 to vector<2x64xf32>
    %290 = arith.addf %289, %288 : vector<2x64xf32>
    %291 = arith.divf %289, %290 : vector<2x64xf32>
    %292 = arith.mulf %283, %260 : vector<2x64xf32>
    %293 = arith.mulf %277, %285 : vector<2x64xf32>
    %294 = arith.addf %292, %293 : vector<2x64xf32>
    %295 = math.tanh %294 : vector<2x64xf32>
    %296 = arith.mulf %291, %295 : vector<2x64xf32>
    %c7 = arith.constant 7 : index
    %c0_59 = arith.constant 0 : index
    %c0_60 = arith.constant 0 : index
    %297 = vector.load %arg6[%c7, %c0_59, %c0_60] : memref<8x2x64xf32, #tpu.memory_space<vmem>>, vector<1x2x64xf32>
    %298 = vector.shape_cast %297 : vector<1x2x64xf32> to vector<2x64xf32>
    %299 = vector.shape_cast %296 : vector<2x64xf32> to vector<1x2x64xf32>
    tpu.vector_store %arg6[%c7, %c0_59, %c0_60], %299 {strides = array<i32>} : memref<8x2x64xf32, #tpu.memory_space<vmem>>, vector<1x2x64xf32>,
    %c0_61 = arith.constant 0 : index
    %c0_62 = arith.constant 0 : index
    %c0_63 = arith.constant 0 : index
    %300 = vector.load %arg6[%c0_61, %c0_62, %c0_63] : memref<8x2x64xf32, #tpu.memory_space<vmem>>, vector<1x2x32xf32>
    %301 = vector.shape_cast %300 : vector<1x2x32xf32> to vector<2x32xf32>
    %c7_64 = arith.constant 7 : index
    %c0_65 = arith.constant 0 : index
    %c32 = arith.constant 32 : index
    %302 = vector.load %arg6[%c7_64, %c0_65, %c32] : memref<8x2x64xf32, #tpu.memory_space<vmem>>, vector<1x2x32xf32>
    %303 = vector.shape_cast %302 : vector<1x2x32xf32> to vector<2x32xf32>
    %304 = tpu.concatenate %301, %303 in 1 : vector<2x32xf32>, vector<2x32xf32> -> vector<2x64xf32>
    %c0_66 = arith.constant 0 : index
    %c0_67 = arith.constant 0 : index
    %c0_68 = arith.constant 0 : index
    %305 = vector.load %arg5[%c0_66, %c0_67, %c0_68] : memref<8x2x64xf32, #tpu.memory_space<vmem>>, vector<1x2x64xf32>
    %306 = vector.shape_cast %305 : vector<1x2x64xf32> to vector<2x64xf32>
    %307 = vector.shape_cast %304 : vector<2x64xf32> to vector<1x2x64xf32>
    tpu.vector_store %arg5[%c0_66, %c0_67, %c0_68], %307 {strides = array<i32>} : memref<8x2x64xf32, #tpu.memory_space<vmem>>, vector<1x2x64xf32>,
    %c1_69 = arith.constant 1 : index
    %c0_70 = arith.constant 0 : index
    %c0_71 = arith.constant 0 : index
    %308 = vector.load %arg6[%c1_69, %c0_70, %c0_71] : memref<8x2x64xf32, #tpu.memory_space<vmem>>, vector<1x2x32xf32>
    %309 = vector.shape_cast %308 : vector<1x2x32xf32> to vector<2x32xf32>
    %c6_72 = arith.constant 6 : index
    %c0_73 = arith.constant 0 : index
    %c32_74 = arith.constant 32 : index
    %310 = vector.load %arg6[%c6_72, %c0_73, %c32_74] : memref<8x2x64xf32, #tpu.memory_space<vmem>>, vector<1x2x32xf32>
    %311 = vector.shape_cast %310 : vector<1x2x32xf32> to vector<2x32xf32>
    %312 = tpu.concatenate %309, %311 in 1 : vector<2x32xf32>, vector<2x32xf32> -> vector<2x64xf32>
    %c1_75 = arith.constant 1 : index
    %c0_76 = arith.constant 0 : index
    %c0_77 = arith.constant 0 : index
    %313 = vector.load %arg5[%c1_75, %c0_76, %c0_77] : memref<8x2x64xf32, #tpu.memory_space<vmem>>, vector<1x2x64xf32>
    %314 = vector.shape_cast %313 : vector<1x2x64xf32> to vector<2x64xf32>
    %315 = vector.shape_cast %312 : vector<2x64xf32> to vector<1x2x64xf32>
    tpu.vector_store %arg5[%c1_75, %c0_76, %c0_77], %315 {strides = array<i32>} : memref<8x2x64xf32, #tpu.memory_space<vmem>>, vector<1x2x64xf32>,
    %c2_78 = arith.constant 2 : index
    %c0_79 = arith.constant 0 : index
    %c0_80 = arith.constant 0 : index
    %316 = vector.load %arg6[%c2_78, %c0_79, %c0_80] : memref<8x2x64xf32, #tpu.memory_space<vmem>>, vector<1x2x32xf32>
    %317 = vector.shape_cast %316 : vector<1x2x32xf32> to vector<2x32xf32>
    %c5_81 = arith.constant 5 : index
    %c0_82 = arith.constant 0 : index
    %c32_83 = arith.constant 32 : index
    %318 = vector.load %arg6[%c5_81, %c0_82, %c32_83] : memref<8x2x64xf32, #tpu.memory_space<vmem>>, vector<1x2x32xf32>
    %319 = vector.shape_cast %318 : vector<1x2x32xf32> to vector<2x32xf32>
    %320 = tpu.concatenate %317, %319 in 1 : vector<2x32xf32>, vector<2x32xf32> -> vector<2x64xf32>
    %c2_84 = arith.constant 2 : index
    %c0_85 = arith.constant 0 : index
    %c0_86 = arith.constant 0 : index
    %321 = vector.load %arg5[%c2_84, %c0_85, %c0_86] : memref<8x2x64xf32, #tpu.memory_space<vmem>>, vector<1x2x64xf32>
    %322 = vector.shape_cast %321 : vector<1x2x64xf32> to vector<2x64xf32>
    %323 = vector.shape_cast %320 : vector<2x64xf32> to vector<1x2x64xf32>
    tpu.vector_store %arg5[%c2_84, %c0_85, %c0_86], %323 {strides = array<i32>} : memref<8x2x64xf32, #tpu.memory_space<vmem>>, vector<1x2x64xf32>,
    %c3_87 = arith.constant 3 : index
    %c0_88 = arith.constant 0 : index
    %c0_89 = arith.constant 0 : index
    %324 = vector.load %arg6[%c3_87, %c0_88, %c0_89] : memref<8x2x64xf32, #tpu.memory_space<vmem>>, vector<1x2x32xf32>
    %325 = vector.shape_cast %324 : vector<1x2x32xf32> to vector<2x32xf32>
    %c4_90 = arith.constant 4 : index
    %c0_91 = arith.constant 0 : index
    %c32_92 = arith.constant 32 : index
    %326 = vector.load %arg6[%c4_90, %c0_91, %c32_92] : memref<8x2x64xf32, #tpu.memory_space<vmem>>, vector<1x2x32xf32>
    %327 = vector.shape_cast %326 : vector<1x2x32xf32> to vector<2x32xf32>
    %328 = tpu.concatenate %325, %327 in 1 : vector<2x32xf32>, vector<2x32xf32> -> vector<2x64xf32>
    %c3_93 = arith.constant 3 : index
    %c0_94 = arith.constant 0 : index
    %c0_95 = arith.constant 0 : index
    %329 = vector.load %arg5[%c3_93, %c0_94, %c0_95] : memref<8x2x64xf32, #tpu.memory_space<vmem>>, vector<1x2x64xf32>
    %330 = vector.shape_cast %329 : vector<1x2x64xf32> to vector<2x64xf32>
    %331 = vector.shape_cast %328 : vector<2x64xf32> to vector<1x2x64xf32>
    tpu.vector_store %arg5[%c3_93, %c0_94, %c0_95], %331 {strides = array<i32>} : memref<8x2x64xf32, #tpu.memory_space<vmem>>, vector<1x2x64xf32>,
    %c4_96 = arith.constant 4 : index
    %c0_97 = arith.constant 0 : index
    %c0_98 = arith.constant 0 : index
    %332 = vector.load %arg6[%c4_96, %c0_97, %c0_98] : memref<8x2x64xf32, #tpu.memory_space<vmem>>, vector<1x2x32xf32>
    %333 = vector.shape_cast %332 : vector<1x2x32xf32> to vector<2x32xf32>
    %c3_99 = arith.constant 3 : index
    %c0_100 = arith.constant 0 : index
    %c32_101 = arith.constant 32 : index
    %334 = vector.load %arg6[%c3_99, %c0_100, %c32_101] : memref<8x2x64xf32, #tpu.memory_space<vmem>>, vector<1x2x32xf32>
    %335 = vector.shape_cast %334 : vector<1x2x32xf32> to vector<2x32xf32>
    %336 = tpu.concatenate %333, %335 in 1 : vector<2x32xf32>, vector<2x32xf32> -> vector<2x64xf32>
    %c4_102 = arith.constant 4 : index
    %c0_103 = arith.constant 0 : index
    %c0_104 = arith.constant 0 : index
    %337 = vector.load %arg5[%c4_102, %c0_103, %c0_104] : memref<8x2x64xf32, #tpu.memory_space<vmem>>, vector<1x2x64xf32>
    %338 = vector.shape_cast %337 : vector<1x2x64xf32> to vector<2x64xf32>
    %339 = vector.shape_cast %336 : vector<2x64xf32> to vector<1x2x64xf32>
    tpu.vector_store %arg5[%c4_102, %c0_103, %c0_104], %339 {strides = array<i32>} : memref<8x2x64xf32, #tpu.memory_space<vmem>>, vector<1x2x64xf32>,
    %c5_105 = arith.constant 5 : index
    %c0_106 = arith.constant 0 : index
    %c0_107 = arith.constant 0 : index
    %340 = vector.load %arg6[%c5_105, %c0_106, %c0_107] : memref<8x2x64xf32, #tpu.memory_space<vmem>>, vector<1x2x32xf32>
    %341 = vector.shape_cast %340 : vector<1x2x32xf32> to vector<2x32xf32>
    %c2_108 = arith.constant 2 : index
    %c0_109 = arith.constant 0 : index
    %c32_110 = arith.constant 32 : index
    %342 = vector.load %arg6[%c2_108, %c0_109, %c32_110] : memref<8x2x64xf32, #tpu.memory_space<vmem>>, vector<1x2x32xf32>
    %343 = vector.shape_cast %342 : vector<1x2x32xf32> to vector<2x32xf32>
    %344 = tpu.concatenate %341, %343 in 1 : vector<2x32xf32>, vector<2x32xf32> -> vector<2x64xf32>
    %c5_111 = arith.constant 5 : index
    %c0_112 = arith.constant 0 : index
    %c0_113 = arith.constant 0 : index
    %345 = vector.load %arg5[%c5_111, %c0_112, %c0_113] : memref<8x2x64xf32, #tpu.memory_space<vmem>>, vector<1x2x64xf32>
    %346 = vector.shape_cast %345 : vector<1x2x64xf32> to vector<2x64xf32>
    %347 = vector.shape_cast %344 : vector<2x64xf32> to vector<1x2x64xf32>
    tpu.vector_store %arg5[%c5_111, %c0_112, %c0_113], %347 {strides = array<i32>} : memref<8x2x64xf32, #tpu.memory_space<vmem>>, vector<1x2x64xf32>,
    %c6_114 = arith.constant 6 : index
    %c0_115 = arith.constant 0 : index
    %c0_116 = arith.constant 0 : index
    %348 = vector.load %arg6[%c6_114, %c0_115, %c0_116] : memref<8x2x64xf32, #tpu.memory_space<vmem>>, vector<1x2x32xf32>
    %349 = vector.shape_cast %348 : vector<1x2x32xf32> to vector<2x32xf32>
    %c1_117 = arith.constant 1 : index
    %c0_118 = arith.constant 0 : index
    %c32_119 = arith.constant 32 : index
    %350 = vector.load %arg6[%c1_117, %c0_118, %c32_119] : memref<8x2x64xf32, #tpu.memory_space<vmem>>, vector<1x2x32xf32>
    %351 = vector.shape_cast %350 : vector<1x2x32xf32> to vector<2x32xf32>
    %352 = tpu.concatenate %349, %351 in 1 : vector<2x32xf32>, vector<2x32xf32> -> vector<2x64xf32>
    %c6_120 = arith.constant 6 : index
    %c0_121 = arith.constant 0 : index
    %c0_122 = arith.constant 0 : index
    %353 = vector.load %arg5[%c6_120, %c0_121, %c0_122] : memref<8x2x64xf32, #tpu.memory_space<vmem>>, vector<1x2x64xf32>
    %354 = vector.shape_cast %353 : vector<1x2x64xf32> to vector<2x64xf32>
    %355 = vector.shape_cast %352 : vector<2x64xf32> to vector<1x2x64xf32>
    tpu.vector_store %arg5[%c6_120, %c0_121, %c0_122], %355 {strides = array<i32>} : memref<8x2x64xf32, #tpu.memory_space<vmem>>, vector<1x2x64xf32>,
    %c7_123 = arith.constant 7 : index
    %c0_124 = arith.constant 0 : index
    %c0_125 = arith.constant 0 : index
    %356 = vector.load %arg6[%c7_123, %c0_124, %c0_125] : memref<8x2x64xf32, #tpu.memory_space<vmem>>, vector<1x2x32xf32>
    %357 = vector.shape_cast %356 : vector<1x2x32xf32> to vector<2x32xf32>
    %c0_126 = arith.constant 0 : index
    %c0_127 = arith.constant 0 : index
    %c32_128 = arith.constant 32 : index
    %358 = vector.load %arg6[%c0_126, %c0_127, %c32_128] : memref<8x2x64xf32, #tpu.memory_space<vmem>>, vector<1x2x32xf32>
    %359 = vector.shape_cast %358 : vector<1x2x32xf32> to vector<2x32xf32>
    %360 = tpu.concatenate %357, %359 in 1 : vector<2x32xf32>, vector<2x32xf32> -> vector<2x64xf32>
    %c7_129 = arith.constant 7 : index
    %c0_130 = arith.constant 0 : index
    %c0_131 = arith.constant 0 : index
    %361 = vector.load %arg5[%c7_129, %c0_130, %c0_131] : memref<8x2x64xf32, #tpu.memory_space<vmem>>, vector<1x2x64xf32>
    %362 = vector.shape_cast %361 : vector<1x2x64xf32> to vector<2x64xf32>
    %363 = vector.shape_cast %360 : vector<2x64xf32> to vector<1x2x64xf32>
    tpu.vector_store %arg5[%c7_129, %c0_130, %c0_131], %363 {strides = array<i32>} : memref<8x2x64xf32, #tpu.memory_space<vmem>>, vector<1x2x64xf32>,
    return
  }
  func.func @transform_0(%arg0: i32) -> (i32, i32) {
    %c0_i32 = arith.constant 0 : i32
    %c0_i32_0 = arith.constant 0 : i32
    %c0_i32_1 = arith.constant 0 : i32
    return %c0_i32, %c0_i32_0 : i32, i32
  }
  func.func @transform_1(%arg0: i32) -> (i32, i32) {
    %c0_i32 = arith.constant 0 : i32
    %c0_i32_0 = arith.constant 0 : i32
    %c0_i32_1 = arith.constant 0 : i32
    return %c0_i32, %c0_i32_0 : i32, i32
  }
  func.func @transform_2(%arg0: i32) -> (i32, i32) {
    %c0_i32 = arith.constant 0 : i32
    %c0_i32_0 = arith.constant 0 : i32
    %c0_i32_1 = arith.constant 0 : i32
    return %c0_i32, %c0_i32_0 : i32, i32
  }
  func.func @transform_3(%arg0: i32) -> (i32, i32) {
    %c0_i32 = arith.constant 0 : i32
    %c0_i32_0 = arith.constant 0 : i32
    %c0_i32_1 = arith.constant 0 : i32
    return %c0_i32, %c0_i32_0 : i32, i32
  }
  func.func @transform_4(%arg0: i32) -> (i32, i32, i32) {
    %c0_i32 = arith.constant 0 : i32
    %c0_i32_0 = arith.constant 0 : i32
    %c0_i32_1 = arith.constant 0 : i32
    %c0_i32_2 = arith.constant 0 : i32
    return %c0_i32, %c0_i32_0, %c0_i32_1 : i32, i32, i32
  }
}

module attributes {stable_mosaic.version = 11 : i64} {
  func.func @_conv_mm_kernel(%arg0: i32, %arg1: memref<384x9xbf16, #tpu.memory_space<vmem>>, %arg2: memref<9x64xbf16, #tpu.memory_space<vmem>>, %arg3: memref<1x64xf32, #tpu.memory_space<vmem>>, %arg4: memref<1x64xf32, #tpu.memory_space<vmem>>, %arg5: memref<1x64xf32, #tpu.memory_space<vmem>>, %arg6: memref<384x64xbf16, #tpu.memory_space<vmem>>) attributes {dimension_semantics = [#tpu.dimension_semantics<parallel>], iteration_bounds = array<i64: 1>, scalar_prefetch = 0 : i64, scratch_operands = 0 : i64, tpu.core_type = #tpu.core_type<tc>, window_params = [{transform_indices = @transform_0, window_bounds = array<i64: 384, 9>}, {pipeline_mode = #tpu.pipeline_mode<synchronous>, transform_indices = @transform_1, window_bounds = array<i64: 9, 64>}, {pipeline_mode = #tpu.pipeline_mode<synchronous>, transform_indices = @transform_2, window_bounds = array<i64: 1, 64>}, {pipeline_mode = #tpu.pipeline_mode<synchronous>, transform_indices = @transform_3, window_bounds = array<i64: 1, 64>}, {pipeline_mode = #tpu.pipeline_mode<synchronous>, transform_indices = @transform_4, window_bounds = array<i64: 1, 64>}, {transform_indices = @transform_5, window_bounds = array<i64: 384, 64>}]} {
    %c0 = arith.constant 0 : index
    %c0_0 = arith.constant 0 : index
    %0 = vector.load %arg1[%c0, %c0_0] : memref<384x9xbf16, #tpu.memory_space<vmem>>, vector<384x9xbf16>
    %c0_1 = arith.constant 0 : index
    %c0_2 = arith.constant 0 : index
    %1 = vector.load %arg2[%c0_1, %c0_2] : memref<9x64xbf16, #tpu.memory_space<vmem>>, vector<9x64xbf16>
    %cst = arith.constant dense<0.000000e+00> : vector<384x64xf32>
    %2 = tpu.matmul %0, %1, %cst {dimension_numbers = #tpu.dot_dimension_numbers<[1], [0], [0], [1], [0, 0, 1, 1], [], []>} : vector<384x9xbf16>, vector<9x64xbf16>, vector<384x64xf32> -> vector<384x64xf32>
    %c0_3 = arith.constant 0 : index
    %c0_4 = arith.constant 0 : index
    %3 = vector.load %arg3[%c0_3, %c0_4] : memref<1x64xf32, #tpu.memory_space<vmem>>, vector<1x64xf32>
    %4 = vector.broadcast %3 : vector<1x64xf32> to vector<384x64xf32>
    %5 = arith.addf %2, %4 : vector<384x64xf32>
    %cst_5 = arith.constant 0.000000e+00 : f32
    %6 = vector.broadcast %cst_5 : f32 to vector<384x64xf32>
    %7 = arith.maximumf %5, %6 : vector<384x64xf32>
    %c0_6 = arith.constant 0 : index
    %c0_7 = arith.constant 0 : index
    %8 = vector.load %arg4[%c0_6, %c0_7] : memref<1x64xf32, #tpu.memory_space<vmem>>, vector<1x64xf32>
    %9 = vector.broadcast %8 : vector<1x64xf32> to vector<384x64xf32>
    %10 = arith.mulf %7, %9 : vector<384x64xf32>
    %c0_8 = arith.constant 0 : index
    %c0_9 = arith.constant 0 : index
    %11 = vector.load %arg5[%c0_8, %c0_9] : memref<1x64xf32, #tpu.memory_space<vmem>>, vector<1x64xf32>
    %12 = vector.broadcast %11 : vector<1x64xf32> to vector<384x64xf32>
    %13 = arith.addf %10, %12 : vector<384x64xf32>
    %14 = arith.truncf %13 : vector<384x64xf32> to vector<384x64xbf16>
    %c0_10 = arith.constant 0 : index
    %c0_11 = arith.constant 0 : index
    %15 = vector.load %arg6[%c0_10, %c0_11] : memref<384x64xbf16, #tpu.memory_space<vmem>>, vector<384x64xbf16>
    tpu.vector_store %arg6[%c0_10, %c0_11], %14 {strides = array<i32>} : memref<384x64xbf16, #tpu.memory_space<vmem>>, vector<384x64xbf16>,
    return
  }
  func.func @transform_0(%arg0: i32) -> (i32, i32) {
    %c0_i32 = arith.constant 0 : i32
    %c0_i32_0 = arith.constant 0 : i32
    return %arg0, %c0_i32 : i32, i32
  }
  func.func @transform_1(%arg0: i32) -> (i32, i32) {
    %c0_i32 = arith.constant 0 : i32
    %c0_i32_0 = arith.constant 0 : i32
    %c0_i32_1 = arith.constant 0 : i32
    return %c0_i32, %c0_i32_0 : i32, i32
  }
  func.func @transform_2(%arg0: i32) -> (i32, i32) {
    %c0_i32 = arith.constant 0 : i32
    %c0_i32_0 = arith.constant 0 : i32
    %c0_i32_1 = arith.constant 0 : i32
    return %c0_i32, %c0_i32_0 : i32, i32
  }
  func.func @transform_3(%arg0: i32) -> (i32, i32) {
    %c0_i32 = arith.constant 0 : i32
    %c0_i32_0 = arith.constant 0 : i32
    %c0_i32_1 = arith.constant 0 : i32
    return %c0_i32, %c0_i32_0 : i32, i32
  }
  func.func @transform_4(%arg0: i32) -> (i32, i32) {
    %c0_i32 = arith.constant 0 : i32
    %c0_i32_0 = arith.constant 0 : i32
    %c0_i32_1 = arith.constant 0 : i32
    return %c0_i32, %c0_i32_0 : i32, i32
  }
  func.func @transform_5(%arg0: i32) -> (i32, i32) {
    %c0_i32 = arith.constant 0 : i32
    %c0_i32_0 = arith.constant 0 : i32
    return %arg0, %c0_i32 : i32, i32
  }
}

module attributes {stable_mosaic.version = 11 : i64} {
  func.func @_conv_mm_kernel(%arg0: i32, %arg1: memref<384x576xbf16, #tpu.memory_space<vmem>>, %arg2: memref<576x64xbf16, #tpu.memory_space<vmem>>, %arg3: memref<1x64xf32, #tpu.memory_space<vmem>>, %arg4: memref<1x64xf32, #tpu.memory_space<vmem>>, %arg5: memref<1x64xf32, #tpu.memory_space<vmem>>, %arg6: memref<384x64xbf16, #tpu.memory_space<vmem>>) attributes {dimension_semantics = [#tpu.dimension_semantics<parallel>], iteration_bounds = array<i64: 1>, scalar_prefetch = 0 : i64, scratch_operands = 0 : i64, tpu.core_type = #tpu.core_type<tc>, window_params = [{transform_indices = @transform_0, window_bounds = array<i64: 384, 576>}, {pipeline_mode = #tpu.pipeline_mode<synchronous>, transform_indices = @transform_1, window_bounds = array<i64: 576, 64>}, {pipeline_mode = #tpu.pipeline_mode<synchronous>, transform_indices = @transform_2, window_bounds = array<i64: 1, 64>}, {pipeline_mode = #tpu.pipeline_mode<synchronous>, transform_indices = @transform_3, window_bounds = array<i64: 1, 64>}, {pipeline_mode = #tpu.pipeline_mode<synchronous>, transform_indices = @transform_4, window_bounds = array<i64: 1, 64>}, {transform_indices = @transform_5, window_bounds = array<i64: 384, 64>}]} {
    %c0 = arith.constant 0 : index
    %c0_0 = arith.constant 0 : index
    %0 = vector.load %arg1[%c0, %c0_0] : memref<384x576xbf16, #tpu.memory_space<vmem>>, vector<384x576xbf16>
    %c0_1 = arith.constant 0 : index
    %c0_2 = arith.constant 0 : index
    %1 = vector.load %arg2[%c0_1, %c0_2] : memref<576x64xbf16, #tpu.memory_space<vmem>>, vector<576x64xbf16>
    %cst = arith.constant dense<0.000000e+00> : vector<384x64xf32>
    %2 = tpu.matmul %0, %1, %cst {dimension_numbers = #tpu.dot_dimension_numbers<[1], [0], [0], [1], [0, 0, 1, 1], [], []>} : vector<384x576xbf16>, vector<576x64xbf16>, vector<384x64xf32> -> vector<384x64xf32>
    %c0_3 = arith.constant 0 : index
    %c0_4 = arith.constant 0 : index
    %3 = vector.load %arg3[%c0_3, %c0_4] : memref<1x64xf32, #tpu.memory_space<vmem>>, vector<1x64xf32>
    %4 = vector.broadcast %3 : vector<1x64xf32> to vector<384x64xf32>
    %5 = arith.addf %2, %4 : vector<384x64xf32>
    %cst_5 = arith.constant 0.000000e+00 : f32
    %6 = vector.broadcast %cst_5 : f32 to vector<384x64xf32>
    %7 = arith.maximumf %5, %6 : vector<384x64xf32>
    %c0_6 = arith.constant 0 : index
    %c0_7 = arith.constant 0 : index
    %8 = vector.load %arg4[%c0_6, %c0_7] : memref<1x64xf32, #tpu.memory_space<vmem>>, vector<1x64xf32>
    %9 = vector.broadcast %8 : vector<1x64xf32> to vector<384x64xf32>
    %10 = arith.mulf %7, %9 : vector<384x64xf32>
    %c0_8 = arith.constant 0 : index
    %c0_9 = arith.constant 0 : index
    %11 = vector.load %arg5[%c0_8, %c0_9] : memref<1x64xf32, #tpu.memory_space<vmem>>, vector<1x64xf32>
    %12 = vector.broadcast %11 : vector<1x64xf32> to vector<384x64xf32>
    %13 = arith.addf %10, %12 : vector<384x64xf32>
    %14 = arith.truncf %13 : vector<384x64xf32> to vector<384x64xbf16>
    %c0_10 = arith.constant 0 : index
    %c0_11 = arith.constant 0 : index
    %15 = vector.load %arg6[%c0_10, %c0_11] : memref<384x64xbf16, #tpu.memory_space<vmem>>, vector<384x64xbf16>
    tpu.vector_store %arg6[%c0_10, %c0_11], %14 {strides = array<i32>} : memref<384x64xbf16, #tpu.memory_space<vmem>>, vector<384x64xbf16>,
    return
  }
  func.func @transform_0(%arg0: i32) -> (i32, i32) {
    %c0_i32 = arith.constant 0 : i32
    %c0_i32_0 = arith.constant 0 : i32
    return %arg0, %c0_i32 : i32, i32
  }
  func.func @transform_1(%arg0: i32) -> (i32, i32) {
    %c0_i32 = arith.constant 0 : i32
    %c0_i32_0 = arith.constant 0 : i32
    %c0_i32_1 = arith.constant 0 : i32
    return %c0_i32, %c0_i32_0 : i32, i32
  }
  func.func @transform_2(%arg0: i32) -> (i32, i32) {
    %c0_i32 = arith.constant 0 : i32
    %c0_i32_0 = arith.constant 0 : i32
    %c0_i32_1 = arith.constant 0 : i32
    return %c0_i32, %c0_i32_0 : i32, i32
  }
  func.func @transform_3(%arg0: i32) -> (i32, i32) {
    %c0_i32 = arith.constant 0 : i32
    %c0_i32_0 = arith.constant 0 : i32
    %c0_i32_1 = arith.constant 0 : i32
    return %c0_i32, %c0_i32_0 : i32, i32
  }
  func.func @transform_4(%arg0: i32) -> (i32, i32) {
    %c0_i32 = arith.constant 0 : i32
    %c0_i32_0 = arith.constant 0 : i32
    %c0_i32_1 = arith.constant 0 : i32
    return %c0_i32, %c0_i32_0 : i32, i32
  }
  func.func @transform_5(%arg0: i32) -> (i32, i32) {
    %c0_i32 = arith.constant 0 : i32
    %c0_i32_0 = arith.constant 0 : i32
    return %arg0, %c0_i32 : i32, i32
  }
}

module attributes {stable_mosaic.version = 11 : i64} {
  func.func @_bilstm_ln_kernel(%arg0: i32, %arg1: memref<16x1536xbf16, #tpu.memory_space<vmem>>, %arg2: memref<1536x256xbf16, #tpu.memory_space<vmem>>, %arg3: memref<1x256xf32, #tpu.memory_space<vmem>>, %arg4: memref<64x256xbf16, #tpu.memory_space<vmem>>, %arg5: memref<1x64xf32, #tpu.memory_space<vmem>>, %arg6: memref<1x64xf32, #tpu.memory_space<vmem>>, %arg7: memref<8x2x64xf32, #tpu.memory_space<vmem>>, %arg8: memref<8x2x64xf32, #tpu.memory_space<vmem>>) attributes {dimension_semantics = [#tpu.dimension_semantics<arbitrary>], iteration_bounds = array<i64: 1>, scalar_prefetch = 0 : i64, scratch_operands = 1 : i64, tpu.core_type = #tpu.core_type<tc>, window_params = [{pipeline_mode = #tpu.pipeline_mode<synchronous>, transform_indices = @transform_0, window_bounds = array<i64: 16, 1536>}, {pipeline_mode = #tpu.pipeline_mode<synchronous>, transform_indices = @transform_1, window_bounds = array<i64: 1536, 256>}, {pipeline_mode = #tpu.pipeline_mode<synchronous>, transform_indices = @transform_2, window_bounds = array<i64: 1, 256>}, {pipeline_mode = #tpu.pipeline_mode<synchronous>, transform_indices = @transform_3, window_bounds = array<i64: 64, 256>}, {pipeline_mode = #tpu.pipeline_mode<synchronous>, transform_indices = @transform_4, window_bounds = array<i64: 1, 64>}, {pipeline_mode = #tpu.pipeline_mode<synchronous>, transform_indices = @transform_5, window_bounds = array<i64: 1, 64>}, {pipeline_mode = #tpu.pipeline_mode<synchronous>, transform_indices = @transform_6, window_bounds = array<i64: 8, 2, 64>}]} {
    %c0 = arith.constant 0 : index
    %c0_0 = arith.constant 0 : index
    %0 = vector.load %arg1[%c0, %c0_0] : memref<16x1536xbf16, #tpu.memory_space<vmem>>, vector<16x1536xbf16>
    %c0_1 = arith.constant 0 : index
    %c0_2 = arith.constant 0 : index
    %1 = vector.load %arg2[%c0_1, %c0_2] : memref<1536x256xbf16, #tpu.memory_space<vmem>>, vector<1536x256xbf16>
    %cst = arith.constant dense<0.000000e+00> : vector<16x256xf32>
    %2 = tpu.matmul %0, %1, %cst {dimension_numbers = #tpu.dot_dimension_numbers<[1], [0], [0], [1], [0, 0, 1, 1], [], []>} : vector<16x1536xbf16>, vector<1536x256xbf16>, vector<16x256xf32> -> vector<16x256xf32>
    %c0_3 = arith.constant 0 : index
    %c0_4 = arith.constant 0 : index
    %3 = vector.load %arg3[%c0_3, %c0_4] : memref<1x256xf32, #tpu.memory_space<vmem>>, vector<1x256xf32>
    %4 = vector.broadcast %3 : vector<1x256xf32> to vector<16x256xf32>
    %5 = arith.addf %2, %4 : vector<16x256xf32>
    %c0_5 = arith.constant 0 : index
    %c0_6 = arith.constant 0 : index
    %6 = vector.load %arg4[%c0_5, %c0_6] : memref<64x256xbf16, #tpu.memory_space<vmem>>, vector<64x256xbf16>
    %7 = tpu.iota {dimensions = array<i32: 1>} : vector<2x256xi32>
    %c64_i32 = arith.constant 64 : i32
    %c0_i32 = arith.constant 0 : i32
    %8 = arith.cmpi eq, %c64_i32, %c0_i32 : i32
    %c1_i32 = arith.constant 1 : i32
    %9 = arith.select %8, %c1_i32, %c64_i32 : i32
    %10 = vector.broadcast %9 : i32 to vector<2x256xi32>
    %11 = arith.remsi %7, %10 : vector<2x256xi32>
    %c0_i32_7 = arith.constant 0 : i32
    %12 = vector.broadcast %c0_i32_7 : i32 to vector<2x256xi32>
    %13 = arith.cmpi ne, %11, %12 : vector<2x256xi32>
    %c0_i32_8 = arith.constant 0 : i32
    %14 = vector.broadcast %c0_i32_8 : i32 to vector<2x256xi32>
    %15 = arith.cmpi slt, %11, %14 : vector<2x256xi32>
    %c0_i32_9 = arith.constant 0 : i32
    %16 = arith.cmpi slt, %9, %c0_i32_9 : i32
    %17 = vector.broadcast %16 : i1 to vector<2x256xi1>
    %18 = vector.broadcast %17 : vector<2x256xi1> to vector<2x256xi1>
    %19 = arith.xori %15, %18 : vector<2x256xi1>
    %20 = arith.andi %19, %13 : vector<2x256xi1>
    %21 = vector.broadcast %9 : i32 to vector<2x256xi32>
    %22 = arith.addi %11, %21 : vector<2x256xi32>
    %23 = arith.select %20, %22, %11 : vector<2x256xi1>, vector<2x256xi32>
    %c32_i32 = arith.constant 32 : i32
    %24 = vector.broadcast %c32_i32 : i32 to vector<2x256xi32>
    %25 = arith.cmpi slt, %23, %24 : vector<2x256xi32>
    %cst_10 = arith.constant 0.000000e+00 : f32
    %26 = vector.broadcast %cst_10 : f32 to vector<2x64xf32>
    %cst_11 = arith.constant 0.000000e+00 : f32
    %27 = vector.broadcast %cst_11 : f32 to vector<2x64xf32>
    %28 = vector.extract_strided_slice %5 {offsets = [0, 0], sizes = [2, 256], strides = [1, 1]} : vector<16x256xf32> to vector<2x256xf32>
    %29 = vector.extract_strided_slice %5 {offsets = [14, 0], sizes = [2, 256], strides = [1, 1]} : vector<16x256xf32> to vector<2x256xf32>
    %30 = arith.select %25, %28, %29 : vector<2x256xi1>, vector<2x256xf32>
    %31 = arith.truncf %26 : vector<2x64xf32> to vector<2x64xbf16>
    %cst_12 = arith.constant dense<0.000000e+00> : vector<2x256xf32>
    %32 = tpu.matmul %31, %6, %cst_12 {dimension_numbers = #tpu.dot_dimension_numbers<[1], [0], [0], [1], [0, 0, 1, 1], [], []>} : vector<2x64xbf16>, vector<64x256xbf16>, vector<2x256xf32> -> vector<2x256xf32>
    %33 = arith.addf %30, %32 : vector<2x256xf32>
    %34 = vector.extract_strided_slice %33 {offsets = [0, 0], sizes = [2, 64], strides = [1, 1]} : vector<2x256xf32> to vector<2x64xf32>
    %35 = arith.negf %34 : vector<2x64xf32>
    %36 = math.exp %35 : vector<2x64xf32>
    %cst_13 = arith.constant 1.000000e+00 : f32
    %37 = vector.broadcast %cst_13 : f32 to vector<2x64xf32>
    %38 = arith.addf %37, %36 : vector<2x64xf32>
    %39 = arith.divf %37, %38 : vector<2x64xf32>
    %40 = vector.extract_strided_slice %33 {offsets = [0, 64], sizes = [2, 64], strides = [1, 1]} : vector<2x256xf32> to vector<2x64xf32>
    %41 = arith.negf %40 : vector<2x64xf32>
    %42 = math.exp %41 : vector<2x64xf32>
    %cst_14 = arith.constant 1.000000e+00 : f32
    %43 = vector.broadcast %cst_14 : f32 to vector<2x64xf32>
    %44 = arith.addf %43, %42 : vector<2x64xf32>
    %45 = arith.divf %43, %44 : vector<2x64xf32>
    %46 = vector.extract_strided_slice %33 {offsets = [0, 128], sizes = [2, 64], strides = [1, 1]} : vector<2x256xf32> to vector<2x64xf32>
    %47 = math.tanh %46 : vector<2x64xf32>
    %48 = vector.extract_strided_slice %33 {offsets = [0, 192], sizes = [2, 64], strides = [1, 1]} : vector<2x256xf32> to vector<2x64xf32>
    %49 = arith.negf %48 : vector<2x64xf32>
    %50 = math.exp %49 : vector<2x64xf32>
    %cst_15 = arith.constant 1.000000e+00 : f32
    %51 = vector.broadcast %cst_15 : f32 to vector<2x64xf32>
    %52 = arith.addf %51, %50 : vector<2x64xf32>
    %53 = arith.divf %51, %52 : vector<2x64xf32>
    %54 = arith.mulf %45, %27 : vector<2x64xf32>
    %55 = arith.mulf %39, %47 : vector<2x64xf32>
    %56 = arith.addf %54, %55 : vector<2x64xf32>
    %57 = math.tanh %56 : vector<2x64xf32>
    %58 = arith.mulf %53, %57 : vector<2x64xf32>
    %c0_16 = arith.constant 0 : index
    %c0_17 = arith.constant 0 : index
    %c0_18 = arith.constant 0 : index
    %59 = vector.load %arg8[%c0_16, %c0_17, %c0_18] : memref<8x2x64xf32, #tpu.memory_space<vmem>>, vector<1x2x64xf32>
    %60 = vector.shape_cast %59 : vector<1x2x64xf32> to vector<2x64xf32>
    %61 = vector.shape_cast %58 : vector<2x64xf32> to vector<1x2x64xf32>
    tpu.vector_store %arg8[%c0_16, %c0_17, %c0_18], %61 {strides = array<i32>} : memref<8x2x64xf32, #tpu.memory_space<vmem>>, vector<1x2x64xf32>,
    %62 = vector.extract_strided_slice %5 {offsets = [2, 0], sizes = [2, 256], strides = [1, 1]} : vector<16x256xf32> to vector<2x256xf32>
    %63 = vector.extract_strided_slice %5 {offsets = [12, 0], sizes = [2, 256], strides = [1, 1]} : vector<16x256xf32> to vector<2x256xf32>
    %64 = arith.select %25, %62, %63 : vector<2x256xi1>, vector<2x256xf32>
    %65 = arith.truncf %58 : vector<2x64xf32> to vector<2x64xbf16>
    %cst_19 = arith.constant dense<0.000000e+00> : vector<2x256xf32>
    %66 = tpu.matmul %65, %6, %cst_19 {dimension_numbers = #tpu.dot_dimension_numbers<[1], [0], [0], [1], [0, 0, 1, 1], [], []>} : vector<2x64xbf16>, vector<64x256xbf16>, vector<2x256xf32> -> vector<2x256xf32>
    %67 = arith.addf %64, %66 : vector<2x256xf32>
    %68 = vector.extract_strided_slice %67 {offsets = [0, 0], sizes = [2, 64], strides = [1, 1]} : vector<2x256xf32> to vector<2x64xf32>
    %69 = arith.negf %68 : vector<2x64xf32>
    %70 = math.exp %69 : vector<2x64xf32>
    %cst_20 = arith.constant 1.000000e+00 : f32
    %71 = vector.broadcast %cst_20 : f32 to vector<2x64xf32>
    %72 = arith.addf %71, %70 : vector<2x64xf32>
    %73 = arith.divf %71, %72 : vector<2x64xf32>
    %74 = vector.extract_strided_slice %67 {offsets = [0, 64], sizes = [2, 64], strides = [1, 1]} : vector<2x256xf32> to vector<2x64xf32>
    %75 = arith.negf %74 : vector<2x64xf32>
    %76 = math.exp %75 : vector<2x64xf32>
    %cst_21 = arith.constant 1.000000e+00 : f32
    %77 = vector.broadcast %cst_21 : f32 to vector<2x64xf32>
    %78 = arith.addf %77, %76 : vector<2x64xf32>
    %79 = arith.divf %77, %78 : vector<2x64xf32>
    %80 = vector.extract_strided_slice %67 {offsets = [0, 128], sizes = [2, 64], strides = [1, 1]} : vector<2x256xf32> to vector<2x64xf32>
    %81 = math.tanh %80 : vector<2x64xf32>
    %82 = vector.extract_strided_slice %67 {offsets = [0, 192], sizes = [2, 64], strides = [1, 1]} : vector<2x256xf32> to vector<2x64xf32>
    %83 = arith.negf %82 : vector<2x64xf32>
    %84 = math.exp %83 : vector<2x64xf32>
    %cst_22 = arith.constant 1.000000e+00 : f32
    %85 = vector.broadcast %cst_22 : f32 to vector<2x64xf32>
    %86 = arith.addf %85, %84 : vector<2x64xf32>
    %87 = arith.divf %85, %86 : vector<2x64xf32>
    %88 = arith.mulf %79, %56 : vector<2x64xf32>
    %89 = arith.mulf %73, %81 : vector<2x64xf32>
    %90 = arith.addf %88, %89 : vector<2x64xf32>
    %91 = math.tanh %90 : vector<2x64xf32>
    %92 = arith.mulf %87, %91 : vector<2x64xf32>
    %c1 = arith.constant 1 : index
    %c0_23 = arith.constant 0 : index
    %c0_24 = arith.constant 0 : index
    %93 = vector.load %arg8[%c1, %c0_23, %c0_24] : memref<8x2x64xf32, #tpu.memory_space<vmem>>, vector<1x2x64xf32>
    %94 = vector.shape_cast %93 : vector<1x2x64xf32> to vector<2x64xf32>
    %95 = vector.shape_cast %92 : vector<2x64xf32> to vector<1x2x64xf32>
    tpu.vector_store %arg8[%c1, %c0_23, %c0_24], %95 {strides = array<i32>} : memref<8x2x64xf32, #tpu.memory_space<vmem>>, vector<1x2x64xf32>,
    %96 = vector.extract_strided_slice %5 {offsets = [4, 0], sizes = [2, 256], strides = [1, 1]} : vector<16x256xf32> to vector<2x256xf32>
    %97 = vector.extract_strided_slice %5 {offsets = [10, 0], sizes = [2, 256], strides = [1, 1]} : vector<16x256xf32> to vector<2x256xf32>
    %98 = arith.select %25, %96, %97 : vector<2x256xi1>, vector<2x256xf32>
    %99 = arith.truncf %92 : vector<2x64xf32> to vector<2x64xbf16>
    %cst_25 = arith.constant dense<0.000000e+00> : vector<2x256xf32>
    %100 = tpu.matmul %99, %6, %cst_25 {dimension_numbers = #tpu.dot_dimension_numbers<[1], [0], [0], [1], [0, 0, 1, 1], [], []>} : vector<2x64xbf16>, vector<64x256xbf16>, vector<2x256xf32> -> vector<2x256xf32>
    %101 = arith.addf %98, %100 : vector<2x256xf32>
    %102 = vector.extract_strided_slice %101 {offsets = [0, 0], sizes = [2, 64], strides = [1, 1]} : vector<2x256xf32> to vector<2x64xf32>
    %103 = arith.negf %102 : vector<2x64xf32>
    %104 = math.exp %103 : vector<2x64xf32>
    %cst_26 = arith.constant 1.000000e+00 : f32
    %105 = vector.broadcast %cst_26 : f32 to vector<2x64xf32>
    %106 = arith.addf %105, %104 : vector<2x64xf32>
    %107 = arith.divf %105, %106 : vector<2x64xf32>
    %108 = vector.extract_strided_slice %101 {offsets = [0, 64], sizes = [2, 64], strides = [1, 1]} : vector<2x256xf32> to vector<2x64xf32>
    %109 = arith.negf %108 : vector<2x64xf32>
    %110 = math.exp %109 : vector<2x64xf32>
    %cst_27 = arith.constant 1.000000e+00 : f32
    %111 = vector.broadcast %cst_27 : f32 to vector<2x64xf32>
    %112 = arith.addf %111, %110 : vector<2x64xf32>
    %113 = arith.divf %111, %112 : vector<2x64xf32>
    %114 = vector.extract_strided_slice %101 {offsets = [0, 128], sizes = [2, 64], strides = [1, 1]} : vector<2x256xf32> to vector<2x64xf32>
    %115 = math.tanh %114 : vector<2x64xf32>
    %116 = vector.extract_strided_slice %101 {offsets = [0, 192], sizes = [2, 64], strides = [1, 1]} : vector<2x256xf32> to vector<2x64xf32>
    %117 = arith.negf %116 : vector<2x64xf32>
    %118 = math.exp %117 : vector<2x64xf32>
    %cst_28 = arith.constant 1.000000e+00 : f32
    %119 = vector.broadcast %cst_28 : f32 to vector<2x64xf32>
    %120 = arith.addf %119, %118 : vector<2x64xf32>
    %121 = arith.divf %119, %120 : vector<2x64xf32>
    %122 = arith.mulf %113, %90 : vector<2x64xf32>
    %123 = arith.mulf %107, %115 : vector<2x64xf32>
    %124 = arith.addf %122, %123 : vector<2x64xf32>
    %125 = math.tanh %124 : vector<2x64xf32>
    %126 = arith.mulf %121, %125 : vector<2x64xf32>
    %c2 = arith.constant 2 : index
    %c0_29 = arith.constant 0 : index
    %c0_30 = arith.constant 0 : index
    %127 = vector.load %arg8[%c2, %c0_29, %c0_30] : memref<8x2x64xf32, #tpu.memory_space<vmem>>, vector<1x2x64xf32>
    %128 = vector.shape_cast %127 : vector<1x2x64xf32> to vector<2x64xf32>
    %129 = vector.shape_cast %126 : vector<2x64xf32> to vector<1x2x64xf32>
    tpu.vector_store %arg8[%c2, %c0_29, %c0_30], %129 {strides = array<i32>} : memref<8x2x64xf32, #tpu.memory_space<vmem>>, vector<1x2x64xf32>,
    %130 = vector.extract_strided_slice %5 {offsets = [6, 0], sizes = [2, 256], strides = [1, 1]} : vector<16x256xf32> to vector<2x256xf32>
    %131 = vector.extract_strided_slice %5 {offsets = [8, 0], sizes = [2, 256], strides = [1, 1]} : vector<16x256xf32> to vector<2x256xf32>
    %132 = arith.select %25, %130, %131 : vector<2x256xi1>, vector<2x256xf32>
    %133 = arith.truncf %126 : vector<2x64xf32> to vector<2x64xbf16>
    %cst_31 = arith.constant dense<0.000000e+00> : vector<2x256xf32>
    %134 = tpu.matmul %133, %6, %cst_31 {dimension_numbers = #tpu.dot_dimension_numbers<[1], [0], [0], [1], [0, 0, 1, 1], [], []>} : vector<2x64xbf16>, vector<64x256xbf16>, vector<2x256xf32> -> vector<2x256xf32>
    %135 = arith.addf %132, %134 : vector<2x256xf32>
    %136 = vector.extract_strided_slice %135 {offsets = [0, 0], sizes = [2, 64], strides = [1, 1]} : vector<2x256xf32> to vector<2x64xf32>
    %137 = arith.negf %136 : vector<2x64xf32>
    %138 = math.exp %137 : vector<2x64xf32>
    %cst_32 = arith.constant 1.000000e+00 : f32
    %139 = vector.broadcast %cst_32 : f32 to vector<2x64xf32>
    %140 = arith.addf %139, %138 : vector<2x64xf32>
    %141 = arith.divf %139, %140 : vector<2x64xf32>
    %142 = vector.extract_strided_slice %135 {offsets = [0, 64], sizes = [2, 64], strides = [1, 1]} : vector<2x256xf32> to vector<2x64xf32>
    %143 = arith.negf %142 : vector<2x64xf32>
    %144 = math.exp %143 : vector<2x64xf32>
    %cst_33 = arith.constant 1.000000e+00 : f32
    %145 = vector.broadcast %cst_33 : f32 to vector<2x64xf32>
    %146 = arith.addf %145, %144 : vector<2x64xf32>
    %147 = arith.divf %145, %146 : vector<2x64xf32>
    %148 = vector.extract_strided_slice %135 {offsets = [0, 128], sizes = [2, 64], strides = [1, 1]} : vector<2x256xf32> to vector<2x64xf32>
    %149 = math.tanh %148 : vector<2x64xf32>
    %150 = vector.extract_strided_slice %135 {offsets = [0, 192], sizes = [2, 64], strides = [1, 1]} : vector<2x256xf32> to vector<2x64xf32>
    %151 = arith.negf %150 : vector<2x64xf32>
    %152 = math.exp %151 : vector<2x64xf32>
    %cst_34 = arith.constant 1.000000e+00 : f32
    %153 = vector.broadcast %cst_34 : f32 to vector<2x64xf32>
    %154 = arith.addf %153, %152 : vector<2x64xf32>
    %155 = arith.divf %153, %154 : vector<2x64xf32>
    %156 = arith.mulf %147, %124 : vector<2x64xf32>
    %157 = arith.mulf %141, %149 : vector<2x64xf32>
    %158 = arith.addf %156, %157 : vector<2x64xf32>
    %159 = math.tanh %158 : vector<2x64xf32>
    %160 = arith.mulf %155, %159 : vector<2x64xf32>
    %c3 = arith.constant 3 : index
    %c0_35 = arith.constant 0 : index
    %c0_36 = arith.constant 0 : index
    %161 = vector.load %arg8[%c3, %c0_35, %c0_36] : memref<8x2x64xf32, #tpu.memory_space<vmem>>, vector<1x2x64xf32>
    %162 = vector.shape_cast %161 : vector<1x2x64xf32> to vector<2x64xf32>
    %163 = vector.shape_cast %160 : vector<2x64xf32> to vector<1x2x64xf32>
    tpu.vector_store %arg8[%c3, %c0_35, %c0_36], %163 {strides = array<i32>} : memref<8x2x64xf32, #tpu.memory_space<vmem>>, vector<1x2x64xf32>,
    %164 = vector.extract_strided_slice %5 {offsets = [8, 0], sizes = [2, 256], strides = [1, 1]} : vector<16x256xf32> to vector<2x256xf32>
    %165 = vector.extract_strided_slice %5 {offsets = [6, 0], sizes = [2, 256], strides = [1, 1]} : vector<16x256xf32> to vector<2x256xf32>
    %166 = arith.select %25, %164, %165 : vector<2x256xi1>, vector<2x256xf32>
    %167 = arith.truncf %160 : vector<2x64xf32> to vector<2x64xbf16>
    %cst_37 = arith.constant dense<0.000000e+00> : vector<2x256xf32>
    %168 = tpu.matmul %167, %6, %cst_37 {dimension_numbers = #tpu.dot_dimension_numbers<[1], [0], [0], [1], [0, 0, 1, 1], [], []>} : vector<2x64xbf16>, vector<64x256xbf16>, vector<2x256xf32> -> vector<2x256xf32>
    %169 = arith.addf %166, %168 : vector<2x256xf32>
    %170 = vector.extract_strided_slice %169 {offsets = [0, 0], sizes = [2, 64], strides = [1, 1]} : vector<2x256xf32> to vector<2x64xf32>
    %171 = arith.negf %170 : vector<2x64xf32>
    %172 = math.exp %171 : vector<2x64xf32>
    %cst_38 = arith.constant 1.000000e+00 : f32
    %173 = vector.broadcast %cst_38 : f32 to vector<2x64xf32>
    %174 = arith.addf %173, %172 : vector<2x64xf32>
    %175 = arith.divf %173, %174 : vector<2x64xf32>
    %176 = vector.extract_strided_slice %169 {offsets = [0, 64], sizes = [2, 64], strides = [1, 1]} : vector<2x256xf32> to vector<2x64xf32>
    %177 = arith.negf %176 : vector<2x64xf32>
    %178 = math.exp %177 : vector<2x64xf32>
    %cst_39 = arith.constant 1.000000e+00 : f32
    %179 = vector.broadcast %cst_39 : f32 to vector<2x64xf32>
    %180 = arith.addf %179, %178 : vector<2x64xf32>
    %181 = arith.divf %179, %180 : vector<2x64xf32>
    %182 = vector.extract_strided_slice %169 {offsets = [0, 128], sizes = [2, 64], strides = [1, 1]} : vector<2x256xf32> to vector<2x64xf32>
    %183 = math.tanh %182 : vector<2x64xf32>
    %184 = vector.extract_strided_slice %169 {offsets = [0, 192], sizes = [2, 64], strides = [1, 1]} : vector<2x256xf32> to vector<2x64xf32>
    %185 = arith.negf %184 : vector<2x64xf32>
    %186 = math.exp %185 : vector<2x64xf32>
    %cst_40 = arith.constant 1.000000e+00 : f32
    %187 = vector.broadcast %cst_40 : f32 to vector<2x64xf32>
    %188 = arith.addf %187, %186 : vector<2x64xf32>
    %189 = arith.divf %187, %188 : vector<2x64xf32>
    %190 = arith.mulf %181, %158 : vector<2x64xf32>
    %191 = arith.mulf %175, %183 : vector<2x64xf32>
    %192 = arith.addf %190, %191 : vector<2x64xf32>
    %193 = math.tanh %192 : vector<2x64xf32>
    %194 = arith.mulf %189, %193 : vector<2x64xf32>
    %c4 = arith.constant 4 : index
    %c0_41 = arith.constant 0 : index
    %c0_42 = arith.constant 0 : index
    %195 = vector.load %arg8[%c4, %c0_41, %c0_42] : memref<8x2x64xf32, #tpu.memory_space<vmem>>, vector<1x2x64xf32>
    %196 = vector.shape_cast %195 : vector<1x2x64xf32> to vector<2x64xf32>
    %197 = vector.shape_cast %194 : vector<2x64xf32> to vector<1x2x64xf32>
    tpu.vector_store %arg8[%c4, %c0_41, %c0_42], %197 {strides = array<i32>} : memref<8x2x64xf32, #tpu.memory_space<vmem>>, vector<1x2x64xf32>,
    %198 = vector.extract_strided_slice %5 {offsets = [10, 0], sizes = [2, 256], strides = [1, 1]} : vector<16x256xf32> to vector<2x256xf32>
    %199 = vector.extract_strided_slice %5 {offsets = [4, 0], sizes = [2, 256], strides = [1, 1]} : vector<16x256xf32> to vector<2x256xf32>
    %200 = arith.select %25, %198, %199 : vector<2x256xi1>, vector<2x256xf32>
    %201 = arith.truncf %194 : vector<2x64xf32> to vector<2x64xbf16>
    %cst_43 = arith.constant dense<0.000000e+00> : vector<2x256xf32>
    %202 = tpu.matmul %201, %6, %cst_43 {dimension_numbers = #tpu.dot_dimension_numbers<[1], [0], [0], [1], [0, 0, 1, 1], [], []>} : vector<2x64xbf16>, vector<64x256xbf16>, vector<2x256xf32> -> vector<2x256xf32>
    %203 = arith.addf %200, %202 : vector<2x256xf32>
    %204 = vector.extract_strided_slice %203 {offsets = [0, 0], sizes = [2, 64], strides = [1, 1]} : vector<2x256xf32> to vector<2x64xf32>
    %205 = arith.negf %204 : vector<2x64xf32>
    %206 = math.exp %205 : vector<2x64xf32>
    %cst_44 = arith.constant 1.000000e+00 : f32
    %207 = vector.broadcast %cst_44 : f32 to vector<2x64xf32>
    %208 = arith.addf %207, %206 : vector<2x64xf32>
    %209 = arith.divf %207, %208 : vector<2x64xf32>
    %210 = vector.extract_strided_slice %203 {offsets = [0, 64], sizes = [2, 64], strides = [1, 1]} : vector<2x256xf32> to vector<2x64xf32>
    %211 = arith.negf %210 : vector<2x64xf32>
    %212 = math.exp %211 : vector<2x64xf32>
    %cst_45 = arith.constant 1.000000e+00 : f32
    %213 = vector.broadcast %cst_45 : f32 to vector<2x64xf32>
    %214 = arith.addf %213, %212 : vector<2x64xf32>
    %215 = arith.divf %213, %214 : vector<2x64xf32>
    %216 = vector.extract_strided_slice %203 {offsets = [0, 128], sizes = [2, 64], strides = [1, 1]} : vector<2x256xf32> to vector<2x64xf32>
    %217 = math.tanh %216 : vector<2x64xf32>
    %218 = vector.extract_strided_slice %203 {offsets = [0, 192], sizes = [2, 64], strides = [1, 1]} : vector<2x256xf32> to vector<2x64xf32>
    %219 = arith.negf %218 : vector<2x64xf32>
    %220 = math.exp %219 : vector<2x64xf32>
    %cst_46 = arith.constant 1.000000e+00 : f32
    %221 = vector.broadcast %cst_46 : f32 to vector<2x64xf32>
    %222 = arith.addf %221, %220 : vector<2x64xf32>
    %223 = arith.divf %221, %222 : vector<2x64xf32>
    %224 = arith.mulf %215, %192 : vector<2x64xf32>
    %225 = arith.mulf %209, %217 : vector<2x64xf32>
    %226 = arith.addf %224, %225 : vector<2x64xf32>
    %227 = math.tanh %226 : vector<2x64xf32>
    %228 = arith.mulf %223, %227 : vector<2x64xf32>
    %c5 = arith.constant 5 : index
    %c0_47 = arith.constant 0 : index
    %c0_48 = arith.constant 0 : index
    %229 = vector.load %arg8[%c5, %c0_47, %c0_48] : memref<8x2x64xf32, #tpu.memory_space<vmem>>, vector<1x2x64xf32>
    %230 = vector.shape_cast %229 : vector<1x2x64xf32> to vector<2x64xf32>
    %231 = vector.shape_cast %228 : vector<2x64xf32> to vector<1x2x64xf32>
    tpu.vector_store %arg8[%c5, %c0_47, %c0_48], %231 {strides = array<i32>} : memref<8x2x64xf32, #tpu.memory_space<vmem>>, vector<1x2x64xf32>,
    %232 = vector.extract_strided_slice %5 {offsets = [12, 0], sizes = [2, 256], strides = [1, 1]} : vector<16x256xf32> to vector<2x256xf32>
    %233 = vector.extract_strided_slice %5 {offsets = [2, 0], sizes = [2, 256], strides = [1, 1]} : vector<16x256xf32> to vector<2x256xf32>
    %234 = arith.select %25, %232, %233 : vector<2x256xi1>, vector<2x256xf32>
    %235 = arith.truncf %228 : vector<2x64xf32> to vector<2x64xbf16>
    %cst_49 = arith.constant dense<0.000000e+00> : vector<2x256xf32>
    %236 = tpu.matmul %235, %6, %cst_49 {dimension_numbers = #tpu.dot_dimension_numbers<[1], [0], [0], [1], [0, 0, 1, 1], [], []>} : vector<2x64xbf16>, vector<64x256xbf16>, vector<2x256xf32> -> vector<2x256xf32>
    %237 = arith.addf %234, %236 : vector<2x256xf32>
    %238 = vector.extract_strided_slice %237 {offsets = [0, 0], sizes = [2, 64], strides = [1, 1]} : vector<2x256xf32> to vector<2x64xf32>
    %239 = arith.negf %238 : vector<2x64xf32>
    %240 = math.exp %239 : vector<2x64xf32>
    %cst_50 = arith.constant 1.000000e+00 : f32
    %241 = vector.broadcast %cst_50 : f32 to vector<2x64xf32>
    %242 = arith.addf %241, %240 : vector<2x64xf32>
    %243 = arith.divf %241, %242 : vector<2x64xf32>
    %244 = vector.extract_strided_slice %237 {offsets = [0, 64], sizes = [2, 64], strides = [1, 1]} : vector<2x256xf32> to vector<2x64xf32>
    %245 = arith.negf %244 : vector<2x64xf32>
    %246 = math.exp %245 : vector<2x64xf32>
    %cst_51 = arith.constant 1.000000e+00 : f32
    %247 = vector.broadcast %cst_51 : f32 to vector<2x64xf32>
    %248 = arith.addf %247, %246 : vector<2x64xf32>
    %249 = arith.divf %247, %248 : vector<2x64xf32>
    %250 = vector.extract_strided_slice %237 {offsets = [0, 128], sizes = [2, 64], strides = [1, 1]} : vector<2x256xf32> to vector<2x64xf32>
    %251 = math.tanh %250 : vector<2x64xf32>
    %252 = vector.extract_strided_slice %237 {offsets = [0, 192], sizes = [2, 64], strides = [1, 1]} : vector<2x256xf32> to vector<2x64xf32>
    %253 = arith.negf %252 : vector<2x64xf32>
    %254 = math.exp %253 : vector<2x64xf32>
    %cst_52 = arith.constant 1.000000e+00 : f32
    %255 = vector.broadcast %cst_52 : f32 to vector<2x64xf32>
    %256 = arith.addf %255, %254 : vector<2x64xf32>
    %257 = arith.divf %255, %256 : vector<2x64xf32>
    %258 = arith.mulf %249, %226 : vector<2x64xf32>
    %259 = arith.mulf %243, %251 : vector<2x64xf32>
    %260 = arith.addf %258, %259 : vector<2x64xf32>
    %261 = math.tanh %260 : vector<2x64xf32>
    %262 = arith.mulf %257, %261 : vector<2x64xf32>
    %c6 = arith.constant 6 : index
    %c0_53 = arith.constant 0 : index
    %c0_54 = arith.constant 0 : index
    %263 = vector.load %arg8[%c6, %c0_53, %c0_54] : memref<8x2x64xf32, #tpu.memory_space<vmem>>, vector<1x2x64xf32>
    %264 = vector.shape_cast %263 : vector<1x2x64xf32> to vector<2x64xf32>
    %265 = vector.shape_cast %262 : vector<2x64xf32> to vector<1x2x64xf32>
    tpu.vector_store %arg8[%c6, %c0_53, %c0_54], %265 {strides = array<i32>} : memref<8x2x64xf32, #tpu.memory_space<vmem>>, vector<1x2x64xf32>,
    %266 = vector.extract_strided_slice %5 {offsets = [14, 0], sizes = [2, 256], strides = [1, 1]} : vector<16x256xf32> to vector<2x256xf32>
    %267 = vector.extract_strided_slice %5 {offsets = [0, 0], sizes = [2, 256], strides = [1, 1]} : vector<16x256xf32> to vector<2x256xf32>
    %268 = arith.select %25, %266, %267 : vector<2x256xi1>, vector<2x256xf32>
    %269 = arith.truncf %262 : vector<2x64xf32> to vector<2x64xbf16>
    %cst_55 = arith.constant dense<0.000000e+00> : vector<2x256xf32>
    %270 = tpu.matmul %269, %6, %cst_55 {dimension_numbers = #tpu.dot_dimension_numbers<[1], [0], [0], [1], [0, 0, 1, 1], [], []>} : vector<2x64xbf16>, vector<64x256xbf16>, vector<2x256xf32> -> vector<2x256xf32>
    %271 = arith.addf %268, %270 : vector<2x256xf32>
    %272 = vector.extract_strided_slice %271 {offsets = [0, 0], sizes = [2, 64], strides = [1, 1]} : vector<2x256xf32> to vector<2x64xf32>
    %273 = arith.negf %272 : vector<2x64xf32>
    %274 = math.exp %273 : vector<2x64xf32>
    %cst_56 = arith.constant 1.000000e+00 : f32
    %275 = vector.broadcast %cst_56 : f32 to vector<2x64xf32>
    %276 = arith.addf %275, %274 : vector<2x64xf32>
    %277 = arith.divf %275, %276 : vector<2x64xf32>
    %278 = vector.extract_strided_slice %271 {offsets = [0, 64], sizes = [2, 64], strides = [1, 1]} : vector<2x256xf32> to vector<2x64xf32>
    %279 = arith.negf %278 : vector<2x64xf32>
    %280 = math.exp %279 : vector<2x64xf32>
    %cst_57 = arith.constant 1.000000e+00 : f32
    %281 = vector.broadcast %cst_57 : f32 to vector<2x64xf32>
    %282 = arith.addf %281, %280 : vector<2x64xf32>
    %283 = arith.divf %281, %282 : vector<2x64xf32>
    %284 = vector.extract_strided_slice %271 {offsets = [0, 128], sizes = [2, 64], strides = [1, 1]} : vector<2x256xf32> to vector<2x64xf32>
    %285 = math.tanh %284 : vector<2x64xf32>
    %286 = vector.extract_strided_slice %271 {offsets = [0, 192], sizes = [2, 64], strides = [1, 1]} : vector<2x256xf32> to vector<2x64xf32>
    %287 = arith.negf %286 : vector<2x64xf32>
    %288 = math.exp %287 : vector<2x64xf32>
    %cst_58 = arith.constant 1.000000e+00 : f32
    %289 = vector.broadcast %cst_58 : f32 to vector<2x64xf32>
    %290 = arith.addf %289, %288 : vector<2x64xf32>
    %291 = arith.divf %289, %290 : vector<2x64xf32>
    %292 = arith.mulf %283, %260 : vector<2x64xf32>
    %293 = arith.mulf %277, %285 : vector<2x64xf32>
    %294 = arith.addf %292, %293 : vector<2x64xf32>
    %295 = math.tanh %294 : vector<2x64xf32>
    %296 = arith.mulf %291, %295 : vector<2x64xf32>
    %c7 = arith.constant 7 : index
    %c0_59 = arith.constant 0 : index
    %c0_60 = arith.constant 0 : index
    %297 = vector.load %arg8[%c7, %c0_59, %c0_60] : memref<8x2x64xf32, #tpu.memory_space<vmem>>, vector<1x2x64xf32>
    %298 = vector.shape_cast %297 : vector<1x2x64xf32> to vector<2x64xf32>
    %299 = vector.shape_cast %296 : vector<2x64xf32> to vector<1x2x64xf32>
    tpu.vector_store %arg8[%c7, %c0_59, %c0_60], %299 {strides = array<i32>} : memref<8x2x64xf32, #tpu.memory_space<vmem>>, vector<1x2x64xf32>,
    %c0_61 = arith.constant 0 : index
    %c0_62 = arith.constant 0 : index
    %300 = vector.load %arg5[%c0_61, %c0_62] : memref<1x64xf32, #tpu.memory_space<vmem>>, vector<1x64xf32>
    %c0_63 = arith.constant 0 : index
    %c0_64 = arith.constant 0 : index
    %301 = vector.load %arg6[%c0_63, %c0_64] : memref<1x64xf32, #tpu.memory_space<vmem>>, vector<1x64xf32>
    %c0_65 = arith.constant 0 : index
    %c0_66 = arith.constant 0 : index
    %c0_67 = arith.constant 0 : index
    %302 = vector.load %arg8[%c0_65, %c0_66, %c0_67] : memref<8x2x64xf32, #tpu.memory_space<vmem>>, vector<1x2x32xf32>
    %303 = vector.shape_cast %302 : vector<1x2x32xf32> to vector<2x32xf32>
    %c7_68 = arith.constant 7 : index
    %c0_69 = arith.constant 0 : index
    %c32 = arith.constant 32 : index
    %304 = vector.load %arg8[%c7_68, %c0_69, %c32] : memref<8x2x64xf32, #tpu.memory_space<vmem>>, vector<1x2x32xf32>
    %305 = vector.shape_cast %304 : vector<1x2x32xf32> to vector<2x32xf32>
    %306 = tpu.concatenate %303, %305 in 1 : vector<2x32xf32>, vector<2x32xf32> -> vector<2x64xf32>
    %cst_70 = arith.constant dense<0.000000e+00> : vector<2xf32>
    %307 = vector.multi_reduction <add>, %306, %cst_70 [1] : vector<2x64xf32> to vector<2xf32>
    %308 = vector.shape_cast %307 : vector<2xf32> to vector<2x1xf32>
    %cst_71 = arith.constant 6.400000e+01 : f32
    %309 = vector.broadcast %cst_71 : f32 to vector<2x1xf32>
    %310 = arith.divf %308, %309 : vector<2x1xf32>
    %311 = vector.broadcast %310 : vector<2x1xf32> to vector<2x64xf32>
    %312 = arith.subf %306, %311 : vector<2x64xf32>
    %313 = arith.mulf %312, %312 : vector<2x64xf32>
    %cst_72 = arith.constant dense<0.000000e+00> : vector<2xf32>
    %314 = vector.multi_reduction <add>, %313, %cst_72 [1] : vector<2x64xf32> to vector<2xf32>
    %315 = vector.shape_cast %314 : vector<2xf32> to vector<2x1xf32>
    %cst_73 = arith.constant 6.400000e+01 : f32
    %316 = vector.broadcast %cst_73 : f32 to vector<2x1xf32>
    %317 = arith.divf %315, %316 : vector<2x1xf32>
    %cst_74 = arith.constant 9.99999974E-6 : f32
    %318 = vector.broadcast %cst_74 : f32 to vector<2x1xf32>
    %319 = arith.addf %317, %318 : vector<2x1xf32>
    %320 = math.rsqrt %319 : vector<2x1xf32>
    %321 = vector.broadcast %320 : vector<2x1xf32> to vector<2x64xf32>
    %322 = arith.mulf %312, %321 : vector<2x64xf32>
    %323 = vector.broadcast %300 : vector<1x64xf32> to vector<2x64xf32>
    %324 = arith.mulf %322, %323 : vector<2x64xf32>
    %325 = vector.broadcast %301 : vector<1x64xf32> to vector<2x64xf32>
    %326 = arith.addf %324, %325 : vector<2x64xf32>
    %c0_75 = arith.constant 0 : index
    %c0_76 = arith.constant 0 : index
    %c0_77 = arith.constant 0 : index
    %327 = vector.load %arg7[%c0_75, %c0_76, %c0_77] : memref<8x2x64xf32, #tpu.memory_space<vmem>>, vector<1x2x64xf32>
    %328 = vector.shape_cast %327 : vector<1x2x64xf32> to vector<2x64xf32>
    %329 = vector.shape_cast %326 : vector<2x64xf32> to vector<1x2x64xf32>
    tpu.vector_store %arg7[%c0_75, %c0_76, %c0_77], %329 {strides = array<i32>} : memref<8x2x64xf32, #tpu.memory_space<vmem>>, vector<1x2x64xf32>,
    %c1_78 = arith.constant 1 : index
    %c0_79 = arith.constant 0 : index
    %c0_80 = arith.constant 0 : index
    %330 = vector.load %arg8[%c1_78, %c0_79, %c0_80] : memref<8x2x64xf32, #tpu.memory_space<vmem>>, vector<1x2x32xf32>
    %331 = vector.shape_cast %330 : vector<1x2x32xf32> to vector<2x32xf32>
    %c6_81 = arith.constant 6 : index
    %c0_82 = arith.constant 0 : index
    %c32_83 = arith.constant 32 : index
    %332 = vector.load %arg8[%c6_81, %c0_82, %c32_83] : memref<8x2x64xf32, #tpu.memory_space<vmem>>, vector<1x2x32xf32>
    %333 = vector.shape_cast %332 : vector<1x2x32xf32> to vector<2x32xf32>
    %334 = tpu.concatenate %331, %333 in 1 : vector<2x32xf32>, vector<2x32xf32> -> vector<2x64xf32>
    %cst_84 = arith.constant dense<0.000000e+00> : vector<2xf32>
    %335 = vector.multi_reduction <add>, %334, %cst_84 [1] : vector<2x64xf32> to vector<2xf32>
    %336 = vector.shape_cast %335 : vector<2xf32> to vector<2x1xf32>
    %cst_85 = arith.constant 6.400000e+01 : f32
    %337 = vector.broadcast %cst_85 : f32 to vector<2x1xf32>
    %338 = arith.divf %336, %337 : vector<2x1xf32>
    %339 = vector.broadcast %338 : vector<2x1xf32> to vector<2x64xf32>
    %340 = arith.subf %334, %339 : vector<2x64xf32>
    %341 = arith.mulf %340, %340 : vector<2x64xf32>
    %cst_86 = arith.constant dense<0.000000e+00> : vector<2xf32>
    %342 = vector.multi_reduction <add>, %341, %cst_86 [1] : vector<2x64xf32> to vector<2xf32>
    %343 = vector.shape_cast %342 : vector<2xf32> to vector<2x1xf32>
    %cst_87 = arith.constant 6.400000e+01 : f32
    %344 = vector.broadcast %cst_87 : f32 to vector<2x1xf32>
    %345 = arith.divf %343, %344 : vector<2x1xf32>
    %cst_88 = arith.constant 9.99999974E-6 : f32
    %346 = vector.broadcast %cst_88 : f32 to vector<2x1xf32>
    %347 = arith.addf %345, %346 : vector<2x1xf32>
    %348 = math.rsqrt %347 : vector<2x1xf32>
    %349 = vector.broadcast %348 : vector<2x1xf32> to vector<2x64xf32>
    %350 = arith.mulf %340, %349 : vector<2x64xf32>
    %351 = vector.broadcast %300 : vector<1x64xf32> to vector<2x64xf32>
    %352 = arith.mulf %350, %351 : vector<2x64xf32>
    %353 = vector.broadcast %301 : vector<1x64xf32> to vector<2x64xf32>
    %354 = arith.addf %352, %353 : vector<2x64xf32>
    %c1_89 = arith.constant 1 : index
    %c0_90 = arith.constant 0 : index
    %c0_91 = arith.constant 0 : index
    %355 = vector.load %arg7[%c1_89, %c0_90, %c0_91] : memref<8x2x64xf32, #tpu.memory_space<vmem>>, vector<1x2x64xf32>
    %356 = vector.shape_cast %355 : vector<1x2x64xf32> to vector<2x64xf32>
    %357 = vector.shape_cast %354 : vector<2x64xf32> to vector<1x2x64xf32>
    tpu.vector_store %arg7[%c1_89, %c0_90, %c0_91], %357 {strides = array<i32>} : memref<8x2x64xf32, #tpu.memory_space<vmem>>, vector<1x2x64xf32>,
    %c2_92 = arith.constant 2 : index
    %c0_93 = arith.constant 0 : index
    %c0_94 = arith.constant 0 : index
    %358 = vector.load %arg8[%c2_92, %c0_93, %c0_94] : memref<8x2x64xf32, #tpu.memory_space<vmem>>, vector<1x2x32xf32>
    %359 = vector.shape_cast %358 : vector<1x2x32xf32> to vector<2x32xf32>
    %c5_95 = arith.constant 5 : index
    %c0_96 = arith.constant 0 : index
    %c32_97 = arith.constant 32 : index
    %360 = vector.load %arg8[%c5_95, %c0_96, %c32_97] : memref<8x2x64xf32, #tpu.memory_space<vmem>>, vector<1x2x32xf32>
    %361 = vector.shape_cast %360 : vector<1x2x32xf32> to vector<2x32xf32>
    %362 = tpu.concatenate %359, %361 in 1 : vector<2x32xf32>, vector<2x32xf32> -> vector<2x64xf32>
    %cst_98 = arith.constant dense<0.000000e+00> : vector<2xf32>
    %363 = vector.multi_reduction <add>, %362, %cst_98 [1] : vector<2x64xf32> to vector<2xf32>
    %364 = vector.shape_cast %363 : vector<2xf32> to vector<2x1xf32>
    %cst_99 = arith.constant 6.400000e+01 : f32
    %365 = vector.broadcast %cst_99 : f32 to vector<2x1xf32>
    %366 = arith.divf %364, %365 : vector<2x1xf32>
    %367 = vector.broadcast %366 : vector<2x1xf32> to vector<2x64xf32>
    %368 = arith.subf %362, %367 : vector<2x64xf32>
    %369 = arith.mulf %368, %368 : vector<2x64xf32>
    %cst_100 = arith.constant dense<0.000000e+00> : vector<2xf32>
    %370 = vector.multi_reduction <add>, %369, %cst_100 [1] : vector<2x64xf32> to vector<2xf32>
    %371 = vector.shape_cast %370 : vector<2xf32> to vector<2x1xf32>
    %cst_101 = arith.constant 6.400000e+01 : f32
    %372 = vector.broadcast %cst_101 : f32 to vector<2x1xf32>
    %373 = arith.divf %371, %372 : vector<2x1xf32>
    %cst_102 = arith.constant 9.99999974E-6 : f32
    %374 = vector.broadcast %cst_102 : f32 to vector<2x1xf32>
    %375 = arith.addf %373, %374 : vector<2x1xf32>
    %376 = math.rsqrt %375 : vector<2x1xf32>
    %377 = vector.broadcast %376 : vector<2x1xf32> to vector<2x64xf32>
    %378 = arith.mulf %368, %377 : vector<2x64xf32>
    %379 = vector.broadcast %300 : vector<1x64xf32> to vector<2x64xf32>
    %380 = arith.mulf %378, %379 : vector<2x64xf32>
    %381 = vector.broadcast %301 : vector<1x64xf32> to vector<2x64xf32>
    %382 = arith.addf %380, %381 : vector<2x64xf32>
    %c2_103 = arith.constant 2 : index
    %c0_104 = arith.constant 0 : index
    %c0_105 = arith.constant 0 : index
    %383 = vector.load %arg7[%c2_103, %c0_104, %c0_105] : memref<8x2x64xf32, #tpu.memory_space<vmem>>, vector<1x2x64xf32>
    %384 = vector.shape_cast %383 : vector<1x2x64xf32> to vector<2x64xf32>
    %385 = vector.shape_cast %382 : vector<2x64xf32> to vector<1x2x64xf32>
    tpu.vector_store %arg7[%c2_103, %c0_104, %c0_105], %385 {strides = array<i32>} : memref<8x2x64xf32, #tpu.memory_space<vmem>>, vector<1x2x64xf32>,
    %c3_106 = arith.constant 3 : index
    %c0_107 = arith.constant 0 : index
    %c0_108 = arith.constant 0 : index
    %386 = vector.load %arg8[%c3_106, %c0_107, %c0_108] : memref<8x2x64xf32, #tpu.memory_space<vmem>>, vector<1x2x32xf32>
    %387 = vector.shape_cast %386 : vector<1x2x32xf32> to vector<2x32xf32>
    %c4_109 = arith.constant 4 : index
    %c0_110 = arith.constant 0 : index
    %c32_111 = arith.constant 32 : index
    %388 = vector.load %arg8[%c4_109, %c0_110, %c32_111] : memref<8x2x64xf32, #tpu.memory_space<vmem>>, vector<1x2x32xf32>
    %389 = vector.shape_cast %388 : vector<1x2x32xf32> to vector<2x32xf32>
    %390 = tpu.concatenate %387, %389 in 1 : vector<2x32xf32>, vector<2x32xf32> -> vector<2x64xf32>
    %cst_112 = arith.constant dense<0.000000e+00> : vector<2xf32>
    %391 = vector.multi_reduction <add>, %390, %cst_112 [1] : vector<2x64xf32> to vector<2xf32>
    %392 = vector.shape_cast %391 : vector<2xf32> to vector<2x1xf32>
    %cst_113 = arith.constant 6.400000e+01 : f32
    %393 = vector.broadcast %cst_113 : f32 to vector<2x1xf32>
    %394 = arith.divf %392, %393 : vector<2x1xf32>
    %395 = vector.broadcast %394 : vector<2x1xf32> to vector<2x64xf32>
    %396 = arith.subf %390, %395 : vector<2x64xf32>
    %397 = arith.mulf %396, %396 : vector<2x64xf32>
    %cst_114 = arith.constant dense<0.000000e+00> : vector<2xf32>
    %398 = vector.multi_reduction <add>, %397, %cst_114 [1] : vector<2x64xf32> to vector<2xf32>
    %399 = vector.shape_cast %398 : vector<2xf32> to vector<2x1xf32>
    %cst_115 = arith.constant 6.400000e+01 : f32
    %400 = vector.broadcast %cst_115 : f32 to vector<2x1xf32>
    %401 = arith.divf %399, %400 : vector<2x1xf32>
    %cst_116 = arith.constant 9.99999974E-6 : f32
    %402 = vector.broadcast %cst_116 : f32 to vector<2x1xf32>
    %403 = arith.addf %401, %402 : vector<2x1xf32>
    %404 = math.rsqrt %403 : vector<2x1xf32>
    %405 = vector.broadcast %404 : vector<2x1xf32> to vector<2x64xf32>
    %406 = arith.mulf %396, %405 : vector<2x64xf32>
    %407 = vector.broadcast %300 : vector<1x64xf32> to vector<2x64xf32>
    %408 = arith.mulf %406, %407 : vector<2x64xf32>
    %409 = vector.broadcast %301 : vector<1x64xf32> to vector<2x64xf32>
    %410 = arith.addf %408, %409 : vector<2x64xf32>
    %c3_117 = arith.constant 3 : index
    %c0_118 = arith.constant 0 : index
    %c0_119 = arith.constant 0 : index
    %411 = vector.load %arg7[%c3_117, %c0_118, %c0_119] : memref<8x2x64xf32, #tpu.memory_space<vmem>>, vector<1x2x64xf32>
    %412 = vector.shape_cast %411 : vector<1x2x64xf32> to vector<2x64xf32>
    %413 = vector.shape_cast %410 : vector<2x64xf32> to vector<1x2x64xf32>
    tpu.vector_store %arg7[%c3_117, %c0_118, %c0_119], %413 {strides = array<i32>} : memref<8x2x64xf32, #tpu.memory_space<vmem>>, vector<1x2x64xf32>,
    %c4_120 = arith.constant 4 : index
    %c0_121 = arith.constant 0 : index
    %c0_122 = arith.constant 0 : index
    %414 = vector.load %arg8[%c4_120, %c0_121, %c0_122] : memref<8x2x64xf32, #tpu.memory_space<vmem>>, vector<1x2x32xf32>
    %415 = vector.shape_cast %414 : vector<1x2x32xf32> to vector<2x32xf32>
    %c3_123 = arith.constant 3 : index
    %c0_124 = arith.constant 0 : index
    %c32_125 = arith.constant 32 : index
    %416 = vector.load %arg8[%c3_123, %c0_124, %c32_125] : memref<8x2x64xf32, #tpu.memory_space<vmem>>, vector<1x2x32xf32>
    %417 = vector.shape_cast %416 : vector<1x2x32xf32> to vector<2x32xf32>
    %418 = tpu.concatenate %415, %417 in 1 : vector<2x32xf32>, vector<2x32xf32> -> vector<2x64xf32>
    %cst_126 = arith.constant dense<0.000000e+00> : vector<2xf32>
    %419 = vector.multi_reduction <add>, %418, %cst_126 [1] : vector<2x64xf32> to vector<2xf32>
    %420 = vector.shape_cast %419 : vector<2xf32> to vector<2x1xf32>
    %cst_127 = arith.constant 6.400000e+01 : f32
    %421 = vector.broadcast %cst_127 : f32 to vector<2x1xf32>
    %422 = arith.divf %420, %421 : vector<2x1xf32>
    %423 = vector.broadcast %422 : vector<2x1xf32> to vector<2x64xf32>
    %424 = arith.subf %418, %423 : vector<2x64xf32>
    %425 = arith.mulf %424, %424 : vector<2x64xf32>
    %cst_128 = arith.constant dense<0.000000e+00> : vector<2xf32>
    %426 = vector.multi_reduction <add>, %425, %cst_128 [1] : vector<2x64xf32> to vector<2xf32>
    %427 = vector.shape_cast %426 : vector<2xf32> to vector<2x1xf32>
    %cst_129 = arith.constant 6.400000e+01 : f32
    %428 = vector.broadcast %cst_129 : f32 to vector<2x1xf32>
    %429 = arith.divf %427, %428 : vector<2x1xf32>
    %cst_130 = arith.constant 9.99999974E-6 : f32
    %430 = vector.broadcast %cst_130 : f32 to vector<2x1xf32>
    %431 = arith.addf %429, %430 : vector<2x1xf32>
    %432 = math.rsqrt %431 : vector<2x1xf32>
    %433 = vector.broadcast %432 : vector<2x1xf32> to vector<2x64xf32>
    %434 = arith.mulf %424, %433 : vector<2x64xf32>
    %435 = vector.broadcast %300 : vector<1x64xf32> to vector<2x64xf32>
    %436 = arith.mulf %434, %435 : vector<2x64xf32>
    %437 = vector.broadcast %301 : vector<1x64xf32> to vector<2x64xf32>
    %438 = arith.addf %436, %437 : vector<2x64xf32>
    %c4_131 = arith.constant 4 : index
    %c0_132 = arith.constant 0 : index
    %c0_133 = arith.constant 0 : index
    %439 = vector.load %arg7[%c4_131, %c0_132, %c0_133] : memref<8x2x64xf32, #tpu.memory_space<vmem>>, vector<1x2x64xf32>
    %440 = vector.shape_cast %439 : vector<1x2x64xf32> to vector<2x64xf32>
    %441 = vector.shape_cast %438 : vector<2x64xf32> to vector<1x2x64xf32>
    tpu.vector_store %arg7[%c4_131, %c0_132, %c0_133], %441 {strides = array<i32>} : memref<8x2x64xf32, #tpu.memory_space<vmem>>, vector<1x2x64xf32>,
    %c5_134 = arith.constant 5 : index
    %c0_135 = arith.constant 0 : index
    %c0_136 = arith.constant 0 : index
    %442 = vector.load %arg8[%c5_134, %c0_135, %c0_136] : memref<8x2x64xf32, #tpu.memory_space<vmem>>, vector<1x2x32xf32>
    %443 = vector.shape_cast %442 : vector<1x2x32xf32> to vector<2x32xf32>
    %c2_137 = arith.constant 2 : index
    %c0_138 = arith.constant 0 : index
    %c32_139 = arith.constant 32 : index
    %444 = vector.load %arg8[%c2_137, %c0_138, %c32_139] : memref<8x2x64xf32, #tpu.memory_space<vmem>>, vector<1x2x32xf32>
    %445 = vector.shape_cast %444 : vector<1x2x32xf32> to vector<2x32xf32>
    %446 = tpu.concatenate %443, %445 in 1 : vector<2x32xf32>, vector<2x32xf32> -> vector<2x64xf32>
    %cst_140 = arith.constant dense<0.000000e+00> : vector<2xf32>
    %447 = vector.multi_reduction <add>, %446, %cst_140 [1] : vector<2x64xf32> to vector<2xf32>
    %448 = vector.shape_cast %447 : vector<2xf32> to vector<2x1xf32>
    %cst_141 = arith.constant 6.400000e+01 : f32
    %449 = vector.broadcast %cst_141 : f32 to vector<2x1xf32>
    %450 = arith.divf %448, %449 : vector<2x1xf32>
    %451 = vector.broadcast %450 : vector<2x1xf32> to vector<2x64xf32>
    %452 = arith.subf %446, %451 : vector<2x64xf32>
    %453 = arith.mulf %452, %452 : vector<2x64xf32>
    %cst_142 = arith.constant dense<0.000000e+00> : vector<2xf32>
    %454 = vector.multi_reduction <add>, %453, %cst_142 [1] : vector<2x64xf32> to vector<2xf32>
    %455 = vector.shape_cast %454 : vector<2xf32> to vector<2x1xf32>
    %cst_143 = arith.constant 6.400000e+01 : f32
    %456 = vector.broadcast %cst_143 : f32 to vector<2x1xf32>
    %457 = arith.divf %455, %456 : vector<2x1xf32>
    %cst_144 = arith.constant 9.99999974E-6 : f32
    %458 = vector.broadcast %cst_144 : f32 to vector<2x1xf32>
    %459 = arith.addf %457, %458 : vector<2x1xf32>
    %460 = math.rsqrt %459 : vector<2x1xf32>
    %461 = vector.broadcast %460 : vector<2x1xf32> to vector<2x64xf32>
    %462 = arith.mulf %452, %461 : vector<2x64xf32>
    %463 = vector.broadcast %300 : vector<1x64xf32> to vector<2x64xf32>
    %464 = arith.mulf %462, %463 : vector<2x64xf32>
    %465 = vector.broadcast %301 : vector<1x64xf32> to vector<2x64xf32>
    %466 = arith.addf %464, %465 : vector<2x64xf32>
    %c5_145 = arith.constant 5 : index
    %c0_146 = arith.constant 0 : index
    %c0_147 = arith.constant 0 : index
    %467 = vector.load %arg7[%c5_145, %c0_146, %c0_147] : memref<8x2x64xf32, #tpu.memory_space<vmem>>, vector<1x2x64xf32>
    %468 = vector.shape_cast %467 : vector<1x2x64xf32> to vector<2x64xf32>
    %469 = vector.shape_cast %466 : vector<2x64xf32> to vector<1x2x64xf32>
    tpu.vector_store %arg7[%c5_145, %c0_146, %c0_147], %469 {strides = array<i32>} : memref<8x2x64xf32, #tpu.memory_space<vmem>>, vector<1x2x64xf32>,
    %c6_148 = arith.constant 6 : index
    %c0_149 = arith.constant 0 : index
    %c0_150 = arith.constant 0 : index
    %470 = vector.load %arg8[%c6_148, %c0_149, %c0_150] : memref<8x2x64xf32, #tpu.memory_space<vmem>>, vector<1x2x32xf32>
    %471 = vector.shape_cast %470 : vector<1x2x32xf32> to vector<2x32xf32>
    %c1_151 = arith.constant 1 : index
    %c0_152 = arith.constant 0 : index
    %c32_153 = arith.constant 32 : index
    %472 = vector.load %arg8[%c1_151, %c0_152, %c32_153] : memref<8x2x64xf32, #tpu.memory_space<vmem>>, vector<1x2x32xf32>
    %473 = vector.shape_cast %472 : vector<1x2x32xf32> to vector<2x32xf32>
    %474 = tpu.concatenate %471, %473 in 1 : vector<2x32xf32>, vector<2x32xf32> -> vector<2x64xf32>
    %cst_154 = arith.constant dense<0.000000e+00> : vector<2xf32>
    %475 = vector.multi_reduction <add>, %474, %cst_154 [1] : vector<2x64xf32> to vector<2xf32>
    %476 = vector.shape_cast %475 : vector<2xf32> to vector<2x1xf32>
    %cst_155 = arith.constant 6.400000e+01 : f32
    %477 = vector.broadcast %cst_155 : f32 to vector<2x1xf32>
    %478 = arith.divf %476, %477 : vector<2x1xf32>
    %479 = vector.broadcast %478 : vector<2x1xf32> to vector<2x64xf32>
    %480 = arith.subf %474, %479 : vector<2x64xf32>
    %481 = arith.mulf %480, %480 : vector<2x64xf32>
    %cst_156 = arith.constant dense<0.000000e+00> : vector<2xf32>
    %482 = vector.multi_reduction <add>, %481, %cst_156 [1] : vector<2x64xf32> to vector<2xf32>
    %483 = vector.shape_cast %482 : vector<2xf32> to vector<2x1xf32>
    %cst_157 = arith.constant 6.400000e+01 : f32
    %484 = vector.broadcast %cst_157 : f32 to vector<2x1xf32>
    %485 = arith.divf %483, %484 : vector<2x1xf32>
    %cst_158 = arith.constant 9.99999974E-6 : f32
    %486 = vector.broadcast %cst_158 : f32 to vector<2x1xf32>
    %487 = arith.addf %485, %486 : vector<2x1xf32>
    %488 = math.rsqrt %487 : vector<2x1xf32>
    %489 = vector.broadcast %488 : vector<2x1xf32> to vector<2x64xf32>
    %490 = arith.mulf %480, %489 : vector<2x64xf32>
    %491 = vector.broadcast %300 : vector<1x64xf32> to vector<2x64xf32>
    %492 = arith.mulf %490, %491 : vector<2x64xf32>
    %493 = vector.broadcast %301 : vector<1x64xf32> to vector<2x64xf32>
    %494 = arith.addf %492, %493 : vector<2x64xf32>
    %c6_159 = arith.constant 6 : index
    %c0_160 = arith.constant 0 : index
    %c0_161 = arith.constant 0 : index
    %495 = vector.load %arg7[%c6_159, %c0_160, %c0_161] : memref<8x2x64xf32, #tpu.memory_space<vmem>>, vector<1x2x64xf32>
    %496 = vector.shape_cast %495 : vector<1x2x64xf32> to vector<2x64xf32>
    %497 = vector.shape_cast %494 : vector<2x64xf32> to vector<1x2x64xf32>
    tpu.vector_store %arg7[%c6_159, %c0_160, %c0_161], %497 {strides = array<i32>} : memref<8x2x64xf32, #tpu.memory_space<vmem>>, vector<1x2x64xf32>,
    %c7_162 = arith.constant 7 : index
    %c0_163 = arith.constant 0 : index
    %c0_164 = arith.constant 0 : index
    %498 = vector.load %arg8[%c7_162, %c0_163, %c0_164] : memref<8x2x64xf32, #tpu.memory_space<vmem>>, vector<1x2x32xf32>
    %499 = vector.shape_cast %498 : vector<1x2x32xf32> to vector<2x32xf32>
    %c0_165 = arith.constant 0 : index
    %c0_166 = arith.constant 0 : index
    %c32_167 = arith.constant 32 : index
    %500 = vector.load %arg8[%c0_165, %c0_166, %c32_167] : memref<8x2x64xf32, #tpu.memory_space<vmem>>, vector<1x2x32xf32>
    %501 = vector.shape_cast %500 : vector<1x2x32xf32> to vector<2x32xf32>
    %502 = tpu.concatenate %499, %501 in 1 : vector<2x32xf32>, vector<2x32xf32> -> vector<2x64xf32>
    %cst_168 = arith.constant dense<0.000000e+00> : vector<2xf32>
    %503 = vector.multi_reduction <add>, %502, %cst_168 [1] : vector<2x64xf32> to vector<2xf32>
    %504 = vector.shape_cast %503 : vector<2xf32> to vector<2x1xf32>
    %cst_169 = arith.constant 6.400000e+01 : f32
    %505 = vector.broadcast %cst_169 : f32 to vector<2x1xf32>
    %506 = arith.divf %504, %505 : vector<2x1xf32>
    %507 = vector.broadcast %506 : vector<2x1xf32> to vector<2x64xf32>
    %508 = arith.subf %502, %507 : vector<2x64xf32>
    %509 = arith.mulf %508, %508 : vector<2x64xf32>
    %cst_170 = arith.constant dense<0.000000e+00> : vector<2xf32>
    %510 = vector.multi_reduction <add>, %509, %cst_170 [1] : vector<2x64xf32> to vector<2xf32>
    %511 = vector.shape_cast %510 : vector<2xf32> to vector<2x1xf32>
    %cst_171 = arith.constant 6.400000e+01 : f32
    %512 = vector.broadcast %cst_171 : f32 to vector<2x1xf32>
    %513 = arith.divf %511, %512 : vector<2x1xf32>
    %cst_172 = arith.constant 9.99999974E-6 : f32
    %514 = vector.broadcast %cst_172 : f32 to vector<2x1xf32>
    %515 = arith.addf %513, %514 : vector<2x1xf32>
    %516 = math.rsqrt %515 : vector<2x1xf32>
    %517 = vector.broadcast %516 : vector<2x1xf32> to vector<2x64xf32>
    %518 = arith.mulf %508, %517 : vector<2x64xf32>
    %519 = vector.broadcast %300 : vector<1x64xf32> to vector<2x64xf32>
    %520 = arith.mulf %518, %519 : vector<2x64xf32>
    %521 = vector.broadcast %301 : vector<1x64xf32> to vector<2x64xf32>
    %522 = arith.addf %520, %521 : vector<2x64xf32>
    %c7_173 = arith.constant 7 : index
    %c0_174 = arith.constant 0 : index
    %c0_175 = arith.constant 0 : index
    %523 = vector.load %arg7[%c7_173, %c0_174, %c0_175] : memref<8x2x64xf32, #tpu.memory_space<vmem>>, vector<1x2x64xf32>
    %524 = vector.shape_cast %523 : vector<1x2x64xf32> to vector<2x64xf32>
    %525 = vector.shape_cast %522 : vector<2x64xf32> to vector<1x2x64xf32>
    tpu.vector_store %arg7[%c7_173, %c0_174, %c0_175], %525 {strides = array<i32>} : memref<8x2x64xf32, #tpu.memory_space<vmem>>, vector<1x2x64xf32>,
    return
  }
  func.func @transform_0(%arg0: i32) -> (i32, i32) {
    %c0_i32 = arith.constant 0 : i32
    %c0_i32_0 = arith.constant 0 : i32
    %c0_i32_1 = arith.constant 0 : i32
    return %c0_i32, %c0_i32_0 : i32, i32
  }
  func.func @transform_1(%arg0: i32) -> (i32, i32) {
    %c0_i32 = arith.constant 0 : i32
    %c0_i32_0 = arith.constant 0 : i32
    %c0_i32_1 = arith.constant 0 : i32
    return %c0_i32, %c0_i32_0 : i32, i32
  }
  func.func @transform_2(%arg0: i32) -> (i32, i32) {
    %c0_i32 = arith.constant 0 : i32
    %c0_i32_0 = arith.constant 0 : i32
    %c0_i32_1 = arith.constant 0 : i32
    return %c0_i32, %c0_i32_0 : i32, i32
  }
  func.func @transform_3(%arg0: i32) -> (i32, i32) {
    %c0_i32 = arith.constant 0 : i32
    %c0_i32_0 = arith.constant 0 : i32
    %c0_i32_1 = arith.constant 0 : i32
    return %c0_i32, %c0_i32_0 : i32, i32
  }
  func.func @transform_4(%arg0: i32) -> (i32, i32) {
    %c0_i32 = arith.constant 0 : i32
    %c0_i32_0 = arith.constant 0 : i32
    %c0_i32_1 = arith.constant 0 : i32
    return %c0_i32, %c0_i32_0 : i32, i32
  }
  func.func @transform_5(%arg0: i32) -> (i32, i32) {
    %c0_i32 = arith.constant 0 : i32
    %c0_i32_0 = arith.constant 0 : i32
    %c0_i32_1 = arith.constant 0 : i32
    return %c0_i32, %c0_i32_0 : i32, i32
  }
  func.func @transform_6(%arg0: i32) -> (i32, i32, i32) {
    %c0_i32 = arith.constant 0 : i32
    %c0_i32_0 = arith.constant 0 : i32
    %c0_i32_1 = arith.constant 0 : i32
    %c0_i32_2 = arith.constant 0 : i32
    return %c0_i32, %c0_i32_0, %c0_i32_1 : i32, i32, i32
  }
}

</mosaic_0001>

<llo_original>
// kernel: deepconvlstm_forward.11
$region0: #{deepconvlstm_forward.11}
  #allocation0 [shape = 'u32[]', space=smem, size = 0x4, offset = 0x4, fixed_abs, tag = 'smem constant byte address 0x4 - core index']
  #allocation1 [shape = 'u32[144,128]{1,0:T(1,128)}', space=vmem, size = 0x12000, scoped, tag = 'internal scratch']
  %s0 = inlined_call_operand.vmem [shape: bf16[192,9], index: 0, kind: input, shape index: {}]
  %s1 = inlined_call_operand.vmem [shape: bf16[9,64], index: 1, kind: input, shape index: {}]
  %s2 = inlined_call_operand.hbm [shape: f32[1,64], index: 2, kind: input, shape index: {}]
  %s3 = inlined_call_operand.hbm [shape: f32[1,64], index: 3, kind: input, shape index: {}]
  %s4 = inlined_call_operand.hbm [shape: f32[1,64], index: 4, kind: input, shape index: {}]
  %s5 = inlined_call_operand.vmem [shape: bf16[192,64], index: 5, kind: output, shape index: {}]
  %s6 = sld [smem:[#allocation0]]
  $region42: #{deepconvlstm_forward.11} parent=0
    _
  %s8 = ssub.s32 1, %s6
  %s9 = scalar_select 0, %s8, %s6
  $region1: #{deepconvlstm_forward.11} parent=0
    #allocation2 [shape = 'u8[512]{0}', space=vmem, size = 0x400, scoped, tag = 'input window, operand 2, single buffered']
    #allocation3 [shape = 's32[1]{0}', space=sflag, size = 0x4, scoped, tag = 'scoped memory for deepconvlstm_forward.11']
    #allocation4 [shape = 'u8[512]{0}', space=vmem, size = 0x400, scoped, tag = 'input window, operand 3, single buffered']
    #allocation5 [shape = 's32[1]{0}', space=sflag, size = 0x4, scoped, tag = 'scoped memory for deepconvlstm_forward.11']
    #allocation6 [shape = 'u8[512]{0}', space=vmem, size = 0x400, scoped, tag = 'input window, operand 4, single buffered']
    %10 = vsyncpa [#allocation3], 0
    %11 = vsyncpa [#allocation5], 0
    // Predicated region
    $region2: #{deepconvlstm_forward.11} parent=1 // pred_check
      _
    $region3: #{deepconvlstm_forward.11} parent=1 // pred_check_branch
      %13 = sbr.rel (0) target = $region5
    $region4: #{deepconvlstm_forward.11} parent=1 // pred_region
      _
    $region5: #{deepconvlstm_forward.11} parent=1 // pred_fallthru
      _
    // Predicated region
    $region6: #{deepconvlstm_forward.11} parent=1 // pred_check
      _
    $region7: #{deepconvlstm_forward.11} parent=1 // pred_check_branch
      %15 = sbr.rel (0) target = $region9
    $region8: #{deepconvlstm_forward.11} parent=1 // pred_region
      _
    $region9: #{deepconvlstm_forward.11} parent=1 // pred_fallthru
      _
    // Predicated region
    $region10: #{deepconvlstm_forward.11} parent=1 // pred_check
      _
    $region11: #{deepconvlstm_forward.11} parent=1 // pred_check_branch
      %17 = sbr.rel (0) target = $region13
    $region12: #{deepconvlstm_forward.11} parent=1 // pred_region
      %s19 = ssub.s32 16, 16
      %20 = vsyncadd [#allocation3], %s19
      %s22 = sshll.u32 [#allocation2], 4
      %s23 = int_to_ptr.vmem [resolvable:$true] %s22
      %25 = dma.hbm_to_vmem [thread:$0]  %s2, 16, %s23, [#allocation3]
    $region13: #{deepconvlstm_forward.11} parent=1 // pred_fallthru
      _
    // Predicated region
    $region14: #{deepconvlstm_forward.11} parent=1 // pred_check
      _
    $region15: #{deepconvlstm_forward.11} parent=1 // pred_check_branch
      %27 = sbr.rel (0) target = $region17
    $region16: #{deepconvlstm_forward.11} parent=1 // pred_region
      %s29 = ssub.s32 16, 16
      %30 = vsyncadd [#allocation5], %s29
      %s32 = sshll.u32 [#allocation4], 4
      %s33 = int_to_ptr.vmem [resolvable:$true] %s32
      %35 = dma.hbm_to_vmem [thread:$0]  %s3, 16, %s33, [#allocation5]
    $region17: #{deepconvlstm_forward.11} parent=1 // pred_fallthru
      _
    // Predicated region
    $region18: #{deepconvlstm_forward.11} parent=1 // pred_check
      _
    $region19: #{deepconvlstm_forward.11} parent=1 // pred_check_branch
      %37 = sbr.rel (0) target = $region21
    $region20: #{deepconvlstm_forward.11} parent=1 // pred_region
      %s39 = ssub.s32 16, 16
      %40 = vsyncadd [#allocation5], %s39
      %s42 = sshll.u32 [#allocation6], 4
      %s43 = int_to_ptr.vmem [resolvable:$true] %s42
      %45 = dma.hbm_to_vmem [thread:$0]  %s4, 16, %s43, [#allocation5]
    $region21: #{deepconvlstm_forward.11} parent=1 // pred_fallthru
      _
    // Predicated region
    $region22: #{deepconvlstm_forward.11} parent=1 // pred_check
      _
    $region23: #{deepconvlstm_forward.11} parent=1 // pred_check_branch
      %47 = sbr.rel (0) target = $region25
    $region24: #{deepconvlstm_forward.11} parent=1 // pred_region
      %48 = dma.done [#allocation3], 16
    $region25: #{deepconvlstm_forward.11} parent=1 // pred_fallthru
      _
    // Predicated region
    $region26: #{deepconvlstm_forward.11} parent=1 // pred_check
      _
    $region27: #{deepconvlstm_forward.11} parent=1 // pred_check_branch
      %50 = sbr.rel (0) target = $region29
    $region28: #{deepconvlstm_forward.11} parent=1 // pred_region
      %51 = dma.done [#allocation5], 16
    $region29: #{deepconvlstm_forward.11} parent=1 // pred_fallthru
      _
    // Predicated region
    $region30: #{deepconvlstm_forward.11} parent=1 // pred_check
      _
    $region31: #{deepconvlstm_forward.11} parent=1 // pred_check_branch
      %53 = sbr.rel (0) target = $region33
    $region32: #{deepconvlstm_forward.11} parent=1 // pred_region
      %54 = dma.done [#allocation5], 16
    $region33: #{deepconvlstm_forward.11} parent=1 // pred_fallthru
      _
    %v56 = vld [vmem:[%s0] sm:$0xf]
    %v57 = vld [vmem:[%s0 + $0x4] sm:$0xf]
    %v58 = vld [vmem:[%s0 + $0x8] sm:$0xf]
    %v59 = vld [vmem:[%s0 + $0xc] sm:$0xf]
    %v60 = vld [vmem:[%s0 + $0x10] sm:$0xf]
    %v61 = vld [vmem:[%s0 + $0x14] sm:$0xf]
    %v62 = vld [vmem:[%s0 + $0x18] sm:$0xf]
    %v63 = vld [vmem:[%s0 + $0x1c] sm:$0xf]
    %v64 = vld [vmem:[%s0 + $0x20] sm:$0xf]
    %v65 = vld [vmem:[%s0 + $0x24] sm:$0xf]
    %v66 = vld [vmem:[%s0 + $0x28] sm:$0xf]
    %v67 = vld [vmem:[%s0 + $0x2c] sm:$0xf]
    %v68 = vld [vmem:[%s0 + $0x30] sm:$0xf]
    %v69 = vld [vmem:[%s0 + $0x34] sm:$0xf]
    %v70 = vld [vmem:[%s0 + $0x38] sm:$0xf]
    %v71 = vld [vmem:[%s0 + $0x3c] sm:$0xf]
    %v72 = vld [vmem:[%s0 + $0x40] sm:$0xf]
    %v73 = vld [vmem:[%s0 + $0x44] sm:$0xf]
    %v74 = vld [vmem:[%s0 + $0x48] sm:$0xf]
    %v75 = vld [vmem:[%s0 + $0x4c] sm:$0xf]
    %v76 = vld [vmem:[%s0 + $0x50] sm:$0xf]
    %v77 = vld [vmem:[%s0 + $0x54] sm:$0xf]
    %v78 = vld [vmem:[%s0 + $0x58] sm:$0xf]
    %v79 = vld [vmem:[%s0 + $0x5c] sm:$0xf]
    %v80 = vld [vmem:[%s1] sm:$0xf]
    %v81 = vld [vmem:[%s1 + $0x4] sm:$0x1]
    %v82 = vld [vmem:[#allocation2] sm:$0x1]
    %v84 = vlaneseq
    %v85 = vshrl.u32 %v84, 7
    %v86 = vsub.s32 0, %v85
    %v87 = vrot.slane %v82, %v86
    %v113 = vunpack.c.l.b16 %v56
    %v114 = vunpack.c.l.b16 %v57
    %v115 = vunpack.c.l.b16 %v58
    %v116 = vunpack.c.l.b16 %v59
    %v117 = vunpack.c.l.b16 %v60
    %v118 = vunpack.c.l.b16 %v61
    %v119 = vunpack.c.l.b16 %v62
    %v120 = vunpack.c.l.b16 %v63
    %v121 = vunpack.c.l.b16 %v64
    %v122 = vunpack.c.l.b16 %v65
    %v123 = vunpack.c.l.b16 %v66
    %v124 = vunpack.c.l.b16 %v67
    %v125 = vunpack.c.l.b16 %v68
    %v126 = vunpack.c.l.b16 %v69
    %v127 = vunpack.c.l.b16 %v70
    %v128 = vunpack.c.l.b16 %v71
    %v129 = vunpack.c.l.b16 %v72
    %v130 = vunpack.c.l.b16 %v73
    %v131 = vunpack.c.l.b16 %v74
    %v132 = vunpack.c.l.b16 %v75
    %v133 = vunpack.c.l.b16 %v76
    %v134 = vunpack.c.l.b16 %v77
    %v135 = vunpack.c.l.b16 %v78
    %v136 = vunpack.c.l.b16 %v79
    %v137 = vpack.c.b16 %v114, %v113
    %v138 = vpack.c.b16 %v116, %v115
    %v139 = vpack.c.b16 %v118, %v117
    %v140 = vpack.c.b16 %v120, %v119
    %v141 = vpack.c.b16 %v122, %v121
    %v142 = vpack.c.b16 %v124, %v123
    %v143 = vpack.c.b16 %v126, %v125
    %v144 = vpack.c.b16 %v128, %v127
    %v145 = vpack.c.b16 %v130, %v129
    %v146 = vpack.c.b16 %v132, %v131
    %v147 = vpack.c.b16 %v134, %v133
    %v148 = vpack.c.b16 %v136, %v135
    %v151 = vunpack.c.l.b16 %v80
    %v152 = vunpack.c.l.b16 %v81
    %v153 = vpack.c.b16 %v152, %v151
    %vm154 = vcmask 72704
    %v156 = vsel %vm154, %v137, 0
    %v159 = vsel %vm154, %v138, 0
    %v162 = vsel %vm154, %v139, 0
    %v165 = vsel %vm154, %v140, 0
    %v168 = vsel %vm154, %v141, 0
    %v171 = vsel %vm154, %v142, 0
    %v174 = vsel %vm154, %v143, 0
    %v177 = vsel %vm154, %v144, 0
    %v180 = vsel %vm154, %v145, 0
    %v183 = vsel %vm154, %v146, 0
    %v186 = vsel %vm154, %v147, 0
    %v189 = vsel %vm154, %v148, 0
    %vm191 = vcmask 1043456
    %vm192 = vcmask 1044480
    %v193 = vsel %vm191, 4294967295, 65535
    %v194 = vsel %vm192, %v193, 0
    %v196 = vand.u32 %v153, %v194
    %198 = vmatprep.subr.bf16.mxu0 0
    %199 = vmatpush1.bf16.msra.mxu0 %v196
    %200 = vmatprep.subr.bf16.mxu0 0
    %201 = vmatpush1.bf16.msra.mxu0 0
    %202 = vmatprep.subr.bf16.mxu0 0
    %203 = vmatpush1.bf16.msra.mxu0 0
    %204 = vmatprep.subr.bf16.mxu0 0
    %205 = vmatpush1.bf16.msra.mxu0 0
    %206 = vmatprep.subr.bf16.mxu0 0
    %207 = vmatpush1.bf16.msra.mxu0 0
    %208 = vmatprep.subr.bf16.mxu0 0
    %209 = vmatpush1.bf16.msra.mxu0 0
    %210 = vmatprep.subr.bf16.mxu0 0
    %211 = vmatpush1.bf16.msra.mxu0 0
    %212 = vmatprep.subr.bf16.mxu0 0
    %213 = vmatpush1.bf16.msra.mxu0 0
    %214 = vmatprep.subr.bf16.mxu0 0
    %215 = vmatpush1.bf16.msra.mxu0 0
    %216 = vmatprep.subr.bf16.mxu0 0
    %217 = vmatpush1.bf16.msra.mxu0 0
    %218 = vmatprep.subr.bf16.mxu0 0
    %219 = vmatpush1.bf16.msra.mxu0 0
    %220 = vmatprep.subr.bf16.mxu0 0
    %221 = vmatpush1.bf16.msra.mxu0 0
    %222 = vmatprep.subr.bf16.mxu0 0
    %223 = vmatpush1.bf16.msra.mxu0 0
    %224 = vmatprep.subr.bf16.mxu0 0
    %225 = vmatpush1.bf16.msra.mxu0 0
    %226 = vmatprep.subr.bf16.mxu0 0
    %227 = vmatpush1.bf16.msra.mxu0 0
    %228 = vmatprep.subr.bf16.mxu0 0
    %229 = vmatpush1.bf16.msra.mxu0 0
    %230 = vmatprep.mubr.bf16.mxu0 0
    %231 = vmatmul.mubr.bf16.gmra.mrb[0].mxu0 %v156
    %v232 = vpop.f32.mrb[0].mxu0
    %v233 = vadd.f32 %v87, %v232
    %v234 = vpop.f32.mrb[0].mxu0
    %v235 = vpop.f32.mrb[0].mxu0
    %v236 = vadd.f32 %v87, %v235
    %v237 = vpop.f32.mrb[0].mxu0
    %238 = vmatprep.mubr.bf16.mxu0 0
    %239 = vmatmul.mubr.bf16.gmra.mrb[0].mxu0 %v159
    %v240 = vpop.f32.mrb[0].mxu0
    %v241 = vadd.f32 %v87, %v240
    %v242 = vpop.f32.mrb[0].mxu0
    %v243 = vpop.f32.mrb[0].mxu0
    %v244 = vadd.f32 %v87, %v243
    %v245 = vpop.f32.mrb[0].mxu0
    %246 = vmatprep.mubr.bf16.mxu0 0
    %247 = vmatmul.mubr.bf16.gmra.mrb[0].mxu0 %v162
    %v248 = vpop.f32.mrb[0].mxu0
    %v249 = vadd.f32 %v87, %v248
    %v250 = vpop.f32.mrb[0].mxu0
    %v251 = vpop.f32.mrb[0].mxu0
    %v252 = vadd.f32 %v87, %v251
    %v253 = vpop.f32.mrb[0].mxu0
    %254 = vmatprep.mubr.bf16.mxu0 0
    %255 = vmatmul.mubr.bf16.gmra.mrb[0].mxu0 %v165
    %v256 = vpop.f32.mrb[0].mxu0
    %v257 = vadd.f32 %v87, %v256
    %v258 = vpop.f32.mrb[0].mxu0
    %v259 = vpop.f32.mrb[0].mxu0
    %v260 = vadd.f32 %v87, %v259
    %v261 = vpop.f32.mrb[0].mxu0
    %262 = vmatprep.mubr.bf16.mxu0 0
    %263 = vmatmul.mubr.bf16.gmra.mrb[0].mxu0 %v168
    %v264 = vpop.f32.mrb[0].mxu0
    %v265 = vadd.f32 %v87, %v264
    %v266 = vpop.f32.mrb[0].mxu0
    %v267 = vpop.f32.mrb[0].mxu0
    %v268 = vadd.f32 %v87, %v267
    %v269 = vpop.f32.mrb[0].mxu0
    %270 = vmatprep.mubr.bf16.mxu0 0
    %271 = vmatmul.mubr.bf16.gmra.mrb[0].mxu0 %v171
    %v272 = vpop.f32.mrb[0].mxu0
    %v273 = vadd.f32 %v87, %v272
    %v274 = vpop.f32.mrb[0].mxu0
    %v275 = vpop.f32.mrb[0].mxu0
    %v276 = vadd.f32 %v87, %v275
    %v277 = vpop.f32.mrb[0].mxu0
    %278 = vmatprep.mubr.bf16.mxu0 0
    %279 = vmatmul.mubr.bf16.gmra.mrb[0].mxu0 %v174
    %v280 = vpop.f32.mrb[0].mxu0
    %v281 = vadd.f32 %v87, %v280
    %v282 = vpop.f32.mrb[0].mxu0
    %v283 = vpop.f32.mrb[0].mxu0
    %v284 = vadd.f32 %v87, %v283
    %v285 = vpop.f32.mrb[0].mxu0
    %286 = vmatprep.mubr.bf16.mxu0 0
    %287 = vmatmul.mubr.bf16.gmra.mrb[0].mxu0 %v177
    %v288 = vpop.f32.mrb[0].mxu0
    %v289 = vadd.f32 %v87, %v288
    %v290 = vpop.f32.mrb[0].mxu0
    %v291 = vpop.f32.mrb[0].mxu0
    %v292 = vadd.f32 %v87, %v291
    %v293 = vpop.f32.mrb[0].mxu0
    %294 = vmatprep.mubr.bf16.mxu0 0
    %295 = vmatmul.mubr.bf16.gmra.mrb[0].mxu0 %v180
    %v296 = vpop.f32.mrb[0].mxu0
    %v297 = vadd.f32 %v87, %v296
    %v298 = vpop.f32.mrb[0].mxu0
    %v299 = vpop.f32.mrb[0].mxu0
    %v300 = vadd.f32 %v87, %v299
    %v301 = vpop.f32.mrb[0].mxu0
    %302 = vmatprep.mubr.bf16.mxu0 0
    %303 = vmatmul.mubr.bf16.gmra.mrb[0].mxu0 %v183
    %v304 = vpop.f32.mrb[0].mxu0
    %v305 = vadd.f32 %v87, %v304
    %v306 = vpop.f32.mrb[0].mxu0
    %v307 = vpop.f32.mrb[0].mxu0
    %v308 = vadd.f32 %v87, %v307
    %v309 = vpop.f32.mrb[0].mxu0
    %310 = vmatprep.mubr.bf16.mxu0 0
    %311 = vmatmul.mubr.bf16.gmra.mrb[0].mxu0 %v186
    %v312 = vpop.f32.mrb[0].mxu0
    %v313 = vadd.f32 %v87, %v312
    %v314 = vpop.f32.mrb[0].mxu0
    %v315 = vpop.f32.mrb[0].mxu0
    %v316 = vadd.f32 %v87, %v315
    %v317 = vpop.f32.mrb[0].mxu0
    %318 = vmatprep.mubr.bf16.mxu0 0
    %319 = vmatmul.mubr.bf16.gmra.mrb[0].mxu0 %v189
    %v320 = vpop.f32.mrb[0].mxu0
    %v321 = vadd.f32 %v87, %v320
    %v322 = vpop.f32.mrb[0].mxu0
    %v323 = vpop.f32.mrb[0].mxu0
    %v324 = vadd.f32 %v87, %v323
    %v325 = vpop.f32.mrb[0].mxu0
    %326 = vdwg.mxu0
    %v327 = vmax.f32 %v233, 0.0
    %v328 = vmax.f32 %v236, 0.0
    %v329 = vmax.f32 %v241, 0.0
    %v330 = vmax.f32 %v244, 0.0
    %v331 = vmax.f32 %v249, 0.0
    %v332 = vmax.f32 %v252, 0.0
    %v333 = vmax.f32 %v257, 0.0
    %v334 = vmax.f32 %v260, 0.0
    %v335 = vmax.f32 %v265, 0.0
    %v336 = vmax.f32 %v268, 0.0
    %v337 = vmax.f32 %v273, 0.0
    %v338 = vmax.f32 %v276, 0.0
    %v339 = vmax.f32 %v281, 0.0
    %v340 = vmax.f32 %v284, 0.0
    %v341 = vmax.f32 %v289, 0.0
    %v342 = vmax.f32 %v292, 0.0
    %v343 = vmax.f32 %v297, 0.0
    %v344 = vmax.f32 %v300, 0.0
    %v345 = vmax.f32 %v305, 0.0
    %v346 = vmax.f32 %v308, 0.0
    %v347 = vmax.f32 %v313, 0.0
    %v348 = vmax.f32 %v316, 0.0
    %v349 = vmax.f32 %v321, 0.0
    %v350 = vmax.f32 %v324, 0.0
    %v351 = vld [vmem:[#allocation4] sm:$0x1]
    %v353 = vlaneseq
    %v354 = vshrl.u32 %v353, 7
    %v355 = vsub.s32 0, %v354
    %v356 = vrot.slane %v351, %v355
    %v358 = vmul.f32 %v327, %v356
    %v359 = vmul.f32 %v328, %v356
    %v360 = vmul.f32 %v329, %v356
    %v361 = vmul.f32 %v330, %v356
    %v362 = vmul.f32 %v331, %v356
    %v363 = vmul.f32 %v332, %v356
    %v364 = vmul.f32 %v333, %v356
    %v365 = vmul.f32 %v334, %v356
    %v366 = vmul.f32 %v335, %v356
    %v367 = vmul.f32 %v336, %v356
    %v368 = vmul.f32 %v337, %v356
    %v369 = vmul.f32 %v338, %v356
    %v370 = vmul.f32 %v339, %v356
    %v371 = vmul.f32 %v340, %v356
    %v372 = vmul.f32 %v341, %v356
    %v373 = vmul.f32 %v342, %v356
    %v374 = vmul.f32 %v343, %v356
    %v375 = vmul.f32 %v344, %v356
    %v376 = vmul.f32 %v345, %v356
    %v377 = vmul.f32 %v346, %v356
    %v378 = vmul.f32 %v347, %v356
    %v379 = vmul.f32 %v348, %v356
    %v380 = vmul.f32 %v349, %v356
    %v381 = vmul.f32 %v350, %v356
    %v382 = vld [vmem:[#allocation6] sm:$0x1]
    %v384 = vlaneseq
    %v385 = vshrl.u32 %v384, 7
    %v386 = vsub.s32 0, %v385
    %v387 = vrot.slane %v382, %v386
    %v389 = vadd.f32 %v358, %v387
    %v390 = vadd.f32 %v359, %v387
    %v391 = vadd.f32 %v360, %v387
    %v392 = vadd.f32 %v361, %v387
    %v393 = vadd.f32 %v362, %v387
    %v394 = vadd.f32 %v363, %v387
    %v395 = vadd.f32 %v364, %v387
    %v396 = vadd.f32 %v365, %v387
    %v397 = vadd.f32 %v366, %v387
    %v398 = vadd.f32 %v367, %v387
    %v399 = vadd.f32 %v368, %v387
    %v400 = vadd.f32 %v369, %v387
    %v401 = vadd.f32 %v370, %v387
    %v402 = vadd.f32 %v371, %v387
    %v403 = vadd.f32 %v372, %v387
    %v404 = vadd.f32 %v373, %v387
    %v405 = vadd.f32 %v374, %v387
    %v406 = vadd.f32 %v375, %v387
    %v407 = vadd.f32 %v376, %v387
    %v408 = vadd.f32 %v377, %v387
    %v409 = vadd.f32 %v378, %v387
    %v410 = vadd.f32 %v379, %v387
    %v411 = vadd.f32 %v380, %v387
    %v412 = vadd.f32 %v381, %v387
    %v413 = vpack.c.bf16 %v390, %v389
    %v414 = vpack.c.bf16 %v392, %v391
    %v415 = vpack.c.bf16 %v394, %v393
    %v416 = vpack.c.bf16 %v396, %v395
    %v417 = vpack.c.bf16 %v398, %v397
    %v418 = vpack.c.bf16 %v400, %v399
    %v419 = vpack.c.bf16 %v402, %v401
    %v420 = vpack.c.bf16 %v404, %v403
    %v421 = vpack.c.bf16 %v406, %v405
    %v422 = vpack.c.bf16 %v408, %v407
    %v423 = vpack.c.bf16 %v410, %v409
    %v424 = vpack.c.bf16 %v412, %v411
    %v437 = vunpack.c.l.b16 %v413
    %v438 = vunpack.c.h.b16 %v413
    %v439 = vunpack.c.l.b16 %v414
    %v440 = vunpack.c.h.b16 %v414
    %v441 = vunpack.c.l.b16 %v415
    %v442 = vunpack.c.h.b16 %v415
    %v443 = vunpack.c.l.b16 %v416
    %v444 = vunpack.c.h.b16 %v416
    %v445 = vunpack.c.l.b16 %v417
    %v446 = vunpack.c.h.b16 %v417
    %v447 = vunpack.c.l.b16 %v418
    %v448 = vunpack.c.h.b16 %v418
    %v449 = vunpack.c.l.b16 %v419
    %v450 = vunpack.c.h.b16 %v419
    %v451 = vunpack.c.l.b16 %v420
    %v452 = vunpack.c.h.b16 %v420
    %v453 = vunpack.c.l.b16 %v421
    %v454 = vunpack.c.h.b16 %v421
    %v455 = vunpack.c.l.b16 %v422
    %v456 = vunpack.c.h.b16 %v422
    %v457 = vunpack.c.l.b16 %v423
    %v458 = vunpack.c.h.b16 %v423
    %v459 = vunpack.c.l.b16 %v424
    %v460 = vunpack.c.h.b16 %v424
    %v461 = vpack.c.b16 %v437, %v437
    %v462 = vpack.c.b16 %v438, %v438
    %v463 = vpack.c.b16 %v439, %v439
    %v464 = vpack.c.b16 %v440, %v440
    %v465 = vpack.c.b16 %v441, %v441
    %v466 = vpack.c.b16 %v442, %v442
    %v467 = vpack.c.b16 %v443, %v443
    %v468 = vpack.c.b16 %v444, %v444
    %v469 = vpack.c.b16 %v445, %v445
    %v470 = vpack.c.b16 %v446, %v446
    %v471 = vpack.c.b16 %v447, %v447
    %v472 = vpack.c.b16 %v448, %v448
    %v473 = vpack.c.b16 %v449, %v449
    %v474 = vpack.c.b16 %v450, %v450
    %v475 = vpack.c.b16 %v451, %v451
    %v476 = vpack.c.b16 %v452, %v452
    %v477 = vpack.c.b16 %v453, %v453
    %v478 = vpack.c.b16 %v454, %v454
    %v479 = vpack.c.b16 %v455, %v455
    %v480 = vpack.c.b16 %v456, %v456
    %v481 = vpack.c.b16 %v457, %v457
    %v482 = vpack.c.b16 %v458, %v458
    %v483 = vpack.c.b16 %v459, %v459
    %v484 = vpack.c.b16 %v460, %v460
    %vm509 = vcmask 519168
    %510 = vst.msk [vmem:[%s5] sm:$0xf] %vm509, %v461
    %511 = vst.msk [vmem:[%s5 + $0x4] sm:$0xf] %vm509, %v462
    %512 = vst.msk [vmem:[%s5 + $0x8] sm:$0xf] %vm509, %v463
    %513 = vst.msk [vmem:[%s5 + $0xc] sm:$0xf] %vm509, %v464
    %514 = vst.msk [vmem:[%s5 + $0x10] sm:$0xf] %vm509, %v465
    %515 = vst.msk [vmem:[%s5 + $0x14] sm:$0xf] %vm509, %v466
    %516 = vst.msk [vmem:[%s5 + $0x18] sm:$0xf] %vm509, %v467
    %517 = vst.msk [vmem:[%s5 + $0x1c] sm:$0xf] %vm509, %v468
    %518 = vst.msk [vmem:[%s5 + $0x20] sm:$0xf] %vm509, %v469
    %519 = vst.msk [vmem:[%s5 + $0x24] sm:$0xf] %vm509, %v470
    %520 = vst.msk [vmem:[%s5 + $0x28] sm:$0xf] %vm509, %v471
    %521 = vst.msk [vmem:[%s5 + $0x2c] sm:$0xf] %vm509, %v472
    %522 = vst.msk [vmem:[%s5 + $0x30] sm:$0xf] %vm509, %v473
    %523 = vst.msk [vmem:[%s5 + $0x34] sm:$0xf] %vm509, %v474
    %524 = vst.msk [vmem:[%s5 + $0x38] sm:$0xf] %vm509, %v475
    %525 = vst.msk [vmem:[%s5 + $0x3c] sm:$0xf] %vm509, %v476
    %526 = vst.msk [vmem:[%s5 + $0x40] sm:$0xf] %vm509, %v477
    %527 = vst.msk [vmem:[%s5 + $0x44] sm:$0xf] %vm509, %v478
    %528 = vst.msk [vmem:[%s5 + $0x48] sm:$0xf] %vm509, %v479
    %529 = vst.msk [vmem:[%s5 + $0x4c] sm:$0xf] %vm509, %v480
    %530 = vst.msk [vmem:[%s5 + $0x50] sm:$0xf] %vm509, %v481
    %531 = vst.msk [vmem:[%s5 + $0x54] sm:$0xf] %vm509, %v482
    %532 = vst.msk [vmem:[%s5 + $0x58] sm:$0xf] %vm509, %v483
    %533 = vst.msk [vmem:[%s5 + $0x5c] sm:$0xf] %vm509, %v484
    // Predicated region
    $region34: #{deepconvlstm_forward.11} parent=1 // pred_check
      _
    $region35: #{deepconvlstm_forward.11} parent=1 // pred_check_branch
      %535 = sbr.rel (0) target = $region37
    $region36: #{deepconvlstm_forward.11} parent=1 // pred_region
      _
    $region37: #{deepconvlstm_forward.11} parent=1 // pred_fallthru
      _
    // Predicated region
    $region38: #{deepconvlstm_forward.11} parent=1 // pred_check
      _
    $region39: #{deepconvlstm_forward.11} parent=1 // pred_check_branch
      %537 = sbr.rel (0) target = $region41
    $region40: #{deepconvlstm_forward.11} parent=1 // pred_region
      _
    $region41: #{deepconvlstm_forward.11} parent=1 // pred_fallthru
      _
    %538 = vsyncpa [#allocation3], 1
    %539 = vsyncpa [#allocation5], 1

// kernel: deepconvlstm_forward.12
$region0: #{deepconvlstm_forward.12}
  #allocation0 [shape = 'u32[]', space=smem, size = 0x4, offset = 0x4, fixed_abs, tag = 'smem constant byte address 0x4 - core index']
  #allocation1 [shape = 'u32[144,128]{1,0:T(1,128)}', space=vmem, size = 0x12000, scoped, tag = 'internal scratch']
  %s0 = inlined_call_operand.vmem [shape: bf16[192,576], index: 0, kind: input, shape index: {}]
  %s1 = inlined_call_operand.vmem [shape: bf16[576,64], index: 1, kind: input, shape index: {}]
  %s2 = inlined_call_operand.vmem [shape: f32[1,64], index: 2, kind: input, shape index: {}]
  %s3 = inlined_call_operand.vmem [shape: f32[1,64], index: 3, kind: input, shape index: {}]
  %s4 = inlined_call_operand.vmem [shape: f32[1,64], index: 4, kind: input, shape index: {}]
  %s5 = inlined_call_operand.vmem [shape: bf16[192,64], index: 5, kind: output, shape index: {}]
  %s6 = sld [smem:[#allocation0]]
  $region30: #{deepconvlstm_forward.12} parent=0
    _
  %s8 = ssub.s32 1, %s6
  %s9 = scalar_select 0, %s8, %s6
  // Predicated region
  $region2: #{deepconvlstm_forward.12} parent=0 // pred_check
    _
  $region3: #{deepconvlstm_forward.12} parent=0 // pred_check_branch
    %11 = sbr.rel (0) target = $region5
  $region4: #{deepconvlstm_forward.12} parent=0 // pred_region
    _
  $region5: #{deepconvlstm_forward.12} parent=0 // pred_fallthru
    _
  // Predicated region
  $region6: #{deepconvlstm_forward.12} parent=0 // pred_check
    _
  $region7: #{deepconvlstm_forward.12} parent=0 // pred_check_branch
    %13 = sbr.rel (0) target = $region9
  $region8: #{deepconvlstm_forward.12} parent=0 // pred_region
    _
  $region9: #{deepconvlstm_forward.12} parent=0 // pred_fallthru
    _
  // Predicated region
  $region10: #{deepconvlstm_forward.12} parent=0 // pred_check
    _
  $region11: #{deepconvlstm_forward.12} parent=0 // pred_check_branch
    %15 = sbr.rel (0) target = $region13
  $region12: #{deepconvlstm_forward.12} parent=0 // pred_region
    _
  $region13: #{deepconvlstm_forward.12} parent=0 // pred_fallthru
    _
  // Predicated region
  $region14: #{deepconvlstm_forward.12} parent=0 // pred_check
    _
  $region15: #{deepconvlstm_forward.12} parent=0 // pred_check_branch
    %17 = sbr.rel (0) target = $region17
  $region16: #{deepconvlstm_forward.12} parent=0 // pred_region
    _
  $region17: #{deepconvlstm_forward.12} parent=0 // pred_fallthru
    _
  // Predicated region
  $region18: #{deepconvlstm_forward.12} parent=0 // pred_check
    _
  $region19: #{deepconvlstm_forward.12} parent=0 // pred_check_branch
    %19 = sbr.rel (0) target = $region21
  $region20: #{deepconvlstm_forward.12} parent=0 // pred_region
    _
  $region21: #{deepconvlstm_forward.12} parent=0 // pred_fallthru
    _
  %v21 = vld [vmem:[%s0] sm:$0xff]
  %v22 = vld [vmem:[%s0 + $0x8] sm:$0xff]
  %v23 = vld [vmem:[%s0 + $0x10] sm:$0xf]
  %v24 = vld [vmem:[%s0 + $0x14] sm:$0xff]
  %v25 = vld [vmem:[%s0 + $0x1c] sm:$0xff]
  %v26 = vld [vmem:[%s0 + $0x24] sm:$0xf]
  %v27 = vld [vmem:[%s0 + $0x28] sm:$0xff]
  %v28 = vld [vmem:[%s0 + $0x30] sm:$0xff]
  %v29 = vld [vmem:[%s0 + $0x38] sm:$0xf]
  %v30 = vld [vmem:[%s0 + $0x3c] sm:$0xff]
  %v31 = vld [vmem:[%s0 + $0x44] sm:$0xff]
  %v32 = vld [vmem:[%s0 + $0x4c] sm:$0xf]
  %v33 = vld [vmem:[%s0 + $0x50] sm:$0xff]
  %v34 = vld [vmem:[%s0 + $0x58] sm:$0xff]
  %v35 = vld [vmem:[%s0 + $0x60] sm:$0xf]
  %v36 = vld [vmem:[%s0 + $0x64] sm:$0xff]
  %v37 = vld [vmem:[%s0 + $0x6c] sm:$0xff]
  %v38 = vld [vmem:[%s0 + $0x74] sm:$0xf]
  %v39 = vld [vmem:[%s0 + $0x78] sm:$0xff]
  %v40 = vld [vmem:[%s0 + $0x80] sm:$0xff]
  %v41 = vld [vmem:[%s0 + $0x88] sm:$0xf]
  %v42 = vld [vmem:[%s0 + $0x8c] sm:$0xff]
  %v43 = vld [vmem:[%s0 + $0x94] sm:$0xff]
  %v44 = vld [vmem:[%s0 + $0x9c] sm:$0xf]
  %v45 = vld [vmem:[%s0 + $0xa0] sm:$0xff]
  %v46 = vld [vmem:[%s0 + $0xa8] sm:$0xff]
  %v47 = vld [vmem:[%s0 + $0xb0] sm:$0xf]
  %v48 = vld [vmem:[%s0 + $0xb4] sm:$0xff]
  %v49 = vld [vmem:[%s0 + $0xbc] sm:$0xff]
  %v50 = vld [vmem:[%s0 + $0xc4] sm:$0xf]
  %v51 = vld [vmem:[%s0 + $0xc8] sm:$0xff]
  %v52 = vld [vmem:[%s0 + $0xd0] sm:$0xff]
  %v53 = vld [vmem:[%s0 + $0xd8] sm:$0xf]
  %v54 = vld [vmem:[%s0 + $0xdc] sm:$0xff]
  %v55 = vld [vmem:[%s0 + $0xe4] sm:$0xff]
  %v56 = vld [vmem:[%s0 + $0xec] sm:$0xf]
  %v57 = vld [vmem:[%s0 + $0xf0] sm:$0xff]
  %v58 = vld [vmem:[%s0 + $0xf8] sm:$0xff]
  %v59 = vld [vmem:[%s0 + $0x100] sm:$0xf]
  %v60 = vld [vmem:[%s0 + $0x104] sm:$0xff]
  %v61 = vld [vmem:[%s0 + $0x10c] sm:$0xff]
  %v62 = vld [vmem:[%s0 + $0x114] sm:$0xf]
  %v63 = vld [vmem:[%s0 + $0x118] sm:$0xff]
  %v64 = vld [vmem:[%s0 + $0x120] sm:$0xff]
  %v65 = vld [vmem:[%s0 + $0x128] sm:$0xf]
  %v66 = vld [vmem:[%s0 + $0x12c] sm:$0xff]
  %v67 = vld [vmem:[%s0 + $0x134] sm:$0xff]
  %v68 = vld [vmem:[%s0 + $0x13c] sm:$0xf]
  %v69 = vld [vmem:[%s0 + $0x140] sm:$0xff]
  %v70 = vld [vmem:[%s0 + $0x148] sm:$0xff]
  %v71 = vld [vmem:[%s0 + $0x150] sm:$0xf]
  %v72 = vld [vmem:[%s0 + $0x154] sm:$0xff]
  %v73 = vld [vmem:[%s0 + $0x15c] sm:$0xff]
  %v74 = vld [vmem:[%s0 + $0x164] sm:$0xf]
  %v75 = vld [vmem:[%s0 + $0x168] sm:$0xff]
  %v76 = vld [vmem:[%s0 + $0x170] sm:$0xff]
  %v77 = vld [vmem:[%s0 + $0x178] sm:$0xf]
  %v78 = vld [vmem:[%s0 + $0x17c] sm:$0xff]
  %v79 = vld [vmem:[%s0 + $0x184] sm:$0xff]
  %v80 = vld [vmem:[%s0 + $0x18c] sm:$0xf]
  %v81 = vld [vmem:[%s0 + $0x190] sm:$0xff]
  %v82 = vld [vmem:[%s0 + $0x198] sm:$0xff]
  %v83 = vld [vmem:[%s0 + $0x1a0] sm:$0xf]
  %v84 = vld [vmem:[%s0 + $0x1a4] sm:$0xff]
  %v85 = vld [vmem:[%s0 + $0x1ac] sm:$0xff]
  %v86 = vld [vmem:[%s0 + $0x1b4] sm:$0xf]
  %v87 = vld [vmem:[%s0 + $0x1b8] sm:$0xff]
  %v88 = vld [vmem:[%s0 + $0x1c0] sm:$0xff]
  %v89 = vld [vmem:[%s0 + $0x1c8] sm:$0xf]
  %v90 = vld [vmem:[%s0 + $0x1cc] sm:$0xff]
  %v91 = vld [vmem:[%s0 + $0x1d4] sm:$0xff]
  %v92 = vld [vmem:[%s0 + $0x1dc] sm:$0xf]
  %v93 = vld [vmem:[%s1] sm:$0xf]
  %v94 = vld [vmem:[%s1 + $0x4] sm:$0xf]
  %v95 = vld [vmem:[%s1 + $0x8] sm:$0xf]
  %v96 = vld [vmem:[%s1 + $0xc] sm:$0xf]
  %v97 = vld [vmem:[%s1 + $0x10] sm:$0xf]
  %v98 = vld [vmem:[%s1 + $0x14] sm:$0xf]
  %v99 = vld [vmem:[%s1 + $0x18] sm:$0xf]
  %v100 = vld [vmem:[%s1 + $0x1c] sm:$0xf]
  %v101 = vld [vmem:[%s1 + $0x20] sm:$0xf]
  %v102 = vld [vmem:[%s1 + $0x24] sm:$0xf]
  %v103 = vld [vmem:[%s1 + $0x28] sm:$0xf]
  %v104 = vld [vmem:[%s1 + $0x2c] sm:$0xf]
  %v105 = vld [vmem:[%s1 + $0x30] sm:$0xf]
  %v106 = vld [vmem:[%s1 + $0x34] sm:$0xf]
  %v107 = vld [vmem:[%s1 + $0x38] sm:$0xf]
  %v108 = vld [vmem:[%s1 + $0x3c] sm:$0xf]
  %v109 = vld [vmem:[%s1 + $0x40] sm:$0xf]
  %v110 = vld [vmem:[%s1 + $0x44] sm:$0xf]
  %v111 = vld [vmem:[%s1 + $0x48] sm:$0xf]
  %v112 = vld [vmem:[%s1 + $0x4c] sm:$0xf]
  %v113 = vld [vmem:[%s1 + $0x50] sm:$0xf]
  %v114 = vld [vmem:[%s1 + $0x54] sm:$0xf]
  %v115 = vld [vmem:[%s1 + $0x58] sm:$0xf]
  %v116 = vld [vmem:[%s1 + $0x5c] sm:$0xf]
  %v117 = vld [vmem:[%s1 + $0x60] sm:$0xf]
  %v118 = vld [vmem:[%s1 + $0x64] sm:$0xf]
  %v119 = vld [vmem:[%s1 + $0x68] sm:$0xf]
  %v120 = vld [vmem:[%s1 + $0x6c] sm:$0xf]
  %v121 = vld [vmem:[%s1 + $0x70] sm:$0xf]
  %v122 = vld [vmem:[%s1 + $0x74] sm:$0xf]
  %v123 = vld [vmem:[%s1 + $0x78] sm:$0xf]
  %v124 = vld [vmem:[%s1 + $0x7c] sm:$0xf]
  %v125 = vld [vmem:[%s1 + $0x80] sm:$0xf]
  %v126 = vld [vmem:[%s1 + $0x84] sm:$0xf]
  %v127 = vld [vmem:[%s1 + $0x88] sm:$0xf]
  %v128 = vld [vmem:[%s1 + $0x8c] sm:$0xf]
  %v129 = vld [vmem:[%s1 + $0x90] sm:$0xf]
  %v130 = vld [vmem:[%s1 + $0x94] sm:$0xf]
  %v131 = vld [vmem:[%s1 + $0x98] sm:$0xf]
  %v132 = vld [vmem:[%s1 + $0x9c] sm:$0xf]
  %v133 = vld [vmem:[%s1 + $0xa0] sm:$0xf]
  %v134 = vld [vmem:[%s1 + $0xa4] sm:$0xf]
  %v135 = vld [vmem:[%s1 + $0xa8] sm:$0xf]
  %v136 = vld [vmem:[%s1 + $0xac] sm:$0xf]
  %v137 = vld [vmem:[%s1 + $0xb0] sm:$0xf]
  %v138 = vld [vmem:[%s1 + $0xb4] sm:$0xf]
  %v139 = vld [vmem:[%s1 + $0xb8] sm:$0xf]
  %v140 = vld [vmem:[%s1 + $0xbc] sm:$0xf]
  %v141 = vld [vmem:[%s1 + $0xc0] sm:$0xf]
  %v142 = vld [vmem:[%s1 + $0xc4] sm:$0xf]
  %v143 = vld [vmem:[%s1 + $0xc8] sm:$0xf]
  %v144 = vld [vmem:[%s1 + $0xcc] sm:$0xf]
  %v145 = vld [vmem:[%s1 + $0xd0] sm:$0xf]
  %v146 = vld [vmem:[%s1 + $0xd4] sm:$0xf]
  %v147 = vld [vmem:[%s1 + $0xd8] sm:$0xf]
  %v148 = vld [vmem:[%s1 + $0xdc] sm:$0xf]
  %v149 = vld [vmem:[%s1 + $0xe0] sm:$0xf]
  %v150 = vld [vmem:[%s1 + $0xe4] sm:$0xf]
  %v151 = vld [vmem:[%s1 + $0xe8] sm:$0xf]
  %v152 = vld [vmem:[%s1 + $0xec] sm:$0xf]
  %v153 = vld [vmem:[%s1 + $0xf0] sm:$0xf]
  %v154 = vld [vmem:[%s1 + $0xf4] sm:$0xf]
  %v155 = vld [vmem:[%s1 + $0xf8] sm:$0xf]
  %v156 = vld [vmem:[%s1 + $0xfc] sm:$0xf]
  %v157 = vld [vmem:[%s1 + $0x100] sm:$0xf]
  %v158 = vld [vmem:[%s1 + $0x104] sm:$0xf]
  %v159 = vld [vmem:[%s1 + $0x108] sm:$0xf]
  %v160 = vld [vmem:[%s1 + $0x10c] sm:$0xf]
  %v161 = vld [vmem:[%s1 + $0x110] sm:$0xf]
  %v162 = vld [vmem:[%s1 + $0x114] sm:$0xf]
  %v163 = vld [vmem:[%s1 + $0x118] sm:$0xf]
  %v164 = vld [vmem:[%s1 + $0x11c] sm:$0xf]
  %v165 = vld [vmem:[%s2] sm:$0x1]
  %v167 = vlaneseq
  %v168 = vshrl.u32 %v167, 7
  %v169 = vsub.s32 0, %v168
  %v170 = vrot.slane %v165, %v169
  %v244 = vunpack.c.l.b16 %v21
  %v245 = vunpack.c.h.b16 %v21
  %v246 = vunpack.c.l.b16 %v22
  %v247 = vunpack.c.h.b16 %v22
  %v248 = vunpack.c.l.b16 %v23
  %v249 = vunpack.c.l.b16 %v24
  %v250 = vunpack.c.h.b16 %v24
  %v251 = vunpack.c.l.b16 %v25
  %v252 = vunpack.c.h.b16 %v25
  %v253 = vunpack.c.l.b16 %v26
  %v254 = vunpack.c.l.b16 %v27
  %v255 = vunpack.c.h.b16 %v27
  %v256 = vunpack.c.l.b16 %v28
  %v257 = vunpack.c.h.b16 %v28
  %v258 = vunpack.c.l.b16 %v29
  %v259 = vunpack.c.l.b16 %v30
  %v260 = vunpack.c.h.b16 %v30
  %v261 = vunpack.c.l.b16 %v31
  %v262 = vunpack.c.h.b16 %v31
  %v263 = vunpack.c.l.b16 %v32
  %v264 = vunpack.c.l.b16 %v33
  %v265 = vunpack.c.h.b16 %v33
  %v266 = vunpack.c.l.b16 %v34
  %v267 = vunpack.c.h.b16 %v34
  %v268 = vunpack.c.l.b16 %v35
  %v269 = vunpack.c.l.b16 %v36
  %v270 = vunpack.c.h.b16 %v36
  %v271 = vunpack.c.l.b16 %v37
  %v272 = vunpack.c.h.b16 %v37
  %v273 = vunpack.c.l.b16 %v38
  %v274 = vunpack.c.l.b16 %v39
  %v275 = vunpack.c.h.b16 %v39
  %v276 = vunpack.c.l.b16 %v40
  %v277 = vunpack.c.h.b16 %v40
  %v278 = vunpack.c.l.b16 %v41
  %v279 = vunpack.c.l.b16 %v42
  %v280 = vunpack.c.h.b16 %v42
  %v281 = vunpack.c.l.b16 %v43
  %v282 = vunpack.c.h.b16 %v43
  %v283 = vunpack.c.l.b16 %v44
  %v284 = vunpack.c.l.b16 %v45
  %v285 = vunpack.c.h.b16 %v45
  %v286 = vunpack.c.l.b16 %v46
  %v287 = vunpack.c.h.b16 %v46
  %v288 = vunpack.c.l.b16 %v47
  %v289 = vunpack.c.l.b16 %v48
  %v290 = vunpack.c.h.b16 %v48
  %v291 = vunpack.c.l.b16 %v49
  %v292 = vunpack.c.h.b16 %v49
  %v293 = vunpack.c.l.b16 %v50
  %v294 = vunpack.c.l.b16 %v51
  %v295 = vunpack.c.h.b16 %v51
  %v296 = vunpack.c.l.b16 %v52
  %v297 = vunpack.c.h.b16 %v52
  %v298 = vunpack.c.l.b16 %v53
  %v299 = vunpack.c.l.b16 %v54
  %v300 = vunpack.c.h.b16 %v54
  %v301 = vunpack.c.l.b16 %v55
  %v302 = vunpack.c.h.b16 %v55
  %v303 = vunpack.c.l.b16 %v56
  %v304 = vunpack.c.l.b16 %v57
  %v305 = vunpack.c.h.b16 %v57
  %v306 = vunpack.c.l.b16 %v58
  %v307 = vunpack.c.h.b16 %v58
  %v308 = vunpack.c.l.b16 %v59
  %v309 = vunpack.c.l.b16 %v60
  %v310 = vunpack.c.h.b16 %v60
  %v311 = vunpack.c.l.b16 %v61
  %v312 = vunpack.c.h.b16 %v61
  %v313 = vunpack.c.l.b16 %v62
  %v314 = vunpack.c.l.b16 %v63
  %v315 = vunpack.c.h.b16 %v63
  %v316 = vunpack.c.l.b16 %v64
  %v317 = vunpack.c.h.b16 %v64
  %v318 = vunpack.c.l.b16 %v65
  %v319 = vunpack.c.l.b16 %v66
  %v320 = vunpack.c.h.b16 %v66
  %v321 = vunpack.c.l.b16 %v67
  %v322 = vunpack.c.h.b16 %v67
  %v323 = vunpack.c.l.b16 %v68
  %v324 = vunpack.c.l.b16 %v69
  %v325 = vunpack.c.h.b16 %v69
  %v326 = vunpack.c.l.b16 %v70
  %v327 = vunpack.c.h.b16 %v70
  %v328 = vunpack.c.l.b16 %v71
  %v329 = vunpack.c.l.b16 %v72
  %v330 = vunpack.c.h.b16 %v72
  %v331 = vunpack.c.l.b16 %v73
  %v332 = vunpack.c.h.b16 %v73
  %v333 = vunpack.c.l.b16 %v74
  %v334 = vunpack.c.l.b16 %v75
  %v335 = vunpack.c.h.b16 %v75
  %v336 = vunpack.c.l.b16 %v76
  %v337 = vunpack.c.h.b16 %v76
  %v338 = vunpack.c.l.b16 %v77
  %v339 = vunpack.c.l.b16 %v78
  %v340 = vunpack.c.h.b16 %v78
  %v341 = vunpack.c.l.b16 %v79
  %v342 = vunpack.c.h.b16 %v79
  %v343 = vunpack.c.l.b16 %v80
  %v344 = vunpack.c.l.b16 %v81
  %v345 = vunpack.c.h.b16 %v81
  %v346 = vunpack.c.l.b16 %v82
  %v347 = vunpack.c.h.b16 %v82
  %v348 = vunpack.c.l.b16 %v83
  %v349 = vunpack.c.l.b16 %v84
  %v350 = vunpack.c.h.b16 %v84
  %v351 = vunpack.c.l.b16 %v85
  %v352 = vunpack.c.h.b16 %v85
  %v353 = vunpack.c.l.b16 %v86
  %v354 = vunpack.c.l.b16 %v87
  %v355 = vunpack.c.h.b16 %v87
  %v356 = vunpack.c.l.b16 %v88
  %v357 = vunpack.c.h.b16 %v88
  %v358 = vunpack.c.l.b16 %v89
  %v359 = vunpack.c.l.b16 %v90
  %v360 = vunpack.c.h.b16 %v90
  %v361 = vunpack.c.l.b16 %v91
  %v362 = vunpack.c.h.b16 %v91
  %v363 = vunpack.c.l.b16 %v92
  %v364 = vpack.c.b16 %v249, %v244
  %v365 = vpack.c.b16 %v250, %v245
  %v366 = vpack.c.b16 %v251, %v246
  %v367 = vpack.c.b16 %v252, %v247
  %v368 = vpack.c.b16 %v253, %v248
  %v369 = vpack.c.b16 %v259, %v254
  %v370 = vpack.c.b16 %v260, %v255
  %v371 = vpack.c.b16 %v261, %v256
  %v372 = vpack.c.b16 %v262, %v257
  %v373 = vpack.c.b16 %v263, %v258
  %v374 = vpack.c.b16 %v269, %v264
  %v375 = vpack.c.b16 %v270, %v265
  %v376 = vpack.c.b16 %v271, %v266
  %v377 = vpack.c.b16 %v272, %v267
  %v378 = vpack.c.b16 %v273, %v268
  %v379 = vpack.c.b16 %v279, %v274
  %v380 = vpack.c.b16 %v280, %v275
  %v381 = vpack.c.b16 %v281, %v276
  %v382 = vpack.c.b16 %v282, %v277
  %v383 = vpack.c.b16 %v283, %v278
  %v384 = vpack.c.b16 %v289, %v284
  %v385 = vpack.c.b16 %v290, %v285
  %v386 = vpack.c.b16 %v291, %v286
  %v387 = vpack.c.b16 %v292, %v287
  %v388 = vpack.c.b16 %v293, %v288
  %v389 = vpack.c.b16 %v299, %v294
  %v390 = vpack.c.b16 %v300, %v295
  %v391 = vpack.c.b16 %v301, %v296
  %v392 = vpack.c.b16 %v302, %v297
  %v393 = vpack.c.b16 %v303, %v298
  %v394 = vpack.c.b16 %v309, %v304
  %v395 = vpack.c.b16 %v310, %v305
  %v396 = vpack.c.b16 %v311, %v306
  %v397 = vpack.c.b16 %v312, %v307
  %v398 = vpack.c.b16 %v313, %v308
  %v399 = vpack.c.b16 %v319, %v314
  %v400 = vpack.c.b16 %v320, %v315
  %v401 = vpack.c.b16 %v321, %v316
  %v402 = vpack.c.b16 %v322, %v317
  %v403 = vpack.c.b16 %v323, %v318
  %v404 = vpack.c.b16 %v329, %v324
  %v405 = vpack.c.b16 %v330, %v325
  %v406 = vpack.c.b16 %v331, %v326
  %v407 = vpack.c.b16 %v332, %v327
  %v408 = vpack.c.b16 %v333, %v328
  %v409 = vpack.c.b16 %v339, %v334
  %v410 = vpack.c.b16 %v340, %v335
  %v411 = vpack.c.b16 %v341, %v336
  %v412 = vpack.c.b16 %v342, %v337
  %v413 = vpack.c.b16 %v343, %v338
  %v414 = vpack.c.b16 %v349, %v344
  %v415 = vpack.c.b16 %v350, %v345
  %v416 = vpack.c.b16 %v351, %v346
  %v417 = vpack.c.b16 %v352, %v347
  %v418 = vpack.c.b16 %v353, %v348
  %v419 = vpack.c.b16 %v359, %v354
  %v420 = vpack.c.b16 %v360, %v355
  %v421 = vpack.c.b16 %v361, %v356
  %v422 = vpack.c.b16 %v362, %v357
  %v423 = vpack.c.b16 %v363, %v358
  %v544 = vunpack.c.l.b16 %v93
  %v545 = vunpack.c.l.b16 %v94
  %v546 = vunpack.c.l.b16 %v95
  %v547 = vunpack.c.l.b16 %v96
  %v548 = vunpack.c.l.b16 %v97
  %v549 = vunpack.c.l.b16 %v98
  %v550 = vunpack.c.l.b16 %v99
  %v551 = vunpack.c.l.b16 %v100
  %v552 = vunpack.c.l.b16 %v101
  %v553 = vunpack.c.l.b16 %v102
  %v554 = vunpack.c.l.b16 %v103
  %v555 = vunpack.c.l.b16 %v104
  %v556 = vunpack.c.l.b16 %v105
  %v557 = vunpack.c.l.b16 %v106
  %v558 = vunpack.c.l.b16 %v107
  %v559 = vunpack.c.l.b16 %v108
  %v560 = vunpack.c.l.b16 %v109
  %v561 = vunpack.c.l.b16 %v110
  %v562 = vunpack.c.l.b16 %v111
  %v563 = vunpack.c.l.b16 %v112
  %v564 = vunpack.c.l.b16 %v113
  %v565 = vunpack.c.l.b16 %v114
  %v566 = vunpack.c.l.b16 %v115
  %v567 = vunpack.c.l.b16 %v116
  %v568 = vunpack.c.l.b16 %v117
  %v569 = vunpack.c.l.b16 %v118
  %v570 = vunpack.c.l.b16 %v119
  %v571 = vunpack.c.l.b16 %v120
  %v572 = vunpack.c.l.b16 %v121
  %v573 = vunpack.c.l.b16 %v122
  %v574 = vunpack.c.l.b16 %v123
  %v575 = vunpack.c.l.b16 %v124
  %v576 = vunpack.c.l.b16 %v125
  %v577 = vunpack.c.l.b16 %v126
  %v578 = vunpack.c.l.b16 %v127
  %v579 = vunpack.c.l.b16 %v128
  %v580 = vunpack.c.l.b16 %v129
  %v581 = vunpack.c.l.b16 %v130
  %v582 = vunpack.c.l.b16 %v131
  %v583 = vunpack.c.l.b16 %v132
  %v584 = vunpack.c.l.b16 %v133
  %v585 = vunpack.c.l.b16 %v134
  %v586 = vunpack.c.l.b16 %v135
  %v587 = vunpack.c.l.b16 %v136
  %v588 = vunpack.c.l.b16 %v137
  %v589 = vunpack.c.l.b16 %v138
  %v590 = vunpack.c.l.b16 %v139
  %v591 = vunpack.c.l.b16 %v140
  %v592 = vunpack.c.l.b16 %v141
  %v593 = vunpack.c.l.b16 %v142
  %v594 = vunpack.c.l.b16 %v143
  %v595 = vunpack.c.l.b16 %v144
  %v596 = vunpack.c.l.b16 %v145
  %v597 = vunpack.c.l.b16 %v146
  %v598 = vunpack.c.l.b16 %v147
  %v599 = vunpack.c.l.b16 %v148
  %v600 = vunpack.c.l.b16 %v149
  %v601 = vunpack.c.l.b16 %v150
  %v602 = vunpack.c.l.b16 %v151
  %v603 = vunpack.c.l.b16 %v152
  %v604 = vunpack.c.l.b16 %v153
  %v605 = vunpack.c.l.b16 %v154
  %v606 = vunpack.c.l.b16 %v155
  %v607 = vunpack.c.l.b16 %v156
  %v608 = vunpack.c.l.b16 %v157
  %v609 = vunpack.c.l.b16 %v158
  %v610 = vunpack.c.l.b16 %v159
  %v611 = vunpack.c.l.b16 %v160
  %v612 = vunpack.c.l.b16 %v161
  %v613 = vunpack.c.l.b16 %v162
  %v614 = vunpack.c.l.b16 %v163
  %v615 = vunpack.c.l.b16 %v164
  %v616 = vpack.c.b16 %v545, %v544
  %v617 = vpack.c.b16 %v547, %v546
  %v618 = vpack.c.b16 %v549, %v548
  %v619 = vpack.c.b16 %v551, %v550
  %v620 = vpack.c.b16 %v553, %v552
  %v621 = vpack.c.b16 %v555, %v554
  %v622 = vpack.c.b16 %v557, %v556
  %v623 = vpack.c.b16 %v559, %v558
  %v624 = vpack.c.b16 %v561, %v560
  %v625 = vpack.c.b16 %v563, %v562
  %v626 = vpack.c.b16 %v565, %v564
  %v627 = vpack.c.b16 %v567, %v566
  %v628 = vpack.c.b16 %v569, %v568
  %v629 = vpack.c.b16 %v571, %v570
  %v630 = vpack.c.b16 %v573, %v572
  %v631 = vpack.c.b16 %v575, %v574
  %v632 = vpack.c.b16 %v577, %v576
  %v633 = vpack.c.b16 %v579, %v578
  %v634 = vpack.c.b16 %v581, %v580
  %v635 = vpack.c.b16 %v583, %v582
  %v636 = vpack.c.b16 %v585, %v584
  %v637 = vpack.c.b16 %v587, %v586
  %v638 = vpack.c.b16 %v589, %v588
  %v639 = vpack.c.b16 %v591, %v590
  %v640 = vpack.c.b16 %v593, %v592
  %v641 = vpack.c.b16 %v595, %v594
  %v642 = vpack.c.b16 %v597, %v596
  %v643 = vpack.c.b16 %v599, %v598
  %v644 = vpack.c.b16 %v601, %v600
  %v645 = vpack.c.b16 %v603, %v602
  %v646 = vpack.c.b16 %v605, %v604
  %v647 = vpack.c.b16 %v607, %v606
  %v648 = vpack.c.b16 %v609, %v608
  %v649 = vpack.c.b16 %v611, %v610
  %v650 = vpack.c.b16 %v613, %v612
  %v651 = vpack.c.b16 %v615, %v614
  %vm688 = vcmask 523264
  %v690 = vsel %vm688, %v368, 0
  %v693 = vsel %vm688, %v373, 0
  %v696 = vsel %vm688, %v378, 0
  %v699 = vsel %vm688, %v383, 0
  %v702 = vsel %vm688, %v388, 0
  %v705 = vsel %vm688, %v393, 0
  %v708 = vsel %vm688, %v398, 0
  %v711 = vsel %vm688, %v403, 0
  %v714 = vsel %vm688, %v408, 0
  %v717 = vsel %vm688, %v413, 0
  %v720 = vsel %vm688, %v418, 0
  %v723 = vsel %vm688, %v423, 0
  %725 = vmatprep.subr.bf16.mxu0 0
  %726 = vmatpush1.bf16.msra.mxu0 %v616
  %727 = vmatprep.subr.bf16.mxu0 0
  %728 = vmatpush1.bf16.msra.mxu0 %v617
  %729 = vmatprep.subr.bf16.mxu0 0
  %730 = vmatpush1.bf16.msra.mxu0 %v618
  %731 = vmatprep.subr.bf16.mxu0 0
  %732 = vmatpush1.bf16.msra.mxu0 %v619
  %733 = vmatprep.subr.bf16.mxu0 0
  %734 = vmatpush1.bf16.msra.mxu0 %v620
  %735 = vmatprep.subr.bf16.mxu0 0
  %736 = vmatpush1.bf16.msra.mxu0 %v621
  %737 = vmatprep.subr.bf16.mxu0 0
  %738 = vmatpush1.bf16.msra.mxu0 %v622
  %739 = vmatprep.subr.bf16.mxu0 0
  %740 = vmatpush1.bf16.msra.mxu0 %v623
  %741 = vmatprep.subr.bf16.mxu0 0
  %742 = vmatpush1.bf16.msra.mxu0 %v624
  %743 = vmatprep.subr.bf16.mxu0 0
  %744 = vmatpush1.bf16.msra.mxu0 %v625
  %745 = vmatprep.subr.bf16.mxu0 0
  %746 = vmatpush1.bf16.msra.mxu0 %v626
  %747 = vmatprep.subr.bf16.mxu0 0
  %748 = vmatpush1.bf16.msra.mxu0 %v627
  %749 = vmatprep.subr.bf16.mxu0 0
  %750 = vmatpush1.bf16.msra.mxu0 %v628
  %751 = vmatprep.subr.bf16.mxu0 0
  %752 = vmatpush1.bf16.msra.mxu0 %v629
  %753 = vmatprep.subr.bf16.mxu0 0
  %754 = vmatpush1.bf16.msra.mxu0 %v630
  %755 = vmatprep.subr.bf16.mxu0 0
  %756 = vmatpush1.bf16.msra.mxu0 %v631
  %757 = vmatprep.mubr.bf16.mxu0 %v365
  %758 = vmatmul.mubr.bf16.gmra.mrb[0].mxu0 %v364
  %v759 = vpop.f32.mrb[0].mxu0
  %v760 = vadd.f32 %v170, %v759
  %v761 = vpop.f32.mrb[0].mxu0
  %v762 = vpop.f32.mrb[0].mxu0
  %v763 = vadd.f32 %v170, %v762
  %v764 = vpop.f32.mrb[0].mxu0
  %765 = vmatprep.mubr.bf16.mxu0 %v370
  %766 = vmatmul.mubr.bf16.gmra.mrb[0].mxu0 %v369
  %v767 = vpop.f32.mrb[0].mxu0
  %v768 = vadd.f32 %v170, %v767
  %v769 = vpop.f32.mrb[0].mxu0
  %v770 = vpop.f32.mrb[0].mxu0
  %v771 = vadd.f32 %v170, %v770
  %v772 = vpop.f32.mrb[0].mxu0
  %773 = vmatprep.mubr.bf16.mxu0 %v375
  %774 = vmatmul.mubr.bf16.gmra.mrb[0].mxu0 %v374
  %v775 = vpop.f32.mrb[0].mxu0
  %v776 = vadd.f32 %v170, %v775
  %v777 = vpop.f32.mrb[0].mxu0
  %v778 = vpop.f32.mrb[0].mxu0
  %v779 = vadd.f32 %v170, %v778
  %v780 = vpop.f32.mrb[0].mxu0
  %781 = vmatprep.mubr.bf16.mxu0 %v380
  %782 = vmatmul.mubr.bf16.gmra.mrb[0].mxu0 %v379
  %v783 = vpop.f32.mrb[0].mxu0
  %v784 = vadd.f32 %v170, %v783
  %v785 = vpop.f32.mrb[0].mxu0
  %v786 = vpop.f32.mrb[0].mxu0
  %v787 = vadd.f32 %v170, %v786
  %v788 = vpop.f32.mrb[0].mxu0
  %789 = vmatprep.mubr.bf16.mxu0 %v385
  %790 = vmatmul.mubr.bf16.gmra.mrb[0].mxu0 %v384
  %v791 = vpop.f32.mrb[0].mxu0
  %v792 = vadd.f32 %v170, %v791
  %v793 = vpop.f32.mrb[0].mxu0
  %v794 = vpop.f32.mrb[0].mxu0
  %v795 = vadd.f32 %v170, %v794
  %v796 = vpop.f32.mrb[0].mxu0
  %797 = vmatprep.mubr.bf16.mxu0 %v390
  %798 = vmatmul.mubr.bf16.gmra.mrb[0].mxu0 %v389
  %v799 = vpop.f32.mrb[0].mxu0
  %v800 = vadd.f32 %v170, %v799
  %v801 = vpop.f32.mrb[0].mxu0
  %v802 = vpop.f32.mrb[0].mxu0
  %v803 = vadd.f32 %v170, %v802
  %v804 = vpop.f32.mrb[0].mxu0
  %805 = vmatprep.mubr.bf16.mxu0 %v395
  %806 = vmatmul.mubr.bf16.gmra.mrb[0].mxu0 %v394
  %v807 = vpop.f32.mrb[0].mxu0
  %v808 = vadd.f32 %v170, %v807
  %v809 = vpop.f32.mrb[0].mxu0
  %v810 = vpop.f32.mrb[0].mxu0
  %v811 = vadd.f32 %v170, %v810
  %v812 = vpop.f32.mrb[0].mxu0
  %813 = vmatprep.mubr.bf16.mxu0 %v400
  %814 = vmatmul.mubr.bf16.gmra.mrb[0].mxu0 %v399
  %v815 = vpop.f32.mrb[0].mxu0
  %v816 = vadd.f32 %v170, %v815
  %v817 = vpop.f32.mrb[0].mxu0
  %v818 = vpop.f32.mrb[0].mxu0
  %v819 = vadd.f32 %v170, %v818
  %v820 = vpop.f32.mrb[0].mxu0
  %821 = vmatprep.mubr.bf16.mxu0 %v405
  %822 = vmatmul.mubr.bf16.gmra.mrb[0].mxu0 %v404
  %v823 = vpop.f32.mrb[0].mxu0
  %v824 = vadd.f32 %v170, %v823
  %v825 = vpop.f32.mrb[0].mxu0
  %v826 = vpop.f32.mrb[0].mxu0
  %v827 = vadd.f32 %v170, %v826
  %v828 = vpop.f32.mrb[0].mxu0
  %829 = vmatprep.mubr.bf16.mxu0 %v410
  %830 = vmatmul.mubr.bf16.gmra.mrb[0].mxu0 %v409
  %v831 = vpop.f32.mrb[0].mxu0
  %v832 = vadd.f32 %v170, %v831
  %v833 = vpop.f32.mrb[0].mxu0
  %v834 = vpop.f32.mrb[0].mxu0
  %v835 = vadd.f32 %v170, %v834
  %v836 = vpop.f32.mrb[0].mxu0
  %837 = vmatprep.mubr.bf16.mxu0 %v415
  %838 = vmatmul.mubr.bf16.gmra.mrb[0].mxu0 %v414
  %v839 = vpop.f32.mrb[0].mxu0
  %v840 = vadd.f32 %v170, %v839
  %v841 = vpop.f32.mrb[0].mxu0
  %v842 = vpop.f32.mrb[0].mxu0
  %v843 = vadd.f32 %v170, %v842
  %v844 = vpop.f32.mrb[0].mxu0
  %845 = vmatprep.mubr.bf16.mxu0 %v420
  %846 = vmatmul.mubr.bf16.gmra.mrb[0].mxu0 %v419
  %v847 = vpop.f32.mrb[0].mxu0
  %v848 = vadd.f32 %v170, %v847
  %v849 = vpop.f32.mrb[0].mxu0
  %v850 = vpop.f32.mrb[0].mxu0
  %v851 = vadd.f32 %v170, %v850
  %v852 = vpop.f32.mrb[0].mxu0
  %853 = vdwg.mxu0
  %854 = vmatprep.subr.bf16.mxu0 0
  %855 = vmatpush1.bf16.msra.mxu0 %v632
  %856 = vmatprep.subr.bf16.mxu0 0
  %857 = vmatpush1.bf16.msra.mxu0 %v633
  %858 = vmatprep.subr.bf16.mxu0 0
  %859 = vmatpush1.bf16.msra.mxu0 %v634
  %860 = vmatprep.subr.bf16.mxu0 0
  %861 = vmatpush1.bf16.msra.mxu0 %v635
  %862 = vmatprep.subr.bf16.mxu0 0
  %863 = vmatpush1.bf16.msra.mxu0 %v636
  %864 = vmatprep.subr.bf16.mxu0 0
  %865 = vmatpush1.bf16.msra.mxu0 %v637
  %866 = vmatprep.subr.bf16.mxu0 0
  %867 = vmatpush1.bf16.msra.mxu0 %v638
  %868 = vmatprep.subr.bf16.mxu0 0
  %869 = vmatpush1.bf16.msra.mxu0 %v639
  %870 = vmatprep.subr.bf16.mxu0 0
  %871 = vmatpush1.bf16.msra.mxu0 %v640
  %872 = vmatprep.subr.bf16.mxu0 0
  %873 = vmatpush1.bf16.msra.mxu0 %v641
  %874 = vmatprep.subr.bf16.mxu0 0
  %875 = vmatpush1.bf16.msra.mxu0 %v642
  %876 = vmatprep.subr.bf16.mxu0 0
  %877 = vmatpush1.bf16.msra.mxu0 %v643
  %878 = vmatprep.subr.bf16.mxu0 0
  %879 = vmatpush1.bf16.msra.mxu0 %v644
  %880 = vmatprep.subr.bf16.mxu0 0
  %881 = vmatpush1.bf16.msra.mxu0 %v645
  %882 = vmatprep.subr.bf16.mxu0 0
  %883 = vmatpush1.bf16.msra.mxu0 %v646
  %884 = vmatprep.subr.bf16.mxu0 0
  %885 = vmatpush1.bf16.msra.mxu0 %v647
  %886 = vmatprep.mubr.bf16.mxu0 %v367
  %887 = vmatmul.mubr.bf16.gmra.mrb[0].mxu0 %v366
  %v888 = vpop.f32.mrb[0].mxu0
  %v889 = vadd.f32 %v760, %v888
  %v890 = vpop.f32.mrb[0].mxu0
  %v891 = vpop.f32.mrb[0].mxu0
  %v892 = vadd.f32 %v763, %v891
  %v893 = vpop.f32.mrb[0].mxu0
  %894 = vmatprep.mubr.bf16.mxu0 %v372
  %895 = vmatmul.mubr.bf16.gmra.mrb[0].mxu0 %v371
  %v896 = vpop.f32.mrb[0].mxu0
  %v897 = vadd.f32 %v768, %v896
  %v898 = vpop.f32.mrb[0].mxu0
  %v899 = vpop.f32.mrb[0].mxu0
  %v900 = vadd.f32 %v771, %v899
  %v901 = vpop.f32.mrb[0].mxu0
  %902 = vmatprep.mubr.bf16.mxu0 %v377
  %903 = vmatmul.mubr.bf16.gmra.mrb[0].mxu0 %v376
  %v904 = vpop.f32.mrb[0].mxu0
  %v905 = vadd.f32 %v776, %v904
  %v906 = vpop.f32.mrb[0].mxu0
  %v907 = vpop.f32.mrb[0].mxu0
  %v908 = vadd.f32 %v779, %v907
  %v909 = vpop.f32.mrb[0].mxu0
  %910 = vmatprep.mubr.bf16.mxu0 %v382
  %911 = vmatmul.mubr.bf16.gmra.mrb[0].mxu0 %v381
  %v912 = vpop.f32.mrb[0].mxu0
  %v913 = vadd.f32 %v784, %v912
  %v914 = vpop.f32.mrb[0].mxu0
  %v915 = vpop.f32.mrb[0].mxu0
  %v916 = vadd.f32 %v787, %v915
  %v917 = vpop.f32.mrb[0].mxu0
  %918 = vmatprep.mubr.bf16.mxu0 %v387
  %919 = vmatmul.mubr.bf16.gmra.mrb[0].mxu0 %v386
  %v920 = vpop.f32.mrb[0].mxu0
  %v921 = vadd.f32 %v792, %v920
  %v922 = vpop.f32.mrb[0].mxu0
  %v923 = vpop.f32.mrb[0].mxu0
  %v924 = vadd.f32 %v795, %v923
  %v925 = vpop.f32.mrb[0].mxu0
  %926 = vmatprep.mubr.bf16.mxu0 %v392
  %927 = vmatmul.mubr.bf16.gmra.mrb[0].mxu0 %v391
  %v928 = vpop.f32.mrb[0].mxu0
  %v929 = vadd.f32 %v800, %v928
  %v930 = vpop.f32.mrb[0].mxu0
  %v931 = vpop.f32.mrb[0].mxu0
  %v932 = vadd.f32 %v803, %v931
  %v933 = vpop.f32.mrb[0].mxu0
  %934 = vmatprep.mubr.bf16.mxu0 %v397
  %935 = vmatmul.mubr.bf16.gmra.mrb[0].mxu0 %v396
  %v936 = vpop.f32.mrb[0].mxu0
  %v937 = vadd.f32 %v808, %v936
  %v938 = vpop.f32.mrb[0].mxu0
  %v939 = vpop.f32.mrb[0].mxu0
  %v940 = vadd.f32 %v811, %v939
  %v941 = vpop.f32.mrb[0].mxu0
  %942 = vmatprep.mubr.bf16.mxu0 %v402
  %943 = vmatmul.mubr.bf16.gmra.mrb[0].mxu0 %v401
  %v944 = vpop.f32.mrb[0].mxu0
  %v945 = vadd.f32 %v816, %v944
  %v946 = vpop.f32.mrb[0].mxu0
  %v947 = vpop.f32.mrb[0].mxu0
  %v948 = vadd.f32 %v819, %v947
  %v949 = vpop.f32.mrb[0].mxu0
  %950 = vmatprep.mubr.bf16.mxu0 %v407
  %951 = vmatmul.mubr.bf16.gmra.mrb[0].mxu0 %v406
  %v952 = vpop.f32.mrb[0].mxu0
  %v953 = vadd.f32 %v824, %v952
  %v954 = vpop.f32.mrb[0].mxu0
  %v955 = vpop.f32.mrb[0].mxu0
  %v956 = vadd.f32 %v827, %v955
  %v957 = vpop.f32.mrb[0].mxu0
  %958 = vmatprep.mubr.bf16.mxu0 %v412
  %959 = vmatmul.mubr.bf16.gmra.mrb[0].mxu0 %v411
  %v960 = vpop.f32.mrb[0].mxu0
  %v961 = vadd.f32 %v832, %v960
  %v962 = vpop.f32.mrb[0].mxu0
  %v963 = vpop.f32.mrb[0].mxu0
  %v964 = vadd.f32 %v835, %v963
  %v965 = vpop.f32.mrb[0].mxu0
  %966 = vmatprep.mubr.bf16.mxu0 %v417
  %967 = vmatmul.mubr.bf16.gmra.mrb[0].mxu0 %v416
  %v968 = vpop.f32.mrb[0].mxu0
  %v969 = vadd.f32 %v840, %v968
  %v970 = vpop.f32.mrb[0].mxu0
  %v971 = vpop.f32.mrb[0].mxu0
  %v972 = vadd.f32 %v843, %v971
  %v973 = vpop.f32.mrb[0].mxu0
  %974 = vmatprep.mubr.bf16.mxu0 %v422
  %975 = vmatmul.mubr.bf16.gmra.mrb[0].mxu0 %v421
  %v976 = vpop.f32.mrb[0].mxu0
  %v977 = vadd.f32 %v848, %v976
  %v978 = vpop.f32.mrb[0].mxu0
  %v979 = vpop.f32.mrb[0].mxu0
  %v980 = vadd.f32 %v851, %v979
  %v981 = vpop.f32.mrb[0].mxu0
  %982 = vdwg.mxu0
  %983 = vmatprep.subr.bf16.mxu0 0
  %984 = vmatpush1.bf16.msra.mxu0 %v648
  %985 = vmatprep.subr.bf16.mxu0 0
  %986 = vmatpush1.bf16.msra.mxu0 %v649
  %987 = vmatprep.subr.bf16.mxu0 0
  %988 = vmatpush1.bf16.msra.mxu0 %v650
  %989 = vmatprep.subr.bf16.mxu0 0
  %990 = vmatpush1.bf16.msra.mxu0 %v651
  %991 = vmatprep.subr.bf16.mxu0 0
  %992 = vmatpush1.bf16.msra.mxu0 0
  %993 = vmatprep.subr.bf16.mxu0 0
  %994 = vmatpush1.bf16.msra.mxu0 0
  %995 = vmatprep.subr.bf16.mxu0 0
  %996 = vmatpush1.bf16.msra.mxu0 0
  %997 = vmatprep.subr.bf16.mxu0 0
  %998 = vmatpush1.bf16.msra.mxu0 0
  %999 = vmatprep.subr.bf16.mxu0 0
  %1000 = vmatpush1.bf16.msra.mxu0 0
  %1001 = vmatprep.subr.bf16.mxu0 0
  %1002 = vmatpush1.bf16.msra.mxu0 0
  %1003 = vmatprep.subr.bf16.mxu0 0
  %1004 = vmatpush1.bf16.msra.mxu0 0
  %1005 = vmatprep.subr.bf16.mxu0 0
  %1006 = vmatpush1.bf16.msra.mxu0 0
  %1007 = vmatprep.subr.bf16.mxu0 0
  %1008 = vmatpush1.bf16.msra.mxu0 0
  %1009 = vmatprep.subr.bf16.mxu0 0
  %1010 = vmatpush1.bf16.msra.mxu0 0
  %1011 = vmatprep.subr.bf16.mxu0 0
  %1012 = vmatpush1.bf16.msra.mxu0 0
  %1013 = vmatprep.subr.bf16.mxu0 0
  %1014 = vmatpush1.bf16.msra.mxu0 0
  %1015 = vmatprep.mubr.bf16.mxu0 0
  %1016 = vmatmul.mubr.bf16.gmra.mrb[0].mxu0 %v690
  %v1017 = vpop.f32.mrb[0].mxu0
  %v1018 = vadd.f32 %v889, %v1017
  %v1019 = vpop.f32.mrb[0].mxu0
  %v1020 = vpop.f32.mrb[0].mxu0
  %v1021 = vadd.f32 %v892, %v1020
  %v1022 = vpop.f32.mrb[0].mxu0
  %1023 = vmatprep.mubr.bf16.mxu0 0
  %1024 = vmatmul.mubr.bf16.gmra.mrb[0].mxu0 %v693
  %v1025 = vpop.f32.mrb[0].mxu0
  %v1026 = vadd.f32 %v897, %v1025
  %v1027 = vpop.f32.mrb[0].mxu0
  %v1028 = vpop.f32.mrb[0].mxu0
  %v1029 = vadd.f32 %v900, %v1028
  %v1030 = vpop.f32.mrb[0].mxu0
  %1031 = vmatprep.mubr.bf16.mxu0 0
  %1032 = vmatmul.mubr.bf16.gmra.mrb[0].mxu0 %v696
  %v1033 = vpop.f32.mrb[0].mxu0
  %v1034 = vadd.f32 %v905, %v1033
  %v1035 = vpop.f32.mrb[0].mxu0
  %v1036 = vpop.f32.mrb[0].mxu0
  %v1037 = vadd.f32 %v908, %v1036
  %v1038 = vpop.f32.mrb[0].mxu0
  %1039 = vmatprep.mubr.bf16.mxu0 0
  %1040 = vmatmul.mubr.bf16.gmra.mrb[0].mxu0 %v699
  %v1041 = vpop.f32.mrb[0].mxu0
  %v1042 = vadd.f32 %v913, %v1041
  %v1043 = vpop.f32.mrb[0].mxu0
  %v1044 = vpop.f32.mrb[0].mxu0
  %v1045 = vadd.f32 %v916, %v1044
  %v1046 = vpop.f32.mrb[0].mxu0
  %1047 = vmatprep.mubr.bf16.mxu0 0
  %1048 = vmatmul.mubr.bf16.gmra.mrb[0].mxu0 %v702
  %v1049 = vpop.f32.mrb[0].mxu0
  %v1050 = vadd.f32 %v921, %v1049
  %v1051 = vpop.f32.mrb[0].mxu0
  %v1052 = vpop.f32.mrb[0].mxu0
  %v1053 = vadd.f32 %v924, %v1052
  %v1054 = vpop.f32.mrb[0].mxu0
  %1055 = vmatprep.mubr.bf16.mxu0 0
  %1056 = vmatmul.mubr.bf16.gmra.mrb[0].mxu0 %v705
  %v1057 = vpop.f32.mrb[0].mxu0
  %v1058 = vadd.f32 %v929, %v1057
  %v1059 = vpop.f32.mrb[0].mxu0
  %v1060 = vpop.f32.mrb[0].mxu0
  %v1061 = vadd.f32 %v932, %v1060
  %v1062 = vpop.f32.mrb[0].mxu0
  %1063 = vmatprep.mubr.bf16.mxu0 0
  %1064 = vmatmul.mubr.bf16.gmra.mrb[0].mxu0 %v708
  %v1065 = vpop.f32.mrb[0].mxu0
  %v1066 = vadd.f32 %v937, %v1065
  %v1067 = vpop.f32.mrb[0].mxu0
  %v1068 = vpop.f32.mrb[0].mxu0
  %v1069 = vadd.f32 %v940, %v1068
  %v1070 = vpop.f32.mrb[0].mxu0
  %1071 = vmatprep.mubr.bf16.mxu0 0
  %1072 = vmatmul.mubr.bf16.gmra.mrb[0].mxu0 %v711
  %v1073 = vpop.f32.mrb[0].mxu0
  %v1074 = vadd.f32 %v945, %v1073
  %v1075 = vpop.f32.mrb[0].mxu0
  %v1076 = vpop.f32.mrb[0].mxu0
  %v1077 = vadd.f32 %v948, %v1076
  %v1078 = vpop.f32.mrb[0].mxu0
  %1079 = vmatprep.mubr.bf16.mxu0 0
  %1080 = vmatmul.mubr.bf16.gmra.mrb[0].mxu0 %v714
  %v1081 = vpop.f32.mrb[0].mxu0
  %v1082 = vadd.f32 %v953, %v1081
  %v1083 = vpop.f32.mrb[0].mxu0
  %v1084 = vpop.f32.mrb[0].mxu0
  %v1085 = vadd.f32 %v956, %v1084
  %v1086 = vpop.f32.mrb[0].mxu0
  %1087 = vmatprep.mubr.bf16.mxu0 0
  %1088 = vmatmul.mubr.bf16.gmra.mrb[0].mxu0 %v717
  %v1089 = vpop.f32.mrb[0].mxu0
  %v1090 = vadd.f32 %v961, %v1089
  %v1091 = vpop.f32.mrb[0].mxu0
  %v1092 = vpop.f32.mrb[0].mxu0
  %v1093 = vadd.f32 %v964, %v1092
  %v1094 = vpop.f32.mrb[0].mxu0
  %1095 = vmatprep.mubr.bf16.mxu0 0
  %1096 = vmatmul.mubr.bf16.gmra.mrb[0].mxu0 %v720
  %v1097 = vpop.f32.mrb[0].mxu0
  %v1098 = vadd.f32 %v969, %v1097
  %v1099 = vpop.f32.mrb[0].mxu0
  %v1100 = vpop.f32.mrb[0].mxu0
  %v1101 = vadd.f32 %v972, %v1100
  %v1102 = vpop.f32.mrb[0].mxu0
  %1103 = vmatprep.mubr.bf16.mxu0 0
  %1104 = vmatmul.mubr.bf16.gmra.mrb[0].mxu0 %v723
  %v1105 = vpop.f32.mrb[0].mxu0
  %v1106 = vadd.f32 %v977, %v1105
  %v1107 = vpop.f32.mrb[0].mxu0
  %v1108 = vpop.f32.mrb[0].mxu0
  %v1109 = vadd.f32 %v980, %v1108
  %v1110 = vpop.f32.mrb[0].mxu0
  %1111 = vdwg.mxu0
  %v1112 = vmax.f32 %v1018, 0.0
  %v1113 = vmax.f32 %v1021, 0.0
  %v1114 = vmax.f32 %v1026, 0.0
  %v1115 = vmax.f32 %v1029, 0.0
  %v1116 = vmax.f32 %v1034, 0.0
  %v1117 = vmax.f32 %v1037, 0.0
  %v1118 = vmax.f32 %v1042, 0.0
  %v1119 = vmax.f32 %v1045, 0.0
  %v1120 = vmax.f32 %v1050, 0.0
  %v1121 = vmax.f32 %v1053, 0.0
  %v1122 = vmax.f32 %v1058, 0.0
  %v1123 = vmax.f32 %v1061, 0.0
  %v1124 = vmax.f32 %v1066, 0.0
  %v1125 = vmax.f32 %v1069, 0.0
  %v1126 = vmax.f32 %v1074, 0.0
  %v1127 = vmax.f32 %v1077, 0.0
  %v1128 = vmax.f32 %v1082, 0.0
  %v1129 = vmax.f32 %v1085, 0.0
  %v1130 = vmax.f32 %v1090, 0.0
  %v1131 = vmax.f32 %v1093, 0.0
  %v1132 = vmax.f32 %v1098, 0.0
  %v1133 = vmax.f32 %v1101, 0.0
  %v1134 = vmax.f32 %v1106, 0.0
  %v1135 = vmax.f32 %v1109, 0.0
  %v1136 = vld [vmem:[%s3] sm:$0x1]
  %v1138 = vlaneseq
  %v1139 = vshrl.u32 %v1138, 7
  %v1140 = vsub.s32 0, %v1139
  %v1141 = vrot.slane %v1136, %v1140
  %v1143 = vmul.f32 %v1112, %v1141
  %v1144 = vmul.f32 %v1113, %v1141
  %v1145 = vmul.f32 %v1114, %v1141
  %v1146 = vmul.f32 %v1115, %v1141
  %v1147 = vmul.f32 %v1116, %v1141
  %v1148 = vmul.f32 %v1117, %v1141
  %v1149 = vmul.f32 %v1118, %v1141
  %v1150 = vmul.f32 %v1119, %v1141
  %v1151 = vmul.f32 %v1120, %v1141
  %v1152 = vmul.f32 %v1121, %v1141
  %v1153 = vmul.f32 %v1122, %v1141
  %v1154 = vmul.f32 %v1123, %v1141
  %v1155 = vmul.f32 %v1124, %v1141
  %v1156 = vmul.f32 %v1125, %v1141
  %v1157 = vmul.f32 %v1126, %v1141
  %v1158 = vmul.f32 %v1127, %v1141
  %v1159 = vmul.f32 %v1128, %v1141
  %v1160 = vmul.f32 %v1129, %v1141
  %v1161 = vmul.f32 %v1130, %v1141
  %v1162 = vmul.f32 %v1131, %v1141
  %v1163 = vmul.f32 %v1132, %v1141
  %v1164 = vmul.f32 %v1133, %v1141
  %v1165 = vmul.f32 %v1134, %v1141
  %v1166 = vmul.f32 %v1135, %v1141
  %v1167 = vld [vmem:[%s4] sm:$0x1]
  %v1169 = vlaneseq
  %v1170 = vshrl.u32 %v1169, 7
  %v1171 = vsub.s32 0, %v1170
  %v1172 = vrot.slane %v1167, %v1171
  %v1174 = vadd.f32 %v1143, %v1172
  %v1175 = vadd.f32 %v1144, %v1172
  %v1176 = vadd.f32 %v1145, %v1172
  %v1177 = vadd.f32 %v1146, %v1172
  %v1178 = vadd.f32 %v1147, %v1172
  %v1179 = vadd.f32 %v1148, %v1172
  %v1180 = vadd.f32 %v1149, %v1172
  %v1181 = vadd.f32 %v1150, %v1172
  %v1182 = vadd.f32 %v1151, %v1172
  %v1183 = vadd.f32 %v1152, %v1172
  %v1184 = vadd.f32 %v1153, %v1172
  %v1185 = vadd.f32 %v1154, %v1172
  %v1186 = vadd.f32 %v1155, %v1172
  %v1187 = vadd.f32 %v1156, %v1172
  %v1188 = vadd.f32 %v1157, %v1172
  %v1189 = vadd.f32 %v1158, %v1172
  %v1190 = vadd.f32 %v1159, %v1172
  %v1191 = vadd.f32 %v1160, %v1172
  %v1192 = vadd.f32 %v1161, %v1172
  %v1193 = vadd.f32 %v1162, %v1172
  %v1194 = vadd.f32 %v1163, %v1172
  %v1195 = vadd.f32 %v1164, %v1172
  %v1196 = vadd.f32 %v1165, %v1172
  %v1197 = vadd.f32 %v1166, %v1172
  %v1198 = vpack.c.bf16 %v1175, %v1174
  %v1199 = vpack.c.bf16 %v1177, %v1176
  %v1200 = vpack.c.bf16 %v1179, %v1178
  %v1201 = vpack.c.bf16 %v1181, %v1180
  %v1202 = vpack.c.bf16 %v1183, %v1182
  %v1203 = vpack.c.bf16 %v1185, %v1184
  %v1204 = vpack.c.bf16 %v1187, %v1186
  %v1205 = vpack.c.bf16 %v1189, %v1188
  %v1206 = vpack.c.bf16 %v1191, %v1190
  %v1207 = vpack.c.bf16 %v1193, %v1192
  %v1208 = vpack.c.bf16 %v1195, %v1194
  %v1209 = vpack.c.bf16 %v1197, %v1196
  %v1222 = vunpack.c.l.b16 %v1198
  %v1223 = vunpack.c.h.b16 %v1198
  %v1224 = vunpack.c.l.b16 %v1199
  %v1225 = vunpack.c.h.b16 %v1199
  %v1226 = vunpack.c.l.b16 %v1200
  %v1227 = vunpack.c.h.b16 %v1200
  %v1228 = vunpack.c.l.b16 %v1201
  %v1229 = vunpack.c.h.b16 %v1201
  %v1230 = vunpack.c.l.b16 %v1202
  %v1231 = vunpack.c.h.b16 %v1202
  %v1232 = vunpack.c.l.b16 %v1203
  %v1233 = vunpack.c.h.b16 %v1203
  %v1234 = vunpack.c.l.b16 %v1204
  %v1235 = vunpack.c.h.b16 %v1204
  %v1236 = vunpack.c.l.b16 %v1205
  %v1237 = vunpack.c.h.b16 %v1205
  %v1238 = vunpack.c.l.b16 %v1206
  %v1239 = vunpack.c.h.b16 %v1206
  %v1240 = vunpack.c.l.b16 %v1207
  %v1241 = vunpack.c.h.b16 %v1207
  %v1242 = vunpack.c.l.b16 %v1208
  %v1243 = vunpack.c.h.b16 %v1208
  %v1244 = vunpack.c.l.b16 %v1209
  %v1245 = vunpack.c.h.b16 %v1209
  %v1246 = vpack.c.b16 %v1222, %v1222
  %v1247 = vpack.c.b16 %v1223, %v1223
  %v1248 = vpack.c.b16 %v1224, %v1224
  %v1249 = vpack.c.b16 %v1225, %v1225
  %v1250 = vpack.c.b16 %v1226, %v1226
  %v1251 = vpack.c.b16 %v1227, %v1227
  %v1252 = vpack.c.b16 %v1228, %v1228
  %v1253 = vpack.c.b16 %v1229, %v1229
  %v1254 = vpack.c.b16 %v1230, %v1230
  %v1255 = vpack.c.b16 %v1231, %v1231
  %v1256 = vpack.c.b16 %v1232, %v1232
  %v1257 = vpack.c.b16 %v1233, %v1233
  %v1258 = vpack.c.b16 %v1234, %v1234
  %v1259 = vpack.c.b16 %v1235, %v1235
  %v1260 = vpack.c.b16 %v1236, %v1236
  %v1261 = vpack.c.b16 %v1237, %v1237
  %v1262 = vpack.c.b16 %v1238, %v1238
  %v1263 = vpack.c.b16 %v1239, %v1239
  %v1264 = vpack.c.b16 %v1240, %v1240
  %v1265 = vpack.c.b16 %v1241, %v1241
  %v1266 = vpack.c.b16 %v1242, %v1242
  %v1267 = vpack.c.b16 %v1243, %v1243
  %v1268 = vpack.c.b16 %v1244, %v1244
  %v1269 = vpack.c.b16 %v1245, %v1245
  %vm1294 = vcmask 519168
  %1295 = vst.msk [vmem:[%s5] sm:$0xf] %vm1294, %v1246
  %1296 = vst.msk [vmem:[%s5 + $0x4] sm:$0xf] %vm1294, %v1247
  %1297 = vst.msk [vmem:[%s5 + $0x8] sm:$0xf] %vm1294, %v1248
  %1298 = vst.msk [vmem:[%s5 + $0xc] sm:$0xf] %vm1294, %v1249
  %1299 = vst.msk [vmem:[%s5 + $0x10] sm:$0xf] %vm1294, %v1250
  %1300 = vst.msk [vmem:[%s5 + $0x14] sm:$0xf] %vm1294, %v1251
  %1301 = vst.msk [vmem:[%s5 + $0x18] sm:$0xf] %vm1294, %v1252
  %1302 = vst.msk [vmem:[%s5 + $0x1c] sm:$0xf] %vm1294, %v1253
  %1303 = vst.msk [vmem:[%s5 + $0x20] sm:$0xf] %vm1294, %v1254
  %1304 = vst.msk [vmem:[%s5 + $0x24] sm:$0xf] %vm1294, %v1255
  %1305 = vst.msk [vmem:[%s5 + $0x28] sm:$0xf] %vm1294, %v1256
  %1306 = vst.msk [vmem:[%s5 + $0x2c] sm:$0xf] %vm1294, %v1257
  %1307 = vst.msk [vmem:[%s5 + $0x30] sm:$0xf] %vm1294, %v1258
  %1308 = vst.msk [vmem:[%s5 + $0x34] sm:$0xf] %vm1294, %v1259
  %1309 = vst.msk [vmem:[%s5 + $0x38] sm:$0xf] %vm1294, %v1260
  %1310 = vst.msk [vmem:[%s5 + $0x3c] sm:$0xf] %vm1294, %v1261
  %1311 = vst.msk [vmem:[%s5 + $0x40] sm:$0xf] %vm1294, %v1262
  %1312 = vst.msk [vmem:[%s5 + $0x44] sm:$0xf] %vm1294, %v1263
  %1313 = vst.msk [vmem:[%s5 + $0x48] sm:$0xf] %vm1294, %v1264
  %1314 = vst.msk [vmem:[%s5 + $0x4c] sm:$0xf] %vm1294, %v1265
  %1315 = vst.msk [vmem:[%s5 + $0x50] sm:$0xf] %vm1294, %v1266
  %1316 = vst.msk [vmem:[%s5 + $0x54] sm:$0xf] %vm1294, %v1267
  %1317 = vst.msk [vmem:[%s5 + $0x58] sm:$0xf] %vm1294, %v1268
  %1318 = vst.msk [vmem:[%s5 + $0x5c] sm:$0xf] %vm1294, %v1269
  // Predicated region
  $region22: #{deepconvlstm_forward.12} parent=0 // pred_check
    _
  $region23: #{deepconvlstm_forward.12} parent=0 // pred_check_branch
    %1320 = sbr.rel (0) target = $region25
  $region24: #{deepconvlstm_forward.12} parent=0 // pred_region
    _
  $region25: #{deepconvlstm_forward.12} parent=0 // pred_fallthru
    _
  // Predicated region
  $region26: #{deepconvlstm_forward.12} parent=0 // pred_check
    _
  $region27: #{deepconvlstm_forward.12} parent=0 // pred_check_branch
    %1322 = sbr.rel (0) target = $region29
  $region28: #{deepconvlstm_forward.12} parent=0 // pred_region
    _
  $region29: #{deepconvlstm_forward.12} parent=0 // pred_fallthru
    _

// kernel: deepconvlstm_forward.16
$region0: #{deepconvlstm_forward.16}
  #allocation0 [shape = 'u32[]', space=smem, size = 0x4, offset = 0x4, fixed_abs, tag = 'smem constant byte address 0x4 - core index']
  #allocation1 [shape = 'u32[144,128]{1,0:T(1,128)}', space=vmem, size = 0x12000, scoped, tag = 'internal scratch']
  %s0 = inlined_call_operand.vmem [shape: bf16[384,9], index: 0, kind: input, shape index: {}]
  %s1 = inlined_call_operand.vmem [shape: bf16[9,64], index: 1, kind: input, shape index: {}]
  %s2 = inlined_call_operand.vmem [shape: f32[1,64], index: 2, kind: input, shape index: {}]
  %s3 = inlined_call_operand.vmem [shape: f32[1,64], index: 3, kind: input, shape index: {}]
  %s4 = inlined_call_operand.vmem [shape: f32[1,64], index: 4, kind: input, shape index: {}]
  %s5 = inlined_call_operand.vmem [shape: bf16[384,64], index: 5, kind: output, shape index: {}]
  %s6 = sld [smem:[#allocation0]]
  $region30: #{deepconvlstm_forward.16} parent=0
    _
  %s8 = ssub.s32 1, %s6
  %s9 = scalar_select 0, %s8, %s6
  // Predicated region
  $region2: #{deepconvlstm_forward.16} parent=0 // pred_check
    _
  $region3: #{deepconvlstm_forward.16} parent=0 // pred_check_branch
    %11 = sbr.rel (0) target = $region5
  $region4: #{deepconvlstm_forward.16} parent=0 // pred_region
    _
  $region5: #{deepconvlstm_forward.16} parent=0 // pred_fallthru
    _
  // Predicated region
  $region6: #{deepconvlstm_forward.16} parent=0 // pred_check
    _
  $region7: #{deepconvlstm_forward.16} parent=0 // pred_check_branch
    %13 = sbr.rel (0) target = $region9
  $region8: #{deepconvlstm_forward.16} parent=0 // pred_region
    _
  $region9: #{deepconvlstm_forward.16} parent=0 // pred_fallthru
    _
  // Predicated region
  $region10: #{deepconvlstm_forward.16} parent=0 // pred_check
    _
  $region11: #{deepconvlstm_forward.16} parent=0 // pred_check_branch
    %15 = sbr.rel (0) target = $region13
  $region12: #{deepconvlstm_forward.16} parent=0 // pred_region
    _
  $region13: #{deepconvlstm_forward.16} parent=0 // pred_fallthru
    _
  // Predicated region
  $region14: #{deepconvlstm_forward.16} parent=0 // pred_check
    _
  $region15: #{deepconvlstm_forward.16} parent=0 // pred_check_branch
    %17 = sbr.rel (0) target = $region17
  $region16: #{deepconvlstm_forward.16} parent=0 // pred_region
    _
  $region17: #{deepconvlstm_forward.16} parent=0 // pred_fallthru
    _
  // Predicated region
  $region18: #{deepconvlstm_forward.16} parent=0 // pred_check
    _
  $region19: #{deepconvlstm_forward.16} parent=0 // pred_check_branch
    %19 = sbr.rel (0) target = $region21
  $region20: #{deepconvlstm_forward.16} parent=0 // pred_region
    _
  $region21: #{deepconvlstm_forward.16} parent=0 // pred_fallthru
    _
  %v21 = vld [vmem:[%s0] sm:$0xf]
  %v22 = vld [vmem:[%s0 + $0x4] sm:$0xf]
  %v23 = vld [vmem:[%s0 + $0x8] sm:$0xf]
  %v24 = vld [vmem:[%s0 + $0xc] sm:$0xf]
  %v25 = vld [vmem:[%s0 + $0x10] sm:$0xf]
  %v26 = vld [vmem:[%s0 + $0x14] sm:$0xf]
  %v27 = vld [vmem:[%s0 + $0x18] sm:$0xf]
  %v28 = vld [vmem:[%s0 + $0x1c] sm:$0xf]
  %v29 = vld [vmem:[%s0 + $0x20] sm:$0xf]
  %v30 = vld [vmem:[%s0 + $0x24] sm:$0xf]
  %v31 = vld [vmem:[%s0 + $0x28] sm:$0xf]
  %v32 = vld [vmem:[%s0 + $0x2c] sm:$0xf]
  %v33 = vld [vmem:[%s0 + $0x30] sm:$0xf]
  %v34 = vld [vmem:[%s0 + $0x34] sm:$0xf]
  %v35 = vld [vmem:[%s0 + $0x38] sm:$0xf]
  %v36 = vld [vmem:[%s0 + $0x3c] sm:$0xf]
  %v37 = vld [vmem:[%s0 + $0x40] sm:$0xf]
  %v38 = vld [vmem:[%s0 + $0x44] sm:$0xf]
  %v39 = vld [vmem:[%s0 + $0x48] sm:$0xf]
  %v40 = vld [vmem:[%s0 + $0x4c] sm:$0xf]
  %v41 = vld [vmem:[%s0 + $0x50] sm:$0xf]
  %v42 = vld [vmem:[%s0 + $0x54] sm:$0xf]
  %v43 = vld [vmem:[%s0 + $0x58] sm:$0xf]
  %v44 = vld [vmem:[%s0 + $0x5c] sm:$0xf]
  %v45 = vld [vmem:[%s0 + $0x60] sm:$0xf]
  %v46 = vld [vmem:[%s0 + $0x64] sm:$0xf]
  %v47 = vld [vmem:[%s0 + $0x68] sm:$0xf]
  %v48 = vld [vmem:[%s0 + $0x6c] sm:$0xf]
  %v49 = vld [vmem:[%s0 + $0x70] sm:$0xf]
  %v50 = vld [vmem:[%s0 + $0x74] sm:$0xf]
  %v51 = vld [vmem:[%s0 + $0x78] sm:$0xf]
  %v52 = vld [vmem:[%s0 + $0x7c] sm:$0xf]
  %v53 = vld [vmem:[%s0 + $0x80] sm:$0xf]
  %v54 = vld [vmem:[%s0 + $0x84] sm:$0xf]
  %v55 = vld [vmem:[%s0 + $0x88] sm:$0xf]
  %v56 = vld [vmem:[%s0 + $0x8c] sm:$0xf]
  %v57 = vld [vmem:[%s0 + $0x90] sm:$0xf]
  %v58 = vld [vmem:[%s0 + $0x94] sm:$0xf]
  %v59 = vld [vmem:[%s0 + $0x98] sm:$0xf]
  %v60 = vld [vmem:[%s0 + $0x9c] sm:$0xf]
  %v61 = vld [vmem:[%s0 + $0xa0] sm:$0xf]
  %v62 = vld [vmem:[%s0 + $0xa4] sm:$0xf]
  %v63 = vld [vmem:[%s0 + $0xa8] sm:$0xf]
  %v64 = vld [vmem:[%s0 + $0xac] sm:$0xf]
  %v65 = vld [vmem:[%s0 + $0xb0] sm:$0xf]
  %v66 = vld [vmem:[%s0 + $0xb4] sm:$0xf]
  %v67 = vld [vmem:[%s0 + $0xb8] sm:$0xf]
  %v68 = vld [vmem:[%s0 + $0xbc] sm:$0xf]
  %v69 = vld [vmem:[%s1] sm:$0xf]
  %v70 = vld [vmem:[%s1 + $0x4] sm:$0x1]
  %v71 = vld [vmem:[%s2] sm:$0x1]
  %v73 = vlaneseq
  %v74 = vshrl.u32 %v73, 7
  %v75 = vsub.s32 0, %v74
  %v76 = vrot.slane %v71, %v75
  %v126 = vunpack.c.l.b16 %v21
  %v127 = vunpack.c.l.b16 %v22
  %v128 = vunpack.c.l.b16 %v23
  %v129 = vunpack.c.l.b16 %v24
  %v130 = vunpack.c.l.b16 %v25
  %v131 = vunpack.c.l.b16 %v26
  %v132 = vunpack.c.l.b16 %v27
  %v133 = vunpack.c.l.b16 %v28
  %v134 = vunpack.c.l.b16 %v29
  %v135 = vunpack.c.l.b16 %v30
  %v136 = vunpack.c.l.b16 %v31
  %v137 = vunpack.c.l.b16 %v32
  %v138 = vunpack.c.l.b16 %v33
  %v139 = vunpack.c.l.b16 %v34
  %v140 = vunpack.c.l.b16 %v35
  %v141 = vunpack.c.l.b16 %v36
  %v142 = vunpack.c.l.b16 %v37
  %v143 = vunpack.c.l.b16 %v38
  %v144 = vunpack.c.l.b16 %v39
  %v145 = vunpack.c.l.b16 %v40
  %v146 = vunpack.c.l.b16 %v41
  %v147 = vunpack.c.l.b16 %v42
  %v148 = vunpack.c.l.b16 %v43
  %v149 = vunpack.c.l.b16 %v44
  %v150 = vunpack.c.l.b16 %v45
  %v151 = vunpack.c.l.b16 %v46
  %v152 = vunpack.c.l.b16 %v47
  %v153 = vunpack.c.l.b16 %v48
  %v154 = vunpack.c.l.b16 %v49
  %v155 = vunpack.c.l.b16 %v50
  %v156 = vunpack.c.l.b16 %v51
  %v157 = vunpack.c.l.b16 %v52
  %v158 = vunpack.c.l.b16 %v53
  %v159 = vunpack.c.l.b16 %v54
  %v160 = vunpack.c.l.b16 %v55
  %v161 = vunpack.c.l.b16 %v56
  %v162 = vunpack.c.l.b16 %v57
  %v163 = vunpack.c.l.b16 %v58
  %v164 = vunpack.c.l.b16 %v59
  %v165 = vunpack.c.l.b16 %v60
  %v166 = vunpack.c.l.b16 %v61
  %v167 = vunpack.c.l.b16 %v62
  %v168 = vunpack.c.l.b16 %v63
  %v169 = vunpack.c.l.b16 %v64
  %v170 = vunpack.c.l.b16 %v65
  %v171 = vunpack.c.l.b16 %v66
  %v172 = vunpack.c.l.b16 %v67
  %v173 = vunpack.c.l.b16 %v68
  %v174 = vpack.c.b16 %v127, %v126
  %v175 = vpack.c.b16 %v129, %v128
  %v176 = vpack.c.b16 %v131, %v130
  %v177 = vpack.c.b16 %v133, %v132
  %v178 = vpack.c.b16 %v135, %v134
  %v179 = vpack.c.b16 %v137, %v136
  %v180 = vpack.c.b16 %v139, %v138
  %v181 = vpack.c.b16 %v141, %v140
  %v182 = vpack.c.b16 %v143, %v142
  %v183 = vpack.c.b16 %v145, %v144
  %v184 = vpack.c.b16 %v147, %v146
  %v185 = vpack.c.b16 %v149, %v148
  %v186 = vpack.c.b16 %v151, %v150
  %v187 = vpack.c.b16 %v153, %v152
  %v188 = vpack.c.b16 %v155, %v154
  %v189 = vpack.c.b16 %v157, %v156
  %v190 = vpack.c.b16 %v159, %v158
  %v191 = vpack.c.b16 %v161, %v160
  %v192 = vpack.c.b16 %v163, %v162
  %v193 = vpack.c.b16 %v165, %v164
  %v194 = vpack.c.b16 %v167, %v166
  %v195 = vpack.c.b16 %v169, %v168
  %v196 = vpack.c.b16 %v171, %v170
  %v197 = vpack.c.b16 %v173, %v172
  %v200 = vunpack.c.l.b16 %v69
  %v201 = vunpack.c.l.b16 %v70
  %v202 = vpack.c.b16 %v201, %v200
  %vm203 = vcmask 72704
  %v205 = vsel %vm203, %v174, 0
  %v208 = vsel %vm203, %v175, 0
  %v211 = vsel %vm203, %v176, 0
  %v214 = vsel %vm203, %v177, 0
  %v217 = vsel %vm203, %v178, 0
  %v220 = vsel %vm203, %v179, 0
  %v223 = vsel %vm203, %v180, 0
  %v226 = vsel %vm203, %v181, 0
  %v229 = vsel %vm203, %v182, 0
  %v232 = vsel %vm203, %v183, 0
  %v235 = vsel %vm203, %v184, 0
  %v238 = vsel %vm203, %v185, 0
  %v241 = vsel %vm203, %v186, 0
  %v244 = vsel %vm203, %v187, 0
  %v247 = vsel %vm203, %v188, 0
  %v250 = vsel %vm203, %v189, 0
  %v253 = vsel %vm203, %v190, 0
  %v256 = vsel %vm203, %v191, 0
  %v259 = vsel %vm203, %v192, 0
  %v262 = vsel %vm203, %v193, 0
  %v265 = vsel %vm203, %v194, 0
  %v268 = vsel %vm203, %v195, 0
  %v271 = vsel %vm203, %v196, 0
  %v274 = vsel %vm203, %v197, 0
  %vm276 = vcmask 1043456
  %vm277 = vcmask 1044480
  %v278 = vsel %vm276, 4294967295, 65535
  %v279 = vsel %vm277, %v278, 0
  %v281 = vand.u32 %v202, %v279
  %283 = vmatprep.subr.bf16.mxu0 0
  %284 = vmatpush1.bf16.msra.mxu0 %v281
  %285 = vmatprep.subr.bf16.mxu0 0
  %286 = vmatpush1.bf16.msra.mxu0 0
  %287 = vmatprep.subr.bf16.mxu0 0
  %288 = vmatpush1.bf16.msra.mxu0 0
  %289 = vmatprep.subr.bf16.mxu0 0
  %290 = vmatpush1.bf16.msra.mxu0 0
  %291 = vmatprep.subr.bf16.mxu0 0
  %292 = vmatpush1.bf16.msra.mxu0 0
  %293 = vmatprep.subr.bf16.mxu0 0
  %294 = vmatpush1.bf16.msra.mxu0 0
  %295 = vmatprep.subr.bf16.mxu0 0
  %296 = vmatpush1.bf16.msra.mxu0 0
  %297 = vmatprep.subr.bf16.mxu0 0
  %298 = vmatpush1.bf16.msra.mxu0 0
  %299 = vmatprep.subr.bf16.mxu0 0
  %300 = vmatpush1.bf16.msra.mxu0 0
  %301 = vmatprep.subr.bf16.mxu0 0
  %302 = vmatpush1.bf16.msra.mxu0 0
  %303 = vmatprep.subr.bf16.mxu0 0
  %304 = vmatpush1.bf16.msra.mxu0 0
  %305 = vmatprep.subr.bf16.mxu0 0
  %306 = vmatpush1.bf16.msra.mxu0 0
  %307 = vmatprep.subr.bf16.mxu0 0
  %308 = vmatpush1.bf16.msra.mxu0 0
  %309 = vmatprep.subr.bf16.mxu0 0
  %310 = vmatpush1.bf16.msra.mxu0 0
  %311 = vmatprep.subr.bf16.mxu0 0
  %312 = vmatpush1.bf16.msra.mxu0 0
  %313 = vmatprep.subr.bf16.mxu0 0
  %314 = vmatpush1.bf16.msra.mxu0 0
  %315 = vmatprep.mubr.bf16.mxu0 0
  %316 = vmatmul.mubr.bf16.gmra.mrb[0].mxu0 %v205
  %v317 = vpop.f32.mrb[0].mxu0
  %v318 = vadd.f32 %v76, %v317
  %v319 = vpop.f32.mrb[0].mxu0
  %v320 = vpop.f32.mrb[0].mxu0
  %v321 = vadd.f32 %v76, %v320
  %v322 = vpop.f32.mrb[0].mxu0
  %323 = vmatprep.mubr.bf16.mxu0 0
  %324 = vmatmul.mubr.bf16.gmra.mrb[0].mxu0 %v208
  %v325 = vpop.f32.mrb[0].mxu0
  %v326 = vadd.f32 %v76, %v325
  %v327 = vpop.f32.mrb[0].mxu0
  %v328 = vpop.f32.mrb[0].mxu0
  %v329 = vadd.f32 %v76, %v328
  %v330 = vpop.f32.mrb[0].mxu0
  %331 = vmatprep.mubr.bf16.mxu0 0
  %332 = vmatmul.mubr.bf16.gmra.mrb[0].mxu0 %v211
  %v333 = vpop.f32.mrb[0].mxu0
  %v334 = vadd.f32 %v76, %v333
  %v335 = vpop.f32.mrb[0].mxu0
  %v336 = vpop.f32.mrb[0].mxu0
  %v337 = vadd.f32 %v76, %v336
  %v338 = vpop.f32.mrb[0].mxu0
  %339 = vmatprep.mubr.bf16.mxu0 0
  %340 = vmatmul.mubr.bf16.gmra.mrb[0].mxu0 %v214
  %v341 = vpop.f32.mrb[0].mxu0
  %v342 = vadd.f32 %v76, %v341
  %v343 = vpop.f32.mrb[0].mxu0
  %v344 = vpop.f32.mrb[0].mxu0
  %v345 = vadd.f32 %v76, %v344
  %v346 = vpop.f32.mrb[0].mxu0
  %347 = vmatprep.mubr.bf16.mxu0 0
  %348 = vmatmul.mubr.bf16.gmra.mrb[0].mxu0 %v217
  %v349 = vpop.f32.mrb[0].mxu0
  %v350 = vadd.f32 %v76, %v349
  %v351 = vpop.f32.mrb[0].mxu0
  %v352 = vpop.f32.mrb[0].mxu0
  %v353 = vadd.f32 %v76, %v352
  %v354 = vpop.f32.mrb[0].mxu0
  %355 = vmatprep.mubr.bf16.mxu0 0
  %356 = vmatmul.mubr.bf16.gmra.mrb[0].mxu0 %v220
  %v357 = vpop.f32.mrb[0].mxu0
  %v358 = vadd.f32 %v76, %v357
  %v359 = vpop.f32.mrb[0].mxu0
  %v360 = vpop.f32.mrb[0].mxu0
  %v361 = vadd.f32 %v76, %v360
  %v362 = vpop.f32.mrb[0].mxu0
  %363 = vmatprep.mubr.bf16.mxu0 0
  %364 = vmatmul.mubr.bf16.gmra.mrb[0].mxu0 %v223
  %v365 = vpop.f32.mrb[0].mxu0
  %v366 = vadd.f32 %v76, %v365
  %v367 = vpop.f32.mrb[0].mxu0
  %v368 = vpop.f32.mrb[0].mxu0
  %v369 = vadd.f32 %v76, %v368
  %v370 = vpop.f32.mrb[0].mxu0
  %371 = vmatprep.mubr.bf16.mxu0 0
  %372 = vmatmul.mubr.bf16.gmra.mrb[0].mxu0 %v226
  %v373 = vpop.f32.mrb[0].mxu0
  %v374 = vadd.f32 %v76, %v373
  %v375 = vpop.f32.mrb[0].mxu0
  %v376 = vpop.f32.mrb[0].mxu0
  %v377 = vadd.f32 %v76, %v376
  %v378 = vpop.f32.mrb[0].mxu0
  %379 = vmatprep.mubr.bf16.mxu0 0
  %380 = vmatmul.mubr.bf16.gmra.mrb[0].mxu0 %v229
  %v381 = vpop.f32.mrb[0].mxu0
  %v382 = vadd.f32 %v76, %v381
  %v383 = vpop.f32.mrb[0].mxu0
  %v384 = vpop.f32.mrb[0].mxu0
  %v385 = vadd.f32 %v76, %v384
  %v386 = vpop.f32.mrb[0].mxu0
  %387 = vmatprep.mubr.bf16.mxu0 0
  %388 = vmatmul.mubr.bf16.gmra.mrb[0].mxu0 %v232
  %v389 = vpop.f32.mrb[0].mxu0
  %v390 = vadd.f32 %v76, %v389
  %v391 = vpop.f32.mrb[0].mxu0
  %v392 = vpop.f32.mrb[0].mxu0
  %v393 = vadd.f32 %v76, %v392
  %v394 = vpop.f32.mrb[0].mxu0
  %395 = vmatprep.mubr.bf16.mxu0 0
  %396 = vmatmul.mubr.bf16.gmra.mrb[0].mxu0 %v235
  %v397 = vpop.f32.mrb[0].mxu0
  %v398 = vadd.f32 %v76, %v397
  %v399 = vpop.f32.mrb[0].mxu0
  %v400 = vpop.f32.mrb[0].mxu0
  %v401 = vadd.f32 %v76, %v400
  %v402 = vpop.f32.mrb[0].mxu0
  %403 = vmatprep.mubr.bf16.mxu0 0
  %404 = vmatmul.mubr.bf16.gmra.mrb[0].mxu0 %v238
  %v405 = vpop.f32.mrb[0].mxu0
  %v406 = vadd.f32 %v76, %v405
  %v407 = vpop.f32.mrb[0].mxu0
  %v408 = vpop.f32.mrb[0].mxu0
  %v409 = vadd.f32 %v76, %v408
  %v410 = vpop.f32.mrb[0].mxu0
  %411 = vmatprep.mubr.bf16.mxu0 0
  %412 = vmatmul.mubr.bf16.gmra.mrb[0].mxu0 %v241
  %v413 = vpop.f32.mrb[0].mxu0
  %v414 = vadd.f32 %v76, %v413
  %v415 = vpop.f32.mrb[0].mxu0
  %v416 = vpop.f32.mrb[0].mxu0
  %v417 = vadd.f32 %v76, %v416
  %v418 = vpop.f32.mrb[0].mxu0
  %419 = vmatprep.mubr.bf16.mxu0 0
  %420 = vmatmul.mubr.bf16.gmra.mrb[0].mxu0 %v244
  %v421 = vpop.f32.mrb[0].mxu0
  %v422 = vadd.f32 %v76, %v421
  %v423 = vpop.f32.mrb[0].mxu0
  %v424 = vpop.f32.mrb[0].mxu0
  %v425 = vadd.f32 %v76, %v424
  %v426 = vpop.f32.mrb[0].mxu0
  %427 = vmatprep.mubr.bf16.mxu0 0
  %428 = vmatmul.mubr.bf16.gmra.mrb[0].mxu0 %v247
  %v429 = vpop.f32.mrb[0].mxu0
  %v430 = vadd.f32 %v76, %v429
  %v431 = vpop.f32.mrb[0].mxu0
  %v432 = vpop.f32.mrb[0].mxu0
  %v433 = vadd.f32 %v76, %v432
  %v434 = vpop.f32.mrb[0].mxu0
  %435 = vmatprep.mubr.bf16.mxu0 0
  %436 = vmatmul.mubr.bf16.gmra.mrb[0].mxu0 %v250
  %v437 = vpop.f32.mrb[0].mxu0
  %v438 = vadd.f32 %v76, %v437
  %v439 = vpop.f32.mrb[0].mxu0
  %v440 = vpop.f32.mrb[0].mxu0
  %v441 = vadd.f32 %v76, %v440
  %v442 = vpop.f32.mrb[0].mxu0
  %443 = vmatprep.mubr.bf16.mxu0 0
  %444 = vmatmul.mubr.bf16.gmra.mrb[0].mxu0 %v253
  %v445 = vpop.f32.mrb[0].mxu0
  %v446 = vadd.f32 %v76, %v445
  %v447 = vpop.f32.mrb[0].mxu0
  %v448 = vpop.f32.mrb[0].mxu0
  %v449 = vadd.f32 %v76, %v448
  %v450 = vpop.f32.mrb[0].mxu0
  %451 = vmatprep.mubr.bf16.mxu0 0
  %452 = vmatmul.mubr.bf16.gmra.mrb[0].mxu0 %v256
  %v453 = vpop.f32.mrb[0].mxu0
  %v454 = vadd.f32 %v76, %v453
  %v455 = vpop.f32.mrb[0].mxu0
  %v456 = vpop.f32.mrb[0].mxu0
  %v457 = vadd.f32 %v76, %v456
  %v458 = vpop.f32.mrb[0].mxu0
  %459 = vmatprep.mubr.bf16.mxu0 0
  %460 = vmatmul.mubr.bf16.gmra.mrb[0].mxu0 %v259
  %v461 = vpop.f32.mrb[0].mxu0
  %v462 = vadd.f32 %v76, %v461
  %v463 = vpop.f32.mrb[0].mxu0
  %v464 = vpop.f32.mrb[0].mxu0
  %v465 = vadd.f32 %v76, %v464
  %v466 = vpop.f32.mrb[0].mxu0
  %467 = vmatprep.mubr.bf16.mxu0 0
  %468 = vmatmul.mubr.bf16.gmra.mrb[0].mxu0 %v262
  %v469 = vpop.f32.mrb[0].mxu0
  %v470 = vadd.f32 %v76, %v469
  %v471 = vpop.f32.mrb[0].mxu0
  %v472 = vpop.f32.mrb[0].mxu0
  %v473 = vadd.f32 %v76, %v472
  %v474 = vpop.f32.mrb[0].mxu0
  %475 = vmatprep.mubr.bf16.mxu0 0
  %476 = vmatmul.mubr.bf16.gmra.mrb[0].mxu0 %v265
  %v477 = vpop.f32.mrb[0].mxu0
  %v478 = vadd.f32 %v76, %v477
  %v479 = vpop.f32.mrb[0].mxu0
  %v480 = vpop.f32.mrb[0].mxu0
  %v481 = vadd.f32 %v76, %v480
  %v482 = vpop.f32.mrb[0].mxu0
  %483 = vmatprep.mubr.bf16.mxu0 0
  %484 = vmatmul.mubr.bf16.gmra.mrb[0].mxu0 %v268
  %v485 = vpop.f32.mrb[0].mxu0
  %v486 = vadd.f32 %v76, %v485
  %v487 = vpop.f32.mrb[0].mxu0
  %v488 = vpop.f32.mrb[0].mxu0
  %v489 = vadd.f32 %v76, %v488
  %v490 = vpop.f32.mrb[0].mxu0
  %491 = vmatprep.mubr.bf16.mxu0 0
  %492 = vmatmul.mubr.bf16.gmra.mrb[0].mxu0 %v271
  %v493 = vpop.f32.mrb[0].mxu0
  %v494 = vadd.f32 %v76, %v493
  %v495 = vpop.f32.mrb[0].mxu0
  %v496 = vpop.f32.mrb[0].mxu0
  %v497 = vadd.f32 %v76, %v496
  %v498 = vpop.f32.mrb[0].mxu0
  %499 = vmatprep.mubr.bf16.mxu0 0
  %500 = vmatmul.mubr.bf16.gmra.mrb[0].mxu0 %v274
  %v501 = vpop.f32.mrb[0].mxu0
  %v502 = vadd.f32 %v76, %v501
  %v503 = vpop.f32.mrb[0].mxu0
  %v504 = vpop.f32.mrb[0].mxu0
  %v505 = vadd.f32 %v76, %v504
  %v506 = vpop.f32.mrb[0].mxu0
  %507 = vdwg.mxu0
  %v508 = vmax.f32 %v318, 0.0
  %v509 = vmax.f32 %v321, 0.0
  %v510 = vmax.f32 %v326, 0.0
  %v511 = vmax.f32 %v329, 0.0
  %v512 = vmax.f32 %v334, 0.0
  %v513 = vmax.f32 %v337, 0.0
  %v514 = vmax.f32 %v342, 0.0
  %v515 = vmax.f32 %v345, 0.0
  %v516 = vmax.f32 %v350, 0.0
  %v517 = vmax.f32 %v353, 0.0
  %v518 = vmax.f32 %v358, 0.0
  %v519 = vmax.f32 %v361, 0.0
  %v520 = vmax.f32 %v366, 0.0
  %v521 = vmax.f32 %v369, 0.0
  %v522 = vmax.f32 %v374, 0.0
  %v523 = vmax.f32 %v377, 0.0
  %v524 = vmax.f32 %v382, 0.0
  %v525 = vmax.f32 %v385, 0.0
  %v526 = vmax.f32 %v390, 0.0
  %v527 = vmax.f32 %v393, 0.0
  %v528 = vmax.f32 %v398, 0.0
  %v529 = vmax.f32 %v401, 0.0
  %v530 = vmax.f32 %v406, 0.0
  %v531 = vmax.f32 %v409, 0.0
  %v532 = vmax.f32 %v414, 0.0
  %v533 = vmax.f32 %v417, 0.0
  %v534 = vmax.f32 %v422, 0.0
  %v535 = vmax.f32 %v425, 0.0
  %v536 = vmax.f32 %v430, 0.0
  %v537 = vmax.f32 %v433, 0.0
  %v538 = vmax.f32 %v438, 0.0
  %v539 = vmax.f32 %v441, 0.0
  %v540 = vmax.f32 %v446, 0.0
  %v541 = vmax.f32 %v449, 0.0
  %v542 = vmax.f32 %v454, 0.0
  %v543 = vmax.f32 %v457, 0.0
  %v544 = vmax.f32 %v462, 0.0
  %v545 = vmax.f32 %v465, 0.0
  %v546 = vmax.f32 %v470, 0.0
  %v547 = vmax.f32 %v473, 0.0
  %v548 = vmax.f32 %v478, 0.0
  %v549 = vmax.f32 %v481, 0.0
  %v550 = vmax.f32 %v486, 0.0
  %v551 = vmax.f32 %v489, 0.0
  %v552 = vmax.f32 %v494, 0.0
  %v553 = vmax.f32 %v497, 0.0
  %v554 = vmax.f32 %v502, 0.0
  %v555 = vmax.f32 %v505, 0.0
  %v556 = vld [vmem:[%s3] sm:$0x1]
  %v558 = vlaneseq
  %v559 = vshrl.u32 %v558, 7
  %v560 = vsub.s32 0, %v559
  %v561 = vrot.slane %v556, %v560
  %v563 = vmul.f32 %v508, %v561
  %v564 = vmul.f32 %v509, %v561
  %v565 = vmul.f32 %v510, %v561
  %v566 = vmul.f32 %v511, %v561
  %v567 = vmul.f32 %v512, %v561
  %v568 = vmul.f32 %v513, %v561
  %v569 = vmul.f32 %v514, %v561
  %v570 = vmul.f32 %v515, %v561
  %v571 = vmul.f32 %v516, %v561
  %v572 = vmul.f32 %v517, %v561
  %v573 = vmul.f32 %v518, %v561
  %v574 = vmul.f32 %v519, %v561
  %v575 = vmul.f32 %v520, %v561
  %v576 = vmul.f32 %v521, %v561
  %v577 = vmul.f32 %v522, %v561
  %v578 = vmul.f32 %v523, %v561
  %v579 = vmul.f32 %v524, %v561
  %v580 = vmul.f32 %v525, %v561
  %v581 = vmul.f32 %v526, %v561
  %v582 = vmul.f32 %v527, %v561
  %v583 = vmul.f32 %v528, %v561
  %v584 = vmul.f32 %v529, %v561
  %v585 = vmul.f32 %v530, %v561
  %v586 = vmul.f32 %v531, %v561
  %v587 = vmul.f32 %v532, %v561
  %v588 = vmul.f32 %v533, %v561
  %v589 = vmul.f32 %v534, %v561
  %v590 = vmul.f32 %v535, %v561
  %v591 = vmul.f32 %v536, %v561
  %v592 = vmul.f32 %v537, %v561
  %v593 = vmul.f32 %v538, %v561
  %v594 = vmul.f32 %v539, %v561
  %v595 = vmul.f32 %v540, %v561
  %v596 = vmul.f32 %v541, %v561
  %v597 = vmul.f32 %v542, %v561
  %v598 = vmul.f32 %v543, %v561
  %v599 = vmul.f32 %v544, %v561
  %v600 = vmul.f32 %v545, %v561
  %v601 = vmul.f32 %v546, %v561
  %v602 = vmul.f32 %v547, %v561
  %v603 = vmul.f32 %v548, %v561
  %v604 = vmul.f32 %v549, %v561
  %v605 = vmul.f32 %v550, %v561
  %v606 = vmul.f32 %v551, %v561
  %v607 = vmul.f32 %v552, %v561
  %v608 = vmul.f32 %v553, %v561
  %v609 = vmul.f32 %v554, %v561
  %v610 = vmul.f32 %v555, %v561
  %v611 = vld [vmem:[%s4] sm:$0x1]
  %v613 = vlaneseq
  %v614 = vshrl.u32 %v613, 7
  %v615 = vsub.s32 0, %v614
  %v616 = vrot.slane %v611, %v615
  %v618 = vadd.f32 %v563, %v616
  %v619 = vadd.f32 %v564, %v616
  %v620 = vadd.f32 %v565, %v616
  %v621 = vadd.f32 %v566, %v616
  %v622 = vadd.f32 %v567, %v616
  %v623 = vadd.f32 %v568, %v616
  %v624 = vadd.f32 %v569, %v616
  %v625 = vadd.f32 %v570, %v616
  %v626 = vadd.f32 %v571, %v616
  %v627 = vadd.f32 %v572, %v616
  %v628 = vadd.f32 %v573, %v616
  %v629 = vadd.f32 %v574, %v616
  %v630 = vadd.f32 %v575, %v616
  %v631 = vadd.f32 %v576, %v616
  %v632 = vadd.f32 %v577, %v616
  %v633 = vadd.f32 %v578, %v616
  %v634 = vadd.f32 %v579, %v616
  %v635 = vadd.f32 %v580, %v616
  %v636 = vadd.f32 %v581, %v616
  %v637 = vadd.f32 %v582, %v616
  %v638 = vadd.f32 %v583, %v616
  %v639 = vadd.f32 %v584, %v616
  %v640 = vadd.f32 %v585, %v616
  %v641 = vadd.f32 %v586, %v616
  %v642 = vadd.f32 %v587, %v616
  %v643 = vadd.f32 %v588, %v616
  %v644 = vadd.f32 %v589, %v616
  %v645 = vadd.f32 %v590, %v616
  %v646 = vadd.f32 %v591, %v616
  %v647 = vadd.f32 %v592, %v616
  %v648 = vadd.f32 %v593, %v616
  %v649 = vadd.f32 %v594, %v616
  %v650 = vadd.f32 %v595, %v616
  %v651 = vadd.f32 %v596, %v616
  %v652 = vadd.f32 %v597, %v616
  %v653 = vadd.f32 %v598, %v616
  %v654 = vadd.f32 %v599, %v616
  %v655 = vadd.f32 %v600, %v616
  %v656 = vadd.f32 %v601, %v616
  %v657 = vadd.f32 %v602, %v616
  %v658 = vadd.f32 %v603, %v616
  %v659 = vadd.f32 %v604, %v616
  %v660 = vadd.f32 %v605, %v616
  %v661 = vadd.f32 %v606, %v616
  %v662 = vadd.f32 %v607, %v616
  %v663 = vadd.f32 %v608, %v616
  %v664 = vadd.f32 %v609, %v616
  %v665 = vadd.f32 %v610, %v616
  %v666 = vpack.c.bf16 %v619, %v618
  %v667 = vpack.c.bf16 %v621, %v620
  %v668 = vpack.c.bf16 %v623, %v622
  %v669 = vpack.c.bf16 %v625, %v624
  %v670 = vpack.c.bf16 %v627, %v626
  %v671 = vpack.c.bf16 %v629, %v628
  %v672 = vpack.c.bf16 %v631, %v630
  %v673 = vpack.c.bf16 %v633, %v632
  %v674 = vpack.c.bf16 %v635, %v634
  %v675 = vpack.c.bf16 %v637, %v636
  %v676 = vpack.c.bf16 %v639, %v638
  %v677 = vpack.c.bf16 %v641, %v640
  %v678 = vpack.c.bf16 %v643, %v642
  %v679 = vpack.c.bf16 %v645, %v644
  %v680 = vpack.c.bf16 %v647, %v646
  %v681 = vpack.c.bf16 %v649, %v648
  %v682 = vpack.c.bf16 %v651, %v650
  %v683 = vpack.c.bf16 %v653, %v652
  %v684 = vpack.c.bf16 %v655, %v654
  %v685 = vpack.c.bf16 %v657, %v656
  %v686 = vpack.c.bf16 %v659, %v658
  %v687 = vpack.c.bf16 %v661, %v660
  %v688 = vpack.c.bf16 %v663, %v662
  %v689 = vpack.c.bf16 %v665, %v664
  %v714 = vunpack.c.l.b16 %v666
  %v715 = vunpack.c.h.b16 %v666
  %v716 = vunpack.c.l.b16 %v667
  %v717 = vunpack.c.h.b16 %v667
  %v718 = vunpack.c.l.b16 %v668
  %v719 = vunpack.c.h.b16 %v668
  %v720 = vunpack.c.l.b16 %v669
  %v721 = vunpack.c.h.b16 %v669
  %v722 = vunpack.c.l.b16 %v670
  %v723 = vunpack.c.h.b16 %v670
  %v724 = vunpack.c.l.b16 %v671
  %v725 = vunpack.c.h.b16 %v671
  %v726 = vunpack.c.l.b16 %v672
  %v727 = vunpack.c.h.b16 %v672
  %v728 = vunpack.c.l.b16 %v673
  %v729 = vunpack.c.h.b16 %v673
  %v730 = vunpack.c.l.b16 %v674
  %v731 = vunpack.c.h.b16 %v674
  %v732 = vunpack.c.l.b16 %v675
  %v733 = vunpack.c.h.b16 %v675
  %v734 = vunpack.c.l.b16 %v676
  %v735 = vunpack.c.h.b16 %v676
  %v736 = vunpack.c.l.b16 %v677
  %v737 = vunpack.c.h.b16 %v677
  %v738 = vunpack.c.l.b16 %v678
  %v739 = vunpack.c.h.b16 %v678
  %v740 = vunpack.c.l.b16 %v679
  %v741 = vunpack.c.h.b16 %v679
  %v742 = vunpack.c.l.b16 %v680
  %v743 = vunpack.c.h.b16 %v680
  %v744 = vunpack.c.l.b16 %v681
  %v745 = vunpack.c.h.b16 %v681
  %v746 = vunpack.c.l.b16 %v682
  %v747 = vunpack.c.h.b16 %v682
  %v748 = vunpack.c.l.b16 %v683
  %v749 = vunpack.c.h.b16 %v683
  %v750 = vunpack.c.l.b16 %v684
  %v751 = vunpack.c.h.b16 %v684
  %v752 = vunpack.c.l.b16 %v685
  %v753 = vunpack.c.h.b16 %v685
  %v754 = vunpack.c.l.b16 %v686
  %v755 = vunpack.c.h.b16 %v686
  %v756 = vunpack.c.l.b16 %v687
  %v757 = vunpack.c.h.b16 %v687
  %v758 = vunpack.c.l.b16 %v688
  %v759 = vunpack.c.h.b16 %v688
  %v760 = vunpack.c.l.b16 %v689
  %v761 = vunpack.c.h.b16 %v689
  %v762 = vpack.c.b16 %v714, %v714
  %v763 = vpack.c.b16 %v715, %v715
  %v764 = vpack.c.b16 %v716, %v716
  %v765 = vpack.c.b16 %v717, %v717
  %v766 = vpack.c.b16 %v718, %v718
  %v767 = vpack.c.b16 %v719, %v719
  %v768 = vpack.c.b16 %v720, %v720
  %v769 = vpack.c.b16 %v721, %v721
  %v770 = vpack.c.b16 %v722, %v722
  %v771 = vpack.c.b16 %v723, %v723
  %v772 = vpack.c.b16 %v724, %v724
  %v773 = vpack.c.b16 %v725, %v725
  %v774 = vpack.c.b16 %v726, %v726
  %v775 = vpack.c.b16 %v727, %v727
  %v776 = vpack.c.b16 %v728, %v728
  %v777 = vpack.c.b16 %v729, %v729
  %v778 = vpack.c.b16 %v730, %v730
  %v779 = vpack.c.b16 %v731, %v731
  %v780 = vpack.c.b16 %v732, %v732
  %v781 = vpack.c.b16 %v733, %v733
  %v782 = vpack.c.b16 %v734, %v734
  %v783 = vpack.c.b16 %v735, %v735
  %v784 = vpack.c.b16 %v736, %v736
  %v785 = vpack.c.b16 %v737, %v737
  %v786 = vpack.c.b16 %v738, %v738
  %v787 = vpack.c.b16 %v739, %v739
  %v788 = vpack.c.b16 %v740, %v740
  %v789 = vpack.c.b16 %v741, %v741
  %v790 = vpack.c.b16 %v742, %v742
  %v791 = vpack.c.b16 %v743, %v743
  %v792 = vpack.c.b16 %v744, %v744
  %v793 = vpack.c.b16 %v745, %v745
  %v794 = vpack.c.b16 %v746, %v746
  %v795 = vpack.c.b16 %v747, %v747
  %v796 = vpack.c.b16 %v748, %v748
  %v797 = vpack.c.b16 %v749, %v749
  %v798 = vpack.c.b16 %v750, %v750
  %v799 = vpack.c.b16 %v751, %v751
  %v800 = vpack.c.b16 %v752, %v752
  %v801 = vpack.c.b16 %v753, %v753
  %v802 = vpack.c.b16 %v754, %v754
  %v803 = vpack.c.b16 %v755, %v755
  %v804 = vpack.c.b16 %v756, %v756
  %v805 = vpack.c.b16 %v757, %v757
  %v806 = vpack.c.b16 %v758, %v758
  %v807 = vpack.c.b16 %v759, %v759
  %v808 = vpack.c.b16 %v760, %v760
  %v809 = vpack.c.b16 %v761, %v761
  %vm858 = vcmask 519168
  %859 = vst.msk [vmem:[%s5] sm:$0xf] %vm858, %v762
  %860 = vst.msk [vmem:[%s5 + $0x4] sm:$0xf] %vm858, %v763
  %861 = vst.msk [vmem:[%s5 + $0x8] sm:$0xf] %vm858, %v764
  %862 = vst.msk [vmem:[%s5 + $0xc] sm:$0xf] %vm858, %v765
  %863 = vst.msk [vmem:[%s5 + $0x10] sm:$0xf] %vm858, %v766
  %864 = vst.msk [vmem:[%s5 + $0x14] sm:$0xf] %vm858, %v767
  %865 = vst.msk [vmem:[%s5 + $0x18] sm:$0xf] %vm858, %v768
  %866 = vst.msk [vmem:[%s5 + $0x1c] sm:$0xf] %vm858, %v769
  %867 = vst.msk [vmem:[%s5 + $0x20] sm:$0xf] %vm858, %v770
  %868 = vst.msk [vmem:[%s5 + $0x24] sm:$0xf] %vm858, %v771
  %869 = vst.msk [vmem:[%s5 + $0x28] sm:$0xf] %vm858, %v772
  %870 = vst.msk [vmem:[%s5 + $0x2c] sm:$0xf] %vm858, %v773
  %871 = vst.msk [vmem:[%s5 + $0x30] sm:$0xf] %vm858, %v774
  %872 = vst.msk [vmem:[%s5 + $0x34] sm:$0xf] %vm858, %v775
  %873 = vst.msk [vmem:[%s5 + $0x38] sm:$0xf] %vm858, %v776
  %874 = vst.msk [vmem:[%s5 + $0x3c] sm:$0xf] %vm858, %v777
  %875 = vst.msk [vmem:[%s5 + $0x40] sm:$0xf] %vm858, %v778
  %876 = vst.msk [vmem:[%s5 + $0x44] sm:$0xf] %vm858, %v779
  %877 = vst.msk [vmem:[%s5 + $0x48] sm:$0xf] %vm858, %v780
  %878 = vst.msk [vmem:[%s5 + $0x4c] sm:$0xf] %vm858, %v781
  %879 = vst.msk [vmem:[%s5 + $0x50] sm:$0xf] %vm858, %v782
  %880 = vst.msk [vmem:[%s5 + $0x54] sm:$0xf] %vm858, %v783
  %881 = vst.msk [vmem:[%s5 + $0x58] sm:$0xf] %vm858, %v784
  %882 = vst.msk [vmem:[%s5 + $0x5c] sm:$0xf] %vm858, %v785
  %883 = vst.msk [vmem:[%s5 + $0x60] sm:$0xf] %vm858, %v786
  %884 = vst.msk [vmem:[%s5 + $0x64] sm:$0xf] %vm858, %v787
  %885 = vst.msk [vmem:[%s5 + $0x68] sm:$0xf] %vm858, %v788
  %886 = vst.msk [vmem:[%s5 + $0x6c] sm:$0xf] %vm858, %v789
  %887 = vst.msk [vmem:[%s5 + $0x70] sm:$0xf] %vm858, %v790
  %888 = vst.msk [vmem:[%s5 + $0x74] sm:$0xf] %vm858, %v791
  %889 = vst.msk [vmem:[%s5 + $0x78] sm:$0xf] %vm858, %v792
  %890 = vst.msk [vmem:[%s5 + $0x7c] sm:$0xf] %vm858, %v793
  %891 = vst.msk [vmem:[%s5 + $0x80] sm:$0xf] %vm858, %v794
  %892 = vst.msk [vmem:[%s5 + $0x84] sm:$0xf] %vm858, %v795
  %893 = vst.msk [vmem:[%s5 + $0x88] sm:$0xf] %vm858, %v796
  %894 = vst.msk [vmem:[%s5 + $0x8c] sm:$0xf] %vm858, %v797
  %895 = vst.msk [vmem:[%s5 + $0x90] sm:$0xf] %vm858, %v798
  %896 = vst.msk [vmem:[%s5 + $0x94] sm:$0xf] %vm858, %v799
  %897 = vst.msk [vmem:[%s5 + $0x98] sm:$0xf] %vm858, %v800
  %898 = vst.msk [vmem:[%s5 + $0x9c] sm:$0xf] %vm858, %v801
  %899 = vst.msk [vmem:[%s5 + $0xa0] sm:$0xf] %vm858, %v802
  %900 = vst.msk [vmem:[%s5 + $0xa4] sm:$0xf] %vm858, %v803
  %901 = vst.msk [vmem:[%s5 + $0xa8] sm:$0xf] %vm858, %v804
  %902 = vst.msk [vmem:[%s5 + $0xac] sm:$0xf] %vm858, %v805
  %903 = vst.msk [vmem:[%s5 + $0xb0] sm:$0xf] %vm858, %v806
  %904 = vst.msk [vmem:[%s5 + $0xb4] sm:$0xf] %vm858, %v807
  %905 = vst.msk [vmem:[%s5 + $0xb8] sm:$0xf] %vm858, %v808
  %906 = vst.msk [vmem:[%s5 + $0xbc] sm:$0xf] %vm858, %v809
  // Predicated region
  $region22: #{deepconvlstm_forward.16} parent=0 // pred_check
    _
  $region23: #{deepconvlstm_forward.16} parent=0 // pred_check_branch
    %908 = sbr.rel (0) target = $region25
  $region24: #{deepconvlstm_forward.16} parent=0 // pred_region
    _
  $region25: #{deepconvlstm_forward.16} parent=0 // pred_fallthru
    _
  // Predicated region
  $region26: #{deepconvlstm_forward.16} parent=0 // pred_check
    _
  $region27: #{deepconvlstm_forward.16} parent=0 // pred_check_branch
    %910 = sbr.rel (0) target = $region29
  $region28: #{deepconvlstm_forward.16} parent=0 // pred_region
    _
  $region29: #{deepconvlstm_forward.16} parent=0 // pred_fallthru
    _

// kernel: deepconvlstm_forward.15
$region0: #{deepconvlstm_forward.15}
  #allocation0 [shape = 'u32[]', space=smem, size = 0x4, offset = 0x4, fixed_abs, tag = 'smem constant byte address 0x4 - core index']
  #allocation1 [shape = 'u32[144,128]{1,0:T(1,128)}', space=vmem, size = 0x12000, scoped, tag = 'internal scratch']
  #allocation2 [shape = 'f32[8,2,64]{2,1,0:T(2,128)}', space=vmem, size = 0x2000, scoped, tag = 'scratch operand']
  %s0 = inlined_call_operand.vmem [shape: bf16[16,768], index: 0, kind: input, shape index: {}]
  %s1 = inlined_call_operand.vmem [shape: bf16[768,256], index: 1, kind: input, shape index: {}]
  %s2 = inlined_call_operand.vmem [shape: f32[1,256], index: 2, kind: input, shape index: {}]
  %s3 = inlined_call_operand.vmem [shape: bf16[64,256], index: 3, kind: input, shape index: {}]
  %s4 = inlined_call_operand.vmem [shape: f32[8,2,64], index: 4, kind: output, shape index: {}]
  %s5 = sld [smem:[#allocation0]]
  $region26: #{deepconvlstm_forward.15} parent=0
    _
  %s7 = ssub.s32 1, %s5
  %s8 = scalar_select 0, %s7, %s5
  // Predicated region
  $region2: #{deepconvlstm_forward.15} parent=0 // pred_check
    _
  $region3: #{deepconvlstm_forward.15} parent=0 // pred_check_branch
    %10 = sbr.rel (0) target = $region5
  $region4: #{deepconvlstm_forward.15} parent=0 // pred_region
    _
  $region5: #{deepconvlstm_forward.15} parent=0 // pred_fallthru
    _
  // Predicated region
  $region6: #{deepconvlstm_forward.15} parent=0 // pred_check
    _
  $region7: #{deepconvlstm_forward.15} parent=0 // pred_check_branch
    %12 = sbr.rel (0) target = $region9
  $region8: #{deepconvlstm_forward.15} parent=0 // pred_region
    _
  $region9: #{deepconvlstm_forward.15} parent=0 // pred_fallthru
    _
  // Predicated region
  $region10: #{deepconvlstm_forward.15} parent=0 // pred_check
    _
  $region11: #{deepconvlstm_forward.15} parent=0 // pred_check_branch
    %14 = sbr.rel (0) target = $region13
  $region12: #{deepconvlstm_forward.15} parent=0 // pred_region
    _
  $region13: #{deepconvlstm_forward.15} parent=0 // pred_fallthru
    _
  // Predicated region
  $region14: #{deepconvlstm_forward.15} parent=0 // pred_check
    _
  $region15: #{deepconvlstm_forward.15} parent=0 // pred_check_branch
    %16 = sbr.rel (0) target = $region17
  $region16: #{deepconvlstm_forward.15} parent=0 // pred_region
    _
  $region17: #{deepconvlstm_forward.15} parent=0 // pred_fallthru
    _
  %v18 = vld [vmem:[%s0] sm:$0xff]
  %v19 = vld [vmem:[%s0 + $0x8] sm:$0xff]
  %v20 = vld [vmem:[%s0 + $0x10] sm:$0xff]
  %v21 = vld [vmem:[%s0 + $0x18] sm:$0xff]
  %v22 = vld [vmem:[%s0 + $0x20] sm:$0xff]
  %v23 = vld [vmem:[%s0 + $0x28] sm:$0xff]
  %v24 = vld [vmem:[%s1] sm:$0xff]
  %v25 = vld [vmem:[%s1 + $0x8] sm:$0xff]
  %v26 = vld [vmem:[%s1 + $0x10] sm:$0xff]
  %v27 = vld [vmem:[%s1 + $0x18] sm:$0xff]
  %v28 = vld [vmem:[%s1 + $0x20] sm:$0xff]
  %v29 = vld [vmem:[%s1 + $0x28] sm:$0xff]
  %v30 = vld [vmem:[%s1 + $0x30] sm:$0xff]
  %v31 = vld [vmem:[%s1 + $0x38] sm:$0xff]
  %v32 = vld [vmem:[%s1 + $0x40] sm:$0xff]
  %v33 = vld [vmem:[%s1 + $0x48] sm:$0xff]
  %v34 = vld [vmem:[%s1 + $0x50] sm:$0xff]
  %v35 = vld [vmem:[%s1 + $0x58] sm:$0xff]
  %v36 = vld [vmem:[%s1 + $0x60] sm:$0xff]
  %v37 = vld [vmem:[%s1 + $0x68] sm:$0xff]
  %v38 = vld [vmem:[%s1 + $0x70] sm:$0xff]
  %v39 = vld [vmem:[%s1 + $0x78] sm:$0xff]
  %v40 = vld [vmem:[%s1 + $0x80] sm:$0xff]
  %v41 = vld [vmem:[%s1 + $0x88] sm:$0xff]
  %v42 = vld [vmem:[%s1 + $0x90] sm:$0xff]
  %v43 = vld [vmem:[%s1 + $0x98] sm:$0xff]
  %v44 = vld [vmem:[%s1 + $0xa0] sm:$0xff]
  %v45 = vld [vmem:[%s1 + $0xa8] sm:$0xff]
  %v46 = vld [vmem:[%s1 + $0xb0] sm:$0xff]
  %v47 = vld [vmem:[%s1 + $0xb8] sm:$0xff]
  %v48 = vld [vmem:[%s1 + $0xc0] sm:$0xff]
  %v49 = vld [vmem:[%s1 + $0xc8] sm:$0xff]
  %v50 = vld [vmem:[%s1 + $0xd0] sm:$0xff]
  %v51 = vld [vmem:[%s1 + $0xd8] sm:$0xff]
  %v52 = vld [vmem:[%s1 + $0xe0] sm:$0xff]
  %v53 = vld [vmem:[%s1 + $0xe8] sm:$0xff]
  %v54 = vld [vmem:[%s1 + $0xf0] sm:$0xff]
  %v55 = vld [vmem:[%s1 + $0xf8] sm:$0xff]
  %v56 = vld [vmem:[%s1 + $0x100] sm:$0xff]
  %v57 = vld [vmem:[%s1 + $0x108] sm:$0xff]
  %v58 = vld [vmem:[%s1 + $0x110] sm:$0xff]
  %v59 = vld [vmem:[%s1 + $0x118] sm:$0xff]
  %v60 = vld [vmem:[%s1 + $0x120] sm:$0xff]
  %v61 = vld [vmem:[%s1 + $0x128] sm:$0xff]
  %v62 = vld [vmem:[%s1 + $0x130] sm:$0xff]
  %v63 = vld [vmem:[%s1 + $0x138] sm:$0xff]
  %v64 = vld [vmem:[%s1 + $0x140] sm:$0xff]
  %v65 = vld [vmem:[%s1 + $0x148] sm:$0xff]
  %v66 = vld [vmem:[%s1 + $0x150] sm:$0xff]
  %v67 = vld [vmem:[%s1 + $0x158] sm:$0xff]
  %v68 = vld [vmem:[%s1 + $0x160] sm:$0xff]
  %v69 = vld [vmem:[%s1 + $0x168] sm:$0xff]
  %v70 = vld [vmem:[%s1 + $0x170] sm:$0xff]
  %v71 = vld [vmem:[%s1 + $0x178] sm:$0xff]
  %v72 = vld [vmem:[%s1 + $0x180] sm:$0xff]
  %v73 = vld [vmem:[%s1 + $0x188] sm:$0xff]
  %v74 = vld [vmem:[%s1 + $0x190] sm:$0xff]
  %v75 = vld [vmem:[%s1 + $0x198] sm:$0xff]
  %v76 = vld [vmem:[%s1 + $0x1a0] sm:$0xff]
  %v77 = vld [vmem:[%s1 + $0x1a8] sm:$0xff]
  %v78 = vld [vmem:[%s1 + $0x1b0] sm:$0xff]
  %v79 = vld [vmem:[%s1 + $0x1b8] sm:$0xff]
  %v80 = vld [vmem:[%s1 + $0x1c0] sm:$0xff]
  %v81 = vld [vmem:[%s1 + $0x1c8] sm:$0xff]
  %v82 = vld [vmem:[%s1 + $0x1d0] sm:$0xff]
  %v83 = vld [vmem:[%s1 + $0x1d8] sm:$0xff]
  %v84 = vld [vmem:[%s1 + $0x1e0] sm:$0xff]
  %v85 = vld [vmem:[%s1 + $0x1e8] sm:$0xff]
  %v86 = vld [vmem:[%s1 + $0x1f0] sm:$0xff]
  %v87 = vld [vmem:[%s1 + $0x1f8] sm:$0xff]
  %v88 = vld [vmem:[%s1 + $0x200] sm:$0xff]
  %v89 = vld [vmem:[%s1 + $0x208] sm:$0xff]
  %v90 = vld [vmem:[%s1 + $0x210] sm:$0xff]
  %v91 = vld [vmem:[%s1 + $0x218] sm:$0xff]
  %v92 = vld [vmem:[%s1 + $0x220] sm:$0xff]
  %v93 = vld [vmem:[%s1 + $0x228] sm:$0xff]
  %v94 = vld [vmem:[%s1 + $0x230] sm:$0xff]
  %v95 = vld [vmem:[%s1 + $0x238] sm:$0xff]
  %v96 = vld [vmem:[%s1 + $0x240] sm:$0xff]
  %v97 = vld [vmem:[%s1 + $0x248] sm:$0xff]
  %v98 = vld [vmem:[%s1 + $0x250] sm:$0xff]
  %v99 = vld [vmem:[%s1 + $0x258] sm:$0xff]
  %v100 = vld [vmem:[%s1 + $0x260] sm:$0xff]
  %v101 = vld [vmem:[%s1 + $0x268] sm:$0xff]
  %v102 = vld [vmem:[%s1 + $0x270] sm:$0xff]
  %v103 = vld [vmem:[%s1 + $0x278] sm:$0xff]
  %v104 = vld [vmem:[%s1 + $0x280] sm:$0xff]
  %v105 = vld [vmem:[%s1 + $0x288] sm:$0xff]
  %v106 = vld [vmem:[%s1 + $0x290] sm:$0xff]
  %v107 = vld [vmem:[%s1 + $0x298] sm:$0xff]
  %v108 = vld [vmem:[%s1 + $0x2a0] sm:$0xff]
  %v109 = vld [vmem:[%s1 + $0x2a8] sm:$0xff]
  %v110 = vld [vmem:[%s1 + $0x2b0] sm:$0xff]
  %v111 = vld [vmem:[%s1 + $0x2b8] sm:$0xff]
  %v112 = vld [vmem:[%s1 + $0x2c0] sm:$0xff]
  %v113 = vld [vmem:[%s1 + $0x2c8] sm:$0xff]
  %v114 = vld [vmem:[%s1 + $0x2d0] sm:$0xff]
  %v115 = vld [vmem:[%s1 + $0x2d8] sm:$0xff]
  %v116 = vld [vmem:[%s1 + $0x2e0] sm:$0xff]
  %v117 = vld [vmem:[%s1 + $0x2e8] sm:$0xff]
  %v118 = vld [vmem:[%s1 + $0x2f0] sm:$0xff]
  %v119 = vld [vmem:[%s1 + $0x2f8] sm:$0xff]
  %v120 = vld [vmem:[%s2] sm:$0x3]
  %v122 = vlaneseq
  %v123 = vshrl.u32 %v122, 7
  %v124 = vsub.s32 0, %v123
  %v125 = vrot.slane %v120, %v124
  %v126 = vlaneseq
  %v127 = vshrl.u32 %v126, 7
  %v128 = vsub.s32 1, %v127
  %v129 = vrot.slane %v120, %v128
  %v138 = vunpack.c.l.b16 %v18
  %v139 = vunpack.c.h.b16 %v18
  %v140 = vunpack.c.l.b16 %v19
  %v141 = vunpack.c.h.b16 %v19
  %v142 = vunpack.c.l.b16 %v20
  %v143 = vunpack.c.h.b16 %v20
  %v144 = vunpack.c.l.b16 %v21
  %v145 = vunpack.c.h.b16 %v21
  %v146 = vunpack.c.l.b16 %v22
  %v147 = vunpack.c.h.b16 %v22
  %v148 = vunpack.c.l.b16 %v23
  %v149 = vunpack.c.h.b16 %v23
  %v150 = vpack.c.b16 %v144, %v138
  %v151 = vpack.c.b16 %v145, %v139
  %v152 = vpack.c.b16 %v146, %v140
  %v153 = vpack.c.b16 %v147, %v141
  %v154 = vpack.c.b16 %v148, %v142
  %v155 = vpack.c.b16 %v149, %v143
  %v258 = vunpack.c.l.b16 %v24
  %v259 = vunpack.c.h.b16 %v24
  %v260 = vunpack.c.l.b16 %v25
  %v261 = vunpack.c.h.b16 %v25
  %v262 = vunpack.c.l.b16 %v26
  %v263 = vunpack.c.h.b16 %v26
  %v264 = vunpack.c.l.b16 %v27
  %v265 = vunpack.c.h.b16 %v27
  %v266 = vunpack.c.l.b16 %v28
  %v267 = vunpack.c.h.b16 %v28
  %v268 = vunpack.c.l.b16 %v29
  %v269 = vunpack.c.h.b16 %v29
  %v270 = vunpack.c.l.b16 %v30
  %v271 = vunpack.c.h.b16 %v30
  %v272 = vunpack.c.l.b16 %v31
  %v273 = vunpack.c.h.b16 %v31
  %v274 = vunpack.c.l.b16 %v32
  %v275 = vunpack.c.h.b16 %v32
  %v276 = vunpack.c.l.b16 %v33
  %v277 = vunpack.c.h.b16 %v33
  %v278 = vunpack.c.l.b16 %v34
  %v279 = vunpack.c.h.b16 %v34
  %v280 = vunpack.c.l.b16 %v35
  %v281 = vunpack.c.h.b16 %v35
  %v282 = vunpack.c.l.b16 %v36
  %v283 = vunpack.c.h.b16 %v36
  %v284 = vunpack.c.l.b16 %v37
  %v285 = vunpack.c.h.b16 %v37
  %v286 = vunpack.c.l.b16 %v38
  %v287 = vunpack.c.h.b16 %v38
  %v288 = vunpack.c.l.b16 %v39
  %v289 = vunpack.c.h.b16 %v39
  %v290 = vunpack.c.l.b16 %v40
  %v291 = vunpack.c.h.b16 %v40
  %v292 = vunpack.c.l.b16 %v41
  %v293 = vunpack.c.h.b16 %v41
  %v294 = vunpack.c.l.b16 %v42
  %v295 = vunpack.c.h.b16 %v42
  %v296 = vunpack.c.l.b16 %v43
  %v297 = vunpack.c.h.b16 %v43
  %v298 = vunpack.c.l.b16 %v44
  %v299 = vunpack.c.h.b16 %v44
  %v300 = vunpack.c.l.b16 %v45
  %v301 = vunpack.c.h.b16 %v45
  %v302 = vunpack.c.l.b16 %v46
  %v303 = vunpack.c.h.b16 %v46
  %v304 = vunpack.c.l.b16 %v47
  %v305 = vunpack.c.h.b16 %v47
  %v306 = vunpack.c.l.b16 %v48
  %v307 = vunpack.c.h.b16 %v48
  %v308 = vunpack.c.l.b16 %v49
  %v309 = vunpack.c.h.b16 %v49
  %v310 = vunpack.c.l.b16 %v50
  %v311 = vunpack.c.h.b16 %v50
  %v312 = vunpack.c.l.b16 %v51
  %v313 = vunpack.c.h.b16 %v51
  %v314 = vunpack.c.l.b16 %v52
  %v315 = vunpack.c.h.b16 %v52
  %v316 = vunpack.c.l.b16 %v53
  %v317 = vunpack.c.h.b16 %v53
  %v318 = vunpack.c.l.b16 %v54
  %v319 = vunpack.c.h.b16 %v54
  %v320 = vunpack.c.l.b16 %v55
  %v321 = vunpack.c.h.b16 %v55
  %v322 = vunpack.c.l.b16 %v56
  %v323 = vunpack.c.h.b16 %v56
  %v324 = vunpack.c.l.b16 %v57
  %v325 = vunpack.c.h.b16 %v57
  %v326 = vunpack.c.l.b16 %v58
  %v327 = vunpack.c.h.b16 %v58
  %v328 = vunpack.c.l.b16 %v59
  %v329 = vunpack.c.h.b16 %v59
  %v330 = vunpack.c.l.b16 %v60
  %v331 = vunpack.c.h.b16 %v60
  %v332 = vunpack.c.l.b16 %v61
  %v333 = vunpack.c.h.b16 %v61
  %v334 = vunpack.c.l.b16 %v62
  %v335 = vunpack.c.h.b16 %v62
  %v336 = vunpack.c.l.b16 %v63
  %v337 = vunpack.c.h.b16 %v63
  %v338 = vunpack.c.l.b16 %v64
  %v339 = vunpack.c.h.b16 %v64
  %v340 = vunpack.c.l.b16 %v65
  %v341 = vunpack.c.h.b16 %v65
  %v342 = vunpack.c.l.b16 %v66
  %v343 = vunpack.c.h.b16 %v66
  %v344 = vunpack.c.l.b16 %v67
  %v345 = vunpack.c.h.b16 %v67
  %v346 = vunpack.c.l.b16 %v68
  %v347 = vunpack.c.h.b16 %v68
  %v348 = vunpack.c.l.b16 %v69
  %v349 = vunpack.c.h.b16 %v69
  %v350 = vunpack.c.l.b16 %v70
  %v351 = vunpack.c.h.b16 %v70
  %v352 = vunpack.c.l.b16 %v71
  %v353 = vunpack.c.h.b16 %v71
  %v354 = vunpack.c.l.b16 %v72
  %v355 = vunpack.c.h.b16 %v72
  %v356 = vunpack.c.l.b16 %v73
  %v357 = vunpack.c.h.b16 %v73
  %v358 = vunpack.c.l.b16 %v74
  %v359 = vunpack.c.h.b16 %v74
  %v360 = vunpack.c.l.b16 %v75
  %v361 = vunpack.c.h.b16 %v75
  %v362 = vunpack.c.l.b16 %v76
  %v363 = vunpack.c.h.b16 %v76
  %v364 = vunpack.c.l.b16 %v77
  %v365 = vunpack.c.h.b16 %v77
  %v366 = vunpack.c.l.b16 %v78
  %v367 = vunpack.c.h.b16 %v78
  %v368 = vunpack.c.l.b16 %v79
  %v369 = vunpack.c.h.b16 %v79
  %v370 = vunpack.c.l.b16 %v80
  %v371 = vunpack.c.h.b16 %v80
  %v372 = vunpack.c.l.b16 %v81
  %v373 = vunpack.c.h.b16 %v81
  %v374 = vunpack.c.l.b16 %v82
  %v375 = vunpack.c.h.b16 %v82
  %v376 = vunpack.c.l.b16 %v83
  %v377 = vunpack.c.h.b16 %v83
  %v378 = vunpack.c.l.b16 %v84
  %v379 = vunpack.c.h.b16 %v84
  %v380 = vunpack.c.l.b16 %v85
  %v381 = vunpack.c.h.b16 %v85
  %v382 = vunpack.c.l.b16 %v86
  %v383 = vunpack.c.h.b16 %v86
  %v384 = vunpack.c.l.b16 %v87
  %v385 = vunpack.c.h.b16 %v87
  %v386 = vunpack.c.l.b16 %v88
  %v387 = vunpack.c.h.b16 %v88
  %v388 = vunpack.c.l.b16 %v89
  %v389 = vunpack.c.h.b16 %v89
  %v390 = vunpack.c.l.b16 %v90
  %v391 = vunpack.c.h.b16 %v90
  %v392 = vunpack.c.l.b16 %v91
  %v393 = vunpack.c.h.b16 %v91
  %v394 = vunpack.c.l.b16 %v92
  %v395 = vunpack.c.h.b16 %v92
  %v396 = vunpack.c.l.b16 %v93
  %v397 = vunpack.c.h.b16 %v93
  %v398 = vunpack.c.l.b16 %v94
  %v399 = vunpack.c.h.b16 %v94
  %v400 = vunpack.c.l.b16 %v95
  %v401 = vunpack.c.h.b16 %v95
  %v402 = vunpack.c.l.b16 %v96
  %v403 = vunpack.c.h.b16 %v96
  %v404 = vunpack.c.l.b16 %v97
  %v405 = vunpack.c.h.b16 %v97
  %v406 = vunpack.c.l.b16 %v98
  %v407 = vunpack.c.h.b16 %v98
  %v408 = vunpack.c.l.b16 %v99
  %v409 = vunpack.c.h.b16 %v99
  %v410 = vunpack.c.l.b16 %v100
  %v411 = vunpack.c.h.b16 %v100
  %v412 = vunpack.c.l.b16 %v101
  %v413 = vunpack.c.h.b16 %v101
  %v414 = vunpack.c.l.b16 %v102
  %v415 = vunpack.c.h.b16 %v102
  %v416 = vunpack.c.l.b16 %v103
  %v417 = vunpack.c.h.b16 %v103
  %v418 = vunpack.c.l.b16 %v104
  %v419 = vunpack.c.h.b16 %v104
  %v420 = vunpack.c.l.b16 %v105
  %v421 = vunpack.c.h.b16 %v105
  %v422 = vunpack.c.l.b16 %v106
  %v423 = vunpack.c.h.b16 %v106
  %v424 = vunpack.c.l.b16 %v107
  %v425 = vunpack.c.h.b16 %v107
  %v426 = vunpack.c.l.b16 %v108
  %v427 = vunpack.c.h.b16 %v108
  %v428 = vunpack.c.l.b16 %v109
  %v429 = vunpack.c.h.b16 %v109
  %v430 = vunpack.c.l.b16 %v110
  %v431 = vunpack.c.h.b16 %v110
  %v432 = vunpack.c.l.b16 %v111
  %v433 = vunpack.c.h.b16 %v111
  %v434 = vunpack.c.l.b16 %v112
  %v435 = vunpack.c.h.b16 %v112
  %v436 = vunpack.c.l.b16 %v113
  %v437 = vunpack.c.h.b16 %v113
  %v438 = vunpack.c.l.b16 %v114
  %v439 = vunpack.c.h.b16 %v114
  %v440 = vunpack.c.l.b16 %v115
  %v441 = vunpack.c.h.b16 %v115
  %v442 = vunpack.c.l.b16 %v116
  %v443 = vunpack.c.h.b16 %v116
  %v444 = vunpack.c.l.b16 %v117
  %v445 = vunpack.c.h.b16 %v117
  %v446 = vunpack.c.l.b16 %v118
  %v447 = vunpack.c.h.b16 %v118
  %v448 = vunpack.c.l.b16 %v119
  %v449 = vunpack.c.h.b16 %v119
  %v450 = vpack.c.b16 %v260, %v258
  %v451 = vpack.c.b16 %v261, %v259
  %v452 = vpack.c.b16 %v264, %v262
  %v453 = vpack.c.b16 %v265, %v263
  %v454 = vpack.c.b16 %v268, %v266
  %v455 = vpack.c.b16 %v269, %v267
  %v456 = vpack.c.b16 %v272, %v270
  %v457 = vpack.c.b16 %v273, %v271
  %v458 = vpack.c.b16 %v276, %v274
  %v459 = vpack.c.b16 %v277, %v275
  %v460 = vpack.c.b16 %v280, %v278
  %v461 = vpack.c.b16 %v281, %v279
  %v462 = vpack.c.b16 %v284, %v282
  %v463 = vpack.c.b16 %v285, %v283
  %v464 = vpack.c.b16 %v288, %v286
  %v465 = vpack.c.b16 %v289, %v287
  %v466 = vpack.c.b16 %v292, %v290
  %v467 = vpack.c.b16 %v293, %v291
  %v468 = vpack.c.b16 %v296, %v294
  %v469 = vpack.c.b16 %v297, %v295
  %v470 = vpack.c.b16 %v300, %v298
  %v471 = vpack.c.b16 %v301, %v299
  %v472 = vpack.c.b16 %v304, %v302
  %v473 = vpack.c.b16 %v305, %v303
  %v474 = vpack.c.b16 %v308, %v306
  %v475 = vpack.c.b16 %v309, %v307
  %v476 = vpack.c.b16 %v312, %v310
  %v477 = vpack.c.b16 %v313, %v311
  %v478 = vpack.c.b16 %v316, %v314
  %v479 = vpack.c.b16 %v317, %v315
  %v480 = vpack.c.b16 %v320, %v318
  %v481 = vpack.c.b16 %v321, %v319
  %v482 = vpack.c.b16 %v324, %v322
  %v483 = vpack.c.b16 %v325, %v323
  %v484 = vpack.c.b16 %v328, %v326
  %v485 = vpack.c.b16 %v329, %v327
  %v486 = vpack.c.b16 %v332, %v330
  %v487 = vpack.c.b16 %v333, %v331
  %v488 = vpack.c.b16 %v336, %v334
  %v489 = vpack.c.b16 %v337, %v335
  %v490 = vpack.c.b16 %v340, %v338
  %v491 = vpack.c.b16 %v341, %v339
  %v492 = vpack.c.b16 %v344, %v342
  %v493 = vpack.c.b16 %v345, %v343
  %v494 = vpack.c.b16 %v348, %v346
  %v495 = vpack.c.b16 %v349, %v347
  %v496 = vpack.c.b16 %v352, %v350
  %v497 = vpack.c.b16 %v353, %v351
  %v498 = vpack.c.b16 %v356, %v354
  %v499 = vpack.c.b16 %v357, %v355
  %v500 = vpack.c.b16 %v360, %v358
  %v501 = vpack.c.b16 %v361, %v359
  %v502 = vpack.c.b16 %v364, %v362
  %v503 = vpack.c.b16 %v365, %v363
  %v504 = vpack.c.b16 %v368, %v366
  %v505 = vpack.c.b16 %v369, %v367
  %v506 = vpack.c.b16 %v372, %v370
  %v507 = vpack.c.b16 %v373, %v371
  %v508 = vpack.c.b16 %v376, %v374
  %v509 = vpack.c.b16 %v377, %v375
  %v510 = vpack.c.b16 %v380, %v378
  %v511 = vpack.c.b16 %v381, %v379
  %v512 = vpack.c.b16 %v384, %v382
  %v513 = vpack.c.b16 %v385, %v383
  %v514 = vpack.c.b16 %v388, %v386
  %v515 = vpack.c.b16 %v389, %v387
  %v516 = vpack.c.b16 %v392, %v390
  %v517 = vpack.c.b16 %v393, %v391
  %v518 = vpack.c.b16 %v396, %v394
  %v519 = vpack.c.b16 %v397, %v395
  %v520 = vpack.c.b16 %v400, %v398
  %v521 = vpack.c.b16 %v401, %v399
  %v522 = vpack.c.b16 %v404, %v402
  %v523 = vpack.c.b16 %v405, %v403
  %v524 = vpack.c.b16 %v408, %v406
  %v525 = vpack.c.b16 %v409, %v407
  %v526 = vpack.c.b16 %v412, %v410
  %v527 = vpack.c.b16 %v413, %v411
  %v528 = vpack.c.b16 %v416, %v414
  %v529 = vpack.c.b16 %v417, %v415
  %v530 = vpack.c.b16 %v420, %v418
  %v531 = vpack.c.b16 %v421, %v419
  %v532 = vpack.c.b16 %v424, %v422
  %v533 = vpack.c.b16 %v425, %v423
  %v534 = vpack.c.b16 %v428, %v426
  %v535 = vpack.c.b16 %v429, %v427
  %v536 = vpack.c.b16 %v432, %v430
  %v537 = vpack.c.b16 %v433, %v431
  %v538 = vpack.c.b16 %v436, %v434
  %v539 = vpack.c.b16 %v437, %v435
  %v540 = vpack.c.b16 %v440, %v438
  %v541 = vpack.c.b16 %v441, %v439
  %v542 = vpack.c.b16 %v444, %v442
  %v543 = vpack.c.b16 %v445, %v443
  %v544 = vpack.c.b16 %v448, %v446
  %v545 = vpack.c.b16 %v449, %v447
  %642 = vmatprep.subr.bf16.mxu0 %v451
  %643 = vmatpush1.bf16.msra.mxu0 %v450
  %644 = vmatprep.subr.bf16.mxu0 %v453
  %645 = vmatpush1.bf16.msra.mxu0 %v452
  %646 = vmatprep.subr.bf16.mxu0 %v455
  %647 = vmatpush1.bf16.msra.mxu0 %v454
  %648 = vmatprep.subr.bf16.mxu0 %v457
  %649 = vmatpush1.bf16.msra.mxu0 %v456
  %650 = vmatprep.subr.bf16.mxu0 %v459
  %651 = vmatpush1.bf16.msra.mxu0 %v458
  %652 = vmatprep.subr.bf16.mxu0 %v461
  %653 = vmatpush1.bf16.msra.mxu0 %v460
  %654 = vmatprep.subr.bf16.mxu0 %v463
  %655 = vmatpush1.bf16.msra.mxu0 %v462
  %656 = vmatprep.subr.bf16.mxu0 %v465
  %657 = vmatpush1.bf16.msra.mxu0 %v464
  %658 = vmatprep.subr.bf16.mxu0 %v467
  %659 = vmatpush1.bf16.msra.mxu0 %v466
  %660 = vmatprep.subr.bf16.mxu0 %v469
  %661 = vmatpush1.bf16.msra.mxu0 %v468
  %662 = vmatprep.subr.bf16.mxu0 %v471
  %663 = vmatpush1.bf16.msra.mxu0 %v470
  %664 = vmatprep.subr.bf16.mxu0 %v473
  %665 = vmatpush1.bf16.msra.mxu0 %v472
  %666 = vmatprep.subr.bf16.mxu0 %v475
  %667 = vmatpush1.bf16.msra.mxu0 %v474
  %668 = vmatprep.subr.bf16.mxu0 %v477
  %669 = vmatpush1.bf16.msra.mxu0 %v476
  %670 = vmatprep.subr.bf16.mxu0 %v479
  %671 = vmatpush1.bf16.msra.mxu0 %v478
  %672 = vmatprep.subr.bf16.mxu0 %v481
  %673 = vmatpush1.bf16.msra.mxu0 %v480
  %674 = vmatprep.mubr.bf16.mxu0 %v151
  %675 = vmatmul.mubr.bf16.gmra.mrb[0].mxu0 %v150
  %v676 = vpop.f32.mrb[0].mxu0
  %v677 = vadd.f32 %v125, %v676
  %v678 = vpop.f32.mrb[0].mxu0
  %v679 = vadd.f32 %v129, %v678
  %v680 = vpop.f32.mrb[0].mxu0
  %v681 = vadd.f32 %v125, %v680
  %v682 = vpop.f32.mrb[0].mxu0
  %v683 = vadd.f32 %v129, %v682
  %684 = vdwg.mxu0
  %685 = vmatprep.subr.bf16.mxu0 %v483
  %686 = vmatpush1.bf16.msra.mxu0 %v482
  %687 = vmatprep.subr.bf16.mxu0 %v485
  %688 = vmatpush1.bf16.msra.mxu0 %v484
  %689 = vmatprep.subr.bf16.mxu0 %v487
  %690 = vmatpush1.bf16.msra.mxu0 %v486
  %691 = vmatprep.subr.bf16.mxu0 %v489
  %692 = vmatpush1.bf16.msra.mxu0 %v488
  %693 = vmatprep.subr.bf16.mxu0 %v491
  %694 = vmatpush1.bf16.msra.mxu0 %v490
  %695 = vmatprep.subr.bf16.mxu0 %v493
  %696 = vmatpush1.bf16.msra.mxu0 %v492
  %697 = vmatprep.subr.bf16.mxu0 %v495
  %698 = vmatpush1.bf16.msra.mxu0 %v494
  %699 = vmatprep.subr.bf16.mxu0 %v497
  %700 = vmatpush1.bf16.msra.mxu0 %v496
  %701 = vmatprep.subr.bf16.mxu0 %v499
  %702 = vmatpush1.bf16.msra.mxu0 %v498
  %703 = vmatprep.subr.bf16.mxu0 %v501
  %704 = vmatpush1.bf16.msra.mxu0 %v500
  %705 = vmatprep.subr.bf16.mxu0 %v503
  %706 = vmatpush1.bf16.msra.mxu0 %v502
  %707 = vmatprep.subr.bf16.mxu0 %v505
  %708 = vmatpush1.bf16.msra.mxu0 %v504
  %709 = vmatprep.subr.bf16.mxu0 %v507
  %710 = vmatpush1.bf16.msra.mxu0 %v506
  %711 = vmatprep.subr.bf16.mxu0 %v509
  %712 = vmatpush1.bf16.msra.mxu0 %v508
  %713 = vmatprep.subr.bf16.mxu0 %v511
  %714 = vmatpush1.bf16.msra.mxu0 %v510
  %715 = vmatprep.subr.bf16.mxu0 %v513
  %716 = vmatpush1.bf16.msra.mxu0 %v512
  %717 = vmatprep.mubr.bf16.mxu0 %v153
  %718 = vmatmul.mubr.bf16.gmra.mrb[0].mxu0 %v152
  %v719 = vpop.f32.mrb[0].mxu0
  %v720 = vadd.f32 %v677, %v719
  %v721 = vpop.f32.mrb[0].mxu0
  %v722 = vadd.f32 %v679, %v721
  %v723 = vpop.f32.mrb[0].mxu0
  %v724 = vadd.f32 %v681, %v723
  %v725 = vpop.f32.mrb[0].mxu0
  %v726 = vadd.f32 %v683, %v725
  %727 = vdwg.mxu0
  %728 = vmatprep.subr.bf16.mxu0 %v515
  %729 = vmatpush1.bf16.msra.mxu0 %v514
  %730 = vmatprep.subr.bf16.mxu0 %v517
  %731 = vmatpush1.bf16.msra.mxu0 %v516
  %732 = vmatprep.subr.bf16.mxu0 %v519
  %733 = vmatpush1.bf16.msra.mxu0 %v518
  %734 = vmatprep.subr.bf16.mxu0 %v521
  %735 = vmatpush1.bf16.msra.mxu0 %v520
  %736 = vmatprep.subr.bf16.mxu0 %v523
  %737 = vmatpush1.bf16.msra.mxu0 %v522
  %738 = vmatprep.subr.bf16.mxu0 %v525
  %739 = vmatpush1.bf16.msra.mxu0 %v524
  %740 = vmatprep.subr.bf16.mxu0 %v527
  %741 = vmatpush1.bf16.msra.mxu0 %v526
  %742 = vmatprep.subr.bf16.mxu0 %v529
  %743 = vmatpush1.bf16.msra.mxu0 %v528
  %744 = vmatprep.subr.bf16.mxu0 %v531
  %745 = vmatpush1.bf16.msra.mxu0 %v530
  %746 = vmatprep.subr.bf16.mxu0 %v533
  %747 = vmatpush1.bf16.msra.mxu0 %v532
  %748 = vmatprep.subr.bf16.mxu0 %v535
  %749 = vmatpush1.bf16.msra.mxu0 %v534
  %750 = vmatprep.subr.bf16.mxu0 %v537
  %751 = vmatpush1.bf16.msra.mxu0 %v536
  %752 = vmatprep.subr.bf16.mxu0 %v539
  %753 = vmatpush1.bf16.msra.mxu0 %v538
  %754 = vmatprep.subr.bf16.mxu0 %v541
  %755 = vmatpush1.bf16.msra.mxu0 %v540
  %756 = vmatprep.subr.bf16.mxu0 %v543
  %757 = vmatpush1.bf16.msra.mxu0 %v542
  %758 = vmatprep.subr.bf16.mxu0 %v545
  %759 = vmatpush1.bf16.msra.mxu0 %v544
  %760 = vmatprep.mubr.bf16.mxu0 %v155
  %761 = vmatmul.mubr.bf16.gmra.mrb[0].mxu0 %v154
  %v762 = vpop.f32.mrb[0].mxu0
  %v763 = vadd.f32 %v720, %v762
  %v764 = vpop.f32.mrb[0].mxu0
  %v765 = vadd.f32 %v722, %v764
  %v766 = vpop.f32.mrb[0].mxu0
  %v767 = vadd.f32 %v724, %v766
  %v768 = vpop.f32.mrb[0].mxu0
  %v769 = vadd.f32 %v726, %v768
  %770 = vdwg.mxu0
  %v771 = vld [vmem:[%s3] sm:$0xff]
  %v772 = vld [vmem:[%s3 + $0x8] sm:$0xff]
  %v773 = vld [vmem:[%s3 + $0x10] sm:$0xff]
  %v774 = vld [vmem:[%s3 + $0x18] sm:$0xff]
  %v775 = vld [vmem:[%s3 + $0x20] sm:$0xff]
  %v776 = vld [vmem:[%s3 + $0x28] sm:$0xff]
  %v777 = vld [vmem:[%s3 + $0x30] sm:$0xff]
  %v778 = vld [vmem:[%s3 + $0x38] sm:$0xff]
  %v779 = vlaneseq
  %v780 = vand.u32 %v779, 127
  %v781 = vadd.s32 %v780, 128
  %vm782 = vcmp.lt.s32.totalorder %v780, 0
  %v783 = vsub.s32 0, %v780
  %v784 = vsel %vm782, %v783, %v780
  %v785 = vshrl.u32 %v784, 6
  %v786 = vand.u32 %v784, 63
  %v787 = vsub.s32 0, %v786
  %v788 = vsel %vm782, %v787, %v786
  %vm789 = vcmp.lt.s32.totalorder %v781, 0
  %v790 = vsub.s32 0, %v781
  %v791 = vsel %vm789, %v790, %v781
  %v792 = vshrl.u32 %v791, 6
  %v793 = vand.u32 %v791, 63
  %v794 = vsub.s32 0, %v793
  %v795 = vsel %vm789, %v794, %v793
  %vm796 = vcmp.ne.s32.totalorder %v788, 0
  %vm797 = vcmp.ne.s32.totalorder %v795, 0
  %vm798 = vcmp.lt.s32.totalorder %v788, 0
  %vm799 = vcmp.lt.s32.totalorder %v795, 0
  %vm800 = vmand %vm798, %vm796
  %vm801 = vmand %vm799, %vm797
  %v802 = vadd.s32 %v788, 64
  %v803 = vadd.s32 %v795, 64
  %v804 = vsel %vm800, %v802, %v788
  %v805 = vsel %vm801, %v803, %v795
  %vm806 = vcmp.lt.s32.totalorder %v804, 32
  %vm807 = vcmp.lt.s32.totalorder %v805, 32
  %v810 = vrot.slane %v767, 6
  %v811 = vrot.slane %v769, 6
  %v814 = vsel %vm806, %v763, %v810
  %v815 = vsel %vm807, %v765, %v811
  %v824 = vunpack.c.l.b16 %v771
  %v825 = vunpack.c.h.b16 %v771
  %v826 = vunpack.c.l.b16 %v772
  %v827 = vunpack.c.h.b16 %v772
  %v828 = vunpack.c.l.b16 %v773
  %v829 = vunpack.c.h.b16 %v773
  %v830 = vunpack.c.l.b16 %v774
  %v831 = vunpack.c.h.b16 %v774
  %v832 = vunpack.c.l.b16 %v775
  %v833 = vunpack.c.h.b16 %v775
  %v834 = vunpack.c.l.b16 %v776
  %v835 = vunpack.c.h.b16 %v776
  %v836 = vunpack.c.l.b16 %v777
  %v837 = vunpack.c.h.b16 %v777
  %v838 = vunpack.c.l.b16 %v778
  %v839 = vunpack.c.h.b16 %v778
  %v840 = vpack.c.b16 %v826, %v824
  %v841 = vpack.c.b16 %v827, %v825
  %v842 = vpack.c.b16 %v830, %v828
  %v843 = vpack.c.b16 %v831, %v829
  %v844 = vpack.c.b16 %v834, %v832
  %v845 = vpack.c.b16 %v835, %v833
  %v846 = vpack.c.b16 %v838, %v836
  %v847 = vpack.c.b16 %v839, %v837
  %vm856 = vcmask 523264
  %v858 = vsel %vm856, 0, 0
  %860 = vmatprep.subr.bf16.mxu0 %v841
  %861 = vmatpush1.bf16.msra.mxu0 %v840
  %862 = vmatprep.subr.bf16.mxu0 %v843
  %863 = vmatpush1.bf16.msra.mxu0 %v842
  %864 = vmatprep.subr.bf16.mxu0 %v845
  %865 = vmatpush1.bf16.msra.mxu0 %v844
  %866 = vmatprep.subr.bf16.mxu0 %v847
  %867 = vmatpush1.bf16.msra.mxu0 %v846
  %868 = vmatprep.subr.bf16.mxu0 0
  %869 = vmatpush1.bf16.msra.mxu0 0
  %870 = vmatprep.subr.bf16.mxu0 0
  %871 = vmatpush1.bf16.msra.mxu0 0
  %872 = vmatprep.subr.bf16.mxu0 0
  %873 = vmatpush1.bf16.msra.mxu0 0
  %874 = vmatprep.subr.bf16.mxu0 0
  %875 = vmatpush1.bf16.msra.mxu0 0
  %876 = vmatprep.subr.bf16.mxu0 0
  %877 = vmatpush1.bf16.msra.mxu0 0
  %878 = vmatprep.subr.bf16.mxu0 0
  %879 = vmatpush1.bf16.msra.mxu0 0
  %880 = vmatprep.subr.bf16.mxu0 0
  %881 = vmatpush1.bf16.msra.mxu0 0
  %882 = vmatprep.subr.bf16.mxu0 0
  %883 = vmatpush1.bf16.msra.mxu0 0
  %884 = vmatprep.subr.bf16.mxu0 0
  %885 = vmatpush1.bf16.msra.mxu0 0
  %886 = vmatprep.subr.bf16.mxu0 0
  %887 = vmatpush1.bf16.msra.mxu0 0
  %888 = vmatprep.subr.bf16.mxu0 0
  %889 = vmatpush1.bf16.msra.mxu0 0
  %890 = vmatprep.subr.bf16.mxu0 0
  %891 = vmatpush1.bf16.msra.mxu0 0
  %892 = vmatprep.mubr.bf16.mxu0 0
  %893 = vmatmul.mubr.bf16.gmra.mrb[0].mxu0 %v858
  %v894 = vpop.f32.mrb[0].mxu0
  %v895 = vadd.f32 0.0, %v894
  %v896 = vpop.f32.mrb[0].mxu0
  %v897 = vadd.f32 0.0, %v896
  %v898 = vpop.f32.mrb[0].mxu0
  %v899 = vpop.f32.mrb[0].mxu0
  %900 = vdwg.mxu0
  %v901 = vadd.f32 %v814, %v895
  %v902 = vadd.f32 %v815, %v897
  %v903 = vxor.u32 %v901, 2147483648
  %v904 = vmul.f32 %v903, 1.442695
  %v905 = vpow.pop %v904
  %v906 = vadd.f32 %v905, 1.0
  %v907 = vrcp.pop %v906
  %v908 = vmul.f32 1.0, %v907
  %v909 = vtanh.pop %v902
  %v910 = vxor.u32 %v902, 2147483648
  %v911 = vmul.f32 %v910, 1.442695
  %v912 = vpow.pop %v911
  %v913 = vadd.f32 %v912, 1.0
  %v914 = vrcp.pop %v913
  %v915 = vmul.f32 1.0, %v914
  %v916 = vmul.f32 %v908, 0.0
  %v917 = vmul.f32 %v908, %v909
  %919 = vrot.lane.b32.xlu0 %v917, 64
  %v920 = vpop.permute.xlu0 %919
  %v922 = vadd.f32 %v916, %v920
  %v923 = vtanh.pop %v922
  %v924 = vmul.f32 %v915, %v923
  %926 = vrot.lane.b32.xlu0 %v924, 64
  %v927 = vpop.permute.xlu0 %926
  %vm929 = vcmask 517120
  %930 = vst.msk [vmem:[#allocation2] sm:$0x3] %vm929, %v927
  %v931 = vrot.slane %v767, 2
  %v932 = vrot.slane %v769, 2
  %v935 = vsel %vm806, %v763, %v931
  %v936 = vsel %vm807, %v765, %v932
  %v937 = vpack.c.bf16 %v924, %v924
  %939 = vrot.lane.b32.xlu0 %v937, 64
  %v940 = vpop.permute.xlu0 %939
  %v942 = vsel %vm856, %v940, 0
  %944 = vmatprep.subr.bf16.mxu0 %v841
  %945 = vmatpush1.bf16.msra.mxu0 %v840
  %946 = vmatprep.subr.bf16.mxu0 %v843
  %947 = vmatpush1.bf16.msra.mxu0 %v842
  %948 = vmatprep.subr.bf16.mxu0 %v845
  %949 = vmatpush1.bf16.msra.mxu0 %v844
  %950 = vmatprep.subr.bf16.mxu0 %v847
  %951 = vmatpush1.bf16.msra.mxu0 %v846
  %952 = vmatprep.subr.bf16.mxu0 0
  %953 = vmatpush1.bf16.msra.mxu0 0
  %954 = vmatprep.subr.bf16.mxu0 0
  %955 = vmatpush1.bf16.msra.mxu0 0
  %956 = vmatprep.subr.bf16.mxu0 0
  %957 = vmatpush1.bf16.msra.mxu0 0
  %958 = vmatprep.subr.bf16.mxu0 0
  %959 = vmatpush1.bf16.msra.mxu0 0
  %960 = vmatprep.subr.bf16.mxu0 0
  %961 = vmatpush1.bf16.msra.mxu0 0
  %962 = vmatprep.subr.bf16.mxu0 0
  %963 = vmatpush1.bf16.msra.mxu0 0
  %964 = vmatprep.subr.bf16.mxu0 0
  %965 = vmatpush1.bf16.msra.mxu0 0
  %966 = vmatprep.subr.bf16.mxu0 0
  %967 = vmatpush1.bf16.msra.mxu0 0
  %968 = vmatprep.subr.bf16.mxu0 0
  %969 = vmatpush1.bf16.msra.mxu0 0
  %970 = vmatprep.subr.bf16.mxu0 0
  %971 = vmatpush1.bf16.msra.mxu0 0
  %972 = vmatprep.subr.bf16.mxu0 0
  %973 = vmatpush1.bf16.msra.mxu0 0
  %974 = vmatprep.subr.bf16.mxu0 0
  %975 = vmatpush1.bf16.msra.mxu0 0
  %976 = vmatprep.mubr.bf16.mxu0 0
  %977 = vmatmul.mubr.bf16.gmra.mrb[0].mxu0 %v942
  %v978 = vpop.f32.mrb[0].mxu0
  %v979 = vadd.f32 0.0, %v978
  %v980 = vpop.f32.mrb[0].mxu0
  %v981 = vadd.f32 0.0, %v980
  %v982 = vpop.f32.mrb[0].mxu0
  %v983 = vpop.f32.mrb[0].mxu0
  %984 = vdwg.mxu0
  %v987 = vrot.slane %v979, 6
  %v988 = vrot.slane %v981, 6
  %v991 = vadd.f32 %v935, %v987
  %v992 = vadd.f32 %v936, %v988
  %v993 = vxor.u32 %v991, 2147483648
  %v994 = vmul.f32 %v993, 1.442695
  %v995 = vpow.pop %v994
  %v996 = vadd.f32 %v995, 1.0
  %v997 = vrcp.pop %v996
  %v998 = vmul.f32 1.0, %v997
  %v999 = vtanh.pop %v992
  %v1000 = vxor.u32 %v992, 2147483648
  %v1001 = vmul.f32 %v1000, 1.442695
  %v1002 = vpow.pop %v1001
  %v1003 = vadd.f32 %v1002, 1.0
  %v1004 = vrcp.pop %v1003
  %v1005 = vmul.f32 1.0, %v1004
  %v1007 = vrot.slane %v922, 6
  %v1009 = vmul.f32 %v998, %v1007
  %v1010 = vmul.f32 %v998, %v999
  %1012 = vrot.lane.b32.xlu0 %v1010, 64
  %v1013 = vpop.permute.xlu0 %1012
  %v1015 = vadd.f32 %v1009, %v1013
  %v1016 = vtanh.pop %v1015
  %v1017 = vmul.f32 %v1005, %v1016
  %1019 = vrot.lane.b32.xlu0 %v1017, 64
  %v1020 = vpop.permute.xlu0 %1019
  %s1022 = scalar_lea.vmem [#allocation2], 2
  %vm1023 = vcmask 519170
  %1024 = vst.msk [vmem:[%s1022 - $0x2] sm:$0xc] %vm1023, %v1020
  %v1025 = vpack.c.bf16 %v1017, %v1017
  %v1027 = vrot.slane %v1025, 1
  %1028 = vrot.lane.b32.xlu0 %v1027, 64
  %v1029 = vpop.permute.xlu0 %1028
  %v1031 = vsel %vm856, %v1029, 0
  %1033 = vmatprep.subr.bf16.mxu0 %v841
  %1034 = vmatpush1.bf16.msra.mxu0 %v840
  %1035 = vmatprep.subr.bf16.mxu0 %v843
  %1036 = vmatpush1.bf16.msra.mxu0 %v842
  %1037 = vmatprep.subr.bf16.mxu0 %v845
  %1038 = vmatpush1.bf16.msra.mxu0 %v844
  %1039 = vmatprep.subr.bf16.mxu0 %v847
  %1040 = vmatpush1.bf16.msra.mxu0 %v846
  %1041 = vmatprep.subr.bf16.mxu0 0
  %1042 = vmatpush1.bf16.msra.mxu0 0
  %1043 = vmatprep.subr.bf16.mxu0 0
  %1044 = vmatpush1.bf16.msra.mxu0 0
  %1045 = vmatprep.subr.bf16.mxu0 0
  %1046 = vmatpush1.bf16.msra.mxu0 0
  %1047 = vmatprep.subr.bf16.mxu0 0
  %1048 = vmatpush1.bf16.msra.mxu0 0
  %1049 = vmatprep.subr.bf16.mxu0 0
  %1050 = vmatpush1.bf16.msra.mxu0 0
  %1051 = vmatprep.subr.bf16.mxu0 0
  %1052 = vmatpush1.bf16.msra.mxu0 0
  %1053 = vmatprep.subr.bf16.mxu0 0
  %1054 = vmatpush1.bf16.msra.mxu0 0
  %1055 = vmatprep.subr.bf16.mxu0 0
  %1056 = vmatpush1.bf16.msra.mxu0 0
  %1057 = vmatprep.subr.bf16.mxu0 0
  %1058 = vmatpush1.bf16.msra.mxu0 0
  %1059 = vmatprep.subr.bf16.mxu0 0
  %1060 = vmatpush1.bf16.msra.mxu0 0
  %1061 = vmatprep.subr.bf16.mxu0 0
  %1062 = vmatpush1.bf16.msra.mxu0 0
  %1063 = vmatprep.subr.bf16.mxu0 0
  %1064 = vmatpush1.bf16.msra.mxu0 0
  %1065 = vmatprep.mubr.bf16.mxu0 0
  %1066 = vmatmul.mubr.bf16.gmra.mrb[0].mxu0 %v1031
  %v1067 = vpop.f32.mrb[0].mxu0
  %v1068 = vadd.f32 0.0, %v1067
  %v1069 = vpop.f32.mrb[0].mxu0
  %v1070 = vadd.f32 0.0, %v1069
  %v1071 = vpop.f32.mrb[0].mxu0
  %v1072 = vpop.f32.mrb[0].mxu0
  %1073 = vdwg.mxu0
  %v1076 = vrot.slane %v1068, 4
  %v1077 = vrot.slane %v1070, 4
  %v1080 = vadd.f32 %v814, %v1076
  %v1081 = vadd.f32 %v815, %v1077
  %v1082 = vxor.u32 %v1080, 2147483648
  %v1083 = vmul.f32 %v1082, 1.442695
  %v1084 = vpow.pop %v1083
  %v1085 = vadd.f32 %v1084, 1.0
  %v1086 = vrcp.pop %v1085
  %v1087 = vmul.f32 1.0, %v1086
  %v1088 = vtanh.pop %v1081
  %v1089 = vxor.u32 %v1081, 2147483648
  %v1090 = vmul.f32 %v1089, 1.442695
  %v1091 = vpow.pop %v1090
  %v1092 = vadd.f32 %v1091, 1.0
  %v1093 = vrcp.pop %v1092
  %v1094 = vmul.f32 1.0, %v1093
  %v1096 = vrot.slane %v1015, 6
  %v1098 = vmul.f32 %v1087, %v1096
  %v1099 = vmul.f32 %v1087, %v1088
  %1101 = vrot.lane.b32.xlu0 %v1099, 64
  %v1102 = vpop.permute.xlu0 %1101
  %v1104 = vadd.f32 %v1098, %v1102
  %v1105 = vtanh.pop %v1104
  %v1106 = vmul.f32 %v1094, %v1105
  %1108 = vrot.lane.b32.xlu0 %v1106, 64
  %v1109 = vpop.permute.xlu0 %1108
  %s1111 = scalar_lea.vmem [#allocation2], 4
  %vm1112 = vcmask 521220
  %1113 = vst.msk [vmem:[%s1111 - $0x4] sm:$0x30] %vm1112, %v1109
  %v1114 = vpack.c.bf16 %v1106, %v1106
  %v1116 = vrot.slane %v1114, 2
  %1117 = vrot.lane.b32.xlu0 %v1116, 64
  %v1118 = vpop.permute.xlu0 %1117
  %v1120 = vsel %vm856, %v1118, 0
  %1122 = vmatprep.subr.bf16.mxu0 %v841
  %1123 = vmatpush1.bf16.msra.mxu0 %v840
  %1124 = vmatprep.subr.bf16.mxu0 %v843
  %1125 = vmatpush1.bf16.msra.mxu0 %v842
  %1126 = vmatprep.subr.bf16.mxu0 %v845
  %1127 = vmatpush1.bf16.msra.mxu0 %v844
  %1128 = vmatprep.subr.bf16.mxu0 %v847
  %1129 = vmatpush1.bf16.msra.mxu0 %v846
  %1130 = vmatprep.subr.bf16.mxu0 0
  %1131 = vmatpush1.bf16.msra.mxu0 0
  %1132 = vmatprep.subr.bf16.mxu0 0
  %1133 = vmatpush1.bf16.msra.mxu0 0
  %1134 = vmatprep.subr.bf16.mxu0 0
  %1135 = vmatpush1.bf16.msra.mxu0 0
  %1136 = vmatprep.subr.bf16.mxu0 0
  %1137 = vmatpush1.bf16.msra.mxu0 0
  %1138 = vmatprep.subr.bf16.mxu0 0
  %1139 = vmatpush1.bf16.msra.mxu0 0
  %1140 = vmatprep.subr.bf16.mxu0 0
  %1141 = vmatpush1.bf16.msra.mxu0 0
  %1142 = vmatprep.subr.bf16.mxu0 0
  %1143 = vmatpush1.bf16.msra.mxu0 0
  %1144 = vmatprep.subr.bf16.mxu0 0
  %1145 = vmatpush1.bf16.msra.mxu0 0
  %1146 = vmatprep.subr.bf16.mxu0 0
  %1147 = vmatpush1.bf16.msra.mxu0 0
  %1148 = vmatprep.subr.bf16.mxu0 0
  %1149 = vmatpush1.bf16.msra.mxu0 0
  %1150 = vmatprep.subr.bf16.mxu0 0
  %1151 = vmatpush1.bf16.msra.mxu0 0
  %1152 = vmatprep.subr.bf16.mxu0 0
  %1153 = vmatpush1.bf16.msra.mxu0 0
  %1154 = vmatprep.mubr.bf16.mxu0 0
  %1155 = vmatmul.mubr.bf16.gmra.mrb[0].mxu0 %v1120
  %v1156 = vpop.f32.mrb[0].mxu0
  %v1157 = vadd.f32 0.0, %v1156
  %v1158 = vpop.f32.mrb[0].mxu0
  %v1159 = vadd.f32 0.0, %v1158
  %v1160 = vpop.f32.mrb[0].mxu0
  %v1161 = vpop.f32.mrb[0].mxu0
  %1162 = vdwg.mxu0
  %v1165 = vrot.slane %v1157, 2
  %v1166 = vrot.slane %v1159, 2
  %v1169 = vadd.f32 %v935, %v1165
  %v1170 = vadd.f32 %v936, %v1166
  %v1171 = vxor.u32 %v1169, 2147483648
  %v1172 = vmul.f32 %v1171, 1.442695
  %v1173 = vpow.pop %v1172
  %v1174 = vadd.f32 %v1173, 1.0
  %v1175 = vrcp.pop %v1174
  %v1176 = vmul.f32 1.0, %v1175
  %v1177 = vtanh.pop %v1170
  %v1178 = vxor.u32 %v1170, 2147483648
  %v1179 = vmul.f32 %v1178, 1.442695
  %v1180 = vpow.pop %v1179
  %v1181 = vadd.f32 %v1180, 1.0
  %v1182 = vrcp.pop %v1181
  %v1183 = vmul.f32 1.0, %v1182
  %v1185 = vrot.slane %v1104, 6
  %v1187 = vmul.f32 %v1176, %v1185
  %v1188 = vmul.f32 %v1176, %v1177
  %1190 = vrot.lane.b32.xlu0 %v1188, 64
  %v1191 = vpop.permute.xlu0 %1190
  %v1193 = vadd.f32 %v1187, %v1191
  %v1194 = vtanh.pop %v1193
  %v1195 = vmul.f32 %v1183, %v1194
  %1197 = vrot.lane.b32.xlu0 %v1195, 64
  %v1198 = vpop.permute.xlu0 %1197
  %s1200 = scalar_lea.vmem [#allocation2], 6
  %vm1201 = vcmask 523270
  %1202 = vst.msk [vmem:[%s1200 - $0x6] sm:$0xc0] %vm1201, %v1198
  %v1205 = vrot.slane %v763, 6
  %v1206 = vrot.slane %v765, 6
  %v1209 = vsel %vm806, %v767, %v1205
  %v1210 = vsel %vm807, %v769, %v1206
  %v1211 = vpack.c.bf16 %v1195, %v1195
  %v1213 = vrot.slane %v1211, 3
  %1214 = vrot.lane.b32.xlu0 %v1213, 64
  %v1215 = vpop.permute.xlu0 %1214
  %v1217 = vsel %vm856, %v1215, 0
  %1219 = vmatprep.subr.bf16.mxu0 %v841
  %1220 = vmatpush1.bf16.msra.mxu0 %v840
  %1221 = vmatprep.subr.bf16.mxu0 %v843
  %1222 = vmatpush1.bf16.msra.mxu0 %v842
  %1223 = vmatprep.subr.bf16.mxu0 %v845
  %1224 = vmatpush1.bf16.msra.mxu0 %v844
  %1225 = vmatprep.subr.bf16.mxu0 %v847
  %1226 = vmatpush1.bf16.msra.mxu0 %v846
  %1227 = vmatprep.subr.bf16.mxu0 0
  %1228 = vmatpush1.bf16.msra.mxu0 0
  %1229 = vmatprep.subr.bf16.mxu0 0
  %1230 = vmatpush1.bf16.msra.mxu0 0
  %1231 = vmatprep.subr.bf16.mxu0 0
  %1232 = vmatpush1.bf16.msra.mxu0 0
  %1233 = vmatprep.subr.bf16.mxu0 0
  %1234 = vmatpush1.bf16.msra.mxu0 0
  %1235 = vmatprep.subr.bf16.mxu0 0
  %1236 = vmatpush1.bf16.msra.mxu0 0
  %1237 = vmatprep.subr.bf16.mxu0 0
  %1238 = vmatpush1.bf16.msra.mxu0 0
  %1239 = vmatprep.subr.bf16.mxu0 0
  %1240 = vmatpush1.bf16.msra.mxu0 0
  %1241 = vmatprep.subr.bf16.mxu0 0
  %1242 = vmatpush1.bf16.msra.mxu0 0
  %1243 = vmatprep.subr.bf16.mxu0 0
  %1244 = vmatpush1.bf16.msra.mxu0 0
  %1245 = vmatprep.subr.bf16.mxu0 0
  %1246 = vmatpush1.bf16.msra.mxu0 0
  %1247 = vmatprep.subr.bf16.mxu0 0
  %1248 = vmatpush1.bf16.msra.mxu0 0
  %1249 = vmatprep.subr.bf16.mxu0 0
  %1250 = vmatpush1.bf16.msra.mxu0 0
  %1251 = vmatprep.mubr.bf16.mxu0 0
  %1252 = vmatmul.mubr.bf16.gmra.mrb[0].mxu0 %v1217
  %v1253 = vpop.f32.mrb[0].mxu0
  %v1254 = vadd.f32 0.0, %v1253
  %v1255 = vpop.f32.mrb[0].mxu0
  %v1256 = vadd.f32 0.0, %v1255
  %v1257 = vpop.f32.mrb[0].mxu0
  %v1258 = vpop.f32.mrb[0].mxu0
  %1259 = vdwg.mxu0
  %v1260 = vadd.f32 %v1209, %v1254
  %v1261 = vadd.f32 %v1210, %v1256
  %v1262 = vxor.u32 %v1260, 2147483648
  %v1263 = vmul.f32 %v1262, 1.442695
  %v1264 = vpow.pop %v1263
  %v1265 = vadd.f32 %v1264, 1.0
  %v1266 = vrcp.pop %v1265
  %v1267 = vmul.f32 1.0, %v1266
  %v1268 = vtanh.pop %v1261
  %v1269 = vxor.u32 %v1261, 2147483648
  %v1270 = vmul.f32 %v1269, 1.442695
  %v1271 = vpow.pop %v1270
  %v1272 = vadd.f32 %v1271, 1.0
  %v1273 = vrcp.pop %v1272
  %v1274 = vmul.f32 1.0, %v1273
  %v1276 = vrot.slane %v1193, 6
  %v1278 = vmul.f32 %v1267, %v1276
  %v1279 = vmul.f32 %v1267, %v1268
  %1281 = vrot.lane.b32.xlu0 %v1279, 64
  %v1282 = vpop.permute.xlu0 %1281
  %v1284 = vadd.f32 %v1278, %v1282
  %v1285 = vtanh.pop %v1284
  %v1286 = vmul.f32 %v1274, %v1285
  %1288 = vrot.lane.b32.xlu0 %v1286, 64
  %v1289 = vpop.permute.xlu0 %1288
  %s1291 = scalar_lea.vmem [#allocation2], 8
  %1292 = vst.msk [vmem:[%s1291] sm:$0x3] %vm929, %v1289
  %v1293 = vrot.slane %v763, 2
  %v1294 = vrot.slane %v765, 2
  %v1297 = vsel %vm806, %v767, %v1293
  %v1298 = vsel %vm807, %v769, %v1294
  %v1299 = vpack.c.bf16 %v1286, %v1286
  %1301 = vrot.lane.b32.xlu0 %v1299, 64
  %v1302 = vpop.permute.xlu0 %1301
  %v1304 = vsel %vm856, %v1302, 0
  %1306 = vmatprep.subr.bf16.mxu0 %v841
  %1307 = vmatpush1.bf16.msra.mxu0 %v840
  %1308 = vmatprep.subr.bf16.mxu0 %v843
  %1309 = vmatpush1.bf16.msra.mxu0 %v842
  %1310 = vmatprep.subr.bf16.mxu0 %v845
  %1311 = vmatpush1.bf16.msra.mxu0 %v844
  %1312 = vmatprep.subr.bf16.mxu0 %v847
  %1313 = vmatpush1.bf16.msra.mxu0 %v846
  %1314 = vmatprep.subr.bf16.mxu0 0
  %1315 = vmatpush1.bf16.msra.mxu0 0
  %1316 = vmatprep.subr.bf16.mxu0 0
  %1317 = vmatpush1.bf16.msra.mxu0 0
  %1318 = vmatprep.subr.bf16.mxu0 0
  %1319 = vmatpush1.bf16.msra.mxu0 0
  %1320 = vmatprep.subr.bf16.mxu0 0
  %1321 = vmatpush1.bf16.msra.mxu0 0
  %1322 = vmatprep.subr.bf16.mxu0 0
  %1323 = vmatpush1.bf16.msra.mxu0 0
  %1324 = vmatprep.subr.bf16.mxu0 0
  %1325 = vmatpush1.bf16.msra.mxu0 0
  %1326 = vmatprep.subr.bf16.mxu0 0
  %1327 = vmatpush1.bf16.msra.mxu0 0
  %1328 = vmatprep.subr.bf16.mxu0 0
  %1329 = vmatpush1.bf16.msra.mxu0 0
  %1330 = vmatprep.subr.bf16.mxu0 0
  %1331 = vmatpush1.bf16.msra.mxu0 0
  %1332 = vmatprep.subr.bf16.mxu0 0
  %1333 = vmatpush1.bf16.msra.mxu0 0
  %1334 = vmatprep.subr.bf16.mxu0 0
  %1335 = vmatpush1.bf16.msra.mxu0 0
  %1336 = vmatprep.subr.bf16.mxu0 0
  %1337 = vmatpush1.bf16.msra.mxu0 0
  %1338 = vmatprep.mubr.bf16.mxu0 0
  %1339 = vmatmul.mubr.bf16.gmra.mrb[0].mxu0 %v1304
  %v1340 = vpop.f32.mrb[0].mxu0
  %v1341 = vadd.f32 0.0, %v1340
  %v1342 = vpop.f32.mrb[0].mxu0
  %v1343 = vadd.f32 0.0, %v1342
  %v1344 = vpop.f32.mrb[0].mxu0
  %v1345 = vpop.f32.mrb[0].mxu0
  %1346 = vdwg.mxu0
  %v1349 = vrot.slane %v1341, 6
  %v1350 = vrot.slane %v1343, 6
  %v1353 = vadd.f32 %v1297, %v1349
  %v1354 = vadd.f32 %v1298, %v1350
  %v1355 = vxor.u32 %v1353, 2147483648
  %v1356 = vmul.f32 %v1355, 1.442695
  %v1357 = vpow.pop %v1356
  %v1358 = vadd.f32 %v1357, 1.0
  %v1359 = vrcp.pop %v1358
  %v1360 = vmul.f32 1.0, %v1359
  %v1361 = vtanh.pop %v1354
  %v1362 = vxor.u32 %v1354, 2147483648
  %v1363 = vmul.f32 %v1362, 1.442695
  %v1364 = vpow.pop %v1363
  %v1365 = vadd.f32 %v1364, 1.0
  %v1366 = vrcp.pop %v1365
  %v1367 = vmul.f32 1.0, %v1366
  %v1369 = vrot.slane %v1284, 6
  %v1371 = vmul.f32 %v1360, %v1369
  %v1372 = vmul.f32 %v1360, %v1361
  %1374 = vrot.lane.b32.xlu0 %v1372, 64
  %v1375 = vpop.permute.xlu0 %1374
  %v1377 = vadd.f32 %v1371, %v1375
  %v1378 = vtanh.pop %v1377
  %v1379 = vmul.f32 %v1367, %v1378
  %1381 = vrot.lane.b32.xlu0 %v1379, 64
  %v1382 = vpop.permute.xlu0 %1381
  %s1384 = scalar_lea.vmem [#allocation2], 10
  %1385 = vst.msk [vmem:[%s1384 - $0x2] sm:$0xc] %vm1023, %v1382
  %v1386 = vpack.c.bf16 %v1379, %v1379
  %v1388 = vrot.slane %v1386, 1
  %1389 = vrot.lane.b32.xlu0 %v1388, 64
  %v1390 = vpop.permute.xlu0 %1389
  %v1392 = vsel %vm856, %v1390, 0
  %1394 = vmatprep.subr.bf16.mxu0 %v841
  %1395 = vmatpush1.bf16.msra.mxu0 %v840
  %1396 = vmatprep.subr.bf16.mxu0 %v843
  %1397 = vmatpush1.bf16.msra.mxu0 %v842
  %1398 = vmatprep.subr.bf16.mxu0 %v845
  %1399 = vmatpush1.bf16.msra.mxu0 %v844
  %1400 = vmatprep.subr.bf16.mxu0 %v847
  %1401 = vmatpush1.bf16.msra.mxu0 %v846
  %1402 = vmatprep.subr.bf16.mxu0 0
  %1403 = vmatpush1.bf16.msra.mxu0 0
  %1404 = vmatprep.subr.bf16.mxu0 0
  %1405 = vmatpush1.bf16.msra.mxu0 0
  %1406 = vmatprep.subr.bf16.mxu0 0
  %1407 = vmatpush1.bf16.msra.mxu0 0
  %1408 = vmatprep.subr.bf16.mxu0 0
  %1409 = vmatpush1.bf16.msra.mxu0 0
  %1410 = vmatprep.subr.bf16.mxu0 0
  %1411 = vmatpush1.bf16.msra.mxu0 0
  %1412 = vmatprep.subr.bf16.mxu0 0
  %1413 = vmatpush1.bf16.msra.mxu0 0
  %1414 = vmatprep.subr.bf16.mxu0 0
  %1415 = vmatpush1.bf16.msra.mxu0 0
  %1416 = vmatprep.subr.bf16.mxu0 0
  %1417 = vmatpush1.bf16.msra.mxu0 0
  %1418 = vmatprep.subr.bf16.mxu0 0
  %1419 = vmatpush1.bf16.msra.mxu0 0
  %1420 = vmatprep.subr.bf16.mxu0 0
  %1421 = vmatpush1.bf16.msra.mxu0 0
  %1422 = vmatprep.subr.bf16.mxu0 0
  %1423 = vmatpush1.bf16.msra.mxu0 0
  %1424 = vmatprep.subr.bf16.mxu0 0
  %1425 = vmatpush1.bf16.msra.mxu0 0
  %1426 = vmatprep.mubr.bf16.mxu0 0
  %1427 = vmatmul.mubr.bf16.gmra.mrb[0].mxu0 %v1392
  %v1428 = vpop.f32.mrb[0].mxu0
  %v1429 = vadd.f32 0.0, %v1428
  %v1430 = vpop.f32.mrb[0].mxu0
  %v1431 = vadd.f32 0.0, %v1430
  %v1432 = vpop.f32.mrb[0].mxu0
  %v1433 = vpop.f32.mrb[0].mxu0
  %1434 = vdwg.mxu0
  %v1437 = vrot.slane %v1429, 4
  %v1438 = vrot.slane %v1431, 4
  %v1441 = vadd.f32 %v1209, %v1437
  %v1442 = vadd.f32 %v1210, %v1438
  %v1443 = vxor.u32 %v1441, 2147483648
  %v1444 = vmul.f32 %v1443, 1.442695
  %v1445 = vpow.pop %v1444
  %v1446 = vadd.f32 %v1445, 1.0
  %v1447 = vrcp.pop %v1446
  %v1448 = vmul.f32 1.0, %v1447
  %v1449 = vtanh.pop %v1442
  %v1450 = vxor.u32 %v1442, 2147483648
  %v1451 = vmul.f32 %v1450, 1.442695
  %v1452 = vpow.pop %v1451
  %v1453 = vadd.f32 %v1452, 1.0
  %v1454 = vrcp.pop %v1453
  %v1455 = vmul.f32 1.0, %v1454
  %v1457 = vrot.slane %v1377, 6
  %v1459 = vmul.f32 %v1448, %v1457
  %v1460 = vmul.f32 %v1448, %v1449
  %1462 = vrot.lane.b32.xlu0 %v1460, 64
  %v1463 = vpop.permute.xlu0 %1462
  %v1465 = vadd.f32 %v1459, %v1463
  %v1466 = vtanh.pop %v1465
  %v1467 = vmul.f32 %v1455, %v1466
  %1469 = vrot.lane.b32.xlu0 %v1467, 64
  %v1470 = vpop.permute.xlu0 %1469
  %s1472 = scalar_lea.vmem [#allocation2], 12
  %1473 = vst.msk [vmem:[%s1472 - $0x4] sm:$0x30] %vm1112, %v1470
  %v1474 = vpack.c.bf16 %v1467, %v1467
  %v1476 = vrot.slane %v1474, 2
  %1477 = vrot.lane.b32.xlu0 %v1476, 64
  %v1478 = vpop.permute.xlu0 %1477
  %v1480 = vsel %vm856, %v1478, 0
  %1482 = vmatprep.subr.bf16.mxu0 %v841
  %1483 = vmatpush1.bf16.msra.mxu0 %v840
  %1484 = vmatprep.subr.bf16.mxu0 %v843
  %1485 = vmatpush1.bf16.msra.mxu0 %v842
  %1486 = vmatprep.subr.bf16.mxu0 %v845
  %1487 = vmatpush1.bf16.msra.mxu0 %v844
  %1488 = vmatprep.subr.bf16.mxu0 %v847
  %1489 = vmatpush1.bf16.msra.mxu0 %v846
  %1490 = vmatprep.subr.bf16.mxu0 0
  %1491 = vmatpush1.bf16.msra.mxu0 0
  %1492 = vmatprep.subr.bf16.mxu0 0
  %1493 = vmatpush1.bf16.msra.mxu0 0
  %1494 = vmatprep.subr.bf16.mxu0 0
  %1495 = vmatpush1.bf16.msra.mxu0 0
  %1496 = vmatprep.subr.bf16.mxu0 0
  %1497 = vmatpush1.bf16.msra.mxu0 0
  %1498 = vmatprep.subr.bf16.mxu0 0
  %1499 = vmatpush1.bf16.msra.mxu0 0
  %1500 = vmatprep.subr.bf16.mxu0 0
  %1501 = vmatpush1.bf16.msra.mxu0 0
  %1502 = vmatprep.subr.bf16.mxu0 0
  %1503 = vmatpush1.bf16.msra.mxu0 0
  %1504 = vmatprep.subr.bf16.mxu0 0
  %1505 = vmatpush1.bf16.msra.mxu0 0
  %1506 = vmatprep.subr.bf16.mxu0 0
  %1507 = vmatpush1.bf16.msra.mxu0 0
  %1508 = vmatprep.subr.bf16.mxu0 0
  %1509 = vmatpush1.bf16.msra.mxu0 0
  %1510 = vmatprep.subr.bf16.mxu0 0
  %1511 = vmatpush1.bf16.msra.mxu0 0
  %1512 = vmatprep.subr.bf16.mxu0 0
  %1513 = vmatpush1.bf16.msra.mxu0 0
  %1514 = vmatprep.mubr.bf16.mxu0 0
  %1515 = vmatmul.mubr.bf16.gmra.mrb[0].mxu0 %v1480
  %v1516 = vpop.f32.mrb[0].mxu0
  %v1517 = vadd.f32 0.0, %v1516
  %v1518 = vpop.f32.mrb[0].mxu0
  %v1519 = vadd.f32 0.0, %v1518
  %v1520 = vpop.f32.mrb[0].mxu0
  %v1521 = vpop.f32.mrb[0].mxu0
  %1522 = vdwg.mxu0
  %v1525 = vrot.slane %v1517, 2
  %v1526 = vrot.slane %v1519, 2
  %v1529 = vadd.f32 %v1297, %v1525
  %v1530 = vadd.f32 %v1298, %v1526
  %v1531 = vxor.u32 %v1529, 2147483648
  %v1532 = vmul.f32 %v1531, 1.442695
  %v1533 = vpow.pop %v1532
  %v1534 = vadd.f32 %v1533, 1.0
  %v1535 = vrcp.pop %v1534
  %v1536 = vmul.f32 1.0, %v1535
  %v1537 = vtanh.pop %v1530
  %v1538 = vxor.u32 %v1530, 2147483648
  %v1539 = vmul.f32 %v1538, 1.442695
  %v1540 = vpow.pop %v1539
  %v1541 = vadd.f32 %v1540, 1.0
  %v1542 = vrcp.pop %v1541
  %v1543 = vmul.f32 1.0, %v1542
  %v1545 = vrot.slane %v1465, 6
  %v1547 = vmul.f32 %v1536, %v1545
  %v1548 = vmul.f32 %v1536, %v1537
  %1550 = vrot.lane.b32.xlu0 %v1548, 64
  %v1551 = vpop.permute.xlu0 %1550
  %v1553 = vadd.f32 %v1547, %v1551
  %v1554 = vtanh.pop %v1553
  %v1555 = vmul.f32 %v1543, %v1554
  %1557 = vrot.lane.b32.xlu0 %v1555, 64
  %v1558 = vpop.permute.xlu0 %1557
  %s1560 = scalar_lea.vmem [#allocation2], 14
  %1561 = vst.msk [vmem:[%s1560 - $0x6] sm:$0xc0] %vm1201, %v1558
  %v1562 = vld [vmem:[#allocation2] sm:$0x3]
  %v1563 = vld [vmem:[%s1560] sm:$0x3]
  %vm1564 = vcmask 261120
  %v1565 = vsel %vm1564, %v1562, %v1563
  %1566 = vst.msk [vmem:[%s4] sm:$0x3] %vm929, %v1565
  %v1567 = vld [vmem:[%s1022] sm:$0x3]
  %v1568 = vld [vmem:[%s1472] sm:$0x3]
  %v1569 = vsel %vm1564, %v1567, %v1568
  %s1570 = scalar_lea.vmem %s4, 2
  %1571 = vst.msk [vmem:[%s1570] sm:$0x3] %vm929, %v1569
  %v1572 = vld [vmem:[%s1111] sm:$0x3]
  %v1573 = vld [vmem:[%s1384] sm:$0x3]
  %v1574 = vsel %vm1564, %v1572, %v1573
  %s1575 = scalar_lea.vmem %s4, 4
  %1576 = vst.msk [vmem:[%s1575] sm:$0x3] %vm929, %v1574
  %v1577 = vld [vmem:[%s1200] sm:$0x3]
  %v1578 = vld [vmem:[%s1291] sm:$0x3]
  %v1579 = vsel %vm1564, %v1577, %v1578
  %s1580 = scalar_lea.vmem %s4, 6
  %1581 = vst.msk [vmem:[%s1580] sm:$0x3] %vm929, %v1579
  %v1582 = vld [vmem:[%s1291] sm:$0x3]
  %v1583 = vld [vmem:[%s1200] sm:$0x3]
  %v1584 = vsel %vm1564, %v1582, %v1583
  %s1585 = scalar_lea.vmem %s4, 8
  %1586 = vst.msk [vmem:[%s1585] sm:$0x3] %vm929, %v1584
  %v1587 = vld [vmem:[%s1384] sm:$0x3]
  %v1588 = vld [vmem:[%s1111] sm:$0x3]
  %v1589 = vsel %vm1564, %v1587, %v1588
  %s1590 = scalar_lea.vmem %s4, 10
  %1591 = vst.msk [vmem:[%s1590] sm:$0x3] %vm929, %v1589
  %v1592 = vld [vmem:[%s1472] sm:$0x3]
  %v1593 = vld [vmem:[%s1022] sm:$0x3]
  %v1594 = vsel %vm1564, %v1592, %v1593
  %s1595 = scalar_lea.vmem %s4, 12
  %1596 = vst.msk [vmem:[%s1595] sm:$0x3] %vm929, %v1594
  %v1597 = vld [vmem:[%s1560] sm:$0x3]
  %v1598 = vld [vmem:[#allocation2] sm:$0x3]
  %v1599 = vsel %vm1564, %v1597, %v1598
  %s1600 = scalar_lea.vmem %s4, 14
  %1601 = vst.msk [vmem:[%s1600] sm:$0x3] %vm929, %v1599
  // Predicated region
  $region18: #{deepconvlstm_forward.15} parent=0 // pred_check
    _
  $region19: #{deepconvlstm_forward.15} parent=0 // pred_check_branch
    %1603 = sbr.rel (0) target = $region21
  $region20: #{deepconvlstm_forward.15} parent=0 // pred_region
    _
  $region21: #{deepconvlstm_forward.15} parent=0 // pred_fallthru
    _
  // Predicated region
  $region22: #{deepconvlstm_forward.15} parent=0 // pred_check
    _
  $region23: #{deepconvlstm_forward.15} parent=0 // pred_check_branch
    %1605 = sbr.rel (0) target = $region25
  $region24: #{deepconvlstm_forward.15} parent=0 // pred_region
    _
  $region25: #{deepconvlstm_forward.15} parent=0 // pred_fallthru
    _

// kernel: deepconvlstm_forward.17
$region0: #{deepconvlstm_forward.17}
  #allocation0 [shape = 'u32[]', space=smem, size = 0x4, offset = 0x4, fixed_abs, tag = 'smem constant byte address 0x4 - core index']
  #allocation1 [shape = 'u32[144,128]{1,0:T(1,128)}', space=vmem, size = 0x12000, scoped, tag = 'internal scratch']
  %s0 = inlined_call_operand.vmem [shape: bf16[384,576], index: 0, kind: input, shape index: {}]
  %s1 = inlined_call_operand.vmem [shape: bf16[576,64], index: 1, kind: input, shape index: {}]
  %s2 = inlined_call_operand.vmem [shape: f32[1,64], index: 2, kind: input, shape index: {}]
  %s3 = inlined_call_operand.vmem [shape: f32[1,64], index: 3, kind: input, shape index: {}]
  %s4 = inlined_call_operand.vmem [shape: f32[1,64], index: 4, kind: input, shape index: {}]
  %s5 = inlined_call_operand.vmem [shape: bf16[384,64], index: 5, kind: output, shape index: {}]
  %s6 = sld [smem:[#allocation0]]
  $region30: #{deepconvlstm_forward.17} parent=0
    _
  %s8 = ssub.s32 1, %s6
  %s9 = scalar_select 0, %s8, %s6
  // Predicated region
  $region2: #{deepconvlstm_forward.17} parent=0 // pred_check
    _
  $region3: #{deepconvlstm_forward.17} parent=0 // pred_check_branch
    %11 = sbr.rel (0) target = $region5
  $region4: #{deepconvlstm_forward.17} parent=0 // pred_region
    _
  $region5: #{deepconvlstm_forward.17} parent=0 // pred_fallthru
    _
  // Predicated region
  $region6: #{deepconvlstm_forward.17} parent=0 // pred_check
    _
  $region7: #{deepconvlstm_forward.17} parent=0 // pred_check_branch
    %13 = sbr.rel (0) target = $region9
  $region8: #{deepconvlstm_forward.17} parent=0 // pred_region
    _
  $region9: #{deepconvlstm_forward.17} parent=0 // pred_fallthru
    _
  // Predicated region
  $region10: #{deepconvlstm_forward.17} parent=0 // pred_check
    _
  $region11: #{deepconvlstm_forward.17} parent=0 // pred_check_branch
    %15 = sbr.rel (0) target = $region13
  $region12: #{deepconvlstm_forward.17} parent=0 // pred_region
    _
  $region13: #{deepconvlstm_forward.17} parent=0 // pred_fallthru
    _
  // Predicated region
  $region14: #{deepconvlstm_forward.17} parent=0 // pred_check
    _
  $region15: #{deepconvlstm_forward.17} parent=0 // pred_check_branch
    %17 = sbr.rel (0) target = $region17
  $region16: #{deepconvlstm_forward.17} parent=0 // pred_region
    _
  $region17: #{deepconvlstm_forward.17} parent=0 // pred_fallthru
    _
  // Predicated region
  $region18: #{deepconvlstm_forward.17} parent=0 // pred_check
    _
  $region19: #{deepconvlstm_forward.17} parent=0 // pred_check_branch
    %19 = sbr.rel (0) target = $region21
  $region20: #{deepconvlstm_forward.17} parent=0 // pred_region
    _
  $region21: #{deepconvlstm_forward.17} parent=0 // pred_fallthru
    _
  %v21 = vld [vmem:[%s0] sm:$0xff]
  %v22 = vld [vmem:[%s0 + $0x8] sm:$0xff]
  %v23 = vld [vmem:[%s0 + $0x10] sm:$0xf]
  %v24 = vld [vmem:[%s0 + $0x14] sm:$0xff]
  %v25 = vld [vmem:[%s0 + $0x1c] sm:$0xff]
  %v26 = vld [vmem:[%s0 + $0x24] sm:$0xf]
  %v27 = vld [vmem:[%s0 + $0x28] sm:$0xff]
  %v28 = vld [vmem:[%s0 + $0x30] sm:$0xff]
  %v29 = vld [vmem:[%s0 + $0x38] sm:$0xf]
  %v30 = vld [vmem:[%s0 + $0x3c] sm:$0xff]
  %v31 = vld [vmem:[%s0 + $0x44] sm:$0xff]
  %v32 = vld [vmem:[%s0 + $0x4c] sm:$0xf]
  %v33 = vld [vmem:[%s0 + $0x50] sm:$0xff]
  %v34 = vld [vmem:[%s0 + $0x58] sm:$0xff]
  %v35 = vld [vmem:[%s0 + $0x60] sm:$0xf]
  %v36 = vld [vmem:[%s0 + $0x64] sm:$0xff]
  %v37 = vld [vmem:[%s0 + $0x6c] sm:$0xff]
  %v38 = vld [vmem:[%s0 + $0x74] sm:$0xf]
  %v39 = vld [vmem:[%s0 + $0x78] sm:$0xff]
  %v40 = vld [vmem:[%s0 + $0x80] sm:$0xff]
  %v41 = vld [vmem:[%s0 + $0x88] sm:$0xf]
  %v42 = vld [vmem:[%s0 + $0x8c] sm:$0xff]
  %v43 = vld [vmem:[%s0 + $0x94] sm:$0xff]
  %v44 = vld [vmem:[%s0 + $0x9c] sm:$0xf]
  %v45 = vld [vmem:[%s0 + $0xa0] sm:$0xff]
  %v46 = vld [vmem:[%s0 + $0xa8] sm:$0xff]
  %v47 = vld [vmem:[%s0 + $0xb0] sm:$0xf]
  %v48 = vld [vmem:[%s0 + $0xb4] sm:$0xff]
  %v49 = vld [vmem:[%s0 + $0xbc] sm:$0xff]
  %v50 = vld [vmem:[%s0 + $0xc4] sm:$0xf]
  %v51 = vld [vmem:[%s0 + $0xc8] sm:$0xff]
  %v52 = vld [vmem:[%s0 + $0xd0] sm:$0xff]
  %v53 = vld [vmem:[%s0 + $0xd8] sm:$0xf]
  %v54 = vld [vmem:[%s0 + $0xdc] sm:$0xff]
  %v55 = vld [vmem:[%s0 + $0xe4] sm:$0xff]
  %v56 = vld [vmem:[%s0 + $0xec] sm:$0xf]
  %v57 = vld [vmem:[%s0 + $0xf0] sm:$0xff]
  %v58 = vld [vmem:[%s0 + $0xf8] sm:$0xff]
  %v59 = vld [vmem:[%s0 + $0x100] sm:$0xf]
  %v60 = vld [vmem:[%s0 + $0x104] sm:$0xff]
  %v61 = vld [vmem:[%s0 + $0x10c] sm:$0xff]
  %v62 = vld [vmem:[%s0 + $0x114] sm:$0xf]
  %v63 = vld [vmem:[%s0 + $0x118] sm:$0xff]
  %v64 = vld [vmem:[%s0 + $0x120] sm:$0xff]
  %v65 = vld [vmem:[%s0 + $0x128] sm:$0xf]
  %v66 = vld [vmem:[%s0 + $0x12c] sm:$0xff]
  %v67 = vld [vmem:[%s0 + $0x134] sm:$0xff]
  %v68 = vld [vmem:[%s0 + $0x13c] sm:$0xf]
  %v69 = vld [vmem:[%s0 + $0x140] sm:$0xff]
  %v70 = vld [vmem:[%s0 + $0x148] sm:$0xff]
  %v71 = vld [vmem:[%s0 + $0x150] sm:$0xf]
  %v72 = vld [vmem:[%s0 + $0x154] sm:$0xff]
  %v73 = vld [vmem:[%s0 + $0x15c] sm:$0xff]
  %v74 = vld [vmem:[%s0 + $0x164] sm:$0xf]
  %v75 = vld [vmem:[%s0 + $0x168] sm:$0xff]
  %v76 = vld [vmem:[%s0 + $0x170] sm:$0xff]
  %v77 = vld [vmem:[%s0 + $0x178] sm:$0xf]
  %v78 = vld [vmem:[%s0 + $0x17c] sm:$0xff]
  %v79 = vld [vmem:[%s0 + $0x184] sm:$0xff]
  %v80 = vld [vmem:[%s0 + $0x18c] sm:$0xf]
  %v81 = vld [vmem:[%s0 + $0x190] sm:$0xff]
  %v82 = vld [vmem:[%s0 + $0x198] sm:$0xff]
  %v83 = vld [vmem:[%s0 + $0x1a0] sm:$0xf]
  %v84 = vld [vmem:[%s0 + $0x1a4] sm:$0xff]
  %v85 = vld [vmem:[%s0 + $0x1ac] sm:$0xff]
  %v86 = vld [vmem:[%s0 + $0x1b4] sm:$0xf]
  %v87 = vld [vmem:[%s0 + $0x1b8] sm:$0xff]
  %v88 = vld [vmem:[%s0 + $0x1c0] sm:$0xff]
  %v89 = vld [vmem:[%s0 + $0x1c8] sm:$0xf]
  %v90 = vld [vmem:[%s0 + $0x1cc] sm:$0xff]
  %v91 = vld [vmem:[%s0 + $0x1d4] sm:$0xff]
  %v92 = vld [vmem:[%s0 + $0x1dc] sm:$0xf]
  %v93 = vld [vmem:[%s0 + $0x1e0] sm:$0xff]
  %v94 = vld [vmem:[%s0 + $0x1e8] sm:$0xff]
  %v95 = vld [vmem:[%s0 + $0x1f0] sm:$0xf]
  %v96 = vld [vmem:[%s0 + $0x1f4] sm:$0xff]
  %v97 = vld [vmem:[%s0 + $0x1fc] sm:$0xff]
  %v98 = vld [vmem:[%s0 + $0x204] sm:$0xf]
  %v99 = vld [vmem:[%s0 + $0x208] sm:$0xff]
  %v100 = vld [vmem:[%s0 + $0x210] sm:$0xff]
  %v101 = vld [vmem:[%s0 + $0x218] sm:$0xf]
  %v102 = vld [vmem:[%s0 + $0x21c] sm:$0xff]
  %v103 = vld [vmem:[%s0 + $0x224] sm:$0xff]
  %v104 = vld [vmem:[%s0 + $0x22c] sm:$0xf]
  %v105 = vld [vmem:[%s0 + $0x230] sm:$0xff]
  %v106 = vld [vmem:[%s0 + $0x238] sm:$0xff]
  %v107 = vld [vmem:[%s0 + $0x240] sm:$0xf]
  %v108 = vld [vmem:[%s0 + $0x244] sm:$0xff]
  %v109 = vld [vmem:[%s0 + $0x24c] sm:$0xff]
  %v110 = vld [vmem:[%s0 + $0x254] sm:$0xf]
  %v111 = vld [vmem:[%s0 + $0x258] sm:$0xff]
  %v112 = vld [vmem:[%s0 + $0x260] sm:$0xff]
  %v113 = vld [vmem:[%s0 + $0x268] sm:$0xf]
  %v114 = vld [vmem:[%s0 + $0x26c] sm:$0xff]
  %v115 = vld [vmem:[%s0 + $0x274] sm:$0xff]
  %v116 = vld [vmem:[%s0 + $0x27c] sm:$0xf]
  %v117 = vld [vmem:[%s0 + $0x280] sm:$0xff]
  %v118 = vld [vmem:[%s0 + $0x288] sm:$0xff]
  %v119 = vld [vmem:[%s0 + $0x290] sm:$0xf]
  %v120 = vld [vmem:[%s0 + $0x294] sm:$0xff]
  %v121 = vld [vmem:[%s0 + $0x29c] sm:$0xff]
  %v122 = vld [vmem:[%s0 + $0x2a4] sm:$0xf]
  %v123 = vld [vmem:[%s0 + $0x2a8] sm:$0xff]
  %v124 = vld [vmem:[%s0 + $0x2b0] sm:$0xff]
  %v125 = vld [vmem:[%s0 + $0x2b8] sm:$0xf]
  %v126 = vld [vmem:[%s0 + $0x2bc] sm:$0xff]
  %v127 = vld [vmem:[%s0 + $0x2c4] sm:$0xff]
  %v128 = vld [vmem:[%s0 + $0x2cc] sm:$0xf]
  %v129 = vld [vmem:[%s0 + $0x2d0] sm:$0xff]
  %v130 = vld [vmem:[%s0 + $0x2d8] sm:$0xff]
  %v131 = vld [vmem:[%s0 + $0x2e0] sm:$0xf]
  %v132 = vld [vmem:[%s0 + $0x2e4] sm:$0xff]
  %v133 = vld [vmem:[%s0 + $0x2ec] sm:$0xff]
  %v134 = vld [vmem:[%s0 + $0x2f4] sm:$0xf]
  %v135 = vld [vmem:[%s0 + $0x2f8] sm:$0xff]
  %v136 = vld [vmem:[%s0 + $0x300] sm:$0xff]
  %v137 = vld [vmem:[%s0 + $0x308] sm:$0xf]
  %v138 = vld [vmem:[%s0 + $0x30c] sm:$0xff]
  %v139 = vld [vmem:[%s0 + $0x314] sm:$0xff]
  %v140 = vld [vmem:[%s0 + $0x31c] sm:$0xf]
  %v141 = vld [vmem:[%s0 + $0x320] sm:$0xff]
  %v142 = vld [vmem:[%s0 + $0x328] sm:$0xff]
  %v143 = vld [vmem:[%s0 + $0x330] sm:$0xf]
  %v144 = vld [vmem:[%s0 + $0x334] sm:$0xff]
  %v145 = vld [vmem:[%s0 + $0x33c] sm:$0xff]
  %v146 = vld [vmem:[%s0 + $0x344] sm:$0xf]
  %v147 = vld [vmem:[%s0 + $0x348] sm:$0xff]
  %v148 = vld [vmem:[%s0 + $0x350] sm:$0xff]
  %v149 = vld [vmem:[%s0 + $0x358] sm:$0xf]
  %v150 = vld [vmem:[%s0 + $0x35c] sm:$0xff]
  %v151 = vld [vmem:[%s0 + $0x364] sm:$0xff]
  %v152 = vld [vmem:[%s0 + $0x36c] sm:$0xf]
  %v153 = vld [vmem:[%s0 + $0x370] sm:$0xff]
  %v154 = vld [vmem:[%s0 + $0x378] sm:$0xff]
  %v155 = vld [vmem:[%s0 + $0x380] sm:$0xf]
  %v156 = vld [vmem:[%s0 + $0x384] sm:$0xff]
  %v157 = vld [vmem:[%s0 + $0x38c] sm:$0xff]
  %v158 = vld [vmem:[%s0 + $0x394] sm:$0xf]
  %v159 = vld [vmem:[%s0 + $0x398] sm:$0xff]
  %v160 = vld [vmem:[%s0 + $0x3a0] sm:$0xff]
  %v161 = vld [vmem:[%s0 + $0x3a8] sm:$0xf]
  %v162 = vld [vmem:[%s0 + $0x3ac] sm:$0xff]
  %v163 = vld [vmem:[%s0 + $0x3b4] sm:$0xff]
  %v164 = vld [vmem:[%s0 + $0x3bc] sm:$0xf]
  %v165 = vld [vmem:[%s1] sm:$0xf]
  %v166 = vld [vmem:[%s1 + $0x4] sm:$0xf]
  %v167 = vld [vmem:[%s1 + $0x8] sm:$0xf]
  %v168 = vld [vmem:[%s1 + $0xc] sm:$0xf]
  %v169 = vld [vmem:[%s1 + $0x10] sm:$0xf]
  %v170 = vld [vmem:[%s1 + $0x14] sm:$0xf]
  %v171 = vld [vmem:[%s1 + $0x18] sm:$0xf]
  %v172 = vld [vmem:[%s1 + $0x1c] sm:$0xf]
  %v173 = vld [vmem:[%s1 + $0x20] sm:$0xf]
  %v174 = vld [vmem:[%s1 + $0x24] sm:$0xf]
  %v175 = vld [vmem:[%s1 + $0x28] sm:$0xf]
  %v176 = vld [vmem:[%s1 + $0x2c] sm:$0xf]
  %v177 = vld [vmem:[%s1 + $0x30] sm:$0xf]
  %v178 = vld [vmem:[%s1 + $0x34] sm:$0xf]
  %v179 = vld [vmem:[%s1 + $0x38] sm:$0xf]
  %v180 = vld [vmem:[%s1 + $0x3c] sm:$0xf]
  %v181 = vld [vmem:[%s1 + $0x40] sm:$0xf]
  %v182 = vld [vmem:[%s1 + $0x44] sm:$0xf]
  %v183 = vld [vmem:[%s1 + $0x48] sm:$0xf]
  %v184 = vld [vmem:[%s1 + $0x4c] sm:$0xf]
  %v185 = vld [vmem:[%s1 + $0x50] sm:$0xf]
  %v186 = vld [vmem:[%s1 + $0x54] sm:$0xf]
  %v187 = vld [vmem:[%s1 + $0x58] sm:$0xf]
  %v188 = vld [vmem:[%s1 + $0x5c] sm:$0xf]
  %v189 = vld [vmem:[%s1 + $0x60] sm:$0xf]
  %v190 = vld [vmem:[%s1 + $0x64] sm:$0xf]
  %v191 = vld [vmem:[%s1 + $0x68] sm:$0xf]
  %v192 = vld [vmem:[%s1 + $0x6c] sm:$0xf]
  %v193 = vld [vmem:[%s1 + $0x70] sm:$0xf]
  %v194 = vld [vmem:[%s1 + $0x74] sm:$0xf]
  %v195 = vld [vmem:[%s1 + $0x78] sm:$0xf]
  %v196 = vld [vmem:[%s1 + $0x7c] sm:$0xf]
  %v197 = vld [vmem:[%s1 + $0x80] sm:$0xf]
  %v198 = vld [vmem:[%s1 + $0x84] sm:$0xf]
  %v199 = vld [vmem:[%s1 + $0x88] sm:$0xf]
  %v200 = vld [vmem:[%s1 + $0x8c] sm:$0xf]
  %v201 = vld [vmem:[%s1 + $0x90] sm:$0xf]
  %v202 = vld [vmem:[%s1 + $0x94] sm:$0xf]
  %v203 = vld [vmem:[%s1 + $0x98] sm:$0xf]
  %v204 = vld [vmem:[%s1 + $0x9c] sm:$0xf]
  %v205 = vld [vmem:[%s1 + $0xa0] sm:$0xf]
  %v206 = vld [vmem:[%s1 + $0xa4] sm:$0xf]
  %v207 = vld [vmem:[%s1 + $0xa8] sm:$0xf]
  %v208 = vld [vmem:[%s1 + $0xac] sm:$0xf]
  %v209 = vld [vmem:[%s1 + $0xb0] sm:$0xf]
  %v210 = vld [vmem:[%s1 + $0xb4] sm:$0xf]
  %v211 = vld [vmem:[%s1 + $0xb8] sm:$0xf]
  %v212 = vld [vmem:[%s1 + $0xbc] sm:$0xf]
  %v213 = vld [vmem:[%s1 + $0xc0] sm:$0xf]
  %v214 = vld [vmem:[%s1 + $0xc4] sm:$0xf]
  %v215 = vld [vmem:[%s1 + $0xc8] sm:$0xf]
  %v216 = vld [vmem:[%s1 + $0xcc] sm:$0xf]
  %v217 = vld [vmem:[%s1 + $0xd0] sm:$0xf]
  %v218 = vld [vmem:[%s1 + $0xd4] sm:$0xf]
  %v219 = vld [vmem:[%s1 + $0xd8] sm:$0xf]
  %v220 = vld [vmem:[%s1 + $0xdc] sm:$0xf]
  %v221 = vld [vmem:[%s1 + $0xe0] sm:$0xf]
  %v222 = vld [vmem:[%s1 + $0xe4] sm:$0xf]
  %v223 = vld [vmem:[%s1 + $0xe8] sm:$0xf]
  %v224 = vld [vmem:[%s1 + $0xec] sm:$0xf]
  %v225 = vld [vmem:[%s1 + $0xf0] sm:$0xf]
  %v226 = vld [vmem:[%s1 + $0xf4] sm:$0xf]
  %v227 = vld [vmem:[%s1 + $0xf8] sm:$0xf]
  %v228 = vld [vmem:[%s1 + $0xfc] sm:$0xf]
  %v229 = vld [vmem:[%s1 + $0x100] sm:$0xf]
  %v230 = vld [vmem:[%s1 + $0x104] sm:$0xf]
  %v231 = vld [vmem:[%s1 + $0x108] sm:$0xf]
  %v232 = vld [vmem:[%s1 + $0x10c] sm:$0xf]
  %v233 = vld [vmem:[%s1 + $0x110] sm:$0xf]
  %v234 = vld [vmem:[%s1 + $0x114] sm:$0xf]
  %v235 = vld [vmem:[%s1 + $0x118] sm:$0xf]
  %v236 = vld [vmem:[%s1 + $0x11c] sm:$0xf]
  %v237 = vld [vmem:[%s2] sm:$0x1]
  %v239 = vlaneseq
  %v240 = vshrl.u32 %v239, 7
  %v241 = vsub.s32 0, %v240
  %v242 = vrot.slane %v237, %v241
  %v388 = vunpack.c.l.b16 %v21
  %v389 = vunpack.c.h.b16 %v21
  %v390 = vunpack.c.l.b16 %v22
  %v391 = vunpack.c.h.b16 %v22
  %v392 = vunpack.c.l.b16 %v23
  %v393 = vunpack.c.l.b16 %v24
  %v394 = vunpack.c.h.b16 %v24
  %v395 = vunpack.c.l.b16 %v25
  %v396 = vunpack.c.h.b16 %v25
  %v397 = vunpack.c.l.b16 %v26
  %v398 = vunpack.c.l.b16 %v27
  %v399 = vunpack.c.h.b16 %v27
  %v400 = vunpack.c.l.b16 %v28
  %v401 = vunpack.c.h.b16 %v28
  %v402 = vunpack.c.l.b16 %v29
  %v403 = vunpack.c.l.b16 %v30
  %v404 = vunpack.c.h.b16 %v30
  %v405 = vunpack.c.l.b16 %v31
  %v406 = vunpack.c.h.b16 %v31
  %v407 = vunpack.c.l.b16 %v32
  %v408 = vunpack.c.l.b16 %v33
  %v409 = vunpack.c.h.b16 %v33
  %v410 = vunpack.c.l.b16 %v34
  %v411 = vunpack.c.h.b16 %v34
  %v412 = vunpack.c.l.b16 %v35
  %v413 = vunpack.c.l.b16 %v36
  %v414 = vunpack.c.h.b16 %v36
  %v415 = vunpack.c.l.b16 %v37
  %v416 = vunpack.c.h.b16 %v37
  %v417 = vunpack.c.l.b16 %v38
  %v418 = vunpack.c.l.b16 %v39
  %v419 = vunpack.c.h.b16 %v39
  %v420 = vunpack.c.l.b16 %v40
  %v421 = vunpack.c.h.b16 %v40
  %v422 = vunpack.c.l.b16 %v41
  %v423 = vunpack.c.l.b16 %v42
  %v424 = vunpack.c.h.b16 %v42
  %v425 = vunpack.c.l.b16 %v43
  %v426 = vunpack.c.h.b16 %v43
  %v427 = vunpack.c.l.b16 %v44
  %v428 = vunpack.c.l.b16 %v45
  %v429 = vunpack.c.h.b16 %v45
  %v430 = vunpack.c.l.b16 %v46
  %v431 = vunpack.c.h.b16 %v46
  %v432 = vunpack.c.l.b16 %v47
  %v433 = vunpack.c.l.b16 %v48
  %v434 = vunpack.c.h.b16 %v48
  %v435 = vunpack.c.l.b16 %v49
  %v436 = vunpack.c.h.b16 %v49
  %v437 = vunpack.c.l.b16 %v50
  %v438 = vunpack.c.l.b16 %v51
  %v439 = vunpack.c.h.b16 %v51
  %v440 = vunpack.c.l.b16 %v52
  %v441 = vunpack.c.h.b16 %v52
  %v442 = vunpack.c.l.b16 %v53
  %v443 = vunpack.c.l.b16 %v54
  %v444 = vunpack.c.h.b16 %v54
  %v445 = vunpack.c.l.b16 %v55
  %v446 = vunpack.c.h.b16 %v55
  %v447 = vunpack.c.l.b16 %v56
  %v448 = vunpack.c.l.b16 %v57
  %v449 = vunpack.c.h.b16 %v57
  %v450 = vunpack.c.l.b16 %v58
  %v451 = vunpack.c.h.b16 %v58
  %v452 = vunpack.c.l.b16 %v59
  %v453 = vunpack.c.l.b16 %v60
  %v454 = vunpack.c.h.b16 %v60
  %v455 = vunpack.c.l.b16 %v61
  %v456 = vunpack.c.h.b16 %v61
  %v457 = vunpack.c.l.b16 %v62
  %v458 = vunpack.c.l.b16 %v63
  %v459 = vunpack.c.h.b16 %v63
  %v460 = vunpack.c.l.b16 %v64
  %v461 = vunpack.c.h.b16 %v64
  %v462 = vunpack.c.l.b16 %v65
  %v463 = vunpack.c.l.b16 %v66
  %v464 = vunpack.c.h.b16 %v66
  %v465 = vunpack.c.l.b16 %v67
  %v466 = vunpack.c.h.b16 %v67
  %v467 = vunpack.c.l.b16 %v68
  %v468 = vunpack.c.l.b16 %v69
  %v469 = vunpack.c.h.b16 %v69
  %v470 = vunpack.c.l.b16 %v70
  %v471 = vunpack.c.h.b16 %v70
  %v472 = vunpack.c.l.b16 %v71
  %v473 = vunpack.c.l.b16 %v72
  %v474 = vunpack.c.h.b16 %v72
  %v475 = vunpack.c.l.b16 %v73
  %v476 = vunpack.c.h.b16 %v73
  %v477 = vunpack.c.l.b16 %v74
  %v478 = vunpack.c.l.b16 %v75
  %v479 = vunpack.c.h.b16 %v75
  %v480 = vunpack.c.l.b16 %v76
  %v481 = vunpack.c.h.b16 %v76
  %v482 = vunpack.c.l.b16 %v77
  %v483 = vunpack.c.l.b16 %v78
  %v484 = vunpack.c.h.b16 %v78
  %v485 = vunpack.c.l.b16 %v79
  %v486 = vunpack.c.h.b16 %v79
  %v487 = vunpack.c.l.b16 %v80
  %v488 = vunpack.c.l.b16 %v81
  %v489 = vunpack.c.h.b16 %v81
  %v490 = vunpack.c.l.b16 %v82
  %v491 = vunpack.c.h.b16 %v82
  %v492 = vunpack.c.l.b16 %v83
  %v493 = vunpack.c.l.b16 %v84
  %v494 = vunpack.c.h.b16 %v84
  %v495 = vunpack.c.l.b16 %v85
  %v496 = vunpack.c.h.b16 %v85
  %v497 = vunpack.c.l.b16 %v86
  %v498 = vunpack.c.l.b16 %v87
  %v499 = vunpack.c.h.b16 %v87
  %v500 = vunpack.c.l.b16 %v88
  %v501 = vunpack.c.h.b16 %v88
  %v502 = vunpack.c.l.b16 %v89
  %v503 = vunpack.c.l.b16 %v90
  %v504 = vunpack.c.h.b16 %v90
  %v505 = vunpack.c.l.b16 %v91
  %v506 = vunpack.c.h.b16 %v91
  %v507 = vunpack.c.l.b16 %v92
  %v508 = vunpack.c.l.b16 %v93
  %v509 = vunpack.c.h.b16 %v93
  %v510 = vunpack.c.l.b16 %v94
  %v511 = vunpack.c.h.b16 %v94
  %v512 = vunpack.c.l.b16 %v95
  %v513 = vunpack.c.l.b16 %v96
  %v514 = vunpack.c.h.b16 %v96
  %v515 = vunpack.c.l.b16 %v97
  %v516 = vunpack.c.h.b16 %v97
  %v517 = vunpack.c.l.b16 %v98
  %v518 = vunpack.c.l.b16 %v99
  %v519 = vunpack.c.h.b16 %v99
  %v520 = vunpack.c.l.b16 %v100
  %v521 = vunpack.c.h.b16 %v100
  %v522 = vunpack.c.l.b16 %v101
  %v523 = vunpack.c.l.b16 %v102
  %v524 = vunpack.c.h.b16 %v102
  %v525 = vunpack.c.l.b16 %v103
  %v526 = vunpack.c.h.b16 %v103
  %v527 = vunpack.c.l.b16 %v104
  %v528 = vunpack.c.l.b16 %v105
  %v529 = vunpack.c.h.b16 %v105
  %v530 = vunpack.c.l.b16 %v106
  %v531 = vunpack.c.h.b16 %v106
  %v532 = vunpack.c.l.b16 %v107
  %v533 = vunpack.c.l.b16 %v108
  %v534 = vunpack.c.h.b16 %v108
  %v535 = vunpack.c.l.b16 %v109
  %v536 = vunpack.c.h.b16 %v109
  %v537 = vunpack.c.l.b16 %v110
  %v538 = vunpack.c.l.b16 %v111
  %v539 = vunpack.c.h.b16 %v111
  %v540 = vunpack.c.l.b16 %v112
  %v541 = vunpack.c.h.b16 %v112
  %v542 = vunpack.c.l.b16 %v113
  %v543 = vunpack.c.l.b16 %v114
  %v544 = vunpack.c.h.b16 %v114
  %v545 = vunpack.c.l.b16 %v115
  %v546 = vunpack.c.h.b16 %v115
  %v547 = vunpack.c.l.b16 %v116
  %v548 = vunpack.c.l.b16 %v117
  %v549 = vunpack.c.h.b16 %v117
  %v550 = vunpack.c.l.b16 %v118
  %v551 = vunpack.c.h.b16 %v118
  %v552 = vunpack.c.l.b16 %v119
  %v553 = vunpack.c.l.b16 %v120
  %v554 = vunpack.c.h.b16 %v120
  %v555 = vunpack.c.l.b16 %v121
  %v556 = vunpack.c.h.b16 %v121
  %v557 = vunpack.c.l.b16 %v122
  %v558 = vunpack.c.l.b16 %v123
  %v559 = vunpack.c.h.b16 %v123
  %v560 = vunpack.c.l.b16 %v124
  %v561 = vunpack.c.h.b16 %v124
  %v562 = vunpack.c.l.b16 %v125
  %v563 = vunpack.c.l.b16 %v126
  %v564 = vunpack.c.h.b16 %v126
  %v565 = vunpack.c.l.b16 %v127
  %v566 = vunpack.c.h.b16 %v127
  %v567 = vunpack.c.l.b16 %v128
  %v568 = vunpack.c.l.b16 %v129
  %v569 = vunpack.c.h.b16 %v129
  %v570 = vunpack.c.l.b16 %v130
  %v571 = vunpack.c.h.b16 %v130
  %v572 = vunpack.c.l.b16 %v131
  %v573 = vunpack.c.l.b16 %v132
  %v574 = vunpack.c.h.b16 %v132
  %v575 = vunpack.c.l.b16 %v133
  %v576 = vunpack.c.h.b16 %v133
  %v577 = vunpack.c.l.b16 %v134
  %v578 = vunpack.c.l.b16 %v135
  %v579 = vunpack.c.h.b16 %v135
  %v580 = vunpack.c.l.b16 %v136
  %v581 = vunpack.c.h.b16 %v136
  %v582 = vunpack.c.l.b16 %v137
  %v583 = vunpack.c.l.b16 %v138
  %v584 = vunpack.c.h.b16 %v138
  %v585 = vunpack.c.l.b16 %v139
  %v586 = vunpack.c.h.b16 %v139
  %v587 = vunpack.c.l.b16 %v140
  %v588 = vunpack.c.l.b16 %v141
  %v589 = vunpack.c.h.b16 %v141
  %v590 = vunpack.c.l.b16 %v142
  %v591 = vunpack.c.h.b16 %v142
  %v592 = vunpack.c.l.b16 %v143
  %v593 = vunpack.c.l.b16 %v144
  %v594 = vunpack.c.h.b16 %v144
  %v595 = vunpack.c.l.b16 %v145
  %v596 = vunpack.c.h.b16 %v145
  %v597 = vunpack.c.l.b16 %v146
  %v598 = vunpack.c.l.b16 %v147
  %v599 = vunpack.c.h.b16 %v147
  %v600 = vunpack.c.l.b16 %v148
  %v601 = vunpack.c.h.b16 %v148
  %v602 = vunpack.c.l.b16 %v149
  %v603 = vunpack.c.l.b16 %v150
  %v604 = vunpack.c.h.b16 %v150
  %v605 = vunpack.c.l.b16 %v151
  %v606 = vunpack.c.h.b16 %v151
  %v607 = vunpack.c.l.b16 %v152
  %v608 = vunpack.c.l.b16 %v153
  %v609 = vunpack.c.h.b16 %v153
  %v610 = vunpack.c.l.b16 %v154
  %v611 = vunpack.c.h.b16 %v154
  %v612 = vunpack.c.l.b16 %v155
  %v613 = vunpack.c.l.b16 %v156
  %v614 = vunpack.c.h.b16 %v156
  %v615 = vunpack.c.l.b16 %v157
  %v616 = vunpack.c.h.b16 %v157
  %v617 = vunpack.c.l.b16 %v158
  %v618 = vunpack.c.l.b16 %v159
  %v619 = vunpack.c.h.b16 %v159
  %v620 = vunpack.c.l.b16 %v160
  %v621 = vunpack.c.h.b16 %v160
  %v622 = vunpack.c.l.b16 %v161
  %v623 = vunpack.c.l.b16 %v162
  %v624 = vunpack.c.h.b16 %v162
  %v625 = vunpack.c.l.b16 %v163
  %v626 = vunpack.c.h.b16 %v163
  %v627 = vunpack.c.l.b16 %v164
  %v628 = vpack.c.b16 %v393, %v388
  %v629 = vpack.c.b16 %v394, %v389
  %v630 = vpack.c.b16 %v395, %v390
  %v631 = vpack.c.b16 %v396, %v391
  %v632 = vpack.c.b16 %v397, %v392
  %v633 = vpack.c.b16 %v403, %v398
  %v634 = vpack.c.b16 %v404, %v399
  %v635 = vpack.c.b16 %v405, %v400
  %v636 = vpack.c.b16 %v406, %v401
  %v637 = vpack.c.b16 %v407, %v402
  %v638 = vpack.c.b16 %v413, %v408
  %v639 = vpack.c.b16 %v414, %v409
  %v640 = vpack.c.b16 %v415, %v410
  %v641 = vpack.c.b16 %v416, %v411
  %v642 = vpack.c.b16 %v417, %v412
  %v643 = vpack.c.b16 %v423, %v418
  %v644 = vpack.c.b16 %v424, %v419
  %v645 = vpack.c.b16 %v425, %v420
  %v646 = vpack.c.b16 %v426, %v421
  %v647 = vpack.c.b16 %v427, %v422
  %v648 = vpack.c.b16 %v433, %v428
  %v649 = vpack.c.b16 %v434, %v429
  %v650 = vpack.c.b16 %v435, %v430
  %v651 = vpack.c.b16 %v436, %v431
  %v652 = vpack.c.b16 %v437, %v432
  %v653 = vpack.c.b16 %v443, %v438
  %v654 = vpack.c.b16 %v444, %v439
  %v655 = vpack.c.b16 %v445, %v440
  %v656 = vpack.c.b16 %v446, %v441
  %v657 = vpack.c.b16 %v447, %v442
  %v658 = vpack.c.b16 %v453, %v448
  %v659 = vpack.c.b16 %v454, %v449
  %v660 = vpack.c.b16 %v455, %v450
  %v661 = vpack.c.b16 %v456, %v451
  %v662 = vpack.c.b16 %v457, %v452
  %v663 = vpack.c.b16 %v463, %v458
  %v664 = vpack.c.b16 %v464, %v459
  %v665 = vpack.c.b16 %v465, %v460
  %v666 = vpack.c.b16 %v466, %v461
  %v667 = vpack.c.b16 %v467, %v462
  %v668 = vpack.c.b16 %v473, %v468
  %v669 = vpack.c.b16 %v474, %v469
  %v670 = vpack.c.b16 %v475, %v470
  %v671 = vpack.c.b16 %v476, %v471
  %v672 = vpack.c.b16 %v477, %v472
  %v673 = vpack.c.b16 %v483, %v478
  %v674 = vpack.c.b16 %v484, %v479
  %v675 = vpack.c.b16 %v485, %v480
  %v676 = vpack.c.b16 %v486, %v481
  %v677 = vpack.c.b16 %v487, %v482
  %v678 = vpack.c.b16 %v493, %v488
  %v679 = vpack.c.b16 %v494, %v489
  %v680 = vpack.c.b16 %v495, %v490
  %v681 = vpack.c.b16 %v496, %v491
  %v682 = vpack.c.b16 %v497, %v492
  %v683 = vpack.c.b16 %v503, %v498
  %v684 = vpack.c.b16 %v504, %v499
  %v685 = vpack.c.b16 %v505, %v500
  %v686 = vpack.c.b16 %v506, %v501
  %v687 = vpack.c.b16 %v507, %v502
  %v688 = vpack.c.b16 %v513, %v508
  %v689 = vpack.c.b16 %v514, %v509
  %v690 = vpack.c.b16 %v515, %v510
  %v691 = vpack.c.b16 %v516, %v511
  %v692 = vpack.c.b16 %v517, %v512
  %v693 = vpack.c.b16 %v523, %v518
  %v694 = vpack.c.b16 %v524, %v519
  %v695 = vpack.c.b16 %v525, %v520
  %v696 = vpack.c.b16 %v526, %v521
  %v697 = vpack.c.b16 %v527, %v522
  %v698 = vpack.c.b16 %v533, %v528
  %v699 = vpack.c.b16 %v534, %v529
  %v700 = vpack.c.b16 %v535, %v530
  %v701 = vpack.c.b16 %v536, %v531
  %v702 = vpack.c.b16 %v537, %v532
  %v703 = vpack.c.b16 %v543, %v538
  %v704 = vpack.c.b16 %v544, %v539
  %v705 = vpack.c.b16 %v545, %v540
  %v706 = vpack.c.b16 %v546, %v541
  %v707 = vpack.c.b16 %v547, %v542
  %v708 = vpack.c.b16 %v553, %v548
  %v709 = vpack.c.b16 %v554, %v549
  %v710 = vpack.c.b16 %v555, %v550
  %v711 = vpack.c.b16 %v556, %v551
  %v712 = vpack.c.b16 %v557, %v552
  %v713 = vpack.c.b16 %v563, %v558
  %v714 = vpack.c.b16 %v564, %v559
  %v715 = vpack.c.b16 %v565, %v560
  %v716 = vpack.c.b16 %v566, %v561
  %v717 = vpack.c.b16 %v567, %v562
  %v718 = vpack.c.b16 %v573, %v568
  %v719 = vpack.c.b16 %v574, %v569
  %v720 = vpack.c.b16 %v575, %v570
  %v721 = vpack.c.b16 %v576, %v571
  %v722 = vpack.c.b16 %v577, %v572
  %v723 = vpack.c.b16 %v583, %v578
  %v724 = vpack.c.b16 %v584, %v579
  %v725 = vpack.c.b16 %v585, %v580
  %v726 = vpack.c.b16 %v586, %v581
  %v727 = vpack.c.b16 %v587, %v582
  %v728 = vpack.c.b16 %v593, %v588
  %v729 = vpack.c.b16 %v594, %v589
  %v730 = vpack.c.b16 %v595, %v590
  %v731 = vpack.c.b16 %v596, %v591
  %v732 = vpack.c.b16 %v597, %v592
  %v733 = vpack.c.b16 %v603, %v598
  %v734 = vpack.c.b16 %v604, %v599
  %v735 = vpack.c.b16 %v605, %v600
  %v736 = vpack.c.b16 %v606, %v601
  %v737 = vpack.c.b16 %v607, %v602
  %v738 = vpack.c.b16 %v613, %v608
  %v739 = vpack.c.b16 %v614, %v609
  %v740 = vpack.c.b16 %v615, %v610
  %v741 = vpack.c.b16 %v616, %v611
  %v742 = vpack.c.b16 %v617, %v612
  %v743 = vpack.c.b16 %v623, %v618
  %v744 = vpack.c.b16 %v624, %v619
  %v745 = vpack.c.b16 %v625, %v620
  %v746 = vpack.c.b16 %v626, %v621
  %v747 = vpack.c.b16 %v627, %v622
  %v916 = vunpack.c.l.b16 %v165
  %v917 = vunpack.c.l.b16 %v166
  %v918 = vunpack.c.l.b16 %v167
  %v919 = vunpack.c.l.b16 %v168
  %v920 = vunpack.c.l.b16 %v169
  %v921 = vunpack.c.l.b16 %v170
  %v922 = vunpack.c.l.b16 %v171
  %v923 = vunpack.c.l.b16 %v172
  %v924 = vunpack.c.l.b16 %v173
  %v925 = vunpack.c.l.b16 %v174
  %v926 = vunpack.c.l.b16 %v175
  %v927 = vunpack.c.l.b16 %v176
  %v928 = vunpack.c.l.b16 %v177
  %v929 = vunpack.c.l.b16 %v178
  %v930 = vunpack.c.l.b16 %v179
  %v931 = vunpack.c.l.b16 %v180
  %v932 = vunpack.c.l.b16 %v181
  %v933 = vunpack.c.l.b16 %v182
  %v934 = vunpack.c.l.b16 %v183
  %v935 = vunpack.c.l.b16 %v184
  %v936 = vunpack.c.l.b16 %v185
  %v937 = vunpack.c.l.b16 %v186
  %v938 = vunpack.c.l.b16 %v187
  %v939 = vunpack.c.l.b16 %v188
  %v940 = vunpack.c.l.b16 %v189
  %v941 = vunpack.c.l.b16 %v190
  %v942 = vunpack.c.l.b16 %v191
  %v943 = vunpack.c.l.b16 %v192
  %v944 = vunpack.c.l.b16 %v193
  %v945 = vunpack.c.l.b16 %v194
  %v946 = vunpack.c.l.b16 %v195
  %v947 = vunpack.c.l.b16 %v196
  %v948 = vunpack.c.l.b16 %v197
  %v949 = vunpack.c.l.b16 %v198
  %v950 = vunpack.c.l.b16 %v199
  %v951 = vunpack.c.l.b16 %v200
  %v952 = vunpack.c.l.b16 %v201
  %v953 = vunpack.c.l.b16 %v202
  %v954 = vunpack.c.l.b16 %v203
  %v955 = vunpack.c.l.b16 %v204
  %v956 = vunpack.c.l.b16 %v205
  %v957 = vunpack.c.l.b16 %v206
  %v958 = vunpack.c.l.b16 %v207
  %v959 = vunpack.c.l.b16 %v208
  %v960 = vunpack.c.l.b16 %v209
  %v961 = vunpack.c.l.b16 %v210
  %v962 = vunpack.c.l.b16 %v211
  %v963 = vunpack.c.l.b16 %v212
  %v964 = vunpack.c.l.b16 %v213
  %v965 = vunpack.c.l.b16 %v214
  %v966 = vunpack.c.l.b16 %v215
  %v967 = vunpack.c.l.b16 %v216
  %v968 = vunpack.c.l.b16 %v217
  %v969 = vunpack.c.l.b16 %v218
  %v970 = vunpack.c.l.b16 %v219
  %v971 = vunpack.c.l.b16 %v220
  %v972 = vunpack.c.l.b16 %v221
  %v973 = vunpack.c.l.b16 %v222
  %v974 = vunpack.c.l.b16 %v223
  %v975 = vunpack.c.l.b16 %v224
  %v976 = vunpack.c.l.b16 %v225
  %v977 = vunpack.c.l.b16 %v226
  %v978 = vunpack.c.l.b16 %v227
  %v979 = vunpack.c.l.b16 %v228
  %v980 = vunpack.c.l.b16 %v229
  %v981 = vunpack.c.l.b16 %v230
  %v982 = vunpack.c.l.b16 %v231
  %v983 = vunpack.c.l.b16 %v232
  %v984 = vunpack.c.l.b16 %v233
  %v985 = vunpack.c.l.b16 %v234
  %v986 = vunpack.c.l.b16 %v235
  %v987 = vunpack.c.l.b16 %v236
  %v988 = vpack.c.b16 %v917, %v916
  %v989 = vpack.c.b16 %v919, %v918
  %v990 = vpack.c.b16 %v921, %v920
  %v991 = vpack.c.b16 %v923, %v922
  %v992 = vpack.c.b16 %v925, %v924
  %v993 = vpack.c.b16 %v927, %v926
  %v994 = vpack.c.b16 %v929, %v928
  %v995 = vpack.c.b16 %v931, %v930
  %v996 = vpack.c.b16 %v933, %v932
  %v997 = vpack.c.b16 %v935, %v934
  %v998 = vpack.c.b16 %v937, %v936
  %v999 = vpack.c.b16 %v939, %v938
  %v1000 = vpack.c.b16 %v941, %v940
  %v1001 = vpack.c.b16 %v943, %v942
  %v1002 = vpack.c.b16 %v945, %v944
  %v1003 = vpack.c.b16 %v947, %v946
  %v1004 = vpack.c.b16 %v949, %v948
  %v1005 = vpack.c.b16 %v951, %v950
  %v1006 = vpack.c.b16 %v953, %v952
  %v1007 = vpack.c.b16 %v955, %v954
  %v1008 = vpack.c.b16 %v957, %v956
  %v1009 = vpack.c.b16 %v959, %v958
  %v1010 = vpack.c.b16 %v961, %v960
  %v1011 = vpack.c.b16 %v963, %v962
  %v1012 = vpack.c.b16 %v965, %v964
  %v1013 = vpack.c.b16 %v967, %v966
  %v1014 = vpack.c.b16 %v969, %v968
  %v1015 = vpack.c.b16 %v971, %v970
  %v1016 = vpack.c.b16 %v973, %v972
  %v1017 = vpack.c.b16 %v975, %v974
  %v1018 = vpack.c.b16 %v977, %v976
  %v1019 = vpack.c.b16 %v979, %v978
  %v1020 = vpack.c.b16 %v981, %v980
  %v1021 = vpack.c.b16 %v983, %v982
  %v1022 = vpack.c.b16 %v985, %v984
  %v1023 = vpack.c.b16 %v987, %v986
  %vm1060 = vcmask 523264
  %v1062 = vsel %vm1060, %v632, 0
  %v1065 = vsel %vm1060, %v637, 0
  %v1068 = vsel %vm1060, %v642, 0
  %v1071 = vsel %vm1060, %v647, 0
  %v1074 = vsel %vm1060, %v652, 0
  %v1077 = vsel %vm1060, %v657, 0
  %v1080 = vsel %vm1060, %v662, 0
  %v1083 = vsel %vm1060, %v667, 0
  %v1086 = vsel %vm1060, %v672, 0
  %v1089 = vsel %vm1060, %v677, 0
  %v1092 = vsel %vm1060, %v682, 0
  %v1095 = vsel %vm1060, %v687, 0
  %v1098 = vsel %vm1060, %v692, 0
  %v1101 = vsel %vm1060, %v697, 0
  %v1104 = vsel %vm1060, %v702, 0
  %v1107 = vsel %vm1060, %v707, 0
  %v1110 = vsel %vm1060, %v712, 0
  %v1113 = vsel %vm1060, %v717, 0
  %v1116 = vsel %vm1060, %v722, 0
  %v1119 = vsel %vm1060, %v727, 0
  %v1122 = vsel %vm1060, %v732, 0
  %v1125 = vsel %vm1060, %v737, 0
  %v1128 = vsel %vm1060, %v742, 0
  %v1131 = vsel %vm1060, %v747, 0
  %1133 = vmatprep.subr.bf16.mxu0 0
  %1134 = vmatpush1.bf16.msra.mxu0 %v988
  %1135 = vmatprep.subr.bf16.mxu0 0
  %1136 = vmatpush1.bf16.msra.mxu0 %v989
  %1137 = vmatprep.subr.bf16.mxu0 0
  %1138 = vmatpush1.bf16.msra.mxu0 %v990
  %1139 = vmatprep.subr.bf16.mxu0 0
  %1140 = vmatpush1.bf16.msra.mxu0 %v991
  %1141 = vmatprep.subr.bf16.mxu0 0
  %1142 = vmatpush1.bf16.msra.mxu0 %v992
  %1143 = vmatprep.subr.bf16.mxu0 0
  %1144 = vmatpush1.bf16.msra.mxu0 %v993
  %1145 = vmatprep.subr.bf16.mxu0 0
  %1146 = vmatpush1.bf16.msra.mxu0 %v994
  %1147 = vmatprep.subr.bf16.mxu0 0
  %1148 = vmatpush1.bf16.msra.mxu0 %v995
  %1149 = vmatprep.subr.bf16.mxu0 0
  %1150 = vmatpush1.bf16.msra.mxu0 %v996
  %1151 = vmatprep.subr.bf16.mxu0 0
  %1152 = vmatpush1.bf16.msra.mxu0 %v997
  %1153 = vmatprep.subr.bf16.mxu0 0
  %1154 = vmatpush1.bf16.msra.mxu0 %v998
  %1155 = vmatprep.subr.bf16.mxu0 0
  %1156 = vmatpush1.bf16.msra.mxu0 %v999
  %1157 = vmatprep.subr.bf16.mxu0 0
  %1158 = vmatpush1.bf16.msra.mxu0 %v1000
  %1159 = vmatprep.subr.bf16.mxu0 0
  %1160 = vmatpush1.bf16.msra.mxu0 %v1001
  %1161 = vmatprep.subr.bf16.mxu0 0
  %1162 = vmatpush1.bf16.msra.mxu0 %v1002
  %1163 = vmatprep.subr.bf16.mxu0 0
  %1164 = vmatpush1.bf16.msra.mxu0 %v1003
  %1165 = vmatprep.mubr.bf16.mxu0 %v629
  %1166 = vmatmul.mubr.bf16.gmra.mrb[0].mxu0 %v628
  %v1167 = vpop.f32.mrb[0].mxu0
  %v1168 = vadd.f32 %v242, %v1167
  %v1169 = vpop.f32.mrb[0].mxu0
  %v1170 = vpop.f32.mrb[0].mxu0
  %v1171 = vadd.f32 %v242, %v1170
  %v1172 = vpop.f32.mrb[0].mxu0
  %1173 = vmatprep.mubr.bf16.mxu0 %v634
  %1174 = vmatmul.mubr.bf16.gmra.mrb[0].mxu0 %v633
  %v1175 = vpop.f32.mrb[0].mxu0
  %v1176 = vadd.f32 %v242, %v1175
  %v1177 = vpop.f32.mrb[0].mxu0
  %v1178 = vpop.f32.mrb[0].mxu0
  %v1179 = vadd.f32 %v242, %v1178
  %v1180 = vpop.f32.mrb[0].mxu0
  %1181 = vmatprep.mubr.bf16.mxu0 %v639
  %1182 = vmatmul.mubr.bf16.gmra.mrb[0].mxu0 %v638
  %v1183 = vpop.f32.mrb[0].mxu0
  %v1184 = vadd.f32 %v242, %v1183
  %v1185 = vpop.f32.mrb[0].mxu0
  %v1186 = vpop.f32.mrb[0].mxu0
  %v1187 = vadd.f32 %v242, %v1186
  %v1188 = vpop.f32.mrb[0].mxu0
  %1189 = vmatprep.mubr.bf16.mxu0 %v644
  %1190 = vmatmul.mubr.bf16.gmra.mrb[0].mxu0 %v643
  %v1191 = vpop.f32.mrb[0].mxu0
  %v1192 = vadd.f32 %v242, %v1191
  %v1193 = vpop.f32.mrb[0].mxu0
  %v1194 = vpop.f32.mrb[0].mxu0
  %v1195 = vadd.f32 %v242, %v1194
  %v1196 = vpop.f32.mrb[0].mxu0
  %1197 = vmatprep.mubr.bf16.mxu0 %v649
  %1198 = vmatmul.mubr.bf16.gmra.mrb[0].mxu0 %v648
  %v1199 = vpop.f32.mrb[0].mxu0
  %v1200 = vadd.f32 %v242, %v1199
  %v1201 = vpop.f32.mrb[0].mxu0
  %v1202 = vpop.f32.mrb[0].mxu0
  %v1203 = vadd.f32 %v242, %v1202
  %v1204 = vpop.f32.mrb[0].mxu0
  %1205 = vmatprep.mubr.bf16.mxu0 %v654
  %1206 = vmatmul.mubr.bf16.gmra.mrb[0].mxu0 %v653
  %v1207 = vpop.f32.mrb[0].mxu0
  %v1208 = vadd.f32 %v242, %v1207
  %v1209 = vpop.f32.mrb[0].mxu0
  %v1210 = vpop.f32.mrb[0].mxu0
  %v1211 = vadd.f32 %v242, %v1210
  %v1212 = vpop.f32.mrb[0].mxu0
  %1213 = vmatprep.mubr.bf16.mxu0 %v659
  %1214 = vmatmul.mubr.bf16.gmra.mrb[0].mxu0 %v658
  %v1215 = vpop.f32.mrb[0].mxu0
  %v1216 = vadd.f32 %v242, %v1215
  %v1217 = vpop.f32.mrb[0].mxu0
  %v1218 = vpop.f32.mrb[0].mxu0
  %v1219 = vadd.f32 %v242, %v1218
  %v1220 = vpop.f32.mrb[0].mxu0
  %1221 = vmatprep.mubr.bf16.mxu0 %v664
  %1222 = vmatmul.mubr.bf16.gmra.mrb[0].mxu0 %v663
  %v1223 = vpop.f32.mrb[0].mxu0
  %v1224 = vadd.f32 %v242, %v1223
  %v1225 = vpop.f32.mrb[0].mxu0
  %v1226 = vpop.f32.mrb[0].mxu0
  %v1227 = vadd.f32 %v242, %v1226
  %v1228 = vpop.f32.mrb[0].mxu0
  %1229 = vmatprep.mubr.bf16.mxu0 %v669
  %1230 = vmatmul.mubr.bf16.gmra.mrb[0].mxu0 %v668
  %v1231 = vpop.f32.mrb[0].mxu0
  %v1232 = vadd.f32 %v242, %v1231
  %v1233 = vpop.f32.mrb[0].mxu0
  %v1234 = vpop.f32.mrb[0].mxu0
  %v1235 = vadd.f32 %v242, %v1234
  %v1236 = vpop.f32.mrb[0].mxu0
  %1237 = vmatprep.mubr.bf16.mxu0 %v674
  %1238 = vmatmul.mubr.bf16.gmra.mrb[0].mxu0 %v673
  %v1239 = vpop.f32.mrb[0].mxu0
  %v1240 = vadd.f32 %v242, %v1239
  %v1241 = vpop.f32.mrb[0].mxu0
  %v1242 = vpop.f32.mrb[0].mxu0
  %v1243 = vadd.f32 %v242, %v1242
  %v1244 = vpop.f32.mrb[0].mxu0
  %1245 = vmatprep.mubr.bf16.mxu0 %v679
  %1246 = vmatmul.mubr.bf16.gmra.mrb[0].mxu0 %v678
  %v1247 = vpop.f32.mrb[0].mxu0
  %v1248 = vadd.f32 %v242, %v1247
  %v1249 = vpop.f32.mrb[0].mxu0
  %v1250 = vpop.f32.mrb[0].mxu0
  %v1251 = vadd.f32 %v242, %v1250
  %v1252 = vpop.f32.mrb[0].mxu0
  %1253 = vmatprep.mubr.bf16.mxu0 %v684
  %1254 = vmatmul.mubr.bf16.gmra.mrb[0].mxu0 %v683
  %v1255 = vpop.f32.mrb[0].mxu0
  %v1256 = vadd.f32 %v242, %v1255
  %v1257 = vpop.f32.mrb[0].mxu0
  %v1258 = vpop.f32.mrb[0].mxu0
  %v1259 = vadd.f32 %v242, %v1258
  %v1260 = vpop.f32.mrb[0].mxu0
  %1261 = vmatprep.mubr.bf16.mxu0 %v689
  %1262 = vmatmul.mubr.bf16.gmra.mrb[0].mxu0 %v688
  %v1263 = vpop.f32.mrb[0].mxu0
  %v1264 = vadd.f32 %v242, %v1263
  %v1265 = vpop.f32.mrb[0].mxu0
  %v1266 = vpop.f32.mrb[0].mxu0
  %v1267 = vadd.f32 %v242, %v1266
  %v1268 = vpop.f32.mrb[0].mxu0
  %1269 = vmatprep.mubr.bf16.mxu0 %v694
  %1270 = vmatmul.mubr.bf16.gmra.mrb[0].mxu0 %v693
  %v1271 = vpop.f32.mrb[0].mxu0
  %v1272 = vadd.f32 %v242, %v1271
  %v1273 = vpop.f32.mrb[0].mxu0
  %v1274 = vpop.f32.mrb[0].mxu0
  %v1275 = vadd.f32 %v242, %v1274
  %v1276 = vpop.f32.mrb[0].mxu0
  %1277 = vmatprep.mubr.bf16.mxu0 %v699
  %1278 = vmatmul.mubr.bf16.gmra.mrb[0].mxu0 %v698
  %v1279 = vpop.f32.mrb[0].mxu0
  %v1280 = vadd.f32 %v242, %v1279
  %v1281 = vpop.f32.mrb[0].mxu0
  %v1282 = vpop.f32.mrb[0].mxu0
  %v1283 = vadd.f32 %v242, %v1282
  %v1284 = vpop.f32.mrb[0].mxu0
  %1285 = vmatprep.mubr.bf16.mxu0 %v704
  %1286 = vmatmul.mubr.bf16.gmra.mrb[0].mxu0 %v703
  %v1287 = vpop.f32.mrb[0].mxu0
  %v1288 = vadd.f32 %v242, %v1287
  %v1289 = vpop.f32.mrb[0].mxu0
  %v1290 = vpop.f32.mrb[0].mxu0
  %v1291 = vadd.f32 %v242, %v1290
  %v1292 = vpop.f32.mrb[0].mxu0
  %1293 = vmatprep.mubr.bf16.mxu0 %v709
  %1294 = vmatmul.mubr.bf16.gmra.mrb[0].mxu0 %v708
  %v1295 = vpop.f32.mrb[0].mxu0
  %v1296 = vadd.f32 %v242, %v1295
  %v1297 = vpop.f32.mrb[0].mxu0
  %v1298 = vpop.f32.mrb[0].mxu0
  %v1299 = vadd.f32 %v242, %v1298
  %v1300 = vpop.f32.mrb[0].mxu0
  %1301 = vmatprep.mubr.bf16.mxu0 %v714
  %1302 = vmatmul.mubr.bf16.gmra.mrb[0].mxu0 %v713
  %v1303 = vpop.f32.mrb[0].mxu0
  %v1304 = vadd.f32 %v242, %v1303
  %v1305 = vpop.f32.mrb[0].mxu0
  %v1306 = vpop.f32.mrb[0].mxu0
  %v1307 = vadd.f32 %v242, %v1306
  %v1308 = vpop.f32.mrb[0].mxu0
  %1309 = vmatprep.mubr.bf16.mxu0 %v719
  %1310 = vmatmul.mubr.bf16.gmra.mrb[0].mxu0 %v718
  %v1311 = vpop.f32.mrb[0].mxu0
  %v1312 = vadd.f32 %v242, %v1311
  %v1313 = vpop.f32.mrb[0].mxu0
  %v1314 = vpop.f32.mrb[0].mxu0
  %v1315 = vadd.f32 %v242, %v1314
  %v1316 = vpop.f32.mrb[0].mxu0
  %1317 = vmatprep.mubr.bf16.mxu0 %v724
  %1318 = vmatmul.mubr.bf16.gmra.mrb[0].mxu0 %v723
  %v1319 = vpop.f32.mrb[0].mxu0
  %v1320 = vadd.f32 %v242, %v1319
  %v1321 = vpop.f32.mrb[0].mxu0
  %v1322 = vpop.f32.mrb[0].mxu0
  %v1323 = vadd.f32 %v242, %v1322
  %v1324 = vpop.f32.mrb[0].mxu0
  %1325 = vmatprep.mubr.bf16.mxu0 %v729
  %1326 = vmatmul.mubr.bf16.gmra.mrb[0].mxu0 %v728
  %v1327 = vpop.f32.mrb[0].mxu0
  %v1328 = vadd.f32 %v242, %v1327
  %v1329 = vpop.f32.mrb[0].mxu0
  %v1330 = vpop.f32.mrb[0].mxu0
  %v1331 = vadd.f32 %v242, %v1330
  %v1332 = vpop.f32.mrb[0].mxu0
  %1333 = vmatprep.mubr.bf16.mxu0 %v734
  %1334 = vmatmul.mubr.bf16.gmra.mrb[0].mxu0 %v733
  %v1335 = vpop.f32.mrb[0].mxu0
  %v1336 = vadd.f32 %v242, %v1335
  %v1337 = vpop.f32.mrb[0].mxu0
  %v1338 = vpop.f32.mrb[0].mxu0
  %v1339 = vadd.f32 %v242, %v1338
  %v1340 = vpop.f32.mrb[0].mxu0
  %1341 = vmatprep.mubr.bf16.mxu0 %v739
  %1342 = vmatmul.mubr.bf16.gmra.mrb[0].mxu0 %v738
  %v1343 = vpop.f32.mrb[0].mxu0
  %v1344 = vadd.f32 %v242, %v1343
  %v1345 = vpop.f32.mrb[0].mxu0
  %v1346 = vpop.f32.mrb[0].mxu0
  %v1347 = vadd.f32 %v242, %v1346
  %v1348 = vpop.f32.mrb[0].mxu0
  %1349 = vmatprep.mubr.bf16.mxu0 %v744
  %1350 = vmatmul.mubr.bf16.gmra.mrb[0].mxu0 %v743
  %v1351 = vpop.f32.mrb[0].mxu0
  %v1352 = vadd.f32 %v242, %v1351
  %v1353 = vpop.f32.mrb[0].mxu0
  %v1354 = vpop.f32.mrb[0].mxu0
  %v1355 = vadd.f32 %v242, %v1354
  %v1356 = vpop.f32.mrb[0].mxu0
  %1357 = vdwg.mxu0
  %1358 = vmatprep.subr.bf16.mxu0 0
  %1359 = vmatpush1.bf16.msra.mxu0 %v1004
  %1360 = vmatprep.subr.bf16.mxu0 0
  %1361 = vmatpush1.bf16.msra.mxu0 %v1005
  %1362 = vmatprep.subr.bf16.mxu0 0
  %1363 = vmatpush1.bf16.msra.mxu0 %v1006
  %1364 = vmatprep.subr.bf16.mxu0 0
  %1365 = vmatpush1.bf16.msra.mxu0 %v1007
  %1366 = vmatprep.subr.bf16.mxu0 0
  %1367 = vmatpush1.bf16.msra.mxu0 %v1008
  %1368 = vmatprep.subr.bf16.mxu0 0
  %1369 = vmatpush1.bf16.msra.mxu0 %v1009
  %1370 = vmatprep.subr.bf16.mxu0 0
  %1371 = vmatpush1.bf16.msra.mxu0 %v1010
  %1372 = vmatprep.subr.bf16.mxu0 0
  %1373 = vmatpush1.bf16.msra.mxu0 %v1011
  %1374 = vmatprep.subr.bf16.mxu0 0
  %1375 = vmatpush1.bf16.msra.mxu0 %v1012
  %1376 = vmatprep.subr.bf16.mxu0 0
  %1377 = vmatpush1.bf16.msra.mxu0 %v1013
  %1378 = vmatprep.subr.bf16.mxu0 0
  %1379 = vmatpush1.bf16.msra.mxu0 %v1014
  %1380 = vmatprep.subr.bf16.mxu0 0
  %1381 = vmatpush1.bf16.msra.mxu0 %v1015
  %1382 = vmatprep.subr.bf16.mxu0 0
  %1383 = vmatpush1.bf16.msra.mxu0 %v1016
  %1384 = vmatprep.subr.bf16.mxu0 0
  %1385 = vmatpush1.bf16.msra.mxu0 %v1017
  %1386 = vmatprep.subr.bf16.mxu0 0
  %1387 = vmatpush1.bf16.msra.mxu0 %v1018
  %1388 = vmatprep.subr.bf16.mxu0 0
  %1389 = vmatpush1.bf16.msra.mxu0 %v1019
  %1390 = vmatprep.mubr.bf16.mxu0 %v631
  %1391 = vmatmul.mubr.bf16.gmra.mrb[0].mxu0 %v630
  %v1392 = vpop.f32.mrb[0].mxu0
  %v1393 = vadd.f32 %v1168, %v1392
  %v1394 = vpop.f32.mrb[0].mxu0
  %v1395 = vpop.f32.mrb[0].mxu0
  %v1396 = vadd.f32 %v1171, %v1395
  %v1397 = vpop.f32.mrb[0].mxu0
  %1398 = vmatprep.mubr.bf16.mxu0 %v636
  %1399 = vmatmul.mubr.bf16.gmra.mrb[0].mxu0 %v635
  %v1400 = vpop.f32.mrb[0].mxu0
  %v1401 = vadd.f32 %v1176, %v1400
  %v1402 = vpop.f32.mrb[0].mxu0
  %v1403 = vpop.f32.mrb[0].mxu0
  %v1404 = vadd.f32 %v1179, %v1403
  %v1405 = vpop.f32.mrb[0].mxu0
  %1406 = vmatprep.mubr.bf16.mxu0 %v641
  %1407 = vmatmul.mubr.bf16.gmra.mrb[0].mxu0 %v640
  %v1408 = vpop.f32.mrb[0].mxu0
  %v1409 = vadd.f32 %v1184, %v1408
  %v1410 = vpop.f32.mrb[0].mxu0
  %v1411 = vpop.f32.mrb[0].mxu0
  %v1412 = vadd.f32 %v1187, %v1411
  %v1413 = vpop.f32.mrb[0].mxu0
  %1414 = vmatprep.mubr.bf16.mxu0 %v646
  %1415 = vmatmul.mubr.bf16.gmra.mrb[0].mxu0 %v645
  %v1416 = vpop.f32.mrb[0].mxu0
  %v1417 = vadd.f32 %v1192, %v1416
  %v1418 = vpop.f32.mrb[0].mxu0
  %v1419 = vpop.f32.mrb[0].mxu0
  %v1420 = vadd.f32 %v1195, %v1419
  %v1421 = vpop.f32.mrb[0].mxu0
  %1422 = vmatprep.mubr.bf16.mxu0 %v651
  %1423 = vmatmul.mubr.bf16.gmra.mrb[0].mxu0 %v650
  %v1424 = vpop.f32.mrb[0].mxu0
  %v1425 = vadd.f32 %v1200, %v1424
  %v1426 = vpop.f32.mrb[0].mxu0
  %v1427 = vpop.f32.mrb[0].mxu0
  %v1428 = vadd.f32 %v1203, %v1427
  %v1429 = vpop.f32.mrb[0].mxu0
  %1430 = vmatprep.mubr.bf16.mxu0 %v656
  %1431 = vmatmul.mubr.bf16.gmra.mrb[0].mxu0 %v655
  %v1432 = vpop.f32.mrb[0].mxu0
  %v1433 = vadd.f32 %v1208, %v1432
  %v1434 = vpop.f32.mrb[0].mxu0
  %v1435 = vpop.f32.mrb[0].mxu0
  %v1436 = vadd.f32 %v1211, %v1435
  %v1437 = vpop.f32.mrb[0].mxu0
  %1438 = vmatprep.mubr.bf16.mxu0 %v661
  %1439 = vmatmul.mubr.bf16.gmra.mrb[0].mxu0 %v660
  %v1440 = vpop.f32.mrb[0].mxu0
  %v1441 = vadd.f32 %v1216, %v1440
  %v1442 = vpop.f32.mrb[0].mxu0
  %v1443 = vpop.f32.mrb[0].mxu0
  %v1444 = vadd.f32 %v1219, %v1443
  %v1445 = vpop.f32.mrb[0].mxu0
  %1446 = vmatprep.mubr.bf16.mxu0 %v666
  %1447 = vmatmul.mubr.bf16.gmra.mrb[0].mxu0 %v665
  %v1448 = vpop.f32.mrb[0].mxu0
  %v1449 = vadd.f32 %v1224, %v1448
  %v1450 = vpop.f32.mrb[0].mxu0
  %v1451 = vpop.f32.mrb[0].mxu0
  %v1452 = vadd.f32 %v1227, %v1451
  %v1453 = vpop.f32.mrb[0].mxu0
  %1454 = vmatprep.mubr.bf16.mxu0 %v671
  %1455 = vmatmul.mubr.bf16.gmra.mrb[0].mxu0 %v670
  %v1456 = vpop.f32.mrb[0].mxu0
  %v1457 = vadd.f32 %v1232, %v1456
  %v1458 = vpop.f32.mrb[0].mxu0
  %v1459 = vpop.f32.mrb[0].mxu0
  %v1460 = vadd.f32 %v1235, %v1459
  %v1461 = vpop.f32.mrb[0].mxu0
  %1462 = vmatprep.mubr.bf16.mxu0 %v676
  %1463 = vmatmul.mubr.bf16.gmra.mrb[0].mxu0 %v675
  %v1464 = vpop.f32.mrb[0].mxu0
  %v1465 = vadd.f32 %v1240, %v1464
  %v1466 = vpop.f32.mrb[0].mxu0
  %v1467 = vpop.f32.mrb[0].mxu0
  %v1468 = vadd.f32 %v1243, %v1467
  %v1469 = vpop.f32.mrb[0].mxu0
  %1470 = vmatprep.mubr.bf16.mxu0 %v681
  %1471 = vmatmul.mubr.bf16.gmra.mrb[0].mxu0 %v680
  %v1472 = vpop.f32.mrb[0].mxu0
  %v1473 = vadd.f32 %v1248, %v1472
  %v1474 = vpop.f32.mrb[0].mxu0
  %v1475 = vpop.f32.mrb[0].mxu0
  %v1476 = vadd.f32 %v1251, %v1475
  %v1477 = vpop.f32.mrb[0].mxu0
  %1478 = vmatprep.mubr.bf16.mxu0 %v686
  %1479 = vmatmul.mubr.bf16.gmra.mrb[0].mxu0 %v685
  %v1480 = vpop.f32.mrb[0].mxu0
  %v1481 = vadd.f32 %v1256, %v1480
  %v1482 = vpop.f32.mrb[0].mxu0
  %v1483 = vpop.f32.mrb[0].mxu0
  %v1484 = vadd.f32 %v1259, %v1483
  %v1485 = vpop.f32.mrb[0].mxu0
  %1486 = vmatprep.mubr.bf16.mxu0 %v691
  %1487 = vmatmul.mubr.bf16.gmra.mrb[0].mxu0 %v690
  %v1488 = vpop.f32.mrb[0].mxu0
  %v1489 = vadd.f32 %v1264, %v1488
  %v1490 = vpop.f32.mrb[0].mxu0
  %v1491 = vpop.f32.mrb[0].mxu0
  %v1492 = vadd.f32 %v1267, %v1491
  %v1493 = vpop.f32.mrb[0].mxu0
  %1494 = vmatprep.mubr.bf16.mxu0 %v696
  %1495 = vmatmul.mubr.bf16.gmra.mrb[0].mxu0 %v695
  %v1496 = vpop.f32.mrb[0].mxu0
  %v1497 = vadd.f32 %v1272, %v1496
  %v1498 = vpop.f32.mrb[0].mxu0
  %v1499 = vpop.f32.mrb[0].mxu0
  %v1500 = vadd.f32 %v1275, %v1499
  %v1501 = vpop.f32.mrb[0].mxu0
  %1502 = vmatprep.mubr.bf16.mxu0 %v701
  %1503 = vmatmul.mubr.bf16.gmra.mrb[0].mxu0 %v700
  %v1504 = vpop.f32.mrb[0].mxu0
  %v1505 = vadd.f32 %v1280, %v1504
  %v1506 = vpop.f32.mrb[0].mxu0
  %v1507 = vpop.f32.mrb[0].mxu0
  %v1508 = vadd.f32 %v1283, %v1507
  %v1509 = vpop.f32.mrb[0].mxu0
  %1510 = vmatprep.mubr.bf16.mxu0 %v706
  %1511 = vmatmul.mubr.bf16.gmra.mrb[0].mxu0 %v705
  %v1512 = vpop.f32.mrb[0].mxu0
  %v1513 = vadd.f32 %v1288, %v1512
  %v1514 = vpop.f32.mrb[0].mxu0
  %v1515 = vpop.f32.mrb[0].mxu0
  %v1516 = vadd.f32 %v1291, %v1515
  %v1517 = vpop.f32.mrb[0].mxu0
  %1518 = vmatprep.mubr.bf16.mxu0 %v711
  %1519 = vmatmul.mubr.bf16.gmra.mrb[0].mxu0 %v710
  %v1520 = vpop.f32.mrb[0].mxu0
  %v1521 = vadd.f32 %v1296, %v1520
  %v1522 = vpop.f32.mrb[0].mxu0
  %v1523 = vpop.f32.mrb[0].mxu0
  %v1524 = vadd.f32 %v1299, %v1523
  %v1525 = vpop.f32.mrb[0].mxu0
  %1526 = vmatprep.mubr.bf16.mxu0 %v716
  %1527 = vmatmul.mubr.bf16.gmra.mrb[0].mxu0 %v715
  %v1528 = vpop.f32.mrb[0].mxu0
  %v1529 = vadd.f32 %v1304, %v1528
  %v1530 = vpop.f32.mrb[0].mxu0
  %v1531 = vpop.f32.mrb[0].mxu0
  %v1532 = vadd.f32 %v1307, %v1531
  %v1533 = vpop.f32.mrb[0].mxu0
  %1534 = vmatprep.mubr.bf16.mxu0 %v721
  %1535 = vmatmul.mubr.bf16.gmra.mrb[0].mxu0 %v720
  %v1536 = vpop.f32.mrb[0].mxu0
  %v1537 = vadd.f32 %v1312, %v1536
  %v1538 = vpop.f32.mrb[0].mxu0
  %v1539 = vpop.f32.mrb[0].mxu0
  %v1540 = vadd.f32 %v1315, %v1539
  %v1541 = vpop.f32.mrb[0].mxu0
  %1542 = vmatprep.mubr.bf16.mxu0 %v726
  %1543 = vmatmul.mubr.bf16.gmra.mrb[0].mxu0 %v725
  %v1544 = vpop.f32.mrb[0].mxu0
  %v1545 = vadd.f32 %v1320, %v1544
  %v1546 = vpop.f32.mrb[0].mxu0
  %v1547 = vpop.f32.mrb[0].mxu0
  %v1548 = vadd.f32 %v1323, %v1547
  %v1549 = vpop.f32.mrb[0].mxu0
  %1550 = vmatprep.mubr.bf16.mxu0 %v731
  %1551 = vmatmul.mubr.bf16.gmra.mrb[0].mxu0 %v730
  %v1552 = vpop.f32.mrb[0].mxu0
  %v1553 = vadd.f32 %v1328, %v1552
  %v1554 = vpop.f32.mrb[0].mxu0
  %v1555 = vpop.f32.mrb[0].mxu0
  %v1556 = vadd.f32 %v1331, %v1555
  %v1557 = vpop.f32.mrb[0].mxu0
  %1558 = vmatprep.mubr.bf16.mxu0 %v736
  %1559 = vmatmul.mubr.bf16.gmra.mrb[0].mxu0 %v735
  %v1560 = vpop.f32.mrb[0].mxu0
  %v1561 = vadd.f32 %v1336, %v1560
  %v1562 = vpop.f32.mrb[0].mxu0
  %v1563 = vpop.f32.mrb[0].mxu0
  %v1564 = vadd.f32 %v1339, %v1563
  %v1565 = vpop.f32.mrb[0].mxu0
  %1566 = vmatprep.mubr.bf16.mxu0 %v741
  %1567 = vmatmul.mubr.bf16.gmra.mrb[0].mxu0 %v740
  %v1568 = vpop.f32.mrb[0].mxu0
  %v1569 = vadd.f32 %v1344, %v1568
  %v1570 = vpop.f32.mrb[0].mxu0
  %v1571 = vpop.f32.mrb[0].mxu0
  %v1572 = vadd.f32 %v1347, %v1571
  %v1573 = vpop.f32.mrb[0].mxu0
  %1574 = vmatprep.mubr.bf16.mxu0 %v746
  %1575 = vmatmul.mubr.bf16.gmra.mrb[0].mxu0 %v745
  %v1576 = vpop.f32.mrb[0].mxu0
  %v1577 = vadd.f32 %v1352, %v1576
  %v1578 = vpop.f32.mrb[0].mxu0
  %v1579 = vpop.f32.mrb[0].mxu0
  %v1580 = vadd.f32 %v1355, %v1579
  %v1581 = vpop.f32.mrb[0].mxu0
  %1582 = vdwg.mxu0
  %1583 = vmatprep.subr.bf16.mxu0 0
  %1584 = vmatpush1.bf16.msra.mxu0 %v1020
  %1585 = vmatprep.subr.bf16.mxu0 0
  %1586 = vmatpush1.bf16.msra.mxu0 %v1021
  %1587 = vmatprep.subr.bf16.mxu0 0
  %1588 = vmatpush1.bf16.msra.mxu0 %v1022
  %1589 = vmatprep.subr.bf16.mxu0 0
  %1590 = vmatpush1.bf16.msra.mxu0 %v1023
  %1591 = vmatprep.subr.bf16.mxu0 0
  %1592 = vmatpush1.bf16.msra.mxu0 0
  %1593 = vmatprep.subr.bf16.mxu0 0
  %1594 = vmatpush1.bf16.msra.mxu0 0
  %1595 = vmatprep.subr.bf16.mxu0 0
  %1596 = vmatpush1.bf16.msra.mxu0 0
  %1597 = vmatprep.subr.bf16.mxu0 0
  %1598 = vmatpush1.bf16.msra.mxu0 0
  %1599 = vmatprep.subr.bf16.mxu0 0
  %1600 = vmatpush1.bf16.msra.mxu0 0
  %1601 = vmatprep.subr.bf16.mxu0 0
  %1602 = vmatpush1.bf16.msra.mxu0 0
  %1603 = vmatprep.subr.bf16.mxu0 0
  %1604 = vmatpush1.bf16.msra.mxu0 0
  %1605 = vmatprep.subr.bf16.mxu0 0
  %1606 = vmatpush1.bf16.msra.mxu0 0
  %1607 = vmatprep.subr.bf16.mxu0 0
  %1608 = vmatpush1.bf16.msra.mxu0 0
  %1609 = vmatprep.subr.bf16.mxu0 0
  %1610 = vmatpush1.bf16.msra.mxu0 0
  %1611 = vmatprep.subr.bf16.mxu0 0
  %1612 = vmatpush1.bf16.msra.mxu0 0
  %1613 = vmatprep.subr.bf16.mxu0 0
  %1614 = vmatpush1.bf16.msra.mxu0 0
  %1615 = vmatprep.mubr.bf16.mxu0 0
  %1616 = vmatmul.mubr.bf16.gmra.mrb[0].mxu0 %v1062
  %v1617 = vpop.f32.mrb[0].mxu0
  %v1618 = vadd.f32 %v1393, %v1617
  %v1619 = vpop.f32.mrb[0].mxu0
  %v1620 = vpop.f32.mrb[0].mxu0
  %v1621 = vadd.f32 %v1396, %v1620
  %v1622 = vpop.f32.mrb[0].mxu0
  %1623 = vmatprep.mubr.bf16.mxu0 0
  %1624 = vmatmul.mubr.bf16.gmra.mrb[0].mxu0 %v1065
  %v1625 = vpop.f32.mrb[0].mxu0
  %v1626 = vadd.f32 %v1401, %v1625
  %v1627 = vpop.f32.mrb[0].mxu0
  %v1628 = vpop.f32.mrb[0].mxu0
  %v1629 = vadd.f32 %v1404, %v1628
  %v1630 = vpop.f32.mrb[0].mxu0
  %1631 = vmatprep.mubr.bf16.mxu0 0
  %1632 = vmatmul.mubr.bf16.gmra.mrb[0].mxu0 %v1068
  %v1633 = vpop.f32.mrb[0].mxu0
  %v1634 = vadd.f32 %v1409, %v1633
  %v1635 = vpop.f32.mrb[0].mxu0
  %v1636 = vpop.f32.mrb[0].mxu0
  %v1637 = vadd.f32 %v1412, %v1636
  %v1638 = vpop.f32.mrb[0].mxu0
  %1639 = vmatprep.mubr.bf16.mxu0 0
  %1640 = vmatmul.mubr.bf16.gmra.mrb[0].mxu0 %v1071
  %v1641 = vpop.f32.mrb[0].mxu0
  %v1642 = vadd.f32 %v1417, %v1641
  %v1643 = vpop.f32.mrb[0].mxu0
  %v1644 = vpop.f32.mrb[0].mxu0
  %v1645 = vadd.f32 %v1420, %v1644
  %v1646 = vpop.f32.mrb[0].mxu0
  %1647 = vmatprep.mubr.bf16.mxu0 0
  %1648 = vmatmul.mubr.bf16.gmra.mrb[0].mxu0 %v1074
  %v1649 = vpop.f32.mrb[0].mxu0
  %v1650 = vadd.f32 %v1425, %v1649
  %v1651 = vpop.f32.mrb[0].mxu0
  %v1652 = vpop.f32.mrb[0].mxu0
  %v1653 = vadd.f32 %v1428, %v1652
  %v1654 = vpop.f32.mrb[0].mxu0
  %1655 = vmatprep.mubr.bf16.mxu0 0
  %1656 = vmatmul.mubr.bf16.gmra.mrb[0].mxu0 %v1077
  %v1657 = vpop.f32.mrb[0].mxu0
  %v1658 = vadd.f32 %v1433, %v1657
  %v1659 = vpop.f32.mrb[0].mxu0
  %v1660 = vpop.f32.mrb[0].mxu0
  %v1661 = vadd.f32 %v1436, %v1660
  %v1662 = vpop.f32.mrb[0].mxu0
  %1663 = vmatprep.mubr.bf16.mxu0 0
  %1664 = vmatmul.mubr.bf16.gmra.mrb[0].mxu0 %v1080
  %v1665 = vpop.f32.mrb[0].mxu0
  %v1666 = vadd.f32 %v1441, %v1665
  %v1667 = vpop.f32.mrb[0].mxu0
  %v1668 = vpop.f32.mrb[0].mxu0
  %v1669 = vadd.f32 %v1444, %v1668
  %v1670 = vpop.f32.mrb[0].mxu0
  %1671 = vmatprep.mubr.bf16.mxu0 0
  %1672 = vmatmul.mubr.bf16.gmra.mrb[0].mxu0 %v1083
  %v1673 = vpop.f32.mrb[0].mxu0
  %v1674 = vadd.f32 %v1449, %v1673
  %v1675 = vpop.f32.mrb[0].mxu0
  %v1676 = vpop.f32.mrb[0].mxu0
  %v1677 = vadd.f32 %v1452, %v1676
  %v1678 = vpop.f32.mrb[0].mxu0
  %1679 = vmatprep.mubr.bf16.mxu0 0
  %1680 = vmatmul.mubr.bf16.gmra.mrb[0].mxu0 %v1086
  %v1681 = vpop.f32.mrb[0].mxu0
  %v1682 = vadd.f32 %v1457, %v1681
  %v1683 = vpop.f32.mrb[0].mxu0
  %v1684 = vpop.f32.mrb[0].mxu0
  %v1685 = vadd.f32 %v1460, %v1684
  %v1686 = vpop.f32.mrb[0].mxu0
  %1687 = vmatprep.mubr.bf16.mxu0 0
  %1688 = vmatmul.mubr.bf16.gmra.mrb[0].mxu0 %v1089
  %v1689 = vpop.f32.mrb[0].mxu0
  %v1690 = vadd.f32 %v1465, %v1689
  %v1691 = vpop.f32.mrb[0].mxu0
  %v1692 = vpop.f32.mrb[0].mxu0
  %v1693 = vadd.f32 %v1468, %v1692
  %v1694 = vpop.f32.mrb[0].mxu0
  %1695 = vmatprep.mubr.bf16.mxu0 0
  %1696 = vmatmul.mubr.bf16.gmra.mrb[0].mxu0 %v1092
  %v1697 = vpop.f32.mrb[0].mxu0
  %v1698 = vadd.f32 %v1473, %v1697
  %v1699 = vpop.f32.mrb[0].mxu0
  %v1700 = vpop.f32.mrb[0].mxu0
  %v1701 = vadd.f32 %v1476, %v1700
  %v1702 = vpop.f32.mrb[0].mxu0
  %1703 = vmatprep.mubr.bf16.mxu0 0
  %1704 = vmatmul.mubr.bf16.gmra.mrb[0].mxu0 %v1095
  %v1705 = vpop.f32.mrb[0].mxu0
  %v1706 = vadd.f32 %v1481, %v1705
  %v1707 = vpop.f32.mrb[0].mxu0
  %v1708 = vpop.f32.mrb[0].mxu0
  %v1709 = vadd.f32 %v1484, %v1708
  %v1710 = vpop.f32.mrb[0].mxu0
  %1711 = vmatprep.mubr.bf16.mxu0 0
  %1712 = vmatmul.mubr.bf16.gmra.mrb[0].mxu0 %v1098
  %v1713 = vpop.f32.mrb[0].mxu0
  %v1714 = vadd.f32 %v1489, %v1713
  %v1715 = vpop.f32.mrb[0].mxu0
  %v1716 = vpop.f32.mrb[0].mxu0
  %v1717 = vadd.f32 %v1492, %v1716
  %v1718 = vpop.f32.mrb[0].mxu0
  %1719 = vmatprep.mubr.bf16.mxu0 0
  %1720 = vmatmul.mubr.bf16.gmra.mrb[0].mxu0 %v1101
  %v1721 = vpop.f32.mrb[0].mxu0
  %v1722 = vadd.f32 %v1497, %v1721
  %v1723 = vpop.f32.mrb[0].mxu0
  %v1724 = vpop.f32.mrb[0].mxu0
  %v1725 = vadd.f32 %v1500, %v1724
  %v1726 = vpop.f32.mrb[0].mxu0
  %1727 = vmatprep.mubr.bf16.mxu0 0
  %1728 = vmatmul.mubr.bf16.gmra.mrb[0].mxu0 %v1104
  %v1729 = vpop.f32.mrb[0].mxu0
  %v1730 = vadd.f32 %v1505, %v1729
  %v1731 = vpop.f32.mrb[0].mxu0
  %v1732 = vpop.f32.mrb[0].mxu0
  %v1733 = vadd.f32 %v1508, %v1732
  %v1734 = vpop.f32.mrb[0].mxu0
  %1735 = vmatprep.mubr.bf16.mxu0 0
  %1736 = vmatmul.mubr.bf16.gmra.mrb[0].mxu0 %v1107
  %v1737 = vpop.f32.mrb[0].mxu0
  %v1738 = vadd.f32 %v1513, %v1737
  %v1739 = vpop.f32.mrb[0].mxu0
  %v1740 = vpop.f32.mrb[0].mxu0
  %v1741 = vadd.f32 %v1516, %v1740
  %v1742 = vpop.f32.mrb[0].mxu0
  %1743 = vmatprep.mubr.bf16.mxu0 0
  %1744 = vmatmul.mubr.bf16.gmra.mrb[0].mxu0 %v1110
  %v1745 = vpop.f32.mrb[0].mxu0
  %v1746 = vadd.f32 %v1521, %v1745
  %v1747 = vpop.f32.mrb[0].mxu0
  %v1748 = vpop.f32.mrb[0].mxu0
  %v1749 = vadd.f32 %v1524, %v1748
  %v1750 = vpop.f32.mrb[0].mxu0
  %1751 = vmatprep.mubr.bf16.mxu0 0
  %1752 = vmatmul.mubr.bf16.gmra.mrb[0].mxu0 %v1113
  %v1753 = vpop.f32.mrb[0].mxu0
  %v1754 = vadd.f32 %v1529, %v1753
  %v1755 = vpop.f32.mrb[0].mxu0
  %v1756 = vpop.f32.mrb[0].mxu0
  %v1757 = vadd.f32 %v1532, %v1756
  %v1758 = vpop.f32.mrb[0].mxu0
  %1759 = vmatprep.mubr.bf16.mxu0 0
  %1760 = vmatmul.mubr.bf16.gmra.mrb[0].mxu0 %v1116
  %v1761 = vpop.f32.mrb[0].mxu0
  %v1762 = vadd.f32 %v1537, %v1761
  %v1763 = vpop.f32.mrb[0].mxu0
  %v1764 = vpop.f32.mrb[0].mxu0
  %v1765 = vadd.f32 %v1540, %v1764
  %v1766 = vpop.f32.mrb[0].mxu0
  %1767 = vmatprep.mubr.bf16.mxu0 0
  %1768 = vmatmul.mubr.bf16.gmra.mrb[0].mxu0 %v1119
  %v1769 = vpop.f32.mrb[0].mxu0
  %v1770 = vadd.f32 %v1545, %v1769
  %v1771 = vpop.f32.mrb[0].mxu0
  %v1772 = vpop.f32.mrb[0].mxu0
  %v1773 = vadd.f32 %v1548, %v1772
  %v1774 = vpop.f32.mrb[0].mxu0
  %1775 = vmatprep.mubr.bf16.mxu0 0
  %1776 = vmatmul.mubr.bf16.gmra.mrb[0].mxu0 %v1122
  %v1777 = vpop.f32.mrb[0].mxu0
  %v1778 = vadd.f32 %v1553, %v1777
  %v1779 = vpop.f32.mrb[0].mxu0
  %v1780 = vpop.f32.mrb[0].mxu0
  %v1781 = vadd.f32 %v1556, %v1780
  %v1782 = vpop.f32.mrb[0].mxu0
  %1783 = vmatprep.mubr.bf16.mxu0 0
  %1784 = vmatmul.mubr.bf16.gmra.mrb[0].mxu0 %v1125
  %v1785 = vpop.f32.mrb[0].mxu0
  %v1786 = vadd.f32 %v1561, %v1785
  %v1787 = vpop.f32.mrb[0].mxu0
  %v1788 = vpop.f32.mrb[0].mxu0
  %v1789 = vadd.f32 %v1564, %v1788
  %v1790 = vpop.f32.mrb[0].mxu0
  %1791 = vmatprep.mubr.bf16.mxu0 0
  %1792 = vmatmul.mubr.bf16.gmra.mrb[0].mxu0 %v1128
  %v1793 = vpop.f32.mrb[0].mxu0
  %v1794 = vadd.f32 %v1569, %v1793
  %v1795 = vpop.f32.mrb[0].mxu0
  %v1796 = vpop.f32.mrb[0].mxu0
  %v1797 = vadd.f32 %v1572, %v1796
  %v1798 = vpop.f32.mrb[0].mxu0
  %1799 = vmatprep.mubr.bf16.mxu0 0
  %1800 = vmatmul.mubr.bf16.gmra.mrb[0].mxu0 %v1131
  %v1801 = vpop.f32.mrb[0].mxu0
  %v1802 = vadd.f32 %v1577, %v1801
  %v1803 = vpop.f32.mrb[0].mxu0
  %v1804 = vpop.f32.mrb[0].mxu0
  %v1805 = vadd.f32 %v1580, %v1804
  %v1806 = vpop.f32.mrb[0].mxu0
  %1807 = vdwg.mxu0
  %v1808 = vmax.f32 %v1618, 0.0
  %v1809 = vmax.f32 %v1621, 0.0
  %v1810 = vmax.f32 %v1626, 0.0
  %v1811 = vmax.f32 %v1629, 0.0
  %v1812 = vmax.f32 %v1634, 0.0
  %v1813 = vmax.f32 %v1637, 0.0
  %v1814 = vmax.f32 %v1642, 0.0
  %v1815 = vmax.f32 %v1645, 0.0
  %v1816 = vmax.f32 %v1650, 0.0
  %v1817 = vmax.f32 %v1653, 0.0
  %v1818 = vmax.f32 %v1658, 0.0
  %v1819 = vmax.f32 %v1661, 0.0
  %v1820 = vmax.f32 %v1666, 0.0
  %v1821 = vmax.f32 %v1669, 0.0
  %v1822 = vmax.f32 %v1674, 0.0
  %v1823 = vmax.f32 %v1677, 0.0
  %v1824 = vmax.f32 %v1682, 0.0
  %v1825 = vmax.f32 %v1685, 0.0
  %v1826 = vmax.f32 %v1690, 0.0
  %v1827 = vmax.f32 %v1693, 0.0
  %v1828 = vmax.f32 %v1698, 0.0
  %v1829 = vmax.f32 %v1701, 0.0
  %v1830 = vmax.f32 %v1706, 0.0
  %v1831 = vmax.f32 %v1709, 0.0
  %v1832 = vmax.f32 %v1714, 0.0
  %v1833 = vmax.f32 %v1717, 0.0
  %v1834 = vmax.f32 %v1722, 0.0
  %v1835 = vmax.f32 %v1725, 0.0
  %v1836 = vmax.f32 %v1730, 0.0
  %v1837 = vmax.f32 %v1733, 0.0
  %v1838 = vmax.f32 %v1738, 0.0
  %v1839 = vmax.f32 %v1741, 0.0
  %v1840 = vmax.f32 %v1746, 0.0
  %v1841 = vmax.f32 %v1749, 0.0
  %v1842 = vmax.f32 %v1754, 0.0
  %v1843 = vmax.f32 %v1757, 0.0
  %v1844 = vmax.f32 %v1762, 0.0
  %v1845 = vmax.f32 %v1765, 0.0
  %v1846 = vmax.f32 %v1770, 0.0
  %v1847 = vmax.f32 %v1773, 0.0
  %v1848 = vmax.f32 %v1778, 0.0
  %v1849 = vmax.f32 %v1781, 0.0
  %v1850 = vmax.f32 %v1786, 0.0
  %v1851 = vmax.f32 %v1789, 0.0
  %v1852 = vmax.f32 %v1794, 0.0
  %v1853 = vmax.f32 %v1797, 0.0
  %v1854 = vmax.f32 %v1802, 0.0
  %v1855 = vmax.f32 %v1805, 0.0
  %v1856 = vld [vmem:[%s3] sm:$0x1]
  %v1858 = vlaneseq
  %v1859 = vshrl.u32 %v1858, 7
  %v1860 = vsub.s32 0, %v1859
  %v1861 = vrot.slane %v1856, %v1860
  %v1863 = vmul.f32 %v1808, %v1861
  %v1864 = vmul.f32 %v1809, %v1861
  %v1865 = vmul.f32 %v1810, %v1861
  %v1866 = vmul.f32 %v1811, %v1861
  %v1867 = vmul.f32 %v1812, %v1861
  %v1868 = vmul.f32 %v1813, %v1861
  %v1869 = vmul.f32 %v1814, %v1861
  %v1870 = vmul.f32 %v1815, %v1861
  %v1871 = vmul.f32 %v1816, %v1861
  %v1872 = vmul.f32 %v1817, %v1861
  %v1873 = vmul.f32 %v1818, %v1861
  %v1874 = vmul.f32 %v1819, %v1861
  %v1875 = vmul.f32 %v1820, %v1861
  %v1876 = vmul.f32 %v1821, %v1861
  %v1877 = vmul.f32 %v1822, %v1861
  %v1878 = vmul.f32 %v1823, %v1861
  %v1879 = vmul.f32 %v1824, %v1861
  %v1880 = vmul.f32 %v1825, %v1861
  %v1881 = vmul.f32 %v1826, %v1861
  %v1882 = vmul.f32 %v1827, %v1861
  %v1883 = vmul.f32 %v1828, %v1861
  %v1884 = vmul.f32 %v1829, %v1861
  %v1885 = vmul.f32 %v1830, %v1861
  %v1886 = vmul.f32 %v1831, %v1861
  %v1887 = vmul.f32 %v1832, %v1861
  %v1888 = vmul.f32 %v1833, %v1861
  %v1889 = vmul.f32 %v1834, %v1861
  %v1890 = vmul.f32 %v1835, %v1861
  %v1891 = vmul.f32 %v1836, %v1861
  %v1892 = vmul.f32 %v1837, %v1861
  %v1893 = vmul.f32 %v1838, %v1861
  %v1894 = vmul.f32 %v1839, %v1861
  %v1895 = vmul.f32 %v1840, %v1861
  %v1896 = vmul.f32 %v1841, %v1861
  %v1897 = vmul.f32 %v1842, %v1861
  %v1898 = vmul.f32 %v1843, %v1861
  %v1899 = vmul.f32 %v1844, %v1861
  %v1900 = vmul.f32 %v1845, %v1861
  %v1901 = vmul.f32 %v1846, %v1861
  %v1902 = vmul.f32 %v1847, %v1861
  %v1903 = vmul.f32 %v1848, %v1861
  %v1904 = vmul.f32 %v1849, %v1861
  %v1905 = vmul.f32 %v1850, %v1861
  %v1906 = vmul.f32 %v1851, %v1861
  %v1907 = vmul.f32 %v1852, %v1861
  %v1908 = vmul.f32 %v1853, %v1861
  %v1909 = vmul.f32 %v1854, %v1861
  %v1910 = vmul.f32 %v1855, %v1861
  %v1911 = vld [vmem:[%s4] sm:$0x1]
  %v1913 = vlaneseq
  %v1914 = vshrl.u32 %v1913, 7
  %v1915 = vsub.s32 0, %v1914
  %v1916 = vrot.slane %v1911, %v1915
  %v1918 = vadd.f32 %v1863, %v1916
  %v1919 = vadd.f32 %v1864, %v1916
  %v1920 = vadd.f32 %v1865, %v1916
  %v1921 = vadd.f32 %v1866, %v1916
  %v1922 = vadd.f32 %v1867, %v1916
  %v1923 = vadd.f32 %v1868, %v1916
  %v1924 = vadd.f32 %v1869, %v1916
  %v1925 = vadd.f32 %v1870, %v1916
  %v1926 = vadd.f32 %v1871, %v1916
  %v1927 = vadd.f32 %v1872, %v1916
  %v1928 = vadd.f32 %v1873, %v1916
  %v1929 = vadd.f32 %v1874, %v1916
  %v1930 = vadd.f32 %v1875, %v1916
  %v1931 = vadd.f32 %v1876, %v1916
  %v1932 = vadd.f32 %v1877, %v1916
  %v1933 = vadd.f32 %v1878, %v1916
  %v1934 = vadd.f32 %v1879, %v1916
  %v1935 = vadd.f32 %v1880, %v1916
  %v1936 = vadd.f32 %v1881, %v1916
  %v1937 = vadd.f32 %v1882, %v1916
  %v1938 = vadd.f32 %v1883, %v1916
  %v1939 = vadd.f32 %v1884, %v1916
  %v1940 = vadd.f32 %v1885, %v1916
  %v1941 = vadd.f32 %v1886, %v1916
  %v1942 = vadd.f32 %v1887, %v1916
  %v1943 = vadd.f32 %v1888, %v1916
  %v1944 = vadd.f32 %v1889, %v1916
  %v1945 = vadd.f32 %v1890, %v1916
  %v1946 = vadd.f32 %v1891, %v1916
  %v1947 = vadd.f32 %v1892, %v1916
  %v1948 = vadd.f32 %v1893, %v1916
  %v1949 = vadd.f32 %v1894, %v1916
  %v1950 = vadd.f32 %v1895, %v1916
  %v1951 = vadd.f32 %v1896, %v1916
  %v1952 = vadd.f32 %v1897, %v1916
  %v1953 = vadd.f32 %v1898, %v1916
  %v1954 = vadd.f32 %v1899, %v1916
  %v1955 = vadd.f32 %v1900, %v1916
  %v1956 = vadd.f32 %v1901, %v1916
  %v1957 = vadd.f32 %v1902, %v1916
  %v1958 = vadd.f32 %v1903, %v1916
  %v1959 = vadd.f32 %v1904, %v1916
  %v1960 = vadd.f32 %v1905, %v1916
  %v1961 = vadd.f32 %v1906, %v1916
  %v1962 = vadd.f32 %v1907, %v1916
  %v1963 = vadd.f32 %v1908, %v1916
  %v1964 = vadd.f32 %v1909, %v1916
  %v1965 = vadd.f32 %v1910, %v1916
  %v1966 = vpack.c.bf16 %v1919, %v1918
  %v1967 = vpack.c.bf16 %v1921, %v1920
  %v1968 = vpack.c.bf16 %v1923, %v1922
  %v1969 = vpack.c.bf16 %v1925, %v1924
  %v1970 = vpack.c.bf16 %v1927, %v1926
  %v1971 = vpack.c.bf16 %v1929, %v1928
  %v1972 = vpack.c.bf16 %v1931, %v1930
  %v1973 = vpack.c.bf16 %v1933, %v1932
  %v1974 = vpack.c.bf16 %v1935, %v1934
  %v1975 = vpack.c.bf16 %v1937, %v1936
  %v1976 = vpack.c.bf16 %v1939, %v1938
  %v1977 = vpack.c.bf16 %v1941, %v1940
  %v1978 = vpack.c.bf16 %v1943, %v1942
  %v1979 = vpack.c.bf16 %v1945, %v1944
  %v1980 = vpack.c.bf16 %v1947, %v1946
  %v1981 = vpack.c.bf16 %v1949, %v1948
  %v1982 = vpack.c.bf16 %v1951, %v1950
  %v1983 = vpack.c.bf16 %v1953, %v1952
  %v1984 = vpack.c.bf16 %v1955, %v1954
  %v1985 = vpack.c.bf16 %v1957, %v1956
  %v1986 = vpack.c.bf16 %v1959, %v1958
  %v1987 = vpack.c.bf16 %v1961, %v1960
  %v1988 = vpack.c.bf16 %v1963, %v1962
  %v1989 = vpack.c.bf16 %v1965, %v1964
  %v2014 = vunpack.c.l.b16 %v1966
  %v2015 = vunpack.c.h.b16 %v1966
  %v2016 = vunpack.c.l.b16 %v1967
  %v2017 = vunpack.c.h.b16 %v1967
  %v2018 = vunpack.c.l.b16 %v1968
  %v2019 = vunpack.c.h.b16 %v1968
  %v2020 = vunpack.c.l.b16 %v1969
  %v2021 = vunpack.c.h.b16 %v1969
  %v2022 = vunpack.c.l.b16 %v1970
  %v2023 = vunpack.c.h.b16 %v1970
  %v2024 = vunpack.c.l.b16 %v1971
  %v2025 = vunpack.c.h.b16 %v1971
  %v2026 = vunpack.c.l.b16 %v1972
  %v2027 = vunpack.c.h.b16 %v1972
  %v2028 = vunpack.c.l.b16 %v1973
  %v2029 = vunpack.c.h.b16 %v1973
  %v2030 = vunpack.c.l.b16 %v1974
  %v2031 = vunpack.c.h.b16 %v1974
  %v2032 = vunpack.c.l.b16 %v1975
  %v2033 = vunpack.c.h.b16 %v1975
  %v2034 = vunpack.c.l.b16 %v1976
  %v2035 = vunpack.c.h.b16 %v1976
  %v2036 = vunpack.c.l.b16 %v1977
  %v2037 = vunpack.c.h.b16 %v1977
  %v2038 = vunpack.c.l.b16 %v1978
  %v2039 = vunpack.c.h.b16 %v1978
  %v2040 = vunpack.c.l.b16 %v1979
  %v2041 = vunpack.c.h.b16 %v1979
  %v2042 = vunpack.c.l.b16 %v1980
  %v2043 = vunpack.c.h.b16 %v1980
  %v2044 = vunpack.c.l.b16 %v1981
  %v2045 = vunpack.c.h.b16 %v1981
  %v2046 = vunpack.c.l.b16 %v1982
  %v2047 = vunpack.c.h.b16 %v1982
  %v2048 = vunpack.c.l.b16 %v1983
  %v2049 = vunpack.c.h.b16 %v1983
  %v2050 = vunpack.c.l.b16 %v1984
  %v2051 = vunpack.c.h.b16 %v1984
  %v2052 = vunpack.c.l.b16 %v1985
  %v2053 = vunpack.c.h.b16 %v1985
  %v2054 = vunpack.c.l.b16 %v1986
  %v2055 = vunpack.c.h.b16 %v1986
  %v2056 = vunpack.c.l.b16 %v1987
  %v2057 = vunpack.c.h.b16 %v1987
  %v2058 = vunpack.c.l.b16 %v1988
  %v2059 = vunpack.c.h.b16 %v1988
  %v2060 = vunpack.c.l.b16 %v1989
  %v2061 = vunpack.c.h.b16 %v1989
  %v2062 = vpack.c.b16 %v2014, %v2014
  %v2063 = vpack.c.b16 %v2015, %v2015
  %v2064 = vpack.c.b16 %v2016, %v2016
  %v2065 = vpack.c.b16 %v2017, %v2017
  %v2066 = vpack.c.b16 %v2018, %v2018
  %v2067 = vpack.c.b16 %v2019, %v2019
  %v2068 = vpack.c.b16 %v2020, %v2020
  %v2069 = vpack.c.b16 %v2021, %v2021
  %v2070 = vpack.c.b16 %v2022, %v2022
  %v2071 = vpack.c.b16 %v2023, %v2023
  %v2072 = vpack.c.b16 %v2024, %v2024
  %v2073 = vpack.c.b16 %v2025, %v2025
  %v2074 = vpack.c.b16 %v2026, %v2026
  %v2075 = vpack.c.b16 %v2027, %v2027
  %v2076 = vpack.c.b16 %v2028, %v2028
  %v2077 = vpack.c.b16 %v2029, %v2029
  %v2078 = vpack.c.b16 %v2030, %v2030
  %v2079 = vpack.c.b16 %v2031, %v2031
  %v2080 = vpack.c.b16 %v2032, %v2032
  %v2081 = vpack.c.b16 %v2033, %v2033
  %v2082 = vpack.c.b16 %v2034, %v2034
  %v2083 = vpack.c.b16 %v2035, %v2035
  %v2084 = vpack.c.b16 %v2036, %v2036
  %v2085 = vpack.c.b16 %v2037, %v2037
  %v2086 = vpack.c.b16 %v2038, %v2038
  %v2087 = vpack.c.b16 %v2039, %v2039
  %v2088 = vpack.c.b16 %v2040, %v2040
  %v2089 = vpack.c.b16 %v2041, %v2041
  %v2090 = vpack.c.b16 %v2042, %v2042
  %v2091 = vpack.c.b16 %v2043, %v2043
  %v2092 = vpack.c.b16 %v2044, %v2044
  %v2093 = vpack.c.b16 %v2045, %v2045
  %v2094 = vpack.c.b16 %v2046, %v2046
  %v2095 = vpack.c.b16 %v2047, %v2047
  %v2096 = vpack.c.b16 %v2048, %v2048
  %v2097 = vpack.c.b16 %v2049, %v2049
  %v2098 = vpack.c.b16 %v2050, %v2050
  %v2099 = vpack.c.b16 %v2051, %v2051
  %v2100 = vpack.c.b16 %v2052, %v2052
  %v2101 = vpack.c.b16 %v2053, %v2053
  %v2102 = vpack.c.b16 %v2054, %v2054
  %v2103 = vpack.c.b16 %v2055, %v2055
  %v2104 = vpack.c.b16 %v2056, %v2056
  %v2105 = vpack.c.b16 %v2057, %v2057
  %v2106 = vpack.c.b16 %v2058, %v2058
  %v2107 = vpack.c.b16 %v2059, %v2059
  %v2108 = vpack.c.b16 %v2060, %v2060
  %v2109 = vpack.c.b16 %v2061, %v2061
  %vm2158 = vcmask 519168
  %2159 = vst.msk [vmem:[%s5] sm:$0xf] %vm2158, %v2062
  %2160 = vst.msk [vmem:[%s5 + $0x4] sm:$0xf] %vm2158, %v2063
  %2161 = vst.msk [vmem:[%s5 + $0x8] sm:$0xf] %vm2158, %v2064
  %2162 = vst.msk [vmem:[%s5 + $0xc] sm:$0xf] %vm2158, %v2065
  %2163 = vst.msk [vmem:[%s5 + $0x10] sm:$0xf] %vm2158, %v2066
  %2164 = vst.msk [vmem:[%s5 + $0x14] sm:$0xf] %vm2158, %v2067
  %2165 = vst.msk [vmem:[%s5 + $0x18] sm:$0xf] %vm2158, %v2068
  %2166 = vst.msk [vmem:[%s5 + $0x1c] sm:$0xf] %vm2158, %v2069
  %2167 = vst.msk [vmem:[%s5 + $0x20] sm:$0xf] %vm2158, %v2070
  %2168 = vst.msk [vmem:[%s5 + $0x24] sm:$0xf] %vm2158, %v2071
  %2169 = vst.msk [vmem:[%s5 + $0x28] sm:$0xf] %vm2158, %v2072
  %2170 = vst.msk [vmem:[%s5 + $0x2c] sm:$0xf] %vm2158, %v2073
  %2171 = vst.msk [vmem:[%s5 + $0x30] sm:$0xf] %vm2158, %v2074
  %2172 = vst.msk [vmem:[%s5 + $0x34] sm:$0xf] %vm2158, %v2075
  %2173 = vst.msk [vmem:[%s5 + $0x38] sm:$0xf] %vm2158, %v2076
  %2174 = vst.msk [vmem:[%s5 + $0x3c] sm:$0xf] %vm2158, %v2077
  %2175 = vst.msk [vmem:[%s5 + $0x40] sm:$0xf] %vm2158, %v2078
  %2176 = vst.msk [vmem:[%s5 + $0x44] sm:$0xf] %vm2158, %v2079
  %2177 = vst.msk [vmem:[%s5 + $0x48] sm:$0xf] %vm2158, %v2080
  %2178 = vst.msk [vmem:[%s5 + $0x4c] sm:$0xf] %vm2158, %v2081
  %2179 = vst.msk [vmem:[%s5 + $0x50] sm:$0xf] %vm2158, %v2082
  %2180 = vst.msk [vmem:[%s5 + $0x54] sm:$0xf] %vm2158, %v2083
  %2181 = vst.msk [vmem:[%s5 + $0x58] sm:$0xf] %vm2158, %v2084
  %2182 = vst.msk [vmem:[%s5 + $0x5c] sm:$0xf] %vm2158, %v2085
  %2183 = vst.msk [vmem:[%s5 + $0x60] sm:$0xf] %vm2158, %v2086
  %2184 = vst.msk [vmem:[%s5 + $0x64] sm:$0xf] %vm2158, %v2087
  %2185 = vst.msk [vmem:[%s5 + $0x68] sm:$0xf] %vm2158, %v2088
  %2186 = vst.msk [vmem:[%s5 + $0x6c] sm:$0xf] %vm2158, %v2089
  %2187 = vst.msk [vmem:[%s5 + $0x70] sm:$0xf] %vm2158, %v2090
  %2188 = vst.msk [vmem:[%s5 + $0x74] sm:$0xf] %vm2158, %v2091
  %2189 = vst.msk [vmem:[%s5 + $0x78] sm:$0xf] %vm2158, %v2092
  %2190 = vst.msk [vmem:[%s5 + $0x7c] sm:$0xf] %vm2158, %v2093
  %2191 = vst.msk [vmem:[%s5 + $0x80] sm:$0xf] %vm2158, %v2094
  %2192 = vst.msk [vmem:[%s5 + $0x84] sm:$0xf] %vm2158, %v2095
  %2193 = vst.msk [vmem:[%s5 + $0x88] sm:$0xf] %vm2158, %v2096
  %2194 = vst.msk [vmem:[%s5 + $0x8c] sm:$0xf] %vm2158, %v2097
  %2195 = vst.msk [vmem:[%s5 + $0x90] sm:$0xf] %vm2158, %v2098
  %2196 = vst.msk [vmem:[%s5 + $0x94] sm:$0xf] %vm2158, %v2099
  %2197 = vst.msk [vmem:[%s5 + $0x98] sm:$0xf] %vm2158, %v2100
  %2198 = vst.msk [vmem:[%s5 + $0x9c] sm:$0xf] %vm2158, %v2101
  %2199 = vst.msk [vmem:[%s5 + $0xa0] sm:$0xf] %vm2158, %v2102
  %2200 = vst.msk [vmem:[%s5 + $0xa4] sm:$0xf] %vm2158, %v2103
  %2201 = vst.msk [vmem:[%s5 + $0xa8] sm:$0xf] %vm2158, %v2104
  %2202 = vst.msk [vmem:[%s5 + $0xac] sm:$0xf] %vm2158, %v2105
  %2203 = vst.msk [vmem:[%s5 + $0xb0] sm:$0xf] %vm2158, %v2106
  %2204 = vst.msk [vmem:[%s5 + $0xb4] sm:$0xf] %vm2158, %v2107
  %2205 = vst.msk [vmem:[%s5 + $0xb8] sm:$0xf] %vm2158, %v2108
  %2206 = vst.msk [vmem:[%s5 + $0xbc] sm:$0xf] %vm2158, %v2109
  // Predicated region
  $region22: #{deepconvlstm_forward.17} parent=0 // pred_check
    _
  $region23: #{deepconvlstm_forward.17} parent=0 // pred_check_branch
    %2208 = sbr.rel (0) target = $region25
  $region24: #{deepconvlstm_forward.17} parent=0 // pred_region
    _
  $region25: #{deepconvlstm_forward.17} parent=0 // pred_fallthru
    _
  // Predicated region
  $region26: #{deepconvlstm_forward.17} parent=0 // pred_check
    _
  $region27: #{deepconvlstm_forward.17} parent=0 // pred_check_branch
    %2210 = sbr.rel (0) target = $region29
  $region28: #{deepconvlstm_forward.17} parent=0 // pred_region
    _
  $region29: #{deepconvlstm_forward.17} parent=0 // pred_fallthru
    _

// kernel: deepconvlstm_forward.21
$region0: #{deepconvlstm_forward.21}
  #allocation0 [shape = 'u32[]', space=smem, size = 0x4, offset = 0x4, fixed_abs, tag = 'smem constant byte address 0x4 - core index']
  #allocation1 [shape = 'u32[144,128]{1,0:T(1,128)}', space=vmem, size = 0x12000, scoped, tag = 'internal scratch']
  #allocation2 [shape = 'f32[8,2,64]{2,1,0:T(2,128)}', space=vmem, size = 0x2000, scoped, tag = 'scratch operand']
  %s0 = inlined_call_operand.vmem [shape: bf16[16,1536], index: 0, kind: input, shape index: {}]
  %s1 = inlined_call_operand.vmem [shape: bf16[1536,256], index: 1, kind: input, shape index: {}]
  %s2 = inlined_call_operand.vmem [shape: f32[1,256], index: 2, kind: input, shape index: {}]
  %s3 = inlined_call_operand.vmem [shape: bf16[64,256], index: 3, kind: input, shape index: {}]
  %s4 = inlined_call_operand.vmem [shape: f32[1,64], index: 4, kind: input, shape index: {}]
  %s5 = inlined_call_operand.vmem [shape: f32[1,64], index: 5, kind: input, shape index: {}]
  %s6 = inlined_call_operand.vmem [shape: f32[8,2,64], index: 6, kind: output, shape index: {}]
  %s7 = sld [smem:[#allocation0]]
  $region34: #{deepconvlstm_forward.21} parent=0
    _
  %s9 = ssub.s32 1, %s7
  %s10 = scalar_select 0, %s9, %s7
  // Predicated region
  $region2: #{deepconvlstm_forward.21} parent=0 // pred_check
    _
  $region3: #{deepconvlstm_forward.21} parent=0 // pred_check_branch
    %12 = sbr.rel (0) target = $region5
  $region4: #{deepconvlstm_forward.21} parent=0 // pred_region
    _
  $region5: #{deepconvlstm_forward.21} parent=0 // pred_fallthru
    _
  // Predicated region
  $region6: #{deepconvlstm_forward.21} parent=0 // pred_check
    _
  $region7: #{deepconvlstm_forward.21} parent=0 // pred_check_branch
    %14 = sbr.rel (0) target = $region9
  $region8: #{deepconvlstm_forward.21} parent=0 // pred_region
    _
  $region9: #{deepconvlstm_forward.21} parent=0 // pred_fallthru
    _
  // Predicated region
  $region10: #{deepconvlstm_forward.21} parent=0 // pred_check
    _
  $region11: #{deepconvlstm_forward.21} parent=0 // pred_check_branch
    %16 = sbr.rel (0) target = $region13
  $region12: #{deepconvlstm_forward.21} parent=0 // pred_region
    _
  $region13: #{deepconvlstm_forward.21} parent=0 // pred_fallthru
    _
  // Predicated region
  $region14: #{deepconvlstm_forward.21} parent=0 // pred_check
    _
  $region15: #{deepconvlstm_forward.21} parent=0 // pred_check_branch
    %18 = sbr.rel (0) target = $region17
  $region16: #{deepconvlstm_forward.21} parent=0 // pred_region
    _
  $region17: #{deepconvlstm_forward.21} parent=0 // pred_fallthru
    _
  // Predicated region
  $region18: #{deepconvlstm_forward.21} parent=0 // pred_check
    _
  $region19: #{deepconvlstm_forward.21} parent=0 // pred_check_branch
    %20 = sbr.rel (0) target = $region21
  $region20: #{deepconvlstm_forward.21} parent=0 // pred_region
    _
  $region21: #{deepconvlstm_forward.21} parent=0 // pred_fallthru
    _
  // Predicated region
  $region22: #{deepconvlstm_forward.21} parent=0 // pred_check
    _
  $region23: #{deepconvlstm_forward.21} parent=0 // pred_check_branch
    %22 = sbr.rel (0) target = $region25
  $region24: #{deepconvlstm_forward.21} parent=0 // pred_region
    _
  $region25: #{deepconvlstm_forward.21} parent=0 // pred_fallthru
    _
  %v24 = vld [vmem:[%s0] sm:$0xff]
  %v25 = vld [vmem:[%s0 + $0x8] sm:$0xff]
  %v26 = vld [vmem:[%s0 + $0x10] sm:$0xff]
  %v27 = vld [vmem:[%s0 + $0x18] sm:$0xff]
  %v28 = vld [vmem:[%s0 + $0x20] sm:$0xff]
  %v29 = vld [vmem:[%s0 + $0x28] sm:$0xff]
  %v30 = vld [vmem:[%s0 + $0x30] sm:$0xff]
  %v31 = vld [vmem:[%s0 + $0x38] sm:$0xff]
  %v32 = vld [vmem:[%s0 + $0x40] sm:$0xff]
  %v33 = vld [vmem:[%s0 + $0x48] sm:$0xff]
  %v34 = vld [vmem:[%s0 + $0x50] sm:$0xff]
  %v35 = vld [vmem:[%s0 + $0x58] sm:$0xff]
  %v36 = vld [vmem:[%s1] sm:$0xff]
  %v37 = vld [vmem:[%s1 + $0x8] sm:$0xff]
  %v38 = vld [vmem:[%s1 + $0x10] sm:$0xff]
  %v39 = vld [vmem:[%s1 + $0x18] sm:$0xff]
  %v40 = vld [vmem:[%s1 + $0x20] sm:$0xff]
  %v41 = vld [vmem:[%s1 + $0x28] sm:$0xff]
  %v42 = vld [vmem:[%s1 + $0x30] sm:$0xff]
  %v43 = vld [vmem:[%s1 + $0x38] sm:$0xff]
  %v44 = vld [vmem:[%s1 + $0x40] sm:$0xff]
  %v45 = vld [vmem:[%s1 + $0x48] sm:$0xff]
  %v46 = vld [vmem:[%s1 + $0x50] sm:$0xff]
  %v47 = vld [vmem:[%s1 + $0x58] sm:$0xff]
  %v48 = vld [vmem:[%s1 + $0x60] sm:$0xff]
  %v49 = vld [vmem:[%s1 + $0x68] sm:$0xff]
  %v50 = vld [vmem:[%s1 + $0x70] sm:$0xff]
  %v51 = vld [vmem:[%s1 + $0x78] sm:$0xff]
  %v52 = vld [vmem:[%s1 + $0x80] sm:$0xff]
  %v53 = vld [vmem:[%s1 + $0x88] sm:$0xff]
  %v54 = vld [vmem:[%s1 + $0x90] sm:$0xff]
  %v55 = vld [vmem:[%s1 + $0x98] sm:$0xff]
  %v56 = vld [vmem:[%s1 + $0xa0] sm:$0xff]
  %v57 = vld [vmem:[%s1 + $0xa8] sm:$0xff]
  %v58 = vld [vmem:[%s1 + $0xb0] sm:$0xff]
  %v59 = vld [vmem:[%s1 + $0xb8] sm:$0xff]
  %v60 = vld [vmem:[%s1 + $0xc0] sm:$0xff]
  %v61 = vld [vmem:[%s1 + $0xc8] sm:$0xff]
  %v62 = vld [vmem:[%s1 + $0xd0] sm:$0xff]
  %v63 = vld [vmem:[%s1 + $0xd8] sm:$0xff]
  %v64 = vld [vmem:[%s1 + $0xe0] sm:$0xff]
  %v65 = vld [vmem:[%s1 + $0xe8] sm:$0xff]
  %v66 = vld [vmem:[%s1 + $0xf0] sm:$0xff]
  %v67 = vld [vmem:[%s1 + $0xf8] sm:$0xff]
  %v68 = vld [vmem:[%s1 + $0x100] sm:$0xff]
  %v69 = vld [vmem:[%s1 + $0x108] sm:$0xff]
  %v70 = vld [vmem:[%s1 + $0x110] sm:$0xff]
  %v71 = vld [vmem:[%s1 + $0x118] sm:$0xff]
  %v72 = vld [vmem:[%s1 + $0x120] sm:$0xff]
  %v73 = vld [vmem:[%s1 + $0x128] sm:$0xff]
  %v74 = vld [vmem:[%s1 + $0x130] sm:$0xff]
  %v75 = vld [vmem:[%s1 + $0x138] sm:$0xff]
  %v76 = vld [vmem:[%s1 + $0x140] sm:$0xff]
  %v77 = vld [vmem:[%s1 + $0x148] sm:$0xff]
  %v78 = vld [vmem:[%s1 + $0x150] sm:$0xff]
  %v79 = vld [vmem:[%s1 + $0x158] sm:$0xff]
  %v80 = vld [vmem:[%s1 + $0x160] sm:$0xff]
  %v81 = vld [vmem:[%s1 + $0x168] sm:$0xff]
  %v82 = vld [vmem:[%s1 + $0x170] sm:$0xff]
  %v83 = vld [vmem:[%s1 + $0x178] sm:$0xff]
  %v84 = vld [vmem:[%s1 + $0x180] sm:$0xff]
  %v85 = vld [vmem:[%s1 + $0x188] sm:$0xff]
  %v86 = vld [vmem:[%s1 + $0x190] sm:$0xff]
  %v87 = vld [vmem:[%s1 + $0x198] sm:$0xff]
  %v88 = vld [vmem:[%s1 + $0x1a0] sm:$0xff]
  %v89 = vld [vmem:[%s1 + $0x1a8] sm:$0xff]
  %v90 = vld [vmem:[%s1 + $0x1b0] sm:$0xff]
  %v91 = vld [vmem:[%s1 + $0x1b8] sm:$0xff]
  %v92 = vld [vmem:[%s1 + $0x1c0] sm:$0xff]
  %v93 = vld [vmem:[%s1 + $0x1c8] sm:$0xff]
  %v94 = vld [vmem:[%s1 + $0x1d0] sm:$0xff]
  %v95 = vld [vmem:[%s1 + $0x1d8] sm:$0xff]
  %v96 = vld [vmem:[%s1 + $0x1e0] sm:$0xff]
  %v97 = vld [vmem:[%s1 + $0x1e8] sm:$0xff]
  %v98 = vld [vmem:[%s1 + $0x1f0] sm:$0xff]
  %v99 = vld [vmem:[%s1 + $0x1f8] sm:$0xff]
  %v100 = vld [vmem:[%s1 + $0x200] sm:$0xff]
  %v101 = vld [vmem:[%s1 + $0x208] sm:$0xff]
  %v102 = vld [vmem:[%s1 + $0x210] sm:$0xff]
  %v103 = vld [vmem:[%s1 + $0x218] sm:$0xff]
  %v104 = vld [vmem:[%s1 + $0x220] sm:$0xff]
  %v105 = vld [vmem:[%s1 + $0x228] sm:$0xff]
  %v106 = vld [vmem:[%s1 + $0x230] sm:$0xff]
  %v107 = vld [vmem:[%s1 + $0x238] sm:$0xff]
  %v108 = vld [vmem:[%s1 + $0x240] sm:$0xff]
  %v109 = vld [vmem:[%s1 + $0x248] sm:$0xff]
  %v110 = vld [vmem:[%s1 + $0x250] sm:$0xff]
  %v111 = vld [vmem:[%s1 + $0x258] sm:$0xff]
  %v112 = vld [vmem:[%s1 + $0x260] sm:$0xff]
  %v113 = vld [vmem:[%s1 + $0x268] sm:$0xff]
  %v114 = vld [vmem:[%s1 + $0x270] sm:$0xff]
  %v115 = vld [vmem:[%s1 + $0x278] sm:$0xff]
  %v116 = vld [vmem:[%s1 + $0x280] sm:$0xff]
  %v117 = vld [vmem:[%s1 + $0x288] sm:$0xff]
  %v118 = vld [vmem:[%s1 + $0x290] sm:$0xff]
  %v119 = vld [vmem:[%s1 + $0x298] sm:$0xff]
  %v120 = vld [vmem:[%s1 + $0x2a0] sm:$0xff]
  %v121 = vld [vmem:[%s1 + $0x2a8] sm:$0xff]
  %v122 = vld [vmem:[%s1 + $0x2b0] sm:$0xff]
  %v123 = vld [vmem:[%s1 + $0x2b8] sm:$0xff]
  %v124 = vld [vmem:[%s1 + $0x2c0] sm:$0xff]
  %v125 = vld [vmem:[%s1 + $0x2c8] sm:$0xff]
  %v126 = vld [vmem:[%s1 + $0x2d0] sm:$0xff]
  %v127 = vld [vmem:[%s1 + $0x2d8] sm:$0xff]
  %v128 = vld [vmem:[%s1 + $0x2e0] sm:$0xff]
  %v129 = vld [vmem:[%s1 + $0x2e8] sm:$0xff]
  %v130 = vld [vmem:[%s1 + $0x2f0] sm:$0xff]
  %v131 = vld [vmem:[%s1 + $0x2f8] sm:$0xff]
  %v132 = vld [vmem:[%s1 + $0x300] sm:$0xff]
  %v133 = vld [vmem:[%s1 + $0x308] sm:$0xff]
  %v134 = vld [vmem:[%s1 + $0x310] sm:$0xff]
  %v135 = vld [vmem:[%s1 + $0x318] sm:$0xff]
  %v136 = vld [vmem:[%s1 + $0x320] sm:$0xff]
  %v137 = vld [vmem:[%s1 + $0x328] sm:$0xff]
  %v138 = vld [vmem:[%s1 + $0x330] sm:$0xff]
  %v139 = vld [vmem:[%s1 + $0x338] sm:$0xff]
  %v140 = vld [vmem:[%s1 + $0x340] sm:$0xff]
  %v141 = vld [vmem:[%s1 + $0x348] sm:$0xff]
  %v142 = vld [vmem:[%s1 + $0x350] sm:$0xff]
  %v143 = vld [vmem:[%s1 + $0x358] sm:$0xff]
  %v144 = vld [vmem:[%s1 + $0x360] sm:$0xff]
  %v145 = vld [vmem:[%s1 + $0x368] sm:$0xff]
  %v146 = vld [vmem:[%s1 + $0x370] sm:$0xff]
  %v147 = vld [vmem:[%s1 + $0x378] sm:$0xff]
  %v148 = vld [vmem:[%s1 + $0x380] sm:$0xff]
  %v149 = vld [vmem:[%s1 + $0x388] sm:$0xff]
  %v150 = vld [vmem:[%s1 + $0x390] sm:$0xff]
  %v151 = vld [vmem:[%s1 + $0x398] sm:$0xff]
  %v152 = vld [vmem:[%s1 + $0x3a0] sm:$0xff]
  %v153 = vld [vmem:[%s1 + $0x3a8] sm:$0xff]
  %v154 = vld [vmem:[%s1 + $0x3b0] sm:$0xff]
  %v155 = vld [vmem:[%s1 + $0x3b8] sm:$0xff]
  %v156 = vld [vmem:[%s1 + $0x3c0] sm:$0xff]
  %v157 = vld [vmem:[%s1 + $0x3c8] sm:$0xff]
  %v158 = vld [vmem:[%s1 + $0x3d0] sm:$0xff]
  %v159 = vld [vmem:[%s1 + $0x3d8] sm:$0xff]
  %v160 = vld [vmem:[%s1 + $0x3e0] sm:$0xff]
  %v161 = vld [vmem:[%s1 + $0x3e8] sm:$0xff]
  %v162 = vld [vmem:[%s1 + $0x3f0] sm:$0xff]
  %v163 = vld [vmem:[%s1 + $0x3f8] sm:$0xff]
  %v164 = vld [vmem:[%s1 + $0x400] sm:$0xff]
  %v165 = vld [vmem:[%s1 + $0x408] sm:$0xff]
  %v166 = vld [vmem:[%s1 + $0x410] sm:$0xff]
  %v167 = vld [vmem:[%s1 + $0x418] sm:$0xff]
  %v168 = vld [vmem:[%s1 + $0x420] sm:$0xff]
  %v169 = vld [vmem:[%s1 + $0x428] sm:$0xff]
  %v170 = vld [vmem:[%s1 + $0x430] sm:$0xff]
  %v171 = vld [vmem:[%s1 + $0x438] sm:$0xff]
  %v172 = vld [vmem:[%s1 + $0x440] sm:$0xff]
  %v173 = vld [vmem:[%s1 + $0x448] sm:$0xff]
  %v174 = vld [vmem:[%s1 + $0x450] sm:$0xff]
  %v175 = vld [vmem:[%s1 + $0x458] sm:$0xff]
  %v176 = vld [vmem:[%s1 + $0x460] sm:$0xff]
  %v177 = vld [vmem:[%s1 + $0x468] sm:$0xff]
  %v178 = vld [vmem:[%s1 + $0x470] sm:$0xff]
  %v179 = vld [vmem:[%s1 + $0x478] sm:$0xff]
  %v180 = vld [vmem:[%s1 + $0x480] sm:$0xff]
  %v181 = vld [vmem:[%s1 + $0x488] sm:$0xff]
  %v182 = vld [vmem:[%s1 + $0x490] sm:$0xff]
  %v183 = vld [vmem:[%s1 + $0x498] sm:$0xff]
  %v184 = vld [vmem:[%s1 + $0x4a0] sm:$0xff]
  %v185 = vld [vmem:[%s1 + $0x4a8] sm:$0xff]
  %v186 = vld [vmem:[%s1 + $0x4b0] sm:$0xff]
  %v187 = vld [vmem:[%s1 + $0x4b8] sm:$0xff]
  %v188 = vld [vmem:[%s1 + $0x4c0] sm:$0xff]
  %v189 = vld [vmem:[%s1 + $0x4c8] sm:$0xff]
  %v190 = vld [vmem:[%s1 + $0x4d0] sm:$0xff]
  %v191 = vld [vmem:[%s1 + $0x4d8] sm:$0xff]
  %v192 = vld [vmem:[%s1 + $0x4e0] sm:$0xff]
  %v193 = vld [vmem:[%s1 + $0x4e8] sm:$0xff]
  %v194 = vld [vmem:[%s1 + $0x4f0] sm:$0xff]
  %v195 = vld [vmem:[%s1 + $0x4f8] sm:$0xff]
  %v196 = vld [vmem:[%s1 + $0x500] sm:$0xff]
  %v197 = vld [vmem:[%s1 + $0x508] sm:$0xff]
  %v198 = vld [vmem:[%s1 + $0x510] sm:$0xff]
  %v199 = vld [vmem:[%s1 + $0x518] sm:$0xff]
  %v200 = vld [vmem:[%s1 + $0x520] sm:$0xff]
  %v201 = vld [vmem:[%s1 + $0x528] sm:$0xff]
  %v202 = vld [vmem:[%s1 + $0x530] sm:$0xff]
  %v203 = vld [vmem:[%s1 + $0x538] sm:$0xff]
  %v204 = vld [vmem:[%s1 + $0x540] sm:$0xff]
  %v205 = vld [vmem:[%s1 + $0x548] sm:$0xff]
  %v206 = vld [vmem:[%s1 + $0x550] sm:$0xff]
  %v207 = vld [vmem:[%s1 + $0x558] sm:$0xff]
  %v208 = vld [vmem:[%s1 + $0x560] sm:$0xff]
  %v209 = vld [vmem:[%s1 + $0x568] sm:$0xff]
  %v210 = vld [vmem:[%s1 + $0x570] sm:$0xff]
  %v211 = vld [vmem:[%s1 + $0x578] sm:$0xff]
  %v212 = vld [vmem:[%s1 + $0x580] sm:$0xff]
  %v213 = vld [vmem:[%s1 + $0x588] sm:$0xff]
  %v214 = vld [vmem:[%s1 + $0x590] sm:$0xff]
  %v215 = vld [vmem:[%s1 + $0x598] sm:$0xff]
  %v216 = vld [vmem:[%s1 + $0x5a0] sm:$0xff]
  %v217 = vld [vmem:[%s1 + $0x5a8] sm:$0xff]
  %v218 = vld [vmem:[%s1 + $0x5b0] sm:$0xff]
  %v219 = vld [vmem:[%s1 + $0x5b8] sm:$0xff]
  %v220 = vld [vmem:[%s1 + $0x5c0] sm:$0xff]
  %v221 = vld [vmem:[%s1 + $0x5c8] sm:$0xff]
  %v222 = vld [vmem:[%s1 + $0x5d0] sm:$0xff]
  %v223 = vld [vmem:[%s1 + $0x5d8] sm:$0xff]
  %v224 = vld [vmem:[%s1 + $0x5e0] sm:$0xff]
  %v225 = vld [vmem:[%s1 + $0x5e8] sm:$0xff]
  %v226 = vld [vmem:[%s1 + $0x5f0] sm:$0xff]
  %v227 = vld [vmem:[%s1 + $0x5f8] sm:$0xff]
  %v228 = vld [vmem:[%s2] sm:$0x3]
  %v230 = vlaneseq
  %v231 = vshrl.u32 %v230, 7
  %v232 = vsub.s32 0, %v231
  %v233 = vrot.slane %v228, %v232
  %v234 = vlaneseq
  %v235 = vshrl.u32 %v234, 7
  %v236 = vsub.s32 1, %v235
  %v237 = vrot.slane %v228, %v236
  %v252 = vunpack.c.l.b16 %v24
  %v253 = vunpack.c.h.b16 %v24
  %v254 = vunpack.c.l.b16 %v25
  %v255 = vunpack.c.h.b16 %v25
  %v256 = vunpack.c.l.b16 %v26
  %v257 = vunpack.c.h.b16 %v26
  %v258 = vunpack.c.l.b16 %v27
  %v259 = vunpack.c.h.b16 %v27
  %v260 = vunpack.c.l.b16 %v28
  %v261 = vunpack.c.h.b16 %v28
  %v262 = vunpack.c.l.b16 %v29
  %v263 = vunpack.c.h.b16 %v29
  %v264 = vunpack.c.l.b16 %v30
  %v265 = vunpack.c.h.b16 %v30
  %v266 = vunpack.c.l.b16 %v31
  %v267 = vunpack.c.h.b16 %v31
  %v268 = vunpack.c.l.b16 %v32
  %v269 = vunpack.c.h.b16 %v32
  %v270 = vunpack.c.l.b16 %v33
  %v271 = vunpack.c.h.b16 %v33
  %v272 = vunpack.c.l.b16 %v34
  %v273 = vunpack.c.h.b16 %v34
  %v274 = vunpack.c.l.b16 %v35
  %v275 = vunpack.c.h.b16 %v35
  %v276 = vpack.c.b16 %v264, %v252
  %v277 = vpack.c.b16 %v265, %v253
  %v278 = vpack.c.b16 %v266, %v254
  %v279 = vpack.c.b16 %v267, %v255
  %v280 = vpack.c.b16 %v268, %v256
  %v281 = vpack.c.b16 %v269, %v257
  %v282 = vpack.c.b16 %v270, %v258
  %v283 = vpack.c.b16 %v271, %v259
  %v284 = vpack.c.b16 %v272, %v260
  %v285 = vpack.c.b16 %v273, %v261
  %v286 = vpack.c.b16 %v274, %v262
  %v287 = vpack.c.b16 %v275, %v263
  %v492 = vunpack.c.l.b16 %v36
  %v493 = vunpack.c.h.b16 %v36
  %v494 = vunpack.c.l.b16 %v37
  %v495 = vunpack.c.h.b16 %v37
  %v496 = vunpack.c.l.b16 %v38
  %v497 = vunpack.c.h.b16 %v38
  %v498 = vunpack.c.l.b16 %v39
  %v499 = vunpack.c.h.b16 %v39
  %v500 = vunpack.c.l.b16 %v40
  %v501 = vunpack.c.h.b16 %v40
  %v502 = vunpack.c.l.b16 %v41
  %v503 = vunpack.c.h.b16 %v41
  %v504 = vunpack.c.l.b16 %v42
  %v505 = vunpack.c.h.b16 %v42
  %v506 = vunpack.c.l.b16 %v43
  %v507 = vunpack.c.h.b16 %v43
  %v508 = vunpack.c.l.b16 %v44
  %v509 = vunpack.c.h.b16 %v44
  %v510 = vunpack.c.l.b16 %v45
  %v511 = vunpack.c.h.b16 %v45
  %v512 = vunpack.c.l.b16 %v46
  %v513 = vunpack.c.h.b16 %v46
  %v514 = vunpack.c.l.b16 %v47
  %v515 = vunpack.c.h.b16 %v47
  %v516 = vunpack.c.l.b16 %v48
  %v517 = vunpack.c.h.b16 %v48
  %v518 = vunpack.c.l.b16 %v49
  %v519 = vunpack.c.h.b16 %v49
  %v520 = vunpack.c.l.b16 %v50
  %v521 = vunpack.c.h.b16 %v50
  %v522 = vunpack.c.l.b16 %v51
  %v523 = vunpack.c.h.b16 %v51
  %v524 = vunpack.c.l.b16 %v52
  %v525 = vunpack.c.h.b16 %v52
  %v526 = vunpack.c.l.b16 %v53
  %v527 = vunpack.c.h.b16 %v53
  %v528 = vunpack.c.l.b16 %v54
  %v529 = vunpack.c.h.b16 %v54
  %v530 = vunpack.c.l.b16 %v55
  %v531 = vunpack.c.h.b16 %v55
  %v532 = vunpack.c.l.b16 %v56
  %v533 = vunpack.c.h.b16 %v56
  %v534 = vunpack.c.l.b16 %v57
  %v535 = vunpack.c.h.b16 %v57
  %v536 = vunpack.c.l.b16 %v58
  %v537 = vunpack.c.h.b16 %v58
  %v538 = vunpack.c.l.b16 %v59
  %v539 = vunpack.c.h.b16 %v59
  %v540 = vunpack.c.l.b16 %v60
  %v541 = vunpack.c.h.b16 %v60
  %v542 = vunpack.c.l.b16 %v61
  %v543 = vunpack.c.h.b16 %v61
  %v544 = vunpack.c.l.b16 %v62
  %v545 = vunpack.c.h.b16 %v62
  %v546 = vunpack.c.l.b16 %v63
  %v547 = vunpack.c.h.b16 %v63
  %v548 = vunpack.c.l.b16 %v64
  %v549 = vunpack.c.h.b16 %v64
  %v550 = vunpack.c.l.b16 %v65
  %v551 = vunpack.c.h.b16 %v65
  %v552 = vunpack.c.l.b16 %v66
  %v553 = vunpack.c.h.b16 %v66
  %v554 = vunpack.c.l.b16 %v67
  %v555 = vunpack.c.h.b16 %v67
  %v556 = vunpack.c.l.b16 %v68
  %v557 = vunpack.c.h.b16 %v68
  %v558 = vunpack.c.l.b16 %v69
  %v559 = vunpack.c.h.b16 %v69
  %v560 = vunpack.c.l.b16 %v70
  %v561 = vunpack.c.h.b16 %v70
  %v562 = vunpack.c.l.b16 %v71
  %v563 = vunpack.c.h.b16 %v71
  %v564 = vunpack.c.l.b16 %v72
  %v565 = vunpack.c.h.b16 %v72
  %v566 = vunpack.c.l.b16 %v73
  %v567 = vunpack.c.h.b16 %v73
  %v568 = vunpack.c.l.b16 %v74
  %v569 = vunpack.c.h.b16 %v74
  %v570 = vunpack.c.l.b16 %v75
  %v571 = vunpack.c.h.b16 %v75
  %v572 = vunpack.c.l.b16 %v76
  %v573 = vunpack.c.h.b16 %v76
  %v574 = vunpack.c.l.b16 %v77
  %v575 = vunpack.c.h.b16 %v77
  %v576 = vunpack.c.l.b16 %v78
  %v577 = vunpack.c.h.b16 %v78
  %v578 = vunpack.c.l.b16 %v79
  %v579 = vunpack.c.h.b16 %v79
  %v580 = vunpack.c.l.b16 %v80
  %v581 = vunpack.c.h.b16 %v80
  %v582 = vunpack.c.l.b16 %v81
  %v583 = vunpack.c.h.b16 %v81
  %v584 = vunpack.c.l.b16 %v82
  %v585 = vunpack.c.h.b16 %v82
  %v586 = vunpack.c.l.b16 %v83
  %v587 = vunpack.c.h.b16 %v83
  %v588 = vunpack.c.l.b16 %v84
  %v589 = vunpack.c.h.b16 %v84
  %v590 = vunpack.c.l.b16 %v85
  %v591 = vunpack.c.h.b16 %v85
  %v592 = vunpack.c.l.b16 %v86
  %v593 = vunpack.c.h.b16 %v86
  %v594 = vunpack.c.l.b16 %v87
  %v595 = vunpack.c.h.b16 %v87
  %v596 = vunpack.c.l.b16 %v88
  %v597 = vunpack.c.h.b16 %v88
  %v598 = vunpack.c.l.b16 %v89
  %v599 = vunpack.c.h.b16 %v89
  %v600 = vunpack.c.l.b16 %v90
  %v601 = vunpack.c.h.b16 %v90
  %v602 = vunpack.c.l.b16 %v91
  %v603 = vunpack.c.h.b16 %v91
  %v604 = vunpack.c.l.b16 %v92
  %v605 = vunpack.c.h.b16 %v92
  %v606 = vunpack.c.l.b16 %v93
  %v607 = vunpack.c.h.b16 %v93
  %v608 = vunpack.c.l.b16 %v94
  %v609 = vunpack.c.h.b16 %v94
  %v610 = vunpack.c.l.b16 %v95
  %v611 = vunpack.c.h.b16 %v95
  %v612 = vunpack.c.l.b16 %v96
  %v613 = vunpack.c.h.b16 %v96
  %v614 = vunpack.c.l.b16 %v97
  %v615 = vunpack.c.h.b16 %v97
  %v616 = vunpack.c.l.b16 %v98
  %v617 = vunpack.c.h.b16 %v98
  %v618 = vunpack.c.l.b16 %v99
  %v619 = vunpack.c.h.b16 %v99
  %v620 = vunpack.c.l.b16 %v100
  %v621 = vunpack.c.h.b16 %v100
  %v622 = vunpack.c.l.b16 %v101
  %v623 = vunpack.c.h.b16 %v101
  %v624 = vunpack.c.l.b16 %v102
  %v625 = vunpack.c.h.b16 %v102
  %v626 = vunpack.c.l.b16 %v103
  %v627 = vunpack.c.h.b16 %v103
  %v628 = vunpack.c.l.b16 %v104
  %v629 = vunpack.c.h.b16 %v104
  %v630 = vunpack.c.l.b16 %v105
  %v631 = vunpack.c.h.b16 %v105
  %v632 = vunpack.c.l.b16 %v106
  %v633 = vunpack.c.h.b16 %v106
  %v634 = vunpack.c.l.b16 %v107
  %v635 = vunpack.c.h.b16 %v107
  %v636 = vunpack.c.l.b16 %v108
  %v637 = vunpack.c.h.b16 %v108
  %v638 = vunpack.c.l.b16 %v109
  %v639 = vunpack.c.h.b16 %v109
  %v640 = vunpack.c.l.b16 %v110
  %v641 = vunpack.c.h.b16 %v110
  %v642 = vunpack.c.l.b16 %v111
  %v643 = vunpack.c.h.b16 %v111
  %v644 = vunpack.c.l.b16 %v112
  %v645 = vunpack.c.h.b16 %v112
  %v646 = vunpack.c.l.b16 %v113
  %v647 = vunpack.c.h.b16 %v113
  %v648 = vunpack.c.l.b16 %v114
  %v649 = vunpack.c.h.b16 %v114
  %v650 = vunpack.c.l.b16 %v115
  %v651 = vunpack.c.h.b16 %v115
  %v652 = vunpack.c.l.b16 %v116
  %v653 = vunpack.c.h.b16 %v116
  %v654 = vunpack.c.l.b16 %v117
  %v655 = vunpack.c.h.b16 %v117
  %v656 = vunpack.c.l.b16 %v118
  %v657 = vunpack.c.h.b16 %v118
  %v658 = vunpack.c.l.b16 %v119
  %v659 = vunpack.c.h.b16 %v119
  %v660 = vunpack.c.l.b16 %v120
  %v661 = vunpack.c.h.b16 %v120
  %v662 = vunpack.c.l.b16 %v121
  %v663 = vunpack.c.h.b16 %v121
  %v664 = vunpack.c.l.b16 %v122
  %v665 = vunpack.c.h.b16 %v122
  %v666 = vunpack.c.l.b16 %v123
  %v667 = vunpack.c.h.b16 %v123
  %v668 = vunpack.c.l.b16 %v124
  %v669 = vunpack.c.h.b16 %v124
  %v670 = vunpack.c.l.b16 %v125
  %v671 = vunpack.c.h.b16 %v125
  %v672 = vunpack.c.l.b16 %v126
  %v673 = vunpack.c.h.b16 %v126
  %v674 = vunpack.c.l.b16 %v127
  %v675 = vunpack.c.h.b16 %v127
  %v676 = vunpack.c.l.b16 %v128
  %v677 = vunpack.c.h.b16 %v128
  %v678 = vunpack.c.l.b16 %v129
  %v679 = vunpack.c.h.b16 %v129
  %v680 = vunpack.c.l.b16 %v130
  %v681 = vunpack.c.h.b16 %v130
  %v682 = vunpack.c.l.b16 %v131
  %v683 = vunpack.c.h.b16 %v131
  %v684 = vunpack.c.l.b16 %v132
  %v685 = vunpack.c.h.b16 %v132
  %v686 = vunpack.c.l.b16 %v133
  %v687 = vunpack.c.h.b16 %v133
  %v688 = vunpack.c.l.b16 %v134
  %v689 = vunpack.c.h.b16 %v134
  %v690 = vunpack.c.l.b16 %v135
  %v691 = vunpack.c.h.b16 %v135
  %v692 = vunpack.c.l.b16 %v136
  %v693 = vunpack.c.h.b16 %v136
  %v694 = vunpack.c.l.b16 %v137
  %v695 = vunpack.c.h.b16 %v137
  %v696 = vunpack.c.l.b16 %v138
  %v697 = vunpack.c.h.b16 %v138
  %v698 = vunpack.c.l.b16 %v139
  %v699 = vunpack.c.h.b16 %v139
  %v700 = vunpack.c.l.b16 %v140
  %v701 = vunpack.c.h.b16 %v140
  %v702 = vunpack.c.l.b16 %v141
  %v703 = vunpack.c.h.b16 %v141
  %v704 = vunpack.c.l.b16 %v142
  %v705 = vunpack.c.h.b16 %v142
  %v706 = vunpack.c.l.b16 %v143
  %v707 = vunpack.c.h.b16 %v143
  %v708 = vunpack.c.l.b16 %v144
  %v709 = vunpack.c.h.b16 %v144
  %v710 = vunpack.c.l.b16 %v145
  %v711 = vunpack.c.h.b16 %v145
  %v712 = vunpack.c.l.b16 %v146
  %v713 = vunpack.c.h.b16 %v146
  %v714 = vunpack.c.l.b16 %v147
  %v715 = vunpack.c.h.b16 %v147
  %v716 = vunpack.c.l.b16 %v148
  %v717 = vunpack.c.h.b16 %v148
  %v718 = vunpack.c.l.b16 %v149
  %v719 = vunpack.c.h.b16 %v149
  %v720 = vunpack.c.l.b16 %v150
  %v721 = vunpack.c.h.b16 %v150
  %v722 = vunpack.c.l.b16 %v151
  %v723 = vunpack.c.h.b16 %v151
  %v724 = vunpack.c.l.b16 %v152
  %v725 = vunpack.c.h.b16 %v152
  %v726 = vunpack.c.l.b16 %v153
  %v727 = vunpack.c.h.b16 %v153
  %v728 = vunpack.c.l.b16 %v154
  %v729 = vunpack.c.h.b16 %v154
  %v730 = vunpack.c.l.b16 %v155
  %v731 = vunpack.c.h.b16 %v155
  %v732 = vunpack.c.l.b16 %v156
  %v733 = vunpack.c.h.b16 %v156
  %v734 = vunpack.c.l.b16 %v157
  %v735 = vunpack.c.h.b16 %v157
  %v736 = vunpack.c.l.b16 %v158
  %v737 = vunpack.c.h.b16 %v158
  %v738 = vunpack.c.l.b16 %v159
  %v739 = vunpack.c.h.b16 %v159
  %v740 = vunpack.c.l.b16 %v160
  %v741 = vunpack.c.h.b16 %v160
  %v742 = vunpack.c.l.b16 %v161
  %v743 = vunpack.c.h.b16 %v161
  %v744 = vunpack.c.l.b16 %v162
  %v745 = vunpack.c.h.b16 %v162
  %v746 = vunpack.c.l.b16 %v163
  %v747 = vunpack.c.h.b16 %v163
  %v748 = vunpack.c.l.b16 %v164
  %v749 = vunpack.c.h.b16 %v164
  %v750 = vunpack.c.l.b16 %v165
  %v751 = vunpack.c.h.b16 %v165
  %v752 = vunpack.c.l.b16 %v166
  %v753 = vunpack.c.h.b16 %v166
  %v754 = vunpack.c.l.b16 %v167
  %v755 = vunpack.c.h.b16 %v167
  %v756 = vunpack.c.l.b16 %v168
  %v757 = vunpack.c.h.b16 %v168
  %v758 = vunpack.c.l.b16 %v169
  %v759 = vunpack.c.h.b16 %v169
  %v760 = vunpack.c.l.b16 %v170
  %v761 = vunpack.c.h.b16 %v170
  %v762 = vunpack.c.l.b16 %v171
  %v763 = vunpack.c.h.b16 %v171
  %v764 = vunpack.c.l.b16 %v172
  %v765 = vunpack.c.h.b16 %v172
  %v766 = vunpack.c.l.b16 %v173
  %v767 = vunpack.c.h.b16 %v173
  %v768 = vunpack.c.l.b16 %v174
  %v769 = vunpack.c.h.b16 %v174
  %v770 = vunpack.c.l.b16 %v175
  %v771 = vunpack.c.h.b16 %v175
  %v772 = vunpack.c.l.b16 %v176
  %v773 = vunpack.c.h.b16 %v176
  %v774 = vunpack.c.l.b16 %v177
  %v775 = vunpack.c.h.b16 %v177
  %v776 = vunpack.c.l.b16 %v178
  %v777 = vunpack.c.h.b16 %v178
  %v778 = vunpack.c.l.b16 %v179
  %v779 = vunpack.c.h.b16 %v179
  %v780 = vunpack.c.l.b16 %v180
  %v781 = vunpack.c.h.b16 %v180
  %v782 = vunpack.c.l.b16 %v181
  %v783 = vunpack.c.h.b16 %v181
  %v784 = vunpack.c.l.b16 %v182
  %v785 = vunpack.c.h.b16 %v182
  %v786 = vunpack.c.l.b16 %v183
  %v787 = vunpack.c.h.b16 %v183
  %v788 = vunpack.c.l.b16 %v184
  %v789 = vunpack.c.h.b16 %v184
  %v790 = vunpack.c.l.b16 %v185
  %v791 = vunpack.c.h.b16 %v185
  %v792 = vunpack.c.l.b16 %v186
  %v793 = vunpack.c.h.b16 %v186
  %v794 = vunpack.c.l.b16 %v187
  %v795 = vunpack.c.h.b16 %v187
  %v796 = vunpack.c.l.b16 %v188
  %v797 = vunpack.c.h.b16 %v188
  %v798 = vunpack.c.l.b16 %v189
  %v799 = vunpack.c.h.b16 %v189
  %v800 = vunpack.c.l.b16 %v190
  %v801 = vunpack.c.h.b16 %v190
  %v802 = vunpack.c.l.b16 %v191
  %v803 = vunpack.c.h.b16 %v191
  %v804 = vunpack.c.l.b16 %v192
  %v805 = vunpack.c.h.b16 %v192
  %v806 = vunpack.c.l.b16 %v193
  %v807 = vunpack.c.h.b16 %v193
  %v808 = vunpack.c.l.b16 %v194
  %v809 = vunpack.c.h.b16 %v194
  %v810 = vunpack.c.l.b16 %v195
  %v811 = vunpack.c.h.b16 %v195
  %v812 = vunpack.c.l.b16 %v196
  %v813 = vunpack.c.h.b16 %v196
  %v814 = vunpack.c.l.b16 %v197
  %v815 = vunpack.c.h.b16 %v197
  %v816 = vunpack.c.l.b16 %v198
  %v817 = vunpack.c.h.b16 %v198
  %v818 = vunpack.c.l.b16 %v199
  %v819 = vunpack.c.h.b16 %v199
  %v820 = vunpack.c.l.b16 %v200
  %v821 = vunpack.c.h.b16 %v200
  %v822 = vunpack.c.l.b16 %v201
  %v823 = vunpack.c.h.b16 %v201
  %v824 = vunpack.c.l.b16 %v202
  %v825 = vunpack.c.h.b16 %v202
  %v826 = vunpack.c.l.b16 %v203
  %v827 = vunpack.c.h.b16 %v203
  %v828 = vunpack.c.l.b16 %v204
  %v829 = vunpack.c.h.b16 %v204
  %v830 = vunpack.c.l.b16 %v205
  %v831 = vunpack.c.h.b16 %v205
  %v832 = vunpack.c.l.b16 %v206
  %v833 = vunpack.c.h.b16 %v206
  %v834 = vunpack.c.l.b16 %v207
  %v835 = vunpack.c.h.b16 %v207
  %v836 = vunpack.c.l.b16 %v208
  %v837 = vunpack.c.h.b16 %v208
  %v838 = vunpack.c.l.b16 %v209
  %v839 = vunpack.c.h.b16 %v209
  %v840 = vunpack.c.l.b16 %v210
  %v841 = vunpack.c.h.b16 %v210
  %v842 = vunpack.c.l.b16 %v211
  %v843 = vunpack.c.h.b16 %v211
  %v844 = vunpack.c.l.b16 %v212
  %v845 = vunpack.c.h.b16 %v212
  %v846 = vunpack.c.l.b16 %v213
  %v847 = vunpack.c.h.b16 %v213
  %v848 = vunpack.c.l.b16 %v214
  %v849 = vunpack.c.h.b16 %v214
  %v850 = vunpack.c.l.b16 %v215
  %v851 = vunpack.c.h.b16 %v215
  %v852 = vunpack.c.l.b16 %v216
  %v853 = vunpack.c.h.b16 %v216
  %v854 = vunpack.c.l.b16 %v217
  %v855 = vunpack.c.h.b16 %v217
  %v856 = vunpack.c.l.b16 %v218
  %v857 = vunpack.c.h.b16 %v218
  %v858 = vunpack.c.l.b16 %v219
  %v859 = vunpack.c.h.b16 %v219
  %v860 = vunpack.c.l.b16 %v220
  %v861 = vunpack.c.h.b16 %v220
  %v862 = vunpack.c.l.b16 %v221
  %v863 = vunpack.c.h.b16 %v221
  %v864 = vunpack.c.l.b16 %v222
  %v865 = vunpack.c.h.b16 %v222
  %v866 = vunpack.c.l.b16 %v223
  %v867 = vunpack.c.h.b16 %v223
  %v868 = vunpack.c.l.b16 %v224
  %v869 = vunpack.c.h.b16 %v224
  %v870 = vunpack.c.l.b16 %v225
  %v871 = vunpack.c.h.b16 %v225
  %v872 = vunpack.c.l.b16 %v226
  %v873 = vunpack.c.h.b16 %v226
  %v874 = vunpack.c.l.b16 %v227
  %v875 = vunpack.c.h.b16 %v227
  %v876 = vpack.c.b16 %v494, %v492
  %v877 = vpack.c.b16 %v495, %v493
  %v878 = vpack.c.b16 %v498, %v496
  %v879 = vpack.c.b16 %v499, %v497
  %v880 = vpack.c.b16 %v502, %v500
  %v881 = vpack.c.b16 %v503, %v501
  %v882 = vpack.c.b16 %v506, %v504
  %v883 = vpack.c.b16 %v507, %v505
  %v884 = vpack.c.b16 %v510, %v508
  %v885 = vpack.c.b16 %v511, %v509
  %v886 = vpack.c.b16 %v514, %v512
  %v887 = vpack.c.b16 %v515, %v513
  %v888 = vpack.c.b16 %v518, %v516
  %v889 = vpack.c.b16 %v519, %v517
  %v890 = vpack.c.b16 %v522, %v520
  %v891 = vpack.c.b16 %v523, %v521
  %v892 = vpack.c.b16 %v526, %v524
  %v893 = vpack.c.b16 %v527, %v525
  %v894 = vpack.c.b16 %v530, %v528
  %v895 = vpack.c.b16 %v531, %v529
  %v896 = vpack.c.b16 %v534, %v532
  %v897 = vpack.c.b16 %v535, %v533
  %v898 = vpack.c.b16 %v538, %v536
  %v899 = vpack.c.b16 %v539, %v537
  %v900 = vpack.c.b16 %v542, %v540
  %v901 = vpack.c.b16 %v543, %v541
  %v902 = vpack.c.b16 %v546, %v544
  %v903 = vpack.c.b16 %v547, %v545
  %v904 = vpack.c.b16 %v550, %v548
  %v905 = vpack.c.b16 %v551, %v549
  %v906 = vpack.c.b16 %v554, %v552
  %v907 = vpack.c.b16 %v555, %v553
  %v908 = vpack.c.b16 %v558, %v556
  %v909 = vpack.c.b16 %v559, %v557
  %v910 = vpack.c.b16 %v562, %v560
  %v911 = vpack.c.b16 %v563, %v561
  %v912 = vpack.c.b16 %v566, %v564
  %v913 = vpack.c.b16 %v567, %v565
  %v914 = vpack.c.b16 %v570, %v568
  %v915 = vpack.c.b16 %v571, %v569
  %v916 = vpack.c.b16 %v574, %v572
  %v917 = vpack.c.b16 %v575, %v573
  %v918 = vpack.c.b16 %v578, %v576
  %v919 = vpack.c.b16 %v579, %v577
  %v920 = vpack.c.b16 %v582, %v580
  %v921 = vpack.c.b16 %v583, %v581
  %v922 = vpack.c.b16 %v586, %v584
  %v923 = vpack.c.b16 %v587, %v585
  %v924 = vpack.c.b16 %v590, %v588
  %v925 = vpack.c.b16 %v591, %v589
  %v926 = vpack.c.b16 %v594, %v592
  %v927 = vpack.c.b16 %v595, %v593
  %v928 = vpack.c.b16 %v598, %v596
  %v929 = vpack.c.b16 %v599, %v597
  %v930 = vpack.c.b16 %v602, %v600
  %v931 = vpack.c.b16 %v603, %v601
  %v932 = vpack.c.b16 %v606, %v604
  %v933 = vpack.c.b16 %v607, %v605
  %v934 = vpack.c.b16 %v610, %v608
  %v935 = vpack.c.b16 %v611, %v609
  %v936 = vpack.c.b16 %v614, %v612
  %v937 = vpack.c.b16 %v615, %v613
  %v938 = vpack.c.b16 %v618, %v616
  %v939 = vpack.c.b16 %v619, %v617
  %v940 = vpack.c.b16 %v622, %v620
  %v941 = vpack.c.b16 %v623, %v621
  %v942 = vpack.c.b16 %v626, %v624
  %v943 = vpack.c.b16 %v627, %v625
  %v944 = vpack.c.b16 %v630, %v628
  %v945 = vpack.c.b16 %v631, %v629
  %v946 = vpack.c.b16 %v634, %v632
  %v947 = vpack.c.b16 %v635, %v633
  %v948 = vpack.c.b16 %v638, %v636
  %v949 = vpack.c.b16 %v639, %v637
  %v950 = vpack.c.b16 %v642, %v640
  %v951 = vpack.c.b16 %v643, %v641
  %v952 = vpack.c.b16 %v646, %v644
  %v953 = vpack.c.b16 %v647, %v645
  %v954 = vpack.c.b16 %v650, %v648
  %v955 = vpack.c.b16 %v651, %v649
  %v956 = vpack.c.b16 %v654, %v652
  %v957 = vpack.c.b16 %v655, %v653
  %v958 = vpack.c.b16 %v658, %v656
  %v959 = vpack.c.b16 %v659, %v657
  %v960 = vpack.c.b16 %v662, %v660
  %v961 = vpack.c.b16 %v663, %v661
  %v962 = vpack.c.b16 %v666, %v664
  %v963 = vpack.c.b16 %v667, %v665
  %v964 = vpack.c.b16 %v670, %v668
  %v965 = vpack.c.b16 %v671, %v669
  %v966 = vpack.c.b16 %v674, %v672
  %v967 = vpack.c.b16 %v675, %v673
  %v968 = vpack.c.b16 %v678, %v676
  %v969 = vpack.c.b16 %v679, %v677
  %v970 = vpack.c.b16 %v682, %v680
  %v971 = vpack.c.b16 %v683, %v681
  %v972 = vpack.c.b16 %v686, %v684
  %v973 = vpack.c.b16 %v687, %v685
  %v974 = vpack.c.b16 %v690, %v688
  %v975 = vpack.c.b16 %v691, %v689
  %v976 = vpack.c.b16 %v694, %v692
  %v977 = vpack.c.b16 %v695, %v693
  %v978 = vpack.c.b16 %v698, %v696
  %v979 = vpack.c.b16 %v699, %v697
  %v980 = vpack.c.b16 %v702, %v700
  %v981 = vpack.c.b16 %v703, %v701
  %v982 = vpack.c.b16 %v706, %v704
  %v983 = vpack.c.b16 %v707, %v705
  %v984 = vpack.c.b16 %v710, %v708
  %v985 = vpack.c.b16 %v711, %v709
  %v986 = vpack.c.b16 %v714, %v712
  %v987 = vpack.c.b16 %v715, %v713
  %v988 = vpack.c.b16 %v718, %v716
  %v989 = vpack.c.b16 %v719, %v717
  %v990 = vpack.c.b16 %v722, %v720
  %v991 = vpack.c.b16 %v723, %v721
  %v992 = vpack.c.b16 %v726, %v724
  %v993 = vpack.c.b16 %v727, %v725
  %v994 = vpack.c.b16 %v730, %v728
  %v995 = vpack.c.b16 %v731, %v729
  %v996 = vpack.c.b16 %v734, %v732
  %v997 = vpack.c.b16 %v735, %v733
  %v998 = vpack.c.b16 %v738, %v736
  %v999 = vpack.c.b16 %v739, %v737
  %v1000 = vpack.c.b16 %v742, %v740
  %v1001 = vpack.c.b16 %v743, %v741
  %v1002 = vpack.c.b16 %v746, %v744
  %v1003 = vpack.c.b16 %v747, %v745
  %v1004 = vpack.c.b16 %v750, %v748
  %v1005 = vpack.c.b16 %v751, %v749
  %v1006 = vpack.c.b16 %v754, %v752
  %v1007 = vpack.c.b16 %v755, %v753
  %v1008 = vpack.c.b16 %v758, %v756
  %v1009 = vpack.c.b16 %v759, %v757
  %v1010 = vpack.c.b16 %v762, %v760
  %v1011 = vpack.c.b16 %v763, %v761
  %v1012 = vpack.c.b16 %v766, %v764
  %v1013 = vpack.c.b16 %v767, %v765
  %v1014 = vpack.c.b16 %v770, %v768
  %v1015 = vpack.c.b16 %v771, %v769
  %v1016 = vpack.c.b16 %v774, %v772
  %v1017 = vpack.c.b16 %v775, %v773
  %v1018 = vpack.c.b16 %v778, %v776
  %v1019 = vpack.c.b16 %v779, %v777
  %v1020 = vpack.c.b16 %v782, %v780
  %v1021 = vpack.c.b16 %v783, %v781
  %v1022 = vpack.c.b16 %v786, %v784
  %v1023 = vpack.c.b16 %v787, %v785
  %v1024 = vpack.c.b16 %v790, %v788
  %v1025 = vpack.c.b16 %v791, %v789
  %v1026 = vpack.c.b16 %v794, %v792
  %v1027 = vpack.c.b16 %v795, %v793
  %v1028 = vpack.c.b16 %v798, %v796
  %v1029 = vpack.c.b16 %v799, %v797
  %v1030 = vpack.c.b16 %v802, %v800
  %v1031 = vpack.c.b16 %v803, %v801
  %v1032 = vpack.c.b16 %v806, %v804
  %v1033 = vpack.c.b16 %v807, %v805
  %v1034 = vpack.c.b16 %v810, %v808
  %v1035 = vpack.c.b16 %v811, %v809
  %v1036 = vpack.c.b16 %v814, %v812
  %v1037 = vpack.c.b16 %v815, %v813
  %v1038 = vpack.c.b16 %v818, %v816
  %v1039 = vpack.c.b16 %v819, %v817
  %v1040 = vpack.c.b16 %v822, %v820
  %v1041 = vpack.c.b16 %v823, %v821
  %v1042 = vpack.c.b16 %v826, %v824
  %v1043 = vpack.c.b16 %v827, %v825
  %v1044 = vpack.c.b16 %v830, %v828
  %v1045 = vpack.c.b16 %v831, %v829
  %v1046 = vpack.c.b16 %v834, %v832
  %v1047 = vpack.c.b16 %v835, %v833
  %v1048 = vpack.c.b16 %v838, %v836
  %v1049 = vpack.c.b16 %v839, %v837
  %v1050 = vpack.c.b16 %v842, %v840
  %v1051 = vpack.c.b16 %v843, %v841
  %v1052 = vpack.c.b16 %v846, %v844
  %v1053 = vpack.c.b16 %v847, %v845
  %v1054 = vpack.c.b16 %v850, %v848
  %v1055 = vpack.c.b16 %v851, %v849
  %v1056 = vpack.c.b16 %v854, %v852
  %v1057 = vpack.c.b16 %v855, %v853
  %v1058 = vpack.c.b16 %v858, %v856
  %v1059 = vpack.c.b16 %v859, %v857
  %v1060 = vpack.c.b16 %v862, %v860
  %v1061 = vpack.c.b16 %v863, %v861
  %v1062 = vpack.c.b16 %v866, %v864
  %v1063 = vpack.c.b16 %v867, %v865
  %v1064 = vpack.c.b16 %v870, %v868
  %v1065 = vpack.c.b16 %v871, %v869
  %v1066 = vpack.c.b16 %v874, %v872
  %v1067 = vpack.c.b16 %v875, %v873
  %1260 = vmatprep.subr.bf16.mxu0 %v877
  %1261 = vmatpush1.bf16.msra.mxu0 %v876
  %1262 = vmatprep.subr.bf16.mxu0 %v879
  %1263 = vmatpush1.bf16.msra.mxu0 %v878
  %1264 = vmatprep.subr.bf16.mxu0 %v881
  %1265 = vmatpush1.bf16.msra.mxu0 %v880
  %1266 = vmatprep.subr.bf16.mxu0 %v883
  %1267 = vmatpush1.bf16.msra.mxu0 %v882
  %1268 = vmatprep.subr.bf16.mxu0 %v885
  %1269 = vmatpush1.bf16.msra.mxu0 %v884
  %1270 = vmatprep.subr.bf16.mxu0 %v887
  %1271 = vmatpush1.bf16.msra.mxu0 %v886
  %1272 = vmatprep.subr.bf16.mxu0 %v889
  %1273 = vmatpush1.bf16.msra.mxu0 %v888
  %1274 = vmatprep.subr.bf16.mxu0 %v891
  %1275 = vmatpush1.bf16.msra.mxu0 %v890
  %1276 = vmatprep.subr.bf16.mxu0 %v893
  %1277 = vmatpush1.bf16.msra.mxu0 %v892
  %1278 = vmatprep.subr.bf16.mxu0 %v895
  %1279 = vmatpush1.bf16.msra.mxu0 %v894
  %1280 = vmatprep.subr.bf16.mxu0 %v897
  %1281 = vmatpush1.bf16.msra.mxu0 %v896
  %1282 = vmatprep.subr.bf16.mxu0 %v899
  %1283 = vmatpush1.bf16.msra.mxu0 %v898
  %1284 = vmatprep.subr.bf16.mxu0 %v901
  %1285 = vmatpush1.bf16.msra.mxu0 %v900
  %1286 = vmatprep.subr.bf16.mxu0 %v903
  %1287 = vmatpush1.bf16.msra.mxu0 %v902
  %1288 = vmatprep.subr.bf16.mxu0 %v905
  %1289 = vmatpush1.bf16.msra.mxu0 %v904
  %1290 = vmatprep.subr.bf16.mxu0 %v907
  %1291 = vmatpush1.bf16.msra.mxu0 %v906
  %1292 = vmatprep.mubr.bf16.mxu0 %v277
  %1293 = vmatmul.mubr.bf16.gmra.mrb[0].mxu0 %v276
  %v1294 = vpop.f32.mrb[0].mxu0
  %v1295 = vadd.f32 %v233, %v1294
  %v1296 = vpop.f32.mrb[0].mxu0
  %v1297 = vadd.f32 %v237, %v1296
  %v1298 = vpop.f32.mrb[0].mxu0
  %v1299 = vadd.f32 %v233, %v1298
  %v1300 = vpop.f32.mrb[0].mxu0
  %v1301 = vadd.f32 %v237, %v1300
  %1302 = vdwg.mxu0
  %1303 = vmatprep.subr.bf16.mxu0 %v909
  %1304 = vmatpush1.bf16.msra.mxu0 %v908
  %1305 = vmatprep.subr.bf16.mxu0 %v911
  %1306 = vmatpush1.bf16.msra.mxu0 %v910
  %1307 = vmatprep.subr.bf16.mxu0 %v913
  %1308 = vmatpush1.bf16.msra.mxu0 %v912
  %1309 = vmatprep.subr.bf16.mxu0 %v915
  %1310 = vmatpush1.bf16.msra.mxu0 %v914
  %1311 = vmatprep.subr.bf16.mxu0 %v917
  %1312 = vmatpush1.bf16.msra.mxu0 %v916
  %1313 = vmatprep.subr.bf16.mxu0 %v919
  %1314 = vmatpush1.bf16.msra.mxu0 %v918
  %1315 = vmatprep.subr.bf16.mxu0 %v921
  %1316 = vmatpush1.bf16.msra.mxu0 %v920
  %1317 = vmatprep.subr.bf16.mxu0 %v923
  %1318 = vmatpush1.bf16.msra.mxu0 %v922
  %1319 = vmatprep.subr.bf16.mxu0 %v925
  %1320 = vmatpush1.bf16.msra.mxu0 %v924
  %1321 = vmatprep.subr.bf16.mxu0 %v927
  %1322 = vmatpush1.bf16.msra.mxu0 %v926
  %1323 = vmatprep.subr.bf16.mxu0 %v929
  %1324 = vmatpush1.bf16.msra.mxu0 %v928
  %1325 = vmatprep.subr.bf16.mxu0 %v931
  %1326 = vmatpush1.bf16.msra.mxu0 %v930
  %1327 = vmatprep.subr.bf16.mxu0 %v933
  %1328 = vmatpush1.bf16.msra.mxu0 %v932
  %1329 = vmatprep.subr.bf16.mxu0 %v935
  %1330 = vmatpush1.bf16.msra.mxu0 %v934
  %1331 = vmatprep.subr.bf16.mxu0 %v937
  %1332 = vmatpush1.bf16.msra.mxu0 %v936
  %1333 = vmatprep.subr.bf16.mxu0 %v939
  %1334 = vmatpush1.bf16.msra.mxu0 %v938
  %1335 = vmatprep.mubr.bf16.mxu0 %v279
  %1336 = vmatmul.mubr.bf16.gmra.mrb[0].mxu0 %v278
  %v1337 = vpop.f32.mrb[0].mxu0
  %v1338 = vadd.f32 %v1295, %v1337
  %v1339 = vpop.f32.mrb[0].mxu0
  %v1340 = vadd.f32 %v1297, %v1339
  %v1341 = vpop.f32.mrb[0].mxu0
  %v1342 = vadd.f32 %v1299, %v1341
  %v1343 = vpop.f32.mrb[0].mxu0
  %v1344 = vadd.f32 %v1301, %v1343
  %1345 = vdwg.mxu0
  %1346 = vmatprep.subr.bf16.mxu0 %v941
  %1347 = vmatpush1.bf16.msra.mxu0 %v940
  %1348 = vmatprep.subr.bf16.mxu0 %v943
  %1349 = vmatpush1.bf16.msra.mxu0 %v942
  %1350 = vmatprep.subr.bf16.mxu0 %v945
  %1351 = vmatpush1.bf16.msra.mxu0 %v944
  %1352 = vmatprep.subr.bf16.mxu0 %v947
  %1353 = vmatpush1.bf16.msra.mxu0 %v946
  %1354 = vmatprep.subr.bf16.mxu0 %v949
  %1355 = vmatpush1.bf16.msra.mxu0 %v948
  %1356 = vmatprep.subr.bf16.mxu0 %v951
  %1357 = vmatpush1.bf16.msra.mxu0 %v950
  %1358 = vmatprep.subr.bf16.mxu0 %v953
  %1359 = vmatpush1.bf16.msra.mxu0 %v952
  %1360 = vmatprep.subr.bf16.mxu0 %v955
  %1361 = vmatpush1.bf16.msra.mxu0 %v954
  %1362 = vmatprep.subr.bf16.mxu0 %v957
  %1363 = vmatpush1.bf16.msra.mxu0 %v956
  %1364 = vmatprep.subr.bf16.mxu0 %v959
  %1365 = vmatpush1.bf16.msra.mxu0 %v958
  %1366 = vmatprep.subr.bf16.mxu0 %v961
  %1367 = vmatpush1.bf16.msra.mxu0 %v960
  %1368 = vmatprep.subr.bf16.mxu0 %v963
  %1369 = vmatpush1.bf16.msra.mxu0 %v962
  %1370 = vmatprep.subr.bf16.mxu0 %v965
  %1371 = vmatpush1.bf16.msra.mxu0 %v964
  %1372 = vmatprep.subr.bf16.mxu0 %v967
  %1373 = vmatpush1.bf16.msra.mxu0 %v966
  %1374 = vmatprep.subr.bf16.mxu0 %v969
  %1375 = vmatpush1.bf16.msra.mxu0 %v968
  %1376 = vmatprep.subr.bf16.mxu0 %v971
  %1377 = vmatpush1.bf16.msra.mxu0 %v970
  %1378 = vmatprep.mubr.bf16.mxu0 %v281
  %1379 = vmatmul.mubr.bf16.gmra.mrb[0].mxu0 %v280
  %v1380 = vpop.f32.mrb[0].mxu0
  %v1381 = vadd.f32 %v1338, %v1380
  %v1382 = vpop.f32.mrb[0].mxu0
  %v1383 = vadd.f32 %v1340, %v1382
  %v1384 = vpop.f32.mrb[0].mxu0
  %v1385 = vadd.f32 %v1342, %v1384
  %v1386 = vpop.f32.mrb[0].mxu0
  %v1387 = vadd.f32 %v1344, %v1386
  %1388 = vdwg.mxu0
  %1389 = vmatprep.subr.bf16.mxu0 %v973
  %1390 = vmatpush1.bf16.msra.mxu0 %v972
  %1391 = vmatprep.subr.bf16.mxu0 %v975
  %1392 = vmatpush1.bf16.msra.mxu0 %v974
  %1393 = vmatprep.subr.bf16.mxu0 %v977
  %1394 = vmatpush1.bf16.msra.mxu0 %v976
  %1395 = vmatprep.subr.bf16.mxu0 %v979
  %1396 = vmatpush1.bf16.msra.mxu0 %v978
  %1397 = vmatprep.subr.bf16.mxu0 %v981
  %1398 = vmatpush1.bf16.msra.mxu0 %v980
  %1399 = vmatprep.subr.bf16.mxu0 %v983
  %1400 = vmatpush1.bf16.msra.mxu0 %v982
  %1401 = vmatprep.subr.bf16.mxu0 %v985
  %1402 = vmatpush1.bf16.msra.mxu0 %v984
  %1403 = vmatprep.subr.bf16.mxu0 %v987
  %1404 = vmatpush1.bf16.msra.mxu0 %v986
  %1405 = vmatprep.subr.bf16.mxu0 %v989
  %1406 = vmatpush1.bf16.msra.mxu0 %v988
  %1407 = vmatprep.subr.bf16.mxu0 %v991
  %1408 = vmatpush1.bf16.msra.mxu0 %v990
  %1409 = vmatprep.subr.bf16.mxu0 %v993
  %1410 = vmatpush1.bf16.msra.mxu0 %v992
  %1411 = vmatprep.subr.bf16.mxu0 %v995
  %1412 = vmatpush1.bf16.msra.mxu0 %v994
  %1413 = vmatprep.subr.bf16.mxu0 %v997
  %1414 = vmatpush1.bf16.msra.mxu0 %v996
  %1415 = vmatprep.subr.bf16.mxu0 %v999
  %1416 = vmatpush1.bf16.msra.mxu0 %v998
  %1417 = vmatprep.subr.bf16.mxu0 %v1001
  %1418 = vmatpush1.bf16.msra.mxu0 %v1000
  %1419 = vmatprep.subr.bf16.mxu0 %v1003
  %1420 = vmatpush1.bf16.msra.mxu0 %v1002
  %1421 = vmatprep.mubr.bf16.mxu0 %v283
  %1422 = vmatmul.mubr.bf16.gmra.mrb[0].mxu0 %v282
  %v1423 = vpop.f32.mrb[0].mxu0
  %v1424 = vadd.f32 %v1381, %v1423
  %v1425 = vpop.f32.mrb[0].mxu0
  %v1426 = vadd.f32 %v1383, %v1425
  %v1427 = vpop.f32.mrb[0].mxu0
  %v1428 = vadd.f32 %v1385, %v1427
  %v1429 = vpop.f32.mrb[0].mxu0
  %v1430 = vadd.f32 %v1387, %v1429
  %1431 = vdwg.mxu0
  %1432 = vmatprep.subr.bf16.mxu0 %v1005
  %1433 = vmatpush1.bf16.msra.mxu0 %v1004
  %1434 = vmatprep.subr.bf16.mxu0 %v1007
  %1435 = vmatpush1.bf16.msra.mxu0 %v1006
  %1436 = vmatprep.subr.bf16.mxu0 %v1009
  %1437 = vmatpush1.bf16.msra.mxu0 %v1008
  %1438 = vmatprep.subr.bf16.mxu0 %v1011
  %1439 = vmatpush1.bf16.msra.mxu0 %v1010
  %1440 = vmatprep.subr.bf16.mxu0 %v1013
  %1441 = vmatpush1.bf16.msra.mxu0 %v1012
  %1442 = vmatprep.subr.bf16.mxu0 %v1015
  %1443 = vmatpush1.bf16.msra.mxu0 %v1014
  %1444 = vmatprep.subr.bf16.mxu0 %v1017
  %1445 = vmatpush1.bf16.msra.mxu0 %v1016
  %1446 = vmatprep.subr.bf16.mxu0 %v1019
  %1447 = vmatpush1.bf16.msra.mxu0 %v1018
  %1448 = vmatprep.subr.bf16.mxu0 %v1021
  %1449 = vmatpush1.bf16.msra.mxu0 %v1020
  %1450 = vmatprep.subr.bf16.mxu0 %v1023
  %1451 = vmatpush1.bf16.msra.mxu0 %v1022
  %1452 = vmatprep.subr.bf16.mxu0 %v1025
  %1453 = vmatpush1.bf16.msra.mxu0 %v1024
  %1454 = vmatprep.subr.bf16.mxu0 %v1027
  %1455 = vmatpush1.bf16.msra.mxu0 %v1026
  %1456 = vmatprep.subr.bf16.mxu0 %v1029
  %1457 = vmatpush1.bf16.msra.mxu0 %v1028
  %1458 = vmatprep.subr.bf16.mxu0 %v1031
  %1459 = vmatpush1.bf16.msra.mxu0 %v1030
  %1460 = vmatprep.subr.bf16.mxu0 %v1033
  %1461 = vmatpush1.bf16.msra.mxu0 %v1032
  %1462 = vmatprep.subr.bf16.mxu0 %v1035
  %1463 = vmatpush1.bf16.msra.mxu0 %v1034
  %1464 = vmatprep.mubr.bf16.mxu0 %v285
  %1465 = vmatmul.mubr.bf16.gmra.mrb[0].mxu0 %v284
  %v1466 = vpop.f32.mrb[0].mxu0
  %v1467 = vadd.f32 %v1424, %v1466
  %v1468 = vpop.f32.mrb[0].mxu0
  %v1469 = vadd.f32 %v1426, %v1468
  %v1470 = vpop.f32.mrb[0].mxu0
  %v1471 = vadd.f32 %v1428, %v1470
  %v1472 = vpop.f32.mrb[0].mxu0
  %v1473 = vadd.f32 %v1430, %v1472
  %1474 = vdwg.mxu0
  %1475 = vmatprep.subr.bf16.mxu0 %v1037
  %1476 = vmatpush1.bf16.msra.mxu0 %v1036
  %1477 = vmatprep.subr.bf16.mxu0 %v1039
  %1478 = vmatpush1.bf16.msra.mxu0 %v1038
  %1479 = vmatprep.subr.bf16.mxu0 %v1041
  %1480 = vmatpush1.bf16.msra.mxu0 %v1040
  %1481 = vmatprep.subr.bf16.mxu0 %v1043
  %1482 = vmatpush1.bf16.msra.mxu0 %v1042
  %1483 = vmatprep.subr.bf16.mxu0 %v1045
  %1484 = vmatpush1.bf16.msra.mxu0 %v1044
  %1485 = vmatprep.subr.bf16.mxu0 %v1047
  %1486 = vmatpush1.bf16.msra.mxu0 %v1046
  %1487 = vmatprep.subr.bf16.mxu0 %v1049
  %1488 = vmatpush1.bf16.msra.mxu0 %v1048
  %1489 = vmatprep.subr.bf16.mxu0 %v1051
  %1490 = vmatpush1.bf16.msra.mxu0 %v1050
  %1491 = vmatprep.subr.bf16.mxu0 %v1053
  %1492 = vmatpush1.bf16.msra.mxu0 %v1052
  %1493 = vmatprep.subr.bf16.mxu0 %v1055
  %1494 = vmatpush1.bf16.msra.mxu0 %v1054
  %1495 = vmatprep.subr.bf16.mxu0 %v1057
  %1496 = vmatpush1.bf16.msra.mxu0 %v1056
  %1497 = vmatprep.subr.bf16.mxu0 %v1059
  %1498 = vmatpush1.bf16.msra.mxu0 %v1058
  %1499 = vmatprep.subr.bf16.mxu0 %v1061
  %1500 = vmatpush1.bf16.msra.mxu0 %v1060
  %1501 = vmatprep.subr.bf16.mxu0 %v1063
  %1502 = vmatpush1.bf16.msra.mxu0 %v1062
  %1503 = vmatprep.subr.bf16.mxu0 %v1065
  %1504 = vmatpush1.bf16.msra.mxu0 %v1064
  %1505 = vmatprep.subr.bf16.mxu0 %v1067
  %1506 = vmatpush1.bf16.msra.mxu0 %v1066
  %1507 = vmatprep.mubr.bf16.mxu0 %v287
  %1508 = vmatmul.mubr.bf16.gmra.mrb[0].mxu0 %v286
  %v1509 = vpop.f32.mrb[0].mxu0
  %v1510 = vadd.f32 %v1467, %v1509
  %v1511 = vpop.f32.mrb[0].mxu0
  %v1512 = vadd.f32 %v1469, %v1511
  %v1513 = vpop.f32.mrb[0].mxu0
  %v1514 = vadd.f32 %v1471, %v1513
  %v1515 = vpop.f32.mrb[0].mxu0
  %v1516 = vadd.f32 %v1473, %v1515
  %1517 = vdwg.mxu0
  %v1518 = vld [vmem:[%s3] sm:$0xff]
  %v1519 = vld [vmem:[%s3 + $0x8] sm:$0xff]
  %v1520 = vld [vmem:[%s3 + $0x10] sm:$0xff]
  %v1521 = vld [vmem:[%s3 + $0x18] sm:$0xff]
  %v1522 = vld [vmem:[%s3 + $0x20] sm:$0xff]
  %v1523 = vld [vmem:[%s3 + $0x28] sm:$0xff]
  %v1524 = vld [vmem:[%s3 + $0x30] sm:$0xff]
  %v1525 = vld [vmem:[%s3 + $0x38] sm:$0xff]
  %v1526 = vlaneseq
  %v1527 = vand.u32 %v1526, 127
  %v1528 = vadd.s32 %v1527, 128
  %vm1529 = vcmp.lt.s32.totalorder %v1527, 0
  %v1530 = vsub.s32 0, %v1527
  %v1531 = vsel %vm1529, %v1530, %v1527
  %v1532 = vshrl.u32 %v1531, 6
  %v1533 = vand.u32 %v1531, 63
  %v1534 = vsub.s32 0, %v1533
  %v1535 = vsel %vm1529, %v1534, %v1533
  %vm1536 = vcmp.lt.s32.totalorder %v1528, 0
  %v1537 = vsub.s32 0, %v1528
  %v1538 = vsel %vm1536, %v1537, %v1528
  %v1539 = vshrl.u32 %v1538, 6
  %v1540 = vand.u32 %v1538, 63
  %v1541 = vsub.s32 0, %v1540
  %v1542 = vsel %vm1536, %v1541, %v1540
  %vm1543 = vcmp.ne.s32.totalorder %v1535, 0
  %vm1544 = vcmp.ne.s32.totalorder %v1542, 0
  %vm1545 = vcmp.lt.s32.totalorder %v1535, 0
  %vm1546 = vcmp.lt.s32.totalorder %v1542, 0
  %vm1547 = vmand %vm1545, %vm1543
  %vm1548 = vmand %vm1546, %vm1544
  %v1549 = vadd.s32 %v1535, 64
  %v1550 = vadd.s32 %v1542, 64
  %v1551 = vsel %vm1547, %v1549, %v1535
  %v1552 = vsel %vm1548, %v1550, %v1542
  %vm1553 = vcmp.lt.s32.totalorder %v1551, 32
  %vm1554 = vcmp.lt.s32.totalorder %v1552, 32
  %v1557 = vrot.slane %v1514, 6
  %v1558 = vrot.slane %v1516, 6
  %v1561 = vsel %vm1553, %v1510, %v1557
  %v1562 = vsel %vm1554, %v1512, %v1558
  %v1571 = vunpack.c.l.b16 %v1518
  %v1572 = vunpack.c.h.b16 %v1518
  %v1573 = vunpack.c.l.b16 %v1519
  %v1574 = vunpack.c.h.b16 %v1519
  %v1575 = vunpack.c.l.b16 %v1520
  %v1576 = vunpack.c.h.b16 %v1520
  %v1577 = vunpack.c.l.b16 %v1521
  %v1578 = vunpack.c.h.b16 %v1521
  %v1579 = vunpack.c.l.b16 %v1522
  %v1580 = vunpack.c.h.b16 %v1522
  %v1581 = vunpack.c.l.b16 %v1523
  %v1582 = vunpack.c.h.b16 %v1523
  %v1583 = vunpack.c.l.b16 %v1524
  %v1584 = vunpack.c.h.b16 %v1524
  %v1585 = vunpack.c.l.b16 %v1525
  %v1586 = vunpack.c.h.b16 %v1525
  %v1587 = vpack.c.b16 %v1573, %v1571
  %v1588 = vpack.c.b16 %v1574, %v1572
  %v1589 = vpack.c.b16 %v1577, %v1575
  %v1590 = vpack.c.b16 %v1578, %v1576
  %v1591 = vpack.c.b16 %v1581, %v1579
  %v1592 = vpack.c.b16 %v1582, %v1580
  %v1593 = vpack.c.b16 %v1585, %v1583
  %v1594 = vpack.c.b16 %v1586, %v1584
  %vm1603 = vcmask 523264
  %v1605 = vsel %vm1603, 0, 0
  %1607 = vmatprep.subr.bf16.mxu0 %v1588
  %1608 = vmatpush1.bf16.msra.mxu0 %v1587
  %1609 = vmatprep.subr.bf16.mxu0 %v1590
  %1610 = vmatpush1.bf16.msra.mxu0 %v1589
  %1611 = vmatprep.subr.bf16.mxu0 %v1592
  %1612 = vmatpush1.bf16.msra.mxu0 %v1591
  %1613 = vmatprep.subr.bf16.mxu0 %v1594
  %1614 = vmatpush1.bf16.msra.mxu0 %v1593
  %1615 = vmatprep.subr.bf16.mxu0 0
  %1616 = vmatpush1.bf16.msra.mxu0 0
  %1617 = vmatprep.subr.bf16.mxu0 0
  %1618 = vmatpush1.bf16.msra.mxu0 0
  %1619 = vmatprep.subr.bf16.mxu0 0
  %1620 = vmatpush1.bf16.msra.mxu0 0
  %1621 = vmatprep.subr.bf16.mxu0 0
  %1622 = vmatpush1.bf16.msra.mxu0 0
  %1623 = vmatprep.subr.bf16.mxu0 0
  %1624 = vmatpush1.bf16.msra.mxu0 0
  %1625 = vmatprep.subr.bf16.mxu0 0
  %1626 = vmatpush1.bf16.msra.mxu0 0
  %1627 = vmatprep.subr.bf16.mxu0 0
  %1628 = vmatpush1.bf16.msra.mxu0 0
  %1629 = vmatprep.subr.bf16.mxu0 0
  %1630 = vmatpush1.bf16.msra.mxu0 0
  %1631 = vmatprep.subr.bf16.mxu0 0
  %1632 = vmatpush1.bf16.msra.mxu0 0
  %1633 = vmatprep.subr.bf16.mxu0 0
  %1634 = vmatpush1.bf16.msra.mxu0 0
  %1635 = vmatprep.subr.bf16.mxu0 0
  %1636 = vmatpush1.bf16.msra.mxu0 0
  %1637 = vmatprep.subr.bf16.mxu0 0
  %1638 = vmatpush1.bf16.msra.mxu0 0
  %1639 = vmatprep.mubr.bf16.mxu0 0
  %1640 = vmatmul.mubr.bf16.gmra.mrb[0].mxu0 %v1605
  %v1641 = vpop.f32.mrb[0].mxu0
  %v1642 = vadd.f32 0.0, %v1641
  %v1643 = vpop.f32.mrb[0].mxu0
  %v1644 = vadd.f32 0.0, %v1643
  %v1645 = vpop.f32.mrb[0].mxu0
  %v1646 = vpop.f32.mrb[0].mxu0
  %1647 = vdwg.mxu0
  %v1648 = vadd.f32 %v1561, %v1642
  %v1649 = vadd.f32 %v1562, %v1644
  %v1650 = vxor.u32 %v1648, 2147483648
  %v1651 = vmul.f32 %v1650, 1.442695
  %v1652 = vpow.pop %v1651
  %v1653 = vadd.f32 %v1652, 1.0
  %v1654 = vrcp.pop %v1653
  %v1655 = vmul.f32 1.0, %v1654
  %v1656 = vtanh.pop %v1649
  %v1657 = vxor.u32 %v1649, 2147483648
  %v1658 = vmul.f32 %v1657, 1.442695
  %v1659 = vpow.pop %v1658
  %v1660 = vadd.f32 %v1659, 1.0
  %v1661 = vrcp.pop %v1660
  %v1662 = vmul.f32 1.0, %v1661
  %v1663 = vmul.f32 %v1655, 0.0
  %v1664 = vmul.f32 %v1655, %v1656
  %1666 = vrot.lane.b32.xlu0 %v1664, 64
  %v1667 = vpop.permute.xlu0 %1666
  %v1669 = vadd.f32 %v1663, %v1667
  %v1670 = vtanh.pop %v1669
  %v1671 = vmul.f32 %v1662, %v1670
  %1673 = vrot.lane.b32.xlu0 %v1671, 64
  %v1674 = vpop.permute.xlu0 %1673
  %vm1676 = vcmask 517120
  %1677 = vst.msk [vmem:[#allocation2] sm:$0x3] %vm1676, %v1674
  %v1678 = vrot.slane %v1514, 2
  %v1679 = vrot.slane %v1516, 2
  %v1682 = vsel %vm1553, %v1510, %v1678
  %v1683 = vsel %vm1554, %v1512, %v1679
  %v1684 = vpack.c.bf16 %v1671, %v1671
  %1686 = vrot.lane.b32.xlu0 %v1684, 64
  %v1687 = vpop.permute.xlu0 %1686
  %v1689 = vsel %vm1603, %v1687, 0
  %1691 = vmatprep.subr.bf16.mxu0 %v1588
  %1692 = vmatpush1.bf16.msra.mxu0 %v1587
  %1693 = vmatprep.subr.bf16.mxu0 %v1590
  %1694 = vmatpush1.bf16.msra.mxu0 %v1589
  %1695 = vmatprep.subr.bf16.mxu0 %v1592
  %1696 = vmatpush1.bf16.msra.mxu0 %v1591
  %1697 = vmatprep.subr.bf16.mxu0 %v1594
  %1698 = vmatpush1.bf16.msra.mxu0 %v1593
  %1699 = vmatprep.subr.bf16.mxu0 0
  %1700 = vmatpush1.bf16.msra.mxu0 0
  %1701 = vmatprep.subr.bf16.mxu0 0
  %1702 = vmatpush1.bf16.msra.mxu0 0
  %1703 = vmatprep.subr.bf16.mxu0 0
  %1704 = vmatpush1.bf16.msra.mxu0 0
  %1705 = vmatprep.subr.bf16.mxu0 0
  %1706 = vmatpush1.bf16.msra.mxu0 0
  %1707 = vmatprep.subr.bf16.mxu0 0
  %1708 = vmatpush1.bf16.msra.mxu0 0
  %1709 = vmatprep.subr.bf16.mxu0 0
  %1710 = vmatpush1.bf16.msra.mxu0 0
  %1711 = vmatprep.subr.bf16.mxu0 0
  %1712 = vmatpush1.bf16.msra.mxu0 0
  %1713 = vmatprep.subr.bf16.mxu0 0
  %1714 = vmatpush1.bf16.msra.mxu0 0
  %1715 = vmatprep.subr.bf16.mxu0 0
  %1716 = vmatpush1.bf16.msra.mxu0 0
  %1717 = vmatprep.subr.bf16.mxu0 0
  %1718 = vmatpush1.bf16.msra.mxu0 0
  %1719 = vmatprep.subr.bf16.mxu0 0
  %1720 = vmatpush1.bf16.msra.mxu0 0
  %1721 = vmatprep.subr.bf16.mxu0 0
  %1722 = vmatpush1.bf16.msra.mxu0 0
  %1723 = vmatprep.mubr.bf16.mxu0 0
  %1724 = vmatmul.mubr.bf16.gmra.mrb[0].mxu0 %v1689
  %v1725 = vpop.f32.mrb[0].mxu0
  %v1726 = vadd.f32 0.0, %v1725
  %v1727 = vpop.f32.mrb[0].mxu0
  %v1728 = vadd.f32 0.0, %v1727
  %v1729 = vpop.f32.mrb[0].mxu0
  %v1730 = vpop.f32.mrb[0].mxu0
  %1731 = vdwg.mxu0
  %v1734 = vrot.slane %v1726, 6
  %v1735 = vrot.slane %v1728, 6
  %v1738 = vadd.f32 %v1682, %v1734
  %v1739 = vadd.f32 %v1683, %v1735
  %v1740 = vxor.u32 %v1738, 2147483648
  %v1741 = vmul.f32 %v1740, 1.442695
  %v1742 = vpow.pop %v1741
  %v1743 = vadd.f32 %v1742, 1.0
  %v1744 = vrcp.pop %v1743
  %v1745 = vmul.f32 1.0, %v1744
  %v1746 = vtanh.pop %v1739
  %v1747 = vxor.u32 %v1739, 2147483648
  %v1748 = vmul.f32 %v1747, 1.442695
  %v1749 = vpow.pop %v1748
  %v1750 = vadd.f32 %v1749, 1.0
  %v1751 = vrcp.pop %v1750
  %v1752 = vmul.f32 1.0, %v1751
  %v1754 = vrot.slane %v1669, 6
  %v1756 = vmul.f32 %v1745, %v1754
  %v1757 = vmul.f32 %v1745, %v1746
  %1759 = vrot.lane.b32.xlu0 %v1757, 64
  %v1760 = vpop.permute.xlu0 %1759
  %v1762 = vadd.f32 %v1756, %v1760
  %v1763 = vtanh.pop %v1762
  %v1764 = vmul.f32 %v1752, %v1763
  %1766 = vrot.lane.b32.xlu0 %v1764, 64
  %v1767 = vpop.permute.xlu0 %1766
  %s1769 = scalar_lea.vmem [#allocation2], 2
  %vm1770 = vcmask 519170
  %1771 = vst.msk [vmem:[%s1769 - $0x2] sm:$0xc] %vm1770, %v1767
  %v1772 = vpack.c.bf16 %v1764, %v1764
  %v1774 = vrot.slane %v1772, 1
  %1775 = vrot.lane.b32.xlu0 %v1774, 64
  %v1776 = vpop.permute.xlu0 %1775
  %v1778 = vsel %vm1603, %v1776, 0
  %1780 = vmatprep.subr.bf16.mxu0 %v1588
  %1781 = vmatpush1.bf16.msra.mxu0 %v1587
  %1782 = vmatprep.subr.bf16.mxu0 %v1590
  %1783 = vmatpush1.bf16.msra.mxu0 %v1589
  %1784 = vmatprep.subr.bf16.mxu0 %v1592
  %1785 = vmatpush1.bf16.msra.mxu0 %v1591
  %1786 = vmatprep.subr.bf16.mxu0 %v1594
  %1787 = vmatpush1.bf16.msra.mxu0 %v1593
  %1788 = vmatprep.subr.bf16.mxu0 0
  %1789 = vmatpush1.bf16.msra.mxu0 0
  %1790 = vmatprep.subr.bf16.mxu0 0
  %1791 = vmatpush1.bf16.msra.mxu0 0
  %1792 = vmatprep.subr.bf16.mxu0 0
  %1793 = vmatpush1.bf16.msra.mxu0 0
  %1794 = vmatprep.subr.bf16.mxu0 0
  %1795 = vmatpush1.bf16.msra.mxu0 0
  %1796 = vmatprep.subr.bf16.mxu0 0
  %1797 = vmatpush1.bf16.msra.mxu0 0
  %1798 = vmatprep.subr.bf16.mxu0 0
  %1799 = vmatpush1.bf16.msra.mxu0 0
  %1800 = vmatprep.subr.bf16.mxu0 0
  %1801 = vmatpush1.bf16.msra.mxu0 0
  %1802 = vmatprep.subr.bf16.mxu0 0
  %1803 = vmatpush1.bf16.msra.mxu0 0
  %1804 = vmatprep.subr.bf16.mxu0 0
  %1805 = vmatpush1.bf16.msra.mxu0 0
  %1806 = vmatprep.subr.bf16.mxu0 0
  %1807 = vmatpush1.bf16.msra.mxu0 0
  %1808 = vmatprep.subr.bf16.mxu0 0
  %1809 = vmatpush1.bf16.msra.mxu0 0
  %1810 = vmatprep.subr.bf16.mxu0 0
  %1811 = vmatpush1.bf16.msra.mxu0 0
  %1812 = vmatprep.mubr.bf16.mxu0 0
  %1813 = vmatmul.mubr.bf16.gmra.mrb[0].mxu0 %v1778
  %v1814 = vpop.f32.mrb[0].mxu0
  %v1815 = vadd.f32 0.0, %v1814
  %v1816 = vpop.f32.mrb[0].mxu0
  %v1817 = vadd.f32 0.0, %v1816
  %v1818 = vpop.f32.mrb[0].mxu0
  %v1819 = vpop.f32.mrb[0].mxu0
  %1820 = vdwg.mxu0
  %v1823 = vrot.slane %v1815, 4
  %v1824 = vrot.slane %v1817, 4
  %v1827 = vadd.f32 %v1561, %v1823
  %v1828 = vadd.f32 %v1562, %v1824
  %v1829 = vxor.u32 %v1827, 2147483648
  %v1830 = vmul.f32 %v1829, 1.442695
  %v1831 = vpow.pop %v1830
  %v1832 = vadd.f32 %v1831, 1.0
  %v1833 = vrcp.pop %v1832
  %v1834 = vmul.f32 1.0, %v1833
  %v1835 = vtanh.pop %v1828
  %v1836 = vxor.u32 %v1828, 2147483648
  %v1837 = vmul.f32 %v1836, 1.442695
  %v1838 = vpow.pop %v1837
  %v1839 = vadd.f32 %v1838, 1.0
  %v1840 = vrcp.pop %v1839
  %v1841 = vmul.f32 1.0, %v1840
  %v1843 = vrot.slane %v1762, 6
  %v1845 = vmul.f32 %v1834, %v1843
  %v1846 = vmul.f32 %v1834, %v1835
  %1848 = vrot.lane.b32.xlu0 %v1846, 64
  %v1849 = vpop.permute.xlu0 %1848
  %v1851 = vadd.f32 %v1845, %v1849
  %v1852 = vtanh.pop %v1851
  %v1853 = vmul.f32 %v1841, %v1852
  %1855 = vrot.lane.b32.xlu0 %v1853, 64
  %v1856 = vpop.permute.xlu0 %1855
  %s1858 = scalar_lea.vmem [#allocation2], 4
  %vm1859 = vcmask 521220
  %1860 = vst.msk [vmem:[%s1858 - $0x4] sm:$0x30] %vm1859, %v1856
  %v1861 = vpack.c.bf16 %v1853, %v1853
  %v1863 = vrot.slane %v1861, 2
  %1864 = vrot.lane.b32.xlu0 %v1863, 64
  %v1865 = vpop.permute.xlu0 %1864
  %v1867 = vsel %vm1603, %v1865, 0
  %1869 = vmatprep.subr.bf16.mxu0 %v1588
  %1870 = vmatpush1.bf16.msra.mxu0 %v1587
  %1871 = vmatprep.subr.bf16.mxu0 %v1590
  %1872 = vmatpush1.bf16.msra.mxu0 %v1589
  %1873 = vmatprep.subr.bf16.mxu0 %v1592
  %1874 = vmatpush1.bf16.msra.mxu0 %v1591
  %1875 = vmatprep.subr.bf16.mxu0 %v1594
  %1876 = vmatpush1.bf16.msra.mxu0 %v1593
  %1877 = vmatprep.subr.bf16.mxu0 0
  %1878 = vmatpush1.bf16.msra.mxu0 0
  %1879 = vmatprep.subr.bf16.mxu0 0
  %1880 = vmatpush1.bf16.msra.mxu0 0
  %1881 = vmatprep.subr.bf16.mxu0 0
  %1882 = vmatpush1.bf16.msra.mxu0 0
  %1883 = vmatprep.subr.bf16.mxu0 0
  %1884 = vmatpush1.bf16.msra.mxu0 0
  %1885 = vmatprep.subr.bf16.mxu0 0
  %1886 = vmatpush1.bf16.msra.mxu0 0
  %1887 = vmatprep.subr.bf16.mxu0 0
  %1888 = vmatpush1.bf16.msra.mxu0 0
  %1889 = vmatprep.subr.bf16.mxu0 0
  %1890 = vmatpush1.bf16.msra.mxu0 0
  %1891 = vmatprep.subr.bf16.mxu0 0
  %1892 = vmatpush1.bf16.msra.mxu0 0
  %1893 = vmatprep.subr.bf16.mxu0 0
  %1894 = vmatpush1.bf16.msra.mxu0 0
  %1895 = vmatprep.subr.bf16.mxu0 0
  %1896 = vmatpush1.bf16.msra.mxu0 0
  %1897 = vmatprep.subr.bf16.mxu0 0
  %1898 = vmatpush1.bf16.msra.mxu0 0
  %1899 = vmatprep.subr.bf16.mxu0 0
  %1900 = vmatpush1.bf16.msra.mxu0 0
  %1901 = vmatprep.mubr.bf16.mxu0 0
  %1902 = vmatmul.mubr.bf16.gmra.mrb[0].mxu0 %v1867
  %v1903 = vpop.f32.mrb[0].mxu0
  %v1904 = vadd.f32 0.0, %v1903
  %v1905 = vpop.f32.mrb[0].mxu0
  %v1906 = vadd.f32 0.0, %v1905
  %v1907 = vpop.f32.mrb[0].mxu0
  %v1908 = vpop.f32.mrb[0].mxu0
  %1909 = vdwg.mxu0
  %v1912 = vrot.slane %v1904, 2
  %v1913 = vrot.slane %v1906, 2
  %v1916 = vadd.f32 %v1682, %v1912
  %v1917 = vadd.f32 %v1683, %v1913
  %v1918 = vxor.u32 %v1916, 2147483648
  %v1919 = vmul.f32 %v1918, 1.442695
  %v1920 = vpow.pop %v1919
  %v1921 = vadd.f32 %v1920, 1.0
  %v1922 = vrcp.pop %v1921
  %v1923 = vmul.f32 1.0, %v1922
  %v1924 = vtanh.pop %v1917
  %v1925 = vxor.u32 %v1917, 2147483648
  %v1926 = vmul.f32 %v1925, 1.442695
  %v1927 = vpow.pop %v1926
  %v1928 = vadd.f32 %v1927, 1.0
  %v1929 = vrcp.pop %v1928
  %v1930 = vmul.f32 1.0, %v1929
  %v1932 = vrot.slane %v1851, 6
  %v1934 = vmul.f32 %v1923, %v1932
  %v1935 = vmul.f32 %v1923, %v1924
  %1937 = vrot.lane.b32.xlu0 %v1935, 64
  %v1938 = vpop.permute.xlu0 %1937
  %v1940 = vadd.f32 %v1934, %v1938
  %v1941 = vtanh.pop %v1940
  %v1942 = vmul.f32 %v1930, %v1941
  %1944 = vrot.lane.b32.xlu0 %v1942, 64
  %v1945 = vpop.permute.xlu0 %1944
  %s1947 = scalar_lea.vmem [#allocation2], 6
  %vm1948 = vcmask 523270
  %1949 = vst.msk [vmem:[%s1947 - $0x6] sm:$0xc0] %vm1948, %v1945
  %v1952 = vrot.slane %v1510, 6
  %v1953 = vrot.slane %v1512, 6
  %v1956 = vsel %vm1553, %v1514, %v1952
  %v1957 = vsel %vm1554, %v1516, %v1953
  %v1958 = vpack.c.bf16 %v1942, %v1942
  %v1960 = vrot.slane %v1958, 3
  %1961 = vrot.lane.b32.xlu0 %v1960, 64
  %v1962 = vpop.permute.xlu0 %1961
  %v1964 = vsel %vm1603, %v1962, 0
  %1966 = vmatprep.subr.bf16.mxu0 %v1588
  %1967 = vmatpush1.bf16.msra.mxu0 %v1587
  %1968 = vmatprep.subr.bf16.mxu0 %v1590
  %1969 = vmatpush1.bf16.msra.mxu0 %v1589
  %1970 = vmatprep.subr.bf16.mxu0 %v1592
  %1971 = vmatpush1.bf16.msra.mxu0 %v1591
  %1972 = vmatprep.subr.bf16.mxu0 %v1594
  %1973 = vmatpush1.bf16.msra.mxu0 %v1593
  %1974 = vmatprep.subr.bf16.mxu0 0
  %1975 = vmatpush1.bf16.msra.mxu0 0
  %1976 = vmatprep.subr.bf16.mxu0 0
  %1977 = vmatpush1.bf16.msra.mxu0 0
  %1978 = vmatprep.subr.bf16.mxu0 0
  %1979 = vmatpush1.bf16.msra.mxu0 0
  %1980 = vmatprep.subr.bf16.mxu0 0
  %1981 = vmatpush1.bf16.msra.mxu0 0
  %1982 = vmatprep.subr.bf16.mxu0 0
  %1983 = vmatpush1.bf16.msra.mxu0 0
  %1984 = vmatprep.subr.bf16.mxu0 0
  %1985 = vmatpush1.bf16.msra.mxu0 0
  %1986 = vmatprep.subr.bf16.mxu0 0
  %1987 = vmatpush1.bf16.msra.mxu0 0
  %1988 = vmatprep.subr.bf16.mxu0 0
  %1989 = vmatpush1.bf16.msra.mxu0 0
  %1990 = vmatprep.subr.bf16.mxu0 0
  %1991 = vmatpush1.bf16.msra.mxu0 0
  %1992 = vmatprep.subr.bf16.mxu0 0
  %1993 = vmatpush1.bf16.msra.mxu0 0
  %1994 = vmatprep.subr.bf16.mxu0 0
  %1995 = vmatpush1.bf16.msra.mxu0 0
  %1996 = vmatprep.subr.bf16.mxu0 0
  %1997 = vmatpush1.bf16.msra.mxu0 0
  %1998 = vmatprep.mubr.bf16.mxu0 0
  %1999 = vmatmul.mubr.bf16.gmra.mrb[0].mxu0 %v1964
  %v2000 = vpop.f32.mrb[0].mxu0
  %v2001 = vadd.f32 0.0, %v2000
  %v2002 = vpop.f32.mrb[0].mxu0
  %v2003 = vadd.f32 0.0, %v2002
  %v2004 = vpop.f32.mrb[0].mxu0
  %v2005 = vpop.f32.mrb[0].mxu0
  %2006 = vdwg.mxu0
  %v2007 = vadd.f32 %v1956, %v2001
  %v2008 = vadd.f32 %v1957, %v2003
  %v2009 = vxor.u32 %v2007, 2147483648
  %v2010 = vmul.f32 %v2009, 1.442695
  %v2011 = vpow.pop %v2010
  %v2012 = vadd.f32 %v2011, 1.0
  %v2013 = vrcp.pop %v2012
  %v2014 = vmul.f32 1.0, %v2013
  %v2015 = vtanh.pop %v2008
  %v2016 = vxor.u32 %v2008, 2147483648
  %v2017 = vmul.f32 %v2016, 1.442695
  %v2018 = vpow.pop %v2017
  %v2019 = vadd.f32 %v2018, 1.0
  %v2020 = vrcp.pop %v2019
  %v2021 = vmul.f32 1.0, %v2020
  %v2023 = vrot.slane %v1940, 6
  %v2025 = vmul.f32 %v2014, %v2023
  %v2026 = vmul.f32 %v2014, %v2015
  %2028 = vrot.lane.b32.xlu0 %v2026, 64
  %v2029 = vpop.permute.xlu0 %2028
  %v2031 = vadd.f32 %v2025, %v2029
  %v2032 = vtanh.pop %v2031
  %v2033 = vmul.f32 %v2021, %v2032
  %2035 = vrot.lane.b32.xlu0 %v2033, 64
  %v2036 = vpop.permute.xlu0 %2035
  %s2038 = scalar_lea.vmem [#allocation2], 8
  %2039 = vst.msk [vmem:[%s2038] sm:$0x3] %vm1676, %v2036
  %v2040 = vrot.slane %v1510, 2
  %v2041 = vrot.slane %v1512, 2
  %v2044 = vsel %vm1553, %v1514, %v2040
  %v2045 = vsel %vm1554, %v1516, %v2041
  %v2046 = vpack.c.bf16 %v2033, %v2033
  %2048 = vrot.lane.b32.xlu0 %v2046, 64
  %v2049 = vpop.permute.xlu0 %2048
  %v2051 = vsel %vm1603, %v2049, 0
  %2053 = vmatprep.subr.bf16.mxu0 %v1588
  %2054 = vmatpush1.bf16.msra.mxu0 %v1587
  %2055 = vmatprep.subr.bf16.mxu0 %v1590
  %2056 = vmatpush1.bf16.msra.mxu0 %v1589
  %2057 = vmatprep.subr.bf16.mxu0 %v1592
  %2058 = vmatpush1.bf16.msra.mxu0 %v1591
  %2059 = vmatprep.subr.bf16.mxu0 %v1594
  %2060 = vmatpush1.bf16.msra.mxu0 %v1593
  %2061 = vmatprep.subr.bf16.mxu0 0
  %2062 = vmatpush1.bf16.msra.mxu0 0
  %2063 = vmatprep.subr.bf16.mxu0 0
  %2064 = vmatpush1.bf16.msra.mxu0 0
  %2065 = vmatprep.subr.bf16.mxu0 0
  %2066 = vmatpush1.bf16.msra.mxu0 0
  %2067 = vmatprep.subr.bf16.mxu0 0
  %2068 = vmatpush1.bf16.msra.mxu0 0
  %2069 = vmatprep.subr.bf16.mxu0 0
  %2070 = vmatpush1.bf16.msra.mxu0 0
  %2071 = vmatprep.subr.bf16.mxu0 0
  %2072 = vmatpush1.bf16.msra.mxu0 0
  %2073 = vmatprep.subr.bf16.mxu0 0
  %2074 = vmatpush1.bf16.msra.mxu0 0
  %2075 = vmatprep.subr.bf16.mxu0 0
  %2076 = vmatpush1.bf16.msra.mxu0 0
  %2077 = vmatprep.subr.bf16.mxu0 0
  %2078 = vmatpush1.bf16.msra.mxu0 0
  %2079 = vmatprep.subr.bf16.mxu0 0
  %2080 = vmatpush1.bf16.msra.mxu0 0
  %2081 = vmatprep.subr.bf16.mxu0 0
  %2082 = vmatpush1.bf16.msra.mxu0 0
  %2083 = vmatprep.subr.bf16.mxu0 0
  %2084 = vmatpush1.bf16.msra.mxu0 0
  %2085 = vmatprep.mubr.bf16.mxu0 0
  %2086 = vmatmul.mubr.bf16.gmra.mrb[0].mxu0 %v2051
  %v2087 = vpop.f32.mrb[0].mxu0
  %v2088 = vadd.f32 0.0, %v2087
  %v2089 = vpop.f32.mrb[0].mxu0
  %v2090 = vadd.f32 0.0, %v2089
  %v2091 = vpop.f32.mrb[0].mxu0
  %v2092 = vpop.f32.mrb[0].mxu0
  %2093 = vdwg.mxu0
  %v2096 = vrot.slane %v2088, 6
  %v2097 = vrot.slane %v2090, 6
  %v2100 = vadd.f32 %v2044, %v2096
  %v2101 = vadd.f32 %v2045, %v2097
  %v2102 = vxor.u32 %v2100, 2147483648
  %v2103 = vmul.f32 %v2102, 1.442695
  %v2104 = vpow.pop %v2103
  %v2105 = vadd.f32 %v2104, 1.0
  %v2106 = vrcp.pop %v2105
  %v2107 = vmul.f32 1.0, %v2106
  %v2108 = vtanh.pop %v2101
  %v2109 = vxor.u32 %v2101, 2147483648
  %v2110 = vmul.f32 %v2109, 1.442695
  %v2111 = vpow.pop %v2110
  %v2112 = vadd.f32 %v2111, 1.0
  %v2113 = vrcp.pop %v2112
  %v2114 = vmul.f32 1.0, %v2113
  %v2116 = vrot.slane %v2031, 6
  %v2118 = vmul.f32 %v2107, %v2116
  %v2119 = vmul.f32 %v2107, %v2108
  %2121 = vrot.lane.b32.xlu0 %v2119, 64
  %v2122 = vpop.permute.xlu0 %2121
  %v2124 = vadd.f32 %v2118, %v2122
  %v2125 = vtanh.pop %v2124
  %v2126 = vmul.f32 %v2114, %v2125
  %2128 = vrot.lane.b32.xlu0 %v2126, 64
  %v2129 = vpop.permute.xlu0 %2128
  %s2131 = scalar_lea.vmem [#allocation2], 10
  %2132 = vst.msk [vmem:[%s2131 - $0x2] sm:$0xc] %vm1770, %v2129
  %v2133 = vpack.c.bf16 %v2126, %v2126
  %v2135 = vrot.slane %v2133, 1
  %2136 = vrot.lane.b32.xlu0 %v2135, 64
  %v2137 = vpop.permute.xlu0 %2136
  %v2139 = vsel %vm1603, %v2137, 0
  %2141 = vmatprep.subr.bf16.mxu0 %v1588
  %2142 = vmatpush1.bf16.msra.mxu0 %v1587
  %2143 = vmatprep.subr.bf16.mxu0 %v1590
  %2144 = vmatpush1.bf16.msra.mxu0 %v1589
  %2145 = vmatprep.subr.bf16.mxu0 %v1592
  %2146 = vmatpush1.bf16.msra.mxu0 %v1591
  %2147 = vmatprep.subr.bf16.mxu0 %v1594
  %2148 = vmatpush1.bf16.msra.mxu0 %v1593
  %2149 = vmatprep.subr.bf16.mxu0 0
  %2150 = vmatpush1.bf16.msra.mxu0 0
  %2151 = vmatprep.subr.bf16.mxu0 0
  %2152 = vmatpush1.bf16.msra.mxu0 0
  %2153 = vmatprep.subr.bf16.mxu0 0
  %2154 = vmatpush1.bf16.msra.mxu0 0
  %2155 = vmatprep.subr.bf16.mxu0 0
  %2156 = vmatpush1.bf16.msra.mxu0 0
  %2157 = vmatprep.subr.bf16.mxu0 0
  %2158 = vmatpush1.bf16.msra.mxu0 0
  %2159 = vmatprep.subr.bf16.mxu0 0
  %2160 = vmatpush1.bf16.msra.mxu0 0
  %2161 = vmatprep.subr.bf16.mxu0 0
  %2162 = vmatpush1.bf16.msra.mxu0 0
  %2163 = vmatprep.subr.bf16.mxu0 0
  %2164 = vmatpush1.bf16.msra.mxu0 0
  %2165 = vmatprep.subr.bf16.mxu0 0
  %2166 = vmatpush1.bf16.msra.mxu0 0
  %2167 = vmatprep.subr.bf16.mxu0 0
  %2168 = vmatpush1.bf16.msra.mxu0 0
  %2169 = vmatprep.subr.bf16.mxu0 0
  %2170 = vmatpush1.bf16.msra.mxu0 0
  %2171 = vmatprep.subr.bf16.mxu0 0
  %2172 = vmatpush1.bf16.msra.mxu0 0
  %2173 = vmatprep.mubr.bf16.mxu0 0
  %2174 = vmatmul.mubr.bf16.gmra.mrb[0].mxu0 %v2139
  %v2175 = vpop.f32.mrb[0].mxu0
  %v2176 = vadd.f32 0.0, %v2175
  %v2177 = vpop.f32.mrb[0].mxu0
  %v2178 = vadd.f32 0.0, %v2177
  %v2179 = vpop.f32.mrb[0].mxu0
  %v2180 = vpop.f32.mrb[0].mxu0
  %2181 = vdwg.mxu0
  %v2184 = vrot.slane %v2176, 4
  %v2185 = vrot.slane %v2178, 4
  %v2188 = vadd.f32 %v1956, %v2184
  %v2189 = vadd.f32 %v1957, %v2185
  %v2190 = vxor.u32 %v2188, 2147483648
  %v2191 = vmul.f32 %v2190, 1.442695
  %v2192 = vpow.pop %v2191
  %v2193 = vadd.f32 %v2192, 1.0
  %v2194 = vrcp.pop %v2193
  %v2195 = vmul.f32 1.0, %v2194
  %v2196 = vtanh.pop %v2189
  %v2197 = vxor.u32 %v2189, 2147483648
  %v2198 = vmul.f32 %v2197, 1.442695
  %v2199 = vpow.pop %v2198
  %v2200 = vadd.f32 %v2199, 1.0
  %v2201 = vrcp.pop %v2200
  %v2202 = vmul.f32 1.0, %v2201
  %v2204 = vrot.slane %v2124, 6
  %v2206 = vmul.f32 %v2195, %v2204
  %v2207 = vmul.f32 %v2195, %v2196
  %2209 = vrot.lane.b32.xlu0 %v2207, 64
  %v2210 = vpop.permute.xlu0 %2209
  %v2212 = vadd.f32 %v2206, %v2210
  %v2213 = vtanh.pop %v2212
  %v2214 = vmul.f32 %v2202, %v2213
  %2216 = vrot.lane.b32.xlu0 %v2214, 64
  %v2217 = vpop.permute.xlu0 %2216
  %s2219 = scalar_lea.vmem [#allocation2], 12
  %2220 = vst.msk [vmem:[%s2219 - $0x4] sm:$0x30] %vm1859, %v2217
  %v2221 = vpack.c.bf16 %v2214, %v2214
  %v2223 = vrot.slane %v2221, 2
  %2224 = vrot.lane.b32.xlu0 %v2223, 64
  %v2225 = vpop.permute.xlu0 %2224
  %v2227 = vsel %vm1603, %v2225, 0
  %2229 = vmatprep.subr.bf16.mxu0 %v1588
  %2230 = vmatpush1.bf16.msra.mxu0 %v1587
  %2231 = vmatprep.subr.bf16.mxu0 %v1590
  %2232 = vmatpush1.bf16.msra.mxu0 %v1589
  %2233 = vmatprep.subr.bf16.mxu0 %v1592
  %2234 = vmatpush1.bf16.msra.mxu0 %v1591
  %2235 = vmatprep.subr.bf16.mxu0 %v1594
  %2236 = vmatpush1.bf16.msra.mxu0 %v1593
  %2237 = vmatprep.subr.bf16.mxu0 0
  %2238 = vmatpush1.bf16.msra.mxu0 0
  %2239 = vmatprep.subr.bf16.mxu0 0
  %2240 = vmatpush1.bf16.msra.mxu0 0
  %2241 = vmatprep.subr.bf16.mxu0 0
  %2242 = vmatpush1.bf16.msra.mxu0 0
  %2243 = vmatprep.subr.bf16.mxu0 0
  %2244 = vmatpush1.bf16.msra.mxu0 0
  %2245 = vmatprep.subr.bf16.mxu0 0
  %2246 = vmatpush1.bf16.msra.mxu0 0
  %2247 = vmatprep.subr.bf16.mxu0 0
  %2248 = vmatpush1.bf16.msra.mxu0 0
  %2249 = vmatprep.subr.bf16.mxu0 0
  %2250 = vmatpush1.bf16.msra.mxu0 0
  %2251 = vmatprep.subr.bf16.mxu0 0
  %2252 = vmatpush1.bf16.msra.mxu0 0
  %2253 = vmatprep.subr.bf16.mxu0 0
  %2254 = vmatpush1.bf16.msra.mxu0 0
  %2255 = vmatprep.subr.bf16.mxu0 0
  %2256 = vmatpush1.bf16.msra.mxu0 0
  %2257 = vmatprep.subr.bf16.mxu0 0
  %2258 = vmatpush1.bf16.msra.mxu0 0
  %2259 = vmatprep.subr.bf16.mxu0 0
  %2260 = vmatpush1.bf16.msra.mxu0 0
  %2261 = vmatprep.mubr.bf16.mxu0 0
  %2262 = vmatmul.mubr.bf16.gmra.mrb[0].mxu0 %v2227
  %v2263 = vpop.f32.mrb[0].mxu0
  %v2264 = vadd.f32 0.0, %v2263
  %v2265 = vpop.f32.mrb[0].mxu0
  %v2266 = vadd.f32 0.0, %v2265
  %v2267 = vpop.f32.mrb[0].mxu0
  %v2268 = vpop.f32.mrb[0].mxu0
  %2269 = vdwg.mxu0
  %v2272 = vrot.slane %v2264, 2
  %v2273 = vrot.slane %v2266, 2
  %v2276 = vadd.f32 %v2044, %v2272
  %v2277 = vadd.f32 %v2045, %v2273
  %v2278 = vxor.u32 %v2276, 2147483648
  %v2279 = vmul.f32 %v2278, 1.442695
  %v2280 = vpow.pop %v2279
  %v2281 = vadd.f32 %v2280, 1.0
  %v2282 = vrcp.pop %v2281
  %v2283 = vmul.f32 1.0, %v2282
  %v2284 = vtanh.pop %v2277
  %v2285 = vxor.u32 %v2277, 2147483648
  %v2286 = vmul.f32 %v2285, 1.442695
  %v2287 = vpow.pop %v2286
  %v2288 = vadd.f32 %v2287, 1.0
  %v2289 = vrcp.pop %v2288
  %v2290 = vmul.f32 1.0, %v2289
  %v2292 = vrot.slane %v2212, 6
  %v2294 = vmul.f32 %v2283, %v2292
  %v2295 = vmul.f32 %v2283, %v2284
  %2297 = vrot.lane.b32.xlu0 %v2295, 64
  %v2298 = vpop.permute.xlu0 %2297
  %v2300 = vadd.f32 %v2294, %v2298
  %v2301 = vtanh.pop %v2300
  %v2302 = vmul.f32 %v2290, %v2301
  %2304 = vrot.lane.b32.xlu0 %v2302, 64
  %v2305 = vpop.permute.xlu0 %2304
  %s2307 = scalar_lea.vmem [#allocation2], 14
  %2308 = vst.msk [vmem:[%s2307 - $0x6] sm:$0xc0] %vm1948, %v2305
  %v2309 = vld [vmem:[%s4] sm:$0x1]
  %v2310 = vld [vmem:[%s5] sm:$0x1]
  %v2311 = vld [vmem:[#allocation2] sm:$0x3]
  %v2312 = vld [vmem:[%s2307] sm:$0x3]
  %vm2313 = vcmask 261120
  %v2314 = vsel %vm2313, %v2311, %v2312
  %v2315 = vsel %vm1676, %v2314, 0.0
  %2316 = vadd.xlane.f32.xlu0 %v2315
  %v2317 = vpop.xlane.xlu0 %2316
  %v2318 = vrcp.pop 64.0
  %v2319 = vmul.f32 %v2317, %v2318
  %v2320 = vsub.f32 %v2314, %v2319
  %v2321 = vmul.f32 %v2320, %v2320
  %v2322 = vsel %vm1676, %v2321, 0.0
  %2323 = vadd.xlane.f32.xlu0 %v2322
  %v2324 = vpop.xlane.xlu0 %2323
  %v2325 = vmul.f32 %v2324, %v2318
  %v2326 = vadd.f32 %v2325, 1e-05
  %v2327 = vrsqrt.pop %v2326
  %v2328 = vmul.f32 %v2320, %v2327
  %v2330 = vlaneseq
  %v2331 = vshrl.u32 %v2330, 7
  %v2332 = vsub.s32 0, %v2331
  %v2333 = vrot.slane %v2309, %v2332
  %v2335 = vmul.f32 %v2328, %v2333
  %v2337 = vlaneseq
  %v2338 = vshrl.u32 %v2337, 7
  %v2339 = vsub.s32 0, %v2338
  %v2340 = vrot.slane %v2310, %v2339
  %v2342 = vadd.f32 %v2335, %v2340
  %2343 = vst.msk [vmem:[%s6] sm:$0x3] %vm1676, %v2342
  %v2344 = vld [vmem:[%s1769] sm:$0x3]
  %v2345 = vld [vmem:[%s2219] sm:$0x3]
  %v2346 = vsel %vm2313, %v2344, %v2345
  %v2347 = vsel %vm1676, %v2346, 0.0
  %2348 = vadd.xlane.f32.xlu0 %v2347
  %v2349 = vpop.xlane.xlu0 %2348
  %v2350 = vmul.f32 %v2349, %v2318
  %v2351 = vsub.f32 %v2346, %v2350
  %v2352 = vmul.f32 %v2351, %v2351
  %v2353 = vsel %vm1676, %v2352, 0.0
  %2354 = vadd.xlane.f32.xlu0 %v2353
  %v2355 = vpop.xlane.xlu0 %2354
  %v2356 = vmul.f32 %v2355, %v2318
  %v2357 = vadd.f32 %v2356, 1e-05
  %v2358 = vrsqrt.pop %v2357
  %v2359 = vmul.f32 %v2351, %v2358
  %v2360 = vmul.f32 %v2359, %v2333
  %v2361 = vadd.f32 %v2360, %v2340
  %s2362 = scalar_lea.vmem %s6, 2
  %2363 = vst.msk [vmem:[%s2362] sm:$0x3] %vm1676, %v2361
  %v2364 = vld [vmem:[%s1858] sm:$0x3]
  %v2365 = vld [vmem:[%s2131] sm:$0x3]
  %v2366 = vsel %vm2313, %v2364, %v2365
  %v2367 = vsel %vm1676, %v2366, 0.0
  %2368 = vadd.xlane.f32.xlu0 %v2367
  %v2369 = vpop.xlane.xlu0 %2368
  %v2370 = vmul.f32 %v2369, %v2318
  %v2371 = vsub.f32 %v2366, %v2370
  %v2372 = vmul.f32 %v2371, %v2371
  %v2373 = vsel %vm1676, %v2372, 0.0
  %2374 = vadd.xlane.f32.xlu0 %v2373
  %v2375 = vpop.xlane.xlu0 %2374
  %v2376 = vmul.f32 %v2375, %v2318
  %v2377 = vadd.f32 %v2376, 1e-05
  %v2378 = vrsqrt.pop %v2377
  %v2379 = vmul.f32 %v2371, %v2378
  %v2380 = vmul.f32 %v2379, %v2333
  %v2381 = vadd.f32 %v2380, %v2340
  %s2382 = scalar_lea.vmem %s6, 4
  %2383 = vst.msk [vmem:[%s2382] sm:$0x3] %vm1676, %v2381
  %v2384 = vld [vmem:[%s1947] sm:$0x3]
  %v2385 = vld [vmem:[%s2038] sm:$0x3]
  %v2386 = vsel %vm2313, %v2384, %v2385
  %v2387 = vsel %vm1676, %v2386, 0.0
  %2388 = vadd.xlane.f32.xlu0 %v2387
  %v2389 = vpop.xlane.xlu0 %2388
  %v2390 = vmul.f32 %v2389, %v2318
  %v2391 = vsub.f32 %v2386, %v2390
  %v2392 = vmul.f32 %v2391, %v2391
  %v2393 = vsel %vm1676, %v2392, 0.0
  %2394 = vadd.xlane.f32.xlu0 %v2393
  %v2395 = vpop.xlane.xlu0 %2394
  %v2396 = vmul.f32 %v2395, %v2318
  %v2397 = vadd.f32 %v2396, 1e-05
  %v2398 = vrsqrt.pop %v2397
  %v2399 = vmul.f32 %v2391, %v2398
  %v2400 = vmul.f32 %v2399, %v2333
  %v2401 = vadd.f32 %v2400, %v2340
  %s2402 = scalar_lea.vmem %s6, 6
  %2403 = vst.msk [vmem:[%s2402] sm:$0x3] %vm1676, %v2401
  %v2404 = vld [vmem:[%s2038] sm:$0x3]
  %v2405 = vld [vmem:[%s1947] sm:$0x3]
  %v2406 = vsel %vm2313, %v2404, %v2405
  %v2407 = vsel %vm1676, %v2406, 0.0
  %2408 = vadd.xlane.f32.xlu0 %v2407
  %v2409 = vpop.xlane.xlu0 %2408
  %v2410 = vmul.f32 %v2409, %v2318
  %v2411 = vsub.f32 %v2406, %v2410
  %v2412 = vmul.f32 %v2411, %v2411
  %v2413 = vsel %vm1676, %v2412, 0.0
  %2414 = vadd.xlane.f32.xlu0 %v2413
  %v2415 = vpop.xlane.xlu0 %2414
  %v2416 = vmul.f32 %v2415, %v2318
  %v2417 = vadd.f32 %v2416, 1e-05
  %v2418 = vrsqrt.pop %v2417
  %v2419 = vmul.f32 %v2411, %v2418
  %v2420 = vmul.f32 %v2419, %v2333
  %v2421 = vadd.f32 %v2420, %v2340
  %s2422 = scalar_lea.vmem %s6, 8
  %2423 = vst.msk [vmem:[%s2422] sm:$0x3] %vm1676, %v2421
  %v2424 = vld [vmem:[%s2131] sm:$0x3]
  %v2425 = vld [vmem:[%s1858] sm:$0x3]
  %v2426 = vsel %vm2313, %v2424, %v2425
  %v2427 = vsel %vm1676, %v2426, 0.0
  %2428 = vadd.xlane.f32.xlu0 %v2427
  %v2429 = vpop.xlane.xlu0 %2428
  %v2430 = vmul.f32 %v2429, %v2318
  %v2431 = vsub.f32 %v2426, %v2430
  %v2432 = vmul.f32 %v2431, %v2431
  %v2433 = vsel %vm1676, %v2432, 0.0
  %2434 = vadd.xlane.f32.xlu0 %v2433
  %v2435 = vpop.xlane.xlu0 %2434
  %v2436 = vmul.f32 %v2435, %v2318
  %v2437 = vadd.f32 %v2436, 1e-05
  %v2438 = vrsqrt.pop %v2437
  %v2439 = vmul.f32 %v2431, %v2438
  %v2440 = vmul.f32 %v2439, %v2333
  %v2441 = vadd.f32 %v2440, %v2340
  %s2442 = scalar_lea.vmem %s6, 10
  %2443 = vst.msk [vmem:[%s2442] sm:$0x3] %vm1676, %v2441
  %v2444 = vld [vmem:[%s2219] sm:$0x3]
  %v2445 = vld [vmem:[%s1769] sm:$0x3]
  %v2446 = vsel %vm2313, %v2444, %v2445
  %v2447 = vsel %vm1676, %v2446, 0.0
  %2448 = vadd.xlane.f32.xlu0 %v2447
  %v2449 = vpop.xlane.xlu0 %2448
  %v2450 = vmul.f32 %v2449, %v2318
  %v2451 = vsub.f32 %v2446, %v2450
  %v2452 = vmul.f32 %v2451, %v2451
  %v2453 = vsel %vm1676, %v2452, 0.0
  %2454 = vadd.xlane.f32.xlu0 %v2453
  %v2455 = vpop.xlane.xlu0 %2454
  %v2456 = vmul.f32 %v2455, %v2318
  %v2457 = vadd.f32 %v2456, 1e-05
  %v2458 = vrsqrt.pop %v2457
  %v2459 = vmul.f32 %v2451, %v2458
  %v2460 = vmul.f32 %v2459, %v2333
  %v2461 = vadd.f32 %v2460, %v2340
  %s2462 = scalar_lea.vmem %s6, 12
  %2463 = vst.msk [vmem:[%s2462] sm:$0x3] %vm1676, %v2461
  %v2464 = vld [vmem:[%s2307] sm:$0x3]
  %v2465 = vld [vmem:[#allocation2] sm:$0x3]
  %v2466 = vsel %vm2313, %v2464, %v2465
  %v2467 = vsel %vm1676, %v2466, 0.0
  %2468 = vadd.xlane.f32.xlu0 %v2467
  %v2469 = vpop.xlane.xlu0 %2468
  %v2470 = vmul.f32 %v2469, %v2318
  %v2471 = vsub.f32 %v2466, %v2470
  %v2472 = vmul.f32 %v2471, %v2471
  %v2473 = vsel %vm1676, %v2472, 0.0
  %2474 = vadd.xlane.f32.xlu0 %v2473
  %v2475 = vpop.xlane.xlu0 %2474
  %v2476 = vmul.f32 %v2475, %v2318
  %v2477 = vadd.f32 %v2476, 1e-05
  %v2478 = vrsqrt.pop %v2477
  %v2479 = vmul.f32 %v2471, %v2478
  %v2480 = vmul.f32 %v2479, %v2333
  %v2481 = vadd.f32 %v2480, %v2340
  %s2482 = scalar_lea.vmem %s6, 14
  %2483 = vst.msk [vmem:[%s2482] sm:$0x3] %vm1676, %v2481
  // Predicated region
  $region26: #{deepconvlstm_forward.21} parent=0 // pred_check
    _
  $region27: #{deepconvlstm_forward.21} parent=0 // pred_check_branch
    %2485 = sbr.rel (0) target = $region29
  $region28: #{deepconvlstm_forward.21} parent=0 // pred_region
    _
  $region29: #{deepconvlstm_forward.21} parent=0 // pred_fallthru
    _
  // Predicated region
  $region30: #{deepconvlstm_forward.21} parent=0 // pred_check
    _
  $region31: #{deepconvlstm_forward.21} parent=0 // pred_check_branch
    %2487 = sbr.rel (0) target = $region33
  $region32: #{deepconvlstm_forward.21} parent=0 // pred_region
    _
  $region33: #{deepconvlstm_forward.21} parent=0 // pred_fallthru
    _

</llo_original>
